<compile_context>
chip_gen: v7x
topology: tpu7x:2x2x1
jax: 0.10.0
libtpu: 0.0.40
codegen_flags: <defaults>
</compile_context>

<pallas_src>
import functools

import jax
import jax.numpy as jnp
from jax.experimental import pallas as pl
from jax.experimental.pallas import tpu as pltpu


# ---------------------------------------------------------------------------
# Kernel 1: point MLP (3 -> 64 -> 128 -> 1024) + running max over N tiles.
# grid = (B, N // TN).  acc_ref is a persistent (1, 1024) f32 running max.
# NOTE: correctness of the accumulator relies on the N axis being the
# innermost, sequentially-iterated ("arbitrary") grid axis.
# ---------------------------------------------------------------------------
def _point_mlp_max_kernel(x_ref, w1_ref, s1_ref, b1_ref, w2_ref, s2_ref, b2_ref,
                          w3_ref, s3_ref, b3_ref, o_ref, acc_ref,
                          *, relu3, tile_n, total_n):
    n = pl.program_id(1)
    last = pl.num_programs(1) - 1

    @pl.when(n == 0)
    def _init():
        acc_ref[...] = jnp.full_like(acc_ref, -jnp.inf)

    # ---- layer 1 (Cin == 3): three VPU broadcast-FMAs, no K=3 MXU matmul ----
    x = x_ref[0]                              # (TN, 3) f32
    w1 = w1_ref[0]                            # (3, 64) f32
    h = (x[:, 0:1] * w1[0:1, :]
         + x[:, 1:2] * w1[1:2, :]
         + x[:, 2:3] * w1[2:3, :])            # (TN, 64) f32
    h = jnp.maximum(h * s1_ref[...] + b1_ref[...], 0.0)

    # ---- layer 2: (TN, 64) @ (64, 128), bf16 in / f32 acc ----
    h = jnp.dot(h.astype(jnp.bfloat16), w2_ref[...],
                preferred_element_type=jnp.float32)                 # (TN, 128)
    h = jnp.maximum(h * s2_ref[...] + b2_ref[...], 0.0)

    # ---- layer 3: (TN, 128) @ (128, 1024), bf16 in / f32 acc ----
    h = jnp.dot(h.astype(jnp.bfloat16), w3_ref[...],
                preferred_element_type=jnp.float32)                 # (TN, 1024)
    h = h * s3_ref[...] + b3_ref[...]
    # (The conv3 ReLU, when present, is applied after the max: relu∘max == max∘relu.)

    if total_n % tile_n != 0:
        # Only the tail tile has OOB-padded rows -- keep the mask out of the
        # steady-state loop and derive it from a cheap (TN, 1) iota.
        @pl.when(n != last)
        def _update():
            acc_ref[...] = jnp.maximum(acc_ref[...],
                                       jnp.max(h, axis=0, keepdims=True))

        @pl.when(n == last)
        def _update_tail():
            row = jax.lax.broadcasted_iota(jnp.int32, (tile_n, 1), 0) + n * tile_n
            hm = jnp.where(row < total_n, h, -jnp.inf)
            acc_ref[...] = jnp.maximum(acc_ref[...],
                                       jnp.max(hm, axis=0, keepdims=True))
    else:
        acc_ref[...] = jnp.maximum(acc_ref[...],
                                   jnp.max(h, axis=0, keepdims=True))

    @pl.when(n == last)
    def _finalize():
        g = acc_ref[...]                                            # (1, 1024)
        if relu3:
            g = jnp.maximum(g, 0.0)
        o_ref[0] = g


def point_mlp_max(x, w1_b, mlp, *, relu3, tile_n=1024):
    """Point MLP (3->64->128->1024) + max over N.  Returns (B, 1024) f32.

    x    : (B, N, 3) f32 points.
    w1_b : (1, 3, 64) shared, or (B, 3, 64) per-batch (transform folded in).
    mlp  : (s1, b1, w2, s2, b2, w3, s3, b3)   -- w2/w3 bf16, scales/biases f32.
    """
    B, N, Cin = x.shape
    s1, b1, w2, s2, b2, w3, s3, b3 = mlp
    C1 = w1_b.shape[-1]
    C2 = w2.shape[1]
    C3 = w3.shape[1]

    tn = min(tile_n, N)
    n_tiles = pl.cdiv(N, tn)

    w1_idx = ((lambda b, n: (b, 0, 0)) if w1_b.shape[0] == B
              else (lambda b, n: (0, 0, 0)))
    const2 = lambda b, n: (0, 0)

    kern = functools.partial(_point_mlp_max_kernel, relu3=relu3,
                             tile_n=tn, total_n=N)

    flops = 2 * B * N * (Cin * C1 + C1 * C2 + C2 * C3)
    bytes_accessed = (x.size * x.dtype.itemsize
                      + sum(a.size * a.dtype.itemsize
                            for a in (w1_b, s1, b1, w2, s2, b2, w3, s3, b3))
                      + B * C3 * 4)

    out = pl.pallas_call(
        kern,
        out_shape=jax.ShapeDtypeStruct((B, 1, C3), jnp.float32),
        grid=(B, n_tiles),
        in_specs=[
            pl.BlockSpec((1, tn, Cin), lambda b, n: (b, n, 0)),   # x tile
            pl.BlockSpec((1, Cin, C1), w1_idx),                   # layer-1 weight
            pl.BlockSpec((1, C1), const2),                        # s1
            pl.BlockSpec((1, C1), const2),                        # b1
            pl.BlockSpec((C1, C2), const2),                       # w2 (bf16)
            pl.BlockSpec((1, C2), const2),                        # s2
            pl.BlockSpec((1, C2), const2),                        # b2
            pl.BlockSpec((C2, C3), const2),                       # w3 (bf16)
            pl.BlockSpec((1, C3), const2),                        # s3
            pl.BlockSpec((1, C3), const2),                        # b3
        ],
        out_specs=pl.BlockSpec((1, 1, C3), lambda b, n: (b, 0, 0)),
        scratch_shapes=[pltpu.VMEM((1, C3), jnp.float32)],        # running max
        compiler_params=pltpu.CompilerParams(
            # B parallel (megacore on v7x), N sequential for the accumulator.
            dimension_semantics=("parallel", "arbitrary"),
            vmem_limit_bytes=32 * 1024 * 1024),   # safe on v7x's 64 MiB VMEM
        cost_estimate=pl.CostEstimate(flops=flops, transcendentals=0,
                                      bytes_accessed=bytes_accessed),
    )(x, w1_b, s1, b1, w2, s2, b2, w3, s3, b3)
    return out[:, 0, :]                                           # (B, C3)


# ---------------------------------------------------------------------------
# Kernel 2: batched FC head  (B,1024) -> 512 -> 256 -> K  (+ log_softmax).
# Single invocation over the whole batch (M = B matmuls).
# ---------------------------------------------------------------------------
def _fc_head_kernel(g_ref, hw1_ref, hs1_ref, hb1_ref, hw2_ref, hs2_ref, hb2_ref,
                    hw3_ref, hb3_ref, o_ref, *, logsoftmax):
    g = g_ref[...]                                                  # (B, 1024)
    z = jnp.dot(g.astype(jnp.bfloat16), hw1_ref[...],
                preferred_element_type=jnp.float32)                 # (B, 512)
    z = jnp.maximum(z * hs1_ref[...] + hb1_ref[...], 0.0)
    # TODO(synk): nn.Dropout(p=0.3) is identity in eval mode; train-mode RNG
    # masking is not implemented here.
    z = jnp.dot(z.astype(jnp.bfloat16), hw2_ref[...],
                preferred_element_type=jnp.float32)                 # (B, 256)
    z = jnp.maximum(z * hs2_ref[...] + hb2_ref[...], 0.0)
    z = jnp.dot(z, hw3_ref[...],
                preferred_element_type=jnp.float32) + hb3_ref[...]  # (B, K) f32
    if logsoftmax:
        z = z - jnp.max(z, axis=-1, keepdims=True)
        z = z - jnp.log(jnp.sum(jnp.exp(z), axis=-1, keepdims=True))
    o_ref[...] = z


def fc_head(g, head, *, logsoftmax):
    """FC head on the (B, 1024) global feature.  head = (hw1, hs1, hb1, hw2,
    hs2, hb2, hw3, hb3); hw1/hw2 bf16, hw3 and all scales/biases f32."""
    B, C3 = g.shape
    hw1, hs1, hb1, hw2, hs2, hb2, hw3, hb3 = head
    H1 = hw1.shape[1]
    H2 = hw2.shape[1]
    K = hw3.shape[1]

    flops = 2 * B * (C3 * H1 + H1 * H2 + H2 * K)
    bytes_accessed = (g.size * g.dtype.itemsize
                      + sum(a.size * a.dtype.itemsize for a in head)
                      + B * K * 4)

    return pl.pallas_call(
        functools.partial(_fc_head_kernel, logsoftmax=logsoftmax),
        out_shape=jax.ShapeDtypeStruct((B, K), jnp.float32),
        cost_estimate=pl.CostEstimate(
            flops=flops,
            transcendentals=(B * K if logsoftmax else 0),
            bytes_accessed=bytes_accessed),
    )(g, hw1, hs1, hb1, hw2, hs2, hb2, hw3, hb3)


# ---------------------------------------------------------------------------
# Parameter construction (deterministic, synthetic) + eval-mode BN fusion.
# Large matmul weights are stored in bf16 (MXU-native); scales/biases and the
# final (small) classifier/regressor weights stay f32.
# ---------------------------------------------------------------------------
def init_params(key, k_cls=2):
    keys = iter(jax.random.split(key, 80))

    def linear(in_c, out_c):
        w = jax.random.normal(next(keys), (out_c, in_c), jnp.float32) * 0.05
        b = jax.random.normal(next(keys), (out_c,), jnp.float32) * 0.05
        return w, b

    def bn(c):
        gamma = jax.random.uniform(next(keys), (c,), jnp.float32, 0.5, 1.5)
        beta = jax.random.normal(next(keys), (c,), jnp.float32) * 0.05
        rm = jax.random.normal(next(keys), (c,), jnp.float32) * 0.05
        rv = jax.random.uniform(next(keys), (c,), jnp.float32, 0.5, 1.5)
        return gamma, beta, rm, rv

    def fuse(in_c, out_c, *, dtype=jnp.float32, eps=1e-5):
        # BN(x @ W^T + b) in eval mode == (x @ W^T) * scale + bias
        (w, b), (gamma, beta, rm, rv) = linear(in_c, out_c), bn(out_c)
        s = gamma * jax.lax.rsqrt(rv + eps)
        bias = (b - rm) * s + beta
        return w.T.astype(dtype), s[None, :], bias[None, :]

    def plain(in_c, out_c, *, dtype=jnp.float32):
        w, b = linear(in_c, out_c)
        return w.T.astype(dtype), b[None, :]

    bf16 = jnp.bfloat16
    params = {}

    # --- STN3d point MLP: 3 -> 64 -> 128 -> 1024 (conv1/2/3 + bn1/2/3) ---
    w1, s1, b1 = fuse(3, 64)                    # layer-1 stays f32 (VPU FMA path)
    w2, s2, b2 = fuse(64, 128, dtype=bf16)
    w3, s3, b3 = fuse(128, 1024, dtype=bf16)
    params['stn_w1'] = w1[None]                 # (1, 3, 64) shared over batch
    params['stn_mlp'] = (s1, b1, w2, s2, b2, w3, s3, b3)

    # --- STN3d FC head: 1024 -> 512 -> 256 -> 9 (fc1/2/3 + bn4/5), +identity ---
    hw1, hs1, hb1 = fuse(1024, 512, dtype=bf16)
    hw2, hs2, hb2 = fuse(512, 256, dtype=bf16)
    hw3, hb3 = plain(256, 9)                    # final layer kept f32
    hb3 = hb3 + jnp.eye(3, dtype=jnp.float32).reshape(1, 9)   # fold identity bias
    params['stn_head'] = (hw1, hs1, hb1, hw2, hs2, hb2, hw3, hb3)

    # --- PointNetfeat point MLP: 3 -> 64 -> 128 -> 1024 (conv1/2/3 + bn1/2/3) ---
    fw1, fs1, fb1 = fuse(3, 64)
    fw2, fs2, fb2 = fuse(64, 128, dtype=bf16)
    fw3, fs3, fb3 = fuse(128, 1024, dtype=bf16)
    params['feat_w1'] = fw1                     # (3, 64) f32; trans folded per batch
    params['feat_mlp'] = (fs1, fb1, fw2, fs2, fb2, fw3, fs3, fb3)

    # --- Classifier head: 1024 -> 512 -> 256 -> k (fc1/2/3 + bn1/2) ---
    cw1, cs1, cb1 = fuse(1024, 512, dtype=bf16)
    cw2, cs2, cb2 = fuse(512, 256, dtype=bf16)
    cw3, cb3 = plain(256, k_cls)                # final classifier layer kept f32
    params['cls_head'] = (cw1, cs1, cb1, cw2, cs2, cb2, cw3, cb3)
    return params


# ---------------------------------------------------------------------------
# Full PointNetCls forward (global_feat=True, feature_transform=False)
# ---------------------------------------------------------------------------
def pointnet_cls_forward(x_bcn, params):
    # x_bcn: (B, 3, N) -- PyTorch Conv1d layout
    x = jnp.transpose(x_bcn, (0, 2, 1))                         # (B, N, 3)
    B = x.shape[0]

    # --- STN3d: point MLP + max (kernel 1), then batched FC head (kernel 2) ---
    stn_feat = point_mlp_max(x, params['stn_w1'], params['stn_mlp'], relu3=True)
    trans9 = fc_head(stn_feat, params['stn_head'], logsoftmax=False)   # (B, 9)
    trans = trans9.reshape(B, 3, 3)                             # (B, 3, 3)

    # Fold the 3x3 input transform into the feature layer-1 weights:
    # (x @ trans) @ W1 == x @ (trans @ W1).  Tiny (B,3,3)@(3,64), plain JAX.
    w1_eff = jnp.einsum('bij,jc->bic', trans, params['feat_w1'])  # (B, 3, 64)

    # --- PointNetfeat point MLP + max, then batched classifier head ---
    feat = point_mlp_max(x, w1_eff, params['feat_mlp'], relu3=False)   # (B, 1024)
    logp = fc_head(feat, params['cls_head'], logsoftmax=True)          # (B, k)

    trans_feat = None                                           # feature_transform=False
    return logp, trans, trans_feat


if __name__ == "__main__":
    key = jax.random.PRNGKey(0)
    kx, kp = jax.random.split(key)
    B, N, k_cls = 2, 256, 2
    x = jax.random.normal(kx, (B, 3, N), jnp.float32)           # (batch, 3, n_points)
    params = init_params(kp, k_cls=k_cls)

    fwd = jax.jit(pointnet_cls_forward)
    logp, trans, trans_feat = fwd(x, params)
    logp = jax.block_until_ready(logp)
    trans = jax.block_until_ready(trans)

    assert logp.shape == (B, k_cls)
    assert trans.shape == (B, 3, 3)
    assert trans_feat is None
    assert bool(jnp.all(jnp.isfinite(logp)))
    assert bool(jnp.all(jnp.isfinite(trans)))
    print("KERNEL_OK")
</pallas_src>

<mosaic_0001>
module attributes {stable_mosaic.version = 11 : i64} {
  func.func @_point_mlp_max_kernel(%arg0: i32, %arg1: i32, %arg2: memref<1x256x3xf32, #tpu.memory_space<vmem>>, %arg3: memref<1x3x64xf32, #tpu.memory_space<vmem>>, %arg4: memref<1x64xf32, #tpu.memory_space<vmem>>, %arg5: memref<1x64xf32, #tpu.memory_space<vmem>>, %arg6: memref<64x128xbf16, #tpu.memory_space<vmem>>, %arg7: memref<1x128xf32, #tpu.memory_space<vmem>>, %arg8: memref<1x128xf32, #tpu.memory_space<vmem>>, %arg9: memref<128x1024xbf16, #tpu.memory_space<vmem>>, %arg10: memref<1x1024xf32, #tpu.memory_space<vmem>>, %arg11: memref<1x1024xf32, #tpu.memory_space<vmem>>, %arg12: memref<1x1x1024xf32, #tpu.memory_space<vmem>>, %arg13: memref<1x1024xf32, #tpu.memory_space<vmem>>) attributes {dimension_semantics = [#tpu.dimension_semantics<parallel>, #tpu.dimension_semantics<arbitrary>], iteration_bounds = array<i64: 2, 1>, scalar_prefetch = 0 : i64, scratch_operands = 1 : i64, tpu.core_type = #tpu.core_type<tc>, window_params = [{transform_indices = @transform_0, window_bounds = array<i64: 1, 256, 3>}, {pipeline_mode = #tpu.pipeline_mode<synchronous>, transform_indices = @transform_1, window_bounds = array<i64: 1, 3, 64>}, {pipeline_mode = #tpu.pipeline_mode<synchronous>, transform_indices = @transform_2, window_bounds = array<i64: 1, 64>}, {pipeline_mode = #tpu.pipeline_mode<synchronous>, transform_indices = @transform_3, window_bounds = array<i64: 1, 64>}, {pipeline_mode = #tpu.pipeline_mode<synchronous>, transform_indices = @transform_4, window_bounds = array<i64: 64, 128>}, {pipeline_mode = #tpu.pipeline_mode<synchronous>, transform_indices = @transform_5, window_bounds = array<i64: 1, 128>}, {pipeline_mode = #tpu.pipeline_mode<synchronous>, transform_indices = @transform_6, window_bounds = array<i64: 1, 128>}, {pipeline_mode = #tpu.pipeline_mode<synchronous>, transform_indices = @transform_7, window_bounds = array<i64: 128, 1024>}, {pipeline_mode = #tpu.pipeline_mode<synchronous>, transform_indices = @transform_8, window_bounds = array<i64: 1, 1024>}, {pipeline_mode = #tpu.pipeline_mode<synchronous>, transform_indices = @transform_9, window_bounds = array<i64: 1, 1024>}, {transform_indices = @transform_10, window_bounds = array<i64: 1, 1, 1024>}]} {
    %c0_i32 = arith.constant 0 : i32
    %0 = arith.cmpi eq, %arg1, %c0_i32 : i32
    %1 = arith.extui %0 : i1 to i32
    %c0_i32_0 = arith.constant 0 : i32
    %2 = arith.cmpi ne, %1, %c0_i32_0 : i32
    scf.if %2 {
      %cst_32 = arith.constant 0xFF800000 : f32
      %60 = vector.broadcast %cst_32 : f32 to vector<1x1024xf32>
      %c0_33 = arith.constant 0 : index
      %c0_34 = arith.constant 0 : index
      %61 = vector.load %arg13[%c0_33, %c0_34] : memref<1x1024xf32, #tpu.memory_space<vmem>>, vector<1x1024xf32>
      tpu.vector_store %arg13[%c0_33, %c0_34], %60 {strides = array<i32>} : memref<1x1024xf32, #tpu.memory_space<vmem>>, vector<1x1024xf32>,
    } else {
    }
    %c0 = arith.constant 0 : index
    %c0_1 = arith.constant 0 : index
    %c0_2 = arith.constant 0 : index
    %3 = vector.load %arg2[%c0, %c0_1, %c0_2] : memref<1x256x3xf32, #tpu.memory_space<vmem>>, vector<1x256x3xf32>
    %4 = vector.shape_cast %3 : vector<1x256x3xf32> to vector<256x3xf32>
    %c0_3 = arith.constant 0 : index
    %c0_4 = arith.constant 0 : index
    %c0_5 = arith.constant 0 : index
    %5 = vector.load %arg3[%c0_3, %c0_4, %c0_5] : memref<1x3x64xf32, #tpu.memory_space<vmem>>, vector<1x3x64xf32>
    %6 = vector.shape_cast %5 : vector<1x3x64xf32> to vector<3x64xf32>
    %7 = vector.extract_strided_slice %4 {offsets = [0, 0], sizes = [256, 1], strides = [1, 1]} : vector<256x3xf32> to vector<256x1xf32>
    %8 = vector.extract_strided_slice %6 {offsets = [0, 0], sizes = [1, 64], strides = [1, 1]} : vector<3x64xf32> to vector<1x64xf32>
    %9 = vector.broadcast %7 : vector<256x1xf32> to vector<256x64xf32>
    %10 = vector.broadcast %8 : vector<1x64xf32> to vector<256x64xf32>
    %11 = arith.mulf %9, %10 : vector<256x64xf32>
    %12 = vector.extract_strided_slice %4 {offsets = [0, 1], sizes = [256, 1], strides = [1, 1]} : vector<256x3xf32> to vector<256x1xf32>
    %13 = vector.extract_strided_slice %6 {offsets = [1, 0], sizes = [1, 64], strides = [1, 1]} : vector<3x64xf32> to vector<1x64xf32>
    %14 = vector.broadcast %12 : vector<256x1xf32> to vector<256x64xf32>
    %15 = vector.broadcast %13 : vector<1x64xf32> to vector<256x64xf32>
    %16 = arith.mulf %14, %15 : vector<256x64xf32>
    %17 = arith.addf %11, %16 : vector<256x64xf32>
    %18 = vector.extract_strided_slice %4 {offsets = [0, 2], sizes = [256, 1], strides = [1, 1]} : vector<256x3xf32> to vector<256x1xf32>
    %19 = vector.extract_strided_slice %6 {offsets = [2, 0], sizes = [1, 64], strides = [1, 1]} : vector<3x64xf32> to vector<1x64xf32>
    %20 = vector.broadcast %18 : vector<256x1xf32> to vector<256x64xf32>
    %21 = vector.broadcast %19 : vector<1x64xf32> to vector<256x64xf32>
    %22 = arith.mulf %20, %21 : vector<256x64xf32>
    %23 = arith.addf %17, %22 : vector<256x64xf32>
    %c0_6 = arith.constant 0 : index
    %c0_7 = arith.constant 0 : index
    %24 = vector.load %arg4[%c0_6, %c0_7] : memref<1x64xf32, #tpu.memory_space<vmem>>, vector<1x64xf32>
    %25 = vector.broadcast %24 : vector<1x64xf32> to vector<256x64xf32>
    %26 = arith.mulf %23, %25 : vector<256x64xf32>
    %c0_8 = arith.constant 0 : index
    %c0_9 = arith.constant 0 : index
    %27 = vector.load %arg5[%c0_8, %c0_9] : memref<1x64xf32, #tpu.memory_space<vmem>>, vector<1x64xf32>
    %28 = vector.broadcast %27 : vector<1x64xf32> to vector<256x64xf32>
    %29 = arith.addf %26, %28 : vector<256x64xf32>
    %cst = arith.constant 0.000000e+00 : f32
    %30 = vector.broadcast %cst : f32 to vector<256x64xf32>
    %31 = arith.maximumf %29, %30 : vector<256x64xf32>
    %32 = arith.truncf %31 : vector<256x64xf32> to vector<256x64xbf16>
    %c0_10 = arith.constant 0 : index
    %c0_11 = arith.constant 0 : index
    %33 = vector.load %arg6[%c0_10, %c0_11] : memref<64x128xbf16, #tpu.memory_space<vmem>>, vector<64x128xbf16>
    %cst_12 = arith.constant dense<0.000000e+00> : vector<256x128xf32>
    %34 = tpu.matmul %32, %33, %cst_12 {dimension_numbers = #tpu.dot_dimension_numbers<[1], [0], [0], [1], [0, 0, 1, 1], [], []>} : vector<256x64xbf16>, vector<64x128xbf16>, vector<256x128xf32> -> vector<256x128xf32>
    %c0_13 = arith.constant 0 : index
    %c0_14 = arith.constant 0 : index
    %35 = vector.load %arg7[%c0_13, %c0_14] : memref<1x128xf32, #tpu.memory_space<vmem>>, vector<1x128xf32>
    %36 = vector.broadcast %35 : vector<1x128xf32> to vector<256x128xf32>
    %37 = arith.mulf %34, %36 : vector<256x128xf32>
    %c0_15 = arith.constant 0 : index
    %c0_16 = arith.constant 0 : index
    %38 = vector.load %arg8[%c0_15, %c0_16] : memref<1x128xf32, #tpu.memory_space<vmem>>, vector<1x128xf32>
    %39 = vector.broadcast %38 : vector<1x128xf32> to vector<256x128xf32>
    %40 = arith.addf %37, %39 : vector<256x128xf32>
    %cst_17 = arith.constant 0.000000e+00 : f32
    %41 = vector.broadcast %cst_17 : f32 to vector<256x128xf32>
    %42 = arith.maximumf %40, %41 : vector<256x128xf32>
    %43 = arith.truncf %42 : vector<256x128xf32> to vector<256x128xbf16>
    %c0_18 = arith.constant 0 : index
    %c0_19 = arith.constant 0 : index
    %44 = vector.load %arg9[%c0_18, %c0_19] : memref<128x1024xbf16, #tpu.memory_space<vmem>>, vector<128x1024xbf16>
    %cst_20 = arith.constant dense<0.000000e+00> : vector<256x1024xf32>
    %45 = tpu.matmul %43, %44, %cst_20 {dimension_numbers = #tpu.dot_dimension_numbers<[1], [0], [0], [1], [0, 0, 1, 1], [], []>} : vector<256x128xbf16>, vector<128x1024xbf16>, vector<256x1024xf32> -> vector<256x1024xf32>
    %c0_21 = arith.constant 0 : index
    %c0_22 = arith.constant 0 : index
    %46 = vector.load %arg10[%c0_21, %c0_22] : memref<1x1024xf32, #tpu.memory_space<vmem>>, vector<1x1024xf32>
    %47 = vector.broadcast %46 : vector<1x1024xf32> to vector<256x1024xf32>
    %48 = arith.mulf %45, %47 : vector<256x1024xf32>
    %c0_23 = arith.constant 0 : index
    %c0_24 = arith.constant 0 : index
    %49 = vector.load %arg11[%c0_23, %c0_24] : memref<1x1024xf32, #tpu.memory_space<vmem>>, vector<1x1024xf32>
    %50 = vector.broadcast %49 : vector<1x1024xf32> to vector<256x1024xf32>
    %51 = arith.addf %48, %50 : vector<256x1024xf32>
    %c0_25 = arith.constant 0 : index
    %c0_26 = arith.constant 0 : index
    %52 = vector.load %arg13[%c0_25, %c0_26] : memref<1x1024xf32, #tpu.memory_space<vmem>>, vector<1x1024xf32>
    %cst_27 = arith.constant dense<0xFF800000> : vector<1024xf32>
    %53 = vector.multi_reduction <maximumf>, %51, %cst_27 [0] : vector<256x1024xf32> to vector<1024xf32>
    %54 = vector.shape_cast %53 : vector<1024xf32> to vector<1x1024xf32>
    %55 = arith.maximumf %52, %54 : vector<1x1024xf32>
    %c0_28 = arith.constant 0 : index
    %c0_29 = arith.constant 0 : index
    %56 = vector.load %arg13[%c0_28, %c0_29] : memref<1x1024xf32, #tpu.memory_space<vmem>>, vector<1x1024xf32>
    tpu.vector_store %arg13[%c0_28, %c0_29], %55 {strides = array<i32>} : memref<1x1024xf32, #tpu.memory_space<vmem>>, vector<1x1024xf32>,
    %c0_i32_30 = arith.constant 0 : i32
    %57 = arith.cmpi eq, %arg1, %c0_i32_30 : i32
    %58 = arith.extui %57 : i1 to i32
    %c0_i32_31 = arith.constant 0 : i32
    %59 = arith.cmpi ne, %58, %c0_i32_31 : i32
    scf.if %59 {
      %c0_32 = arith.constant 0 : index
      %c0_33 = arith.constant 0 : index
      %60 = vector.load %arg13[%c0_32, %c0_33] : memref<1x1024xf32, #tpu.memory_space<vmem>>, vector<1x1024xf32>
      %cst_34 = arith.constant 0.000000e+00 : f32
      %61 = vector.broadcast %cst_34 : f32 to vector<1x1024xf32>
      %62 = arith.maximumf %60, %61 : vector<1x1024xf32>
      %c0_35 = arith.constant 0 : index
      %c0_36 = arith.constant 0 : index
      %c0_37 = arith.constant 0 : index
      %63 = vector.load %arg12[%c0_35, %c0_36, %c0_37] : memref<1x1x1024xf32, #tpu.memory_space<vmem>>, vector<1x1x1024xf32>
      %64 = vector.shape_cast %63 : vector<1x1x1024xf32> to vector<1x1024xf32>
      %65 = vector.shape_cast %62 : vector<1x1024xf32> to vector<1x1x1024xf32>
      tpu.vector_store %arg12[%c0_35, %c0_36, %c0_37], %65 {strides = array<i32>} : memref<1x1x1024xf32, #tpu.memory_space<vmem>>, vector<1x1x1024xf32>,
    } else {
    }
    return
  }
  func.func @transform_0(%arg0: i32, %arg1: i32) -> (i32, i32, i32) {
    %c0_i32 = arith.constant 0 : i32
    %c0_i32_0 = arith.constant 0 : i32
    return %arg0, %arg1, %c0_i32 : i32, i32, i32
  }
  func.func @transform_1(%arg0: i32, %arg1: i32) -> (i32, i32, i32) {
    %c0_i32 = arith.constant 0 : i32
    %c0_i32_0 = arith.constant 0 : i32
    %c0_i32_1 = arith.constant 0 : i32
    %c0_i32_2 = arith.constant 0 : i32
    return %c0_i32, %c0_i32_0, %c0_i32_1 : i32, i32, i32
  }
  func.func @transform_2(%arg0: i32, %arg1: i32) -> (i32, i32) {
    %c0_i32 = arith.constant 0 : i32
    %c0_i32_0 = arith.constant 0 : i32
    %c0_i32_1 = arith.constant 0 : i32
    return %c0_i32, %c0_i32_0 : i32, i32
  }
  func.func @transform_3(%arg0: i32, %arg1: i32) -> (i32, i32) {
    %c0_i32 = arith.constant 0 : i32
    %c0_i32_0 = arith.constant 0 : i32
    %c0_i32_1 = arith.constant 0 : i32
    return %c0_i32, %c0_i32_0 : i32, i32
  }
  func.func @transform_4(%arg0: i32, %arg1: i32) -> (i32, i32) {
    %c0_i32 = arith.constant 0 : i32
    %c0_i32_0 = arith.constant 0 : i32
    %c0_i32_1 = arith.constant 0 : i32
    return %c0_i32, %c0_i32_0 : i32, i32
  }
  func.func @transform_5(%arg0: i32, %arg1: i32) -> (i32, i32) {
    %c0_i32 = arith.constant 0 : i32
    %c0_i32_0 = arith.constant 0 : i32
    %c0_i32_1 = arith.constant 0 : i32
    return %c0_i32, %c0_i32_0 : i32, i32
  }
  func.func @transform_6(%arg0: i32, %arg1: i32) -> (i32, i32) {
    %c0_i32 = arith.constant 0 : i32
    %c0_i32_0 = arith.constant 0 : i32
    %c0_i32_1 = arith.constant 0 : i32
    return %c0_i32, %c0_i32_0 : i32, i32
  }
  func.func @transform_7(%arg0: i32, %arg1: i32) -> (i32, i32) {
    %c0_i32 = arith.constant 0 : i32
    %c0_i32_0 = arith.constant 0 : i32
    %c0_i32_1 = arith.constant 0 : i32
    return %c0_i32, %c0_i32_0 : i32, i32
  }
  func.func @transform_8(%arg0: i32, %arg1: i32) -> (i32, i32) {
    %c0_i32 = arith.constant 0 : i32
    %c0_i32_0 = arith.constant 0 : i32
    %c0_i32_1 = arith.constant 0 : i32
    return %c0_i32, %c0_i32_0 : i32, i32
  }
  func.func @transform_9(%arg0: i32, %arg1: i32) -> (i32, i32) {
    %c0_i32 = arith.constant 0 : i32
    %c0_i32_0 = arith.constant 0 : i32
    %c0_i32_1 = arith.constant 0 : i32
    return %c0_i32, %c0_i32_0 : i32, i32
  }
  func.func @transform_10(%arg0: i32, %arg1: i32) -> (i32, i32, i32) {
    %c0_i32 = arith.constant 0 : i32
    %c0_i32_0 = arith.constant 0 : i32
    %c0_i32_1 = arith.constant 0 : i32
    return %arg0, %c0_i32, %c0_i32_0 : i32, i32, i32
  }
}

module attributes {stable_mosaic.version = 11 : i64} {
  func.func @_point_mlp_max_kernel(%arg0: i32, %arg1: i32, %arg2: memref<1x256x3xf32, #tpu.memory_space<vmem>>, %arg3: memref<1x3x64xf32, #tpu.memory_space<vmem>>, %arg4: memref<1x64xf32, #tpu.memory_space<vmem>>, %arg5: memref<1x64xf32, #tpu.memory_space<vmem>>, %arg6: memref<64x128xbf16, #tpu.memory_space<vmem>>, %arg7: memref<1x128xf32, #tpu.memory_space<vmem>>, %arg8: memref<1x128xf32, #tpu.memory_space<vmem>>, %arg9: memref<128x1024xbf16, #tpu.memory_space<vmem>>, %arg10: memref<1x1024xf32, #tpu.memory_space<vmem>>, %arg11: memref<1x1024xf32, #tpu.memory_space<vmem>>, %arg12: memref<1x1x1024xf32, #tpu.memory_space<vmem>>, %arg13: memref<1x1024xf32, #tpu.memory_space<vmem>>) attributes {dimension_semantics = [#tpu.dimension_semantics<parallel>, #tpu.dimension_semantics<arbitrary>], iteration_bounds = array<i64: 2, 1>, scalar_prefetch = 0 : i64, scratch_operands = 1 : i64, tpu.core_type = #tpu.core_type<tc>, window_params = [{transform_indices = @transform_0, window_bounds = array<i64: 1, 256, 3>}, {transform_indices = @transform_1, window_bounds = array<i64: 1, 3, 64>}, {pipeline_mode = #tpu.pipeline_mode<synchronous>, transform_indices = @transform_2, window_bounds = array<i64: 1, 64>}, {pipeline_mode = #tpu.pipeline_mode<synchronous>, transform_indices = @transform_3, window_bounds = array<i64: 1, 64>}, {pipeline_mode = #tpu.pipeline_mode<synchronous>, transform_indices = @transform_4, window_bounds = array<i64: 64, 128>}, {pipeline_mode = #tpu.pipeline_mode<synchronous>, transform_indices = @transform_5, window_bounds = array<i64: 1, 128>}, {pipeline_mode = #tpu.pipeline_mode<synchronous>, transform_indices = @transform_6, window_bounds = array<i64: 1, 128>}, {pipeline_mode = #tpu.pipeline_mode<synchronous>, transform_indices = @transform_7, window_bounds = array<i64: 128, 1024>}, {pipeline_mode = #tpu.pipeline_mode<synchronous>, transform_indices = @transform_8, window_bounds = array<i64: 1, 1024>}, {pipeline_mode = #tpu.pipeline_mode<synchronous>, transform_indices = @transform_9, window_bounds = array<i64: 1, 1024>}, {transform_indices = @transform_10, window_bounds = array<i64: 1, 1, 1024>}]} {
    %c0_i32 = arith.constant 0 : i32
    %0 = arith.cmpi eq, %arg1, %c0_i32 : i32
    %1 = arith.extui %0 : i1 to i32
    %c0_i32_0 = arith.constant 0 : i32
    %2 = arith.cmpi ne, %1, %c0_i32_0 : i32
    scf.if %2 {
      %cst_32 = arith.constant 0xFF800000 : f32
      %60 = vector.broadcast %cst_32 : f32 to vector<1x1024xf32>
      %c0_33 = arith.constant 0 : index
      %c0_34 = arith.constant 0 : index
      %61 = vector.load %arg13[%c0_33, %c0_34] : memref<1x1024xf32, #tpu.memory_space<vmem>>, vector<1x1024xf32>
      tpu.vector_store %arg13[%c0_33, %c0_34], %60 {strides = array<i32>} : memref<1x1024xf32, #tpu.memory_space<vmem>>, vector<1x1024xf32>,
    } else {
    }
    %c0 = arith.constant 0 : index
    %c0_1 = arith.constant 0 : index
    %c0_2 = arith.constant 0 : index
    %3 = vector.load %arg2[%c0, %c0_1, %c0_2] : memref<1x256x3xf32, #tpu.memory_space<vmem>>, vector<1x256x3xf32>
    %4 = vector.shape_cast %3 : vector<1x256x3xf32> to vector<256x3xf32>
    %c0_3 = arith.constant 0 : index
    %c0_4 = arith.constant 0 : index
    %c0_5 = arith.constant 0 : index
    %5 = vector.load %arg3[%c0_3, %c0_4, %c0_5] : memref<1x3x64xf32, #tpu.memory_space<vmem>>, vector<1x3x64xf32>
    %6 = vector.shape_cast %5 : vector<1x3x64xf32> to vector<3x64xf32>
    %7 = vector.extract_strided_slice %4 {offsets = [0, 0], sizes = [256, 1], strides = [1, 1]} : vector<256x3xf32> to vector<256x1xf32>
    %8 = vector.extract_strided_slice %6 {offsets = [0, 0], sizes = [1, 64], strides = [1, 1]} : vector<3x64xf32> to vector<1x64xf32>
    %9 = vector.broadcast %7 : vector<256x1xf32> to vector<256x64xf32>
    %10 = vector.broadcast %8 : vector<1x64xf32> to vector<256x64xf32>
    %11 = arith.mulf %9, %10 : vector<256x64xf32>
    %12 = vector.extract_strided_slice %4 {offsets = [0, 1], sizes = [256, 1], strides = [1, 1]} : vector<256x3xf32> to vector<256x1xf32>
    %13 = vector.extract_strided_slice %6 {offsets = [1, 0], sizes = [1, 64], strides = [1, 1]} : vector<3x64xf32> to vector<1x64xf32>
    %14 = vector.broadcast %12 : vector<256x1xf32> to vector<256x64xf32>
    %15 = vector.broadcast %13 : vector<1x64xf32> to vector<256x64xf32>
    %16 = arith.mulf %14, %15 : vector<256x64xf32>
    %17 = arith.addf %11, %16 : vector<256x64xf32>
    %18 = vector.extract_strided_slice %4 {offsets = [0, 2], sizes = [256, 1], strides = [1, 1]} : vector<256x3xf32> to vector<256x1xf32>
    %19 = vector.extract_strided_slice %6 {offsets = [2, 0], sizes = [1, 64], strides = [1, 1]} : vector<3x64xf32> to vector<1x64xf32>
    %20 = vector.broadcast %18 : vector<256x1xf32> to vector<256x64xf32>
    %21 = vector.broadcast %19 : vector<1x64xf32> to vector<256x64xf32>
    %22 = arith.mulf %20, %21 : vector<256x64xf32>
    %23 = arith.addf %17, %22 : vector<256x64xf32>
    %c0_6 = arith.constant 0 : index
    %c0_7 = arith.constant 0 : index
    %24 = vector.load %arg4[%c0_6, %c0_7] : memref<1x64xf32, #tpu.memory_space<vmem>>, vector<1x64xf32>
    %25 = vector.broadcast %24 : vector<1x64xf32> to vector<256x64xf32>
    %26 = arith.mulf %23, %25 : vector<256x64xf32>
    %c0_8 = arith.constant 0 : index
    %c0_9 = arith.constant 0 : index
    %27 = vector.load %arg5[%c0_8, %c0_9] : memref<1x64xf32, #tpu.memory_space<vmem>>, vector<1x64xf32>
    %28 = vector.broadcast %27 : vector<1x64xf32> to vector<256x64xf32>
    %29 = arith.addf %26, %28 : vector<256x64xf32>
    %cst = arith.constant 0.000000e+00 : f32
    %30 = vector.broadcast %cst : f32 to vector<256x64xf32>
    %31 = arith.maximumf %29, %30 : vector<256x64xf32>
    %32 = arith.truncf %31 : vector<256x64xf32> to vector<256x64xbf16>
    %c0_10 = arith.constant 0 : index
    %c0_11 = arith.constant 0 : index
    %33 = vector.load %arg6[%c0_10, %c0_11] : memref<64x128xbf16, #tpu.memory_space<vmem>>, vector<64x128xbf16>
    %cst_12 = arith.constant dense<0.000000e+00> : vector<256x128xf32>
    %34 = tpu.matmul %32, %33, %cst_12 {dimension_numbers = #tpu.dot_dimension_numbers<[1], [0], [0], [1], [0, 0, 1, 1], [], []>} : vector<256x64xbf16>, vector<64x128xbf16>, vector<256x128xf32> -> vector<256x128xf32>
    %c0_13 = arith.constant 0 : index
    %c0_14 = arith.constant 0 : index
    %35 = vector.load %arg7[%c0_13, %c0_14] : memref<1x128xf32, #tpu.memory_space<vmem>>, vector<1x128xf32>
    %36 = vector.broadcast %35 : vector<1x128xf32> to vector<256x128xf32>
    %37 = arith.mulf %34, %36 : vector<256x128xf32>
    %c0_15 = arith.constant 0 : index
    %c0_16 = arith.constant 0 : index
    %38 = vector.load %arg8[%c0_15, %c0_16] : memref<1x128xf32, #tpu.memory_space<vmem>>, vector<1x128xf32>
    %39 = vector.broadcast %38 : vector<1x128xf32> to vector<256x128xf32>
    %40 = arith.addf %37, %39 : vector<256x128xf32>
    %cst_17 = arith.constant 0.000000e+00 : f32
    %41 = vector.broadcast %cst_17 : f32 to vector<256x128xf32>
    %42 = arith.maximumf %40, %41 : vector<256x128xf32>
    %43 = arith.truncf %42 : vector<256x128xf32> to vector<256x128xbf16>
    %c0_18 = arith.constant 0 : index
    %c0_19 = arith.constant 0 : index
    %44 = vector.load %arg9[%c0_18, %c0_19] : memref<128x1024xbf16, #tpu.memory_space<vmem>>, vector<128x1024xbf16>
    %cst_20 = arith.constant dense<0.000000e+00> : vector<256x1024xf32>
    %45 = tpu.matmul %43, %44, %cst_20 {dimension_numbers = #tpu.dot_dimension_numbers<[1], [0], [0], [1], [0, 0, 1, 1], [], []>} : vector<256x128xbf16>, vector<128x1024xbf16>, vector<256x1024xf32> -> vector<256x1024xf32>
    %c0_21 = arith.constant 0 : index
    %c0_22 = arith.constant 0 : index
    %46 = vector.load %arg10[%c0_21, %c0_22] : memref<1x1024xf32, #tpu.memory_space<vmem>>, vector<1x1024xf32>
    %47 = vector.broadcast %46 : vector<1x1024xf32> to vector<256x1024xf32>
    %48 = arith.mulf %45, %47 : vector<256x1024xf32>
    %c0_23 = arith.constant 0 : index
    %c0_24 = arith.constant 0 : index
    %49 = vector.load %arg11[%c0_23, %c0_24] : memref<1x1024xf32, #tpu.memory_space<vmem>>, vector<1x1024xf32>
    %50 = vector.broadcast %49 : vector<1x1024xf32> to vector<256x1024xf32>
    %51 = arith.addf %48, %50 : vector<256x1024xf32>
    %c0_25 = arith.constant 0 : index
    %c0_26 = arith.constant 0 : index
    %52 = vector.load %arg13[%c0_25, %c0_26] : memref<1x1024xf32, #tpu.memory_space<vmem>>, vector<1x1024xf32>
    %cst_27 = arith.constant dense<0xFF800000> : vector<1024xf32>
    %53 = vector.multi_reduction <maximumf>, %51, %cst_27 [0] : vector<256x1024xf32> to vector<1024xf32>
    %54 = vector.shape_cast %53 : vector<1024xf32> to vector<1x1024xf32>
    %55 = arith.maximumf %52, %54 : vector<1x1024xf32>
    %c0_28 = arith.constant 0 : index
    %c0_29 = arith.constant 0 : index
    %56 = vector.load %arg13[%c0_28, %c0_29] : memref<1x1024xf32, #tpu.memory_space<vmem>>, vector<1x1024xf32>
    tpu.vector_store %arg13[%c0_28, %c0_29], %55 {strides = array<i32>} : memref<1x1024xf32, #tpu.memory_space<vmem>>, vector<1x1024xf32>,
    %c0_i32_30 = arith.constant 0 : i32
    %57 = arith.cmpi eq, %arg1, %c0_i32_30 : i32
    %58 = arith.extui %57 : i1 to i32
    %c0_i32_31 = arith.constant 0 : i32
    %59 = arith.cmpi ne, %58, %c0_i32_31 : i32
    scf.if %59 {
      %c0_32 = arith.constant 0 : index
      %c0_33 = arith.constant 0 : index
      %60 = vector.load %arg13[%c0_32, %c0_33] : memref<1x1024xf32, #tpu.memory_space<vmem>>, vector<1x1024xf32>
      %c0_34 = arith.constant 0 : index
      %c0_35 = arith.constant 0 : index
      %c0_36 = arith.constant 0 : index
      %61 = vector.load %arg12[%c0_34, %c0_35, %c0_36] : memref<1x1x1024xf32, #tpu.memory_space<vmem>>, vector<1x1x1024xf32>
      %62 = vector.shape_cast %61 : vector<1x1x1024xf32> to vector<1x1024xf32>
      %63 = vector.shape_cast %60 : vector<1x1024xf32> to vector<1x1x1024xf32>
      tpu.vector_store %arg12[%c0_34, %c0_35, %c0_36], %63 {strides = array<i32>} : memref<1x1x1024xf32, #tpu.memory_space<vmem>>, vector<1x1x1024xf32>,
    } else {
    }
    return
  }
  func.func @transform_0(%arg0: i32, %arg1: i32) -> (i32, i32, i32) {
    %c0_i32 = arith.constant 0 : i32
    %c0_i32_0 = arith.constant 0 : i32
    return %arg0, %arg1, %c0_i32 : i32, i32, i32
  }
  func.func @transform_1(%arg0: i32, %arg1: i32) -> (i32, i32, i32) {
    %c0_i32 = arith.constant 0 : i32
    %c0_i32_0 = arith.constant 0 : i32
    %c0_i32_1 = arith.constant 0 : i32
    return %arg0, %c0_i32, %c0_i32_0 : i32, i32, i32
  }
  func.func @transform_2(%arg0: i32, %arg1: i32) -> (i32, i32) {
    %c0_i32 = arith.constant 0 : i32
    %c0_i32_0 = arith.constant 0 : i32
    %c0_i32_1 = arith.constant 0 : i32
    return %c0_i32, %c0_i32_0 : i32, i32
  }
  func.func @transform_3(%arg0: i32, %arg1: i32) -> (i32, i32) {
    %c0_i32 = arith.constant 0 : i32
    %c0_i32_0 = arith.constant 0 : i32
    %c0_i32_1 = arith.constant 0 : i32
    return %c0_i32, %c0_i32_0 : i32, i32
  }
  func.func @transform_4(%arg0: i32, %arg1: i32) -> (i32, i32) {
    %c0_i32 = arith.constant 0 : i32
    %c0_i32_0 = arith.constant 0 : i32
    %c0_i32_1 = arith.constant 0 : i32
    return %c0_i32, %c0_i32_0 : i32, i32
  }
  func.func @transform_5(%arg0: i32, %arg1: i32) -> (i32, i32) {
    %c0_i32 = arith.constant 0 : i32
    %c0_i32_0 = arith.constant 0 : i32
    %c0_i32_1 = arith.constant 0 : i32
    return %c0_i32, %c0_i32_0 : i32, i32
  }
  func.func @transform_6(%arg0: i32, %arg1: i32) -> (i32, i32) {
    %c0_i32 = arith.constant 0 : i32
    %c0_i32_0 = arith.constant 0 : i32
    %c0_i32_1 = arith.constant 0 : i32
    return %c0_i32, %c0_i32_0 : i32, i32
  }
  func.func @transform_7(%arg0: i32, %arg1: i32) -> (i32, i32) {
    %c0_i32 = arith.constant 0 : i32
    %c0_i32_0 = arith.constant 0 : i32
    %c0_i32_1 = arith.constant 0 : i32
    return %c0_i32, %c0_i32_0 : i32, i32
  }
  func.func @transform_8(%arg0: i32, %arg1: i32) -> (i32, i32) {
    %c0_i32 = arith.constant 0 : i32
    %c0_i32_0 = arith.constant 0 : i32
    %c0_i32_1 = arith.constant 0 : i32
    return %c0_i32, %c0_i32_0 : i32, i32
  }
  func.func @transform_9(%arg0: i32, %arg1: i32) -> (i32, i32) {
    %c0_i32 = arith.constant 0 : i32
    %c0_i32_0 = arith.constant 0 : i32
    %c0_i32_1 = arith.constant 0 : i32
    return %c0_i32, %c0_i32_0 : i32, i32
  }
  func.func @transform_10(%arg0: i32, %arg1: i32) -> (i32, i32, i32) {
    %c0_i32 = arith.constant 0 : i32
    %c0_i32_0 = arith.constant 0 : i32
    %c0_i32_1 = arith.constant 0 : i32
    return %arg0, %c0_i32, %c0_i32_0 : i32, i32, i32
  }
}

module attributes {stable_mosaic.version = 11 : i64} {
  func.func @_fc_head_kernel(%arg0: memref<2x1024xf32, #tpu.memory_space<vmem>>, %arg1: memref<1024x512xbf16, #tpu.memory_space<vmem>>, %arg2: memref<1x512xf32, #tpu.memory_space<vmem>>, %arg3: memref<1x512xf32, #tpu.memory_space<vmem>>, %arg4: memref<512x256xbf16, #tpu.memory_space<vmem>>, %arg5: memref<1x256xf32, #tpu.memory_space<vmem>>, %arg6: memref<1x256xf32, #tpu.memory_space<vmem>>, %arg7: memref<256x9xf32, #tpu.memory_space<vmem>>, %arg8: memref<1x9xf32, #tpu.memory_space<vmem>>, %arg9: memref<2x9xf32, #tpu.memory_space<vmem>>) attributes {dimension_semantics = [], scalar_prefetch = 0 : i64, scratch_operands = 0 : i64, tpu.core_type = #tpu.core_type<tc>} {
    %c0 = arith.constant 0 : index
    %c0_0 = arith.constant 0 : index
    %0 = vector.load %arg0[%c0, %c0_0] : memref<2x1024xf32, #tpu.memory_space<vmem>>, vector<2x1024xf32>
    %1 = arith.truncf %0 : vector<2x1024xf32> to vector<2x1024xbf16>
    %c0_1 = arith.constant 0 : index
    %c0_2 = arith.constant 0 : index
    %2 = vector.load %arg1[%c0_1, %c0_2] : memref<1024x512xbf16, #tpu.memory_space<vmem>>, vector<1024x512xbf16>
    %cst = arith.constant dense<0.000000e+00> : vector<2x512xf32>
    %3 = tpu.matmul %1, %2, %cst {dimension_numbers = #tpu.dot_dimension_numbers<[1], [0], [0], [1], [0, 0, 1, 1], [], []>} : vector<2x1024xbf16>, vector<1024x512xbf16>, vector<2x512xf32> -> vector<2x512xf32>
    %c0_3 = arith.constant 0 : index
    %c0_4 = arith.constant 0 : index
    %4 = vector.load %arg2[%c0_3, %c0_4] : memref<1x512xf32, #tpu.memory_space<vmem>>, vector<1x512xf32>
    %5 = vector.broadcast %4 : vector<1x512xf32> to vector<2x512xf32>
    %6 = arith.mulf %3, %5 : vector<2x512xf32>
    %c0_5 = arith.constant 0 : index
    %c0_6 = arith.constant 0 : index
    %7 = vector.load %arg3[%c0_5, %c0_6] : memref<1x512xf32, #tpu.memory_space<vmem>>, vector<1x512xf32>
    %8 = vector.broadcast %7 : vector<1x512xf32> to vector<2x512xf32>
    %9 = arith.addf %6, %8 : vector<2x512xf32>
    %cst_7 = arith.constant 0.000000e+00 : f32
    %10 = vector.broadcast %cst_7 : f32 to vector<2x512xf32>
    %11 = arith.maximumf %9, %10 : vector<2x512xf32>
    %12 = arith.truncf %11 : vector<2x512xf32> to vector<2x512xbf16>
    %c0_8 = arith.constant 0 : index
    %c0_9 = arith.constant 0 : index
    %13 = vector.load %arg4[%c0_8, %c0_9] : memref<512x256xbf16, #tpu.memory_space<vmem>>, vector<512x256xbf16>
    %cst_10 = arith.constant dense<0.000000e+00> : vector<2x256xf32>
    %14 = tpu.matmul %12, %13, %cst_10 {dimension_numbers = #tpu.dot_dimension_numbers<[1], [0], [0], [1], [0, 0, 1, 1], [], []>} : vector<2x512xbf16>, vector<512x256xbf16>, vector<2x256xf32> -> vector<2x256xf32>
    %c0_11 = arith.constant 0 : index
    %c0_12 = arith.constant 0 : index
    %15 = vector.load %arg5[%c0_11, %c0_12] : memref<1x256xf32, #tpu.memory_space<vmem>>, vector<1x256xf32>
    %16 = vector.broadcast %15 : vector<1x256xf32> to vector<2x256xf32>
    %17 = arith.mulf %14, %16 : vector<2x256xf32>
    %c0_13 = arith.constant 0 : index
    %c0_14 = arith.constant 0 : index
    %18 = vector.load %arg6[%c0_13, %c0_14] : memref<1x256xf32, #tpu.memory_space<vmem>>, vector<1x256xf32>
    %19 = vector.broadcast %18 : vector<1x256xf32> to vector<2x256xf32>
    %20 = arith.addf %17, %19 : vector<2x256xf32>
    %cst_15 = arith.constant 0.000000e+00 : f32
    %21 = vector.broadcast %cst_15 : f32 to vector<2x256xf32>
    %22 = arith.maximumf %20, %21 : vector<2x256xf32>
    %c0_16 = arith.constant 0 : index
    %c0_17 = arith.constant 0 : index
    %23 = vector.load %arg7[%c0_16, %c0_17] : memref<256x9xf32, #tpu.memory_space<vmem>>, vector<256x9xf32>
    %cst_18 = arith.constant dense<0.000000e+00> : vector<2x9xf32>
    %24 = tpu.matmul %22, %23, %cst_18 {dimension_numbers = #tpu.dot_dimension_numbers<[1], [0], [0], [1], [0, 0, 1, 1], [], []>} : vector<2x256xf32>, vector<256x9xf32>, vector<2x9xf32> -> vector<2x9xf32>
    %c0_19 = arith.constant 0 : index
    %c0_20 = arith.constant 0 : index
    %25 = vector.load %arg8[%c0_19, %c0_20] : memref<1x9xf32, #tpu.memory_space<vmem>>, vector<1x9xf32>
    %26 = vector.broadcast %25 : vector<1x9xf32> to vector<2x9xf32>
    %27 = arith.addf %24, %26 : vector<2x9xf32>
    %c0_21 = arith.constant 0 : index
    %c0_22 = arith.constant 0 : index
    %28 = vector.load %arg9[%c0_21, %c0_22] : memref<2x9xf32, #tpu.memory_space<vmem>>, vector<2x9xf32>
    tpu.vector_store %arg9[%c0_21, %c0_22], %27 {strides = array<i32>} : memref<2x9xf32, #tpu.memory_space<vmem>>, vector<2x9xf32>,
    return
  }
}

module attributes {stable_mosaic.version = 11 : i64} {
  func.func @_fc_head_kernel(%arg0: memref<2x1024xf32, #tpu.memory_space<vmem>>, %arg1: memref<1024x512xbf16, #tpu.memory_space<vmem>>, %arg2: memref<1x512xf32, #tpu.memory_space<vmem>>, %arg3: memref<1x512xf32, #tpu.memory_space<vmem>>, %arg4: memref<512x256xbf16, #tpu.memory_space<vmem>>, %arg5: memref<1x256xf32, #tpu.memory_space<vmem>>, %arg6: memref<1x256xf32, #tpu.memory_space<vmem>>, %arg7: memref<256x2xf32, #tpu.memory_space<vmem>>, %arg8: memref<1x2xf32, #tpu.memory_space<vmem>>, %arg9: memref<2x2xf32, #tpu.memory_space<vmem>>) attributes {dimension_semantics = [], scalar_prefetch = 0 : i64, scratch_operands = 0 : i64, tpu.core_type = #tpu.core_type<tc>} {
    %c0 = arith.constant 0 : index
    %c0_0 = arith.constant 0 : index
    %0 = vector.load %arg0[%c0, %c0_0] : memref<2x1024xf32, #tpu.memory_space<vmem>>, vector<2x1024xf32>
    %1 = arith.truncf %0 : vector<2x1024xf32> to vector<2x1024xbf16>
    %c0_1 = arith.constant 0 : index
    %c0_2 = arith.constant 0 : index
    %2 = vector.load %arg1[%c0_1, %c0_2] : memref<1024x512xbf16, #tpu.memory_space<vmem>>, vector<1024x512xbf16>
    %cst = arith.constant dense<0.000000e+00> : vector<2x512xf32>
    %3 = tpu.matmul %1, %2, %cst {dimension_numbers = #tpu.dot_dimension_numbers<[1], [0], [0], [1], [0, 0, 1, 1], [], []>} : vector<2x1024xbf16>, vector<1024x512xbf16>, vector<2x512xf32> -> vector<2x512xf32>
    %c0_3 = arith.constant 0 : index
    %c0_4 = arith.constant 0 : index
    %4 = vector.load %arg2[%c0_3, %c0_4] : memref<1x512xf32, #tpu.memory_space<vmem>>, vector<1x512xf32>
    %5 = vector.broadcast %4 : vector<1x512xf32> to vector<2x512xf32>
    %6 = arith.mulf %3, %5 : vector<2x512xf32>
    %c0_5 = arith.constant 0 : index
    %c0_6 = arith.constant 0 : index
    %7 = vector.load %arg3[%c0_5, %c0_6] : memref<1x512xf32, #tpu.memory_space<vmem>>, vector<1x512xf32>
    %8 = vector.broadcast %7 : vector<1x512xf32> to vector<2x512xf32>
    %9 = arith.addf %6, %8 : vector<2x512xf32>
    %cst_7 = arith.constant 0.000000e+00 : f32
    %10 = vector.broadcast %cst_7 : f32 to vector<2x512xf32>
    %11 = arith.maximumf %9, %10 : vector<2x512xf32>
    %12 = arith.truncf %11 : vector<2x512xf32> to vector<2x512xbf16>
    %c0_8 = arith.constant 0 : index
    %c0_9 = arith.constant 0 : index
    %13 = vector.load %arg4[%c0_8, %c0_9] : memref<512x256xbf16, #tpu.memory_space<vmem>>, vector<512x256xbf16>
    %cst_10 = arith.constant dense<0.000000e+00> : vector<2x256xf32>
    %14 = tpu.matmul %12, %13, %cst_10 {dimension_numbers = #tpu.dot_dimension_numbers<[1], [0], [0], [1], [0, 0, 1, 1], [], []>} : vector<2x512xbf16>, vector<512x256xbf16>, vector<2x256xf32> -> vector<2x256xf32>
    %c0_11 = arith.constant 0 : index
    %c0_12 = arith.constant 0 : index
    %15 = vector.load %arg5[%c0_11, %c0_12] : memref<1x256xf32, #tpu.memory_space<vmem>>, vector<1x256xf32>
    %16 = vector.broadcast %15 : vector<1x256xf32> to vector<2x256xf32>
    %17 = arith.mulf %14, %16 : vector<2x256xf32>
    %c0_13 = arith.constant 0 : index
    %c0_14 = arith.constant 0 : index
    %18 = vector.load %arg6[%c0_13, %c0_14] : memref<1x256xf32, #tpu.memory_space<vmem>>, vector<1x256xf32>
    %19 = vector.broadcast %18 : vector<1x256xf32> to vector<2x256xf32>
    %20 = arith.addf %17, %19 : vector<2x256xf32>
    %cst_15 = arith.constant 0.000000e+00 : f32
    %21 = vector.broadcast %cst_15 : f32 to vector<2x256xf32>
    %22 = arith.maximumf %20, %21 : vector<2x256xf32>
    %c0_16 = arith.constant 0 : index
    %c0_17 = arith.constant 0 : index
    %23 = vector.load %arg7[%c0_16, %c0_17] : memref<256x2xf32, #tpu.memory_space<vmem>>, vector<256x2xf32>
    %cst_18 = arith.constant dense<0.000000e+00> : vector<2x2xf32>
    %24 = tpu.matmul %22, %23, %cst_18 {dimension_numbers = #tpu.dot_dimension_numbers<[1], [0], [0], [1], [0, 0, 1, 1], [], []>} : vector<2x256xf32>, vector<256x2xf32>, vector<2x2xf32> -> vector<2x2xf32>
    %c0_19 = arith.constant 0 : index
    %c0_20 = arith.constant 0 : index
    %25 = vector.load %arg8[%c0_19, %c0_20] : memref<1x2xf32, #tpu.memory_space<vmem>>, vector<1x2xf32>
    %26 = vector.broadcast %25 : vector<1x2xf32> to vector<2x2xf32>
    %27 = arith.addf %24, %26 : vector<2x2xf32>
    %cst_21 = arith.constant dense<0xFF800000> : vector<2xf32>
    %28 = vector.multi_reduction <maximumf>, %27, %cst_21 [1] : vector<2x2xf32> to vector<2xf32>
    %29 = vector.shape_cast %28 : vector<2xf32> to vector<2x1xf32>
    %30 = vector.broadcast %29 : vector<2x1xf32> to vector<2x2xf32>
    %31 = arith.subf %27, %30 : vector<2x2xf32>
    %32 = math.exp %31 : vector<2x2xf32>
    %cst_22 = arith.constant dense<0.000000e+00> : vector<2xf32>
    %33 = vector.multi_reduction <add>, %32, %cst_22 [1] : vector<2x2xf32> to vector<2xf32>
    %34 = vector.shape_cast %33 : vector<2xf32> to vector<2x1xf32>
    %35 = math.log %34 : vector<2x1xf32>
    %36 = vector.broadcast %35 : vector<2x1xf32> to vector<2x2xf32>
    %37 = arith.subf %31, %36 : vector<2x2xf32>
    %c0_23 = arith.constant 0 : index
    %c0_24 = arith.constant 0 : index
    %38 = vector.load %arg9[%c0_23, %c0_24] : memref<2x2xf32, #tpu.memory_space<vmem>>, vector<2x2xf32>
    tpu.vector_store %arg9[%c0_23, %c0_24], %37 {strides = array<i32>} : memref<2x2xf32, #tpu.memory_space<vmem>>, vector<2x2xf32>,
    return
  }
}

</mosaic_0001>

<llo_original>
// kernel: pointnet_cls_forward.4
$region0: #{pointnet_cls_forward.4}
  #allocation0 [shape = 'u32[]', space=smem, size = 0x4, offset = 0x4, fixed_abs, tag = 'smem constant byte address 0x4 - core index']
  #allocation1 [shape = 'u32[144,128]{1,0:T(1,128)}', space=vmem, size = 0x12000, scoped, tag = 'internal scratch']
  #allocation2 [shape = 'f32[1,1024]{1,0:T(1,128)}', space=vmem, size = 0x1000, scoped, tag = 'scratch operand']
  %s0 = inlined_call_operand.vmem [shape: f32[2,256,3], index: 0, kind: input, shape index: {}]
  %s1 = inlined_call_operand.vmem [shape: f32[1,3,64], index: 1, kind: input, shape index: {}]
  %s2 = inlined_call_operand.vmem [shape: f32[1,64], index: 2, kind: input, shape index: {}]
  %s3 = inlined_call_operand.vmem [shape: f32[1,64], index: 3, kind: input, shape index: {}]
  %s4 = inlined_call_operand.vmem [shape: bf16[64,128], index: 4, kind: input, shape index: {}]
  %s5 = inlined_call_operand.vmem [shape: f32[1,128], index: 5, kind: input, shape index: {}]
  %s6 = inlined_call_operand.vmem [shape: f32[1,128], index: 6, kind: input, shape index: {}]
  %s7 = inlined_call_operand.vmem [shape: bf16[128,1024], index: 7, kind: input, shape index: {}]
  %s8 = inlined_call_operand.vmem [shape: f32[1,1024], index: 8, kind: input, shape index: {}]
  %s9 = inlined_call_operand.vmem [shape: f32[1,1024], index: 9, kind: input, shape index: {}]
  %s10 = inlined_call_operand.vmem [shape: f32[2,1,1024], index: 10, kind: output, shape index: {}]
  %s11 = sld [smem:[#allocation0]]
  $region81: #{pointnet_cls_forward.4} parent=0
    _
  %s13 = ssub.s32 1, %s11
  %s14 = scalar_select 0, %s13, %s11
  loop: start=0, step=1, limit=4
  $region2: #{pointnet_cls_forward.4} parent=0 // loop_pre_header
    _
  $region3: #{pointnet_cls_forward.4} parent=0 // loop_header
    %s16 = sphi 0, %s20
    %p17 = scmp.ge.s32.totalorder %s16, 4
    %s23 = sphi 0, %s35
    %s24 = sphi 0, %s31
    %s25 = sphi 0, %s23
    %s26 = sphi 0, %s24
    %s27 = sphi 0, %s25
    %s28 = sphi 0, %s26
    %s40 = sphi 0, %s42
    %s43 = sphi 0, %s40
    %s44 = sphi 0, %s43
    %s60 = sphi 0, %s44
    %s64 = sphi 0, %s64
    %s66 = sphi 0, %s64
    %s67 = sphi 0, %s66
    %s81 = sphi 0, %s67
    %s85 = sphi 0, %s85
    %s87 = sphi 0, %s85
    %s88 = sphi 0, %s87
    %s102 = sphi 0, %s88
    %s106 = sphi 0, %s106
    %s108 = sphi 0, %s106
    %s109 = sphi 0, %s108
    %s123 = sphi 0, %s109
    %s127 = sphi 0, %s127
    %s129 = sphi 0, %s127
    %s130 = sphi 0, %s129
    %s144 = sphi 0, %s130
    %s148 = sphi 0, %s148
    %s150 = sphi 0, %s148
    %s151 = sphi 0, %s150
    %s165 = sphi 0, %s151
    %s169 = sphi 0, %s169
    %s171 = sphi 0, %s169
    %s172 = sphi 0, %s171
    %s186 = sphi 0, %s172
    %s190 = sphi 0, %s190
    %s192 = sphi 0, %s190
    %s193 = sphi 0, %s192
    %s207 = sphi 0, %s193
    %s211 = sphi 0, %s211
    %s213 = sphi 0, %s211
    %s214 = sphi 0, %s213
    %s228 = sphi 0, %s214
    %s232 = sphi 0, %s232
    %s234 = sphi 0, %s232
    %s235 = sphi 0, %s234
    %s249 = sphi 0, %s235
    %s255 = sphi 0, %s257
    %s258 = sphi 0, %s255
    %s259 = sphi 0, %s258
    %s275 = sphi 0, %s259
  $region4: #{pointnet_cls_forward.4} parent=0 // loop_header_branch
    %19 = sbr.rel (%p17) target = $region8
  $region5: #{pointnet_cls_forward.4} parent=0 // loop_body
    %s21 = ssub.s32 %s16, 1
    %s22 = ssub.s32 %s16, 2
    %s29 = sadd.s32 1, %s24
    %p30 = scmp.ge.s32.totalorder %s29, 1
    %s31 = scalar_select %p30, 0, %s29
    %s32 = sadd.s32 1, %s23
    %s33 = scalar_select %p30, %s32, %s23
    %p34 = scmp.ge.s32.totalorder %s33, 2
    %s35 = scalar_select %p34, 0, %s33
    %s36 = ssub.s32 %s23, %s35
    %s37 = ssub.s32 %s24, %s31
    %s38 = sor.u32 %s36, %s37
    %p39 = scmp.eq.s32.totalorder %s38, 0
    %s41 = sadd.s32 %s40, 1
    %s42 = scalar_select %p39, %s40, %s41
    %p45 = pneg %p39
    %p46 = scmp.eq.s32.totalorder %s16, 1
    %p47 = por %p45, %p46
    %p48 = scmp.ne.s32.totalorder %s40, %s43
    %p49 = scmp.eq.s32.totalorder %s16, 0
    %p50 = por %p48, %p49
    %p51 = scmp.ne.s32.totalorder %s40, %s43
    %p52 = scmp.eq.s32.totalorder %s21, 1
    %p53 = por %p51, %p52
    %p54 = scmp.ne.s32.totalorder %s43, %s44
    %p55 = scmp.eq.s32.totalorder %s21, 0
    %p56 = por %p54, %p55
    %p57 = scmp.ne.s32.totalorder %s43, %s44
    %p58 = scmp.eq.s32.totalorder %s22, 1
    %p59 = por %p57, %p58
    %p61 = scmp.ne.s32.totalorder %s44, %s60
    %p62 = scmp.eq.s32.totalorder %s22, 0
    %p63 = por %p61, %p62
    %s65 = sadd.s32 %s64, 1
    %p68 = scmp.eq.s32.totalorder %s16, 1
    %p69 = scmp.ne.s32.totalorder %s64, %s66
    %p70 = scmp.eq.s32.totalorder %s16, 0
    %p71 = por %p69, %p70
    %p72 = scmp.ne.s32.totalorder %s64, %s66
    %p73 = scmp.eq.s32.totalorder %s21, 1
    %p74 = por %p72, %p73
    %p75 = scmp.ne.s32.totalorder %s66, %s67
    %p76 = scmp.eq.s32.totalorder %s21, 0
    %p77 = por %p75, %p76
    %p78 = scmp.ne.s32.totalorder %s66, %s67
    %p79 = scmp.eq.s32.totalorder %s22, 1
    %p80 = por %p78, %p79
    %p82 = scmp.ne.s32.totalorder %s67, %s81
    %p83 = scmp.eq.s32.totalorder %s22, 0
    %p84 = por %p82, %p83
    %s86 = sadd.s32 %s85, 1
    %p89 = scmp.eq.s32.totalorder %s16, 1
    %p90 = scmp.ne.s32.totalorder %s85, %s87
    %p91 = scmp.eq.s32.totalorder %s16, 0
    %p92 = por %p90, %p91
    %p93 = scmp.ne.s32.totalorder %s85, %s87
    %p94 = scmp.eq.s32.totalorder %s21, 1
    %p95 = por %p93, %p94
    %p96 = scmp.ne.s32.totalorder %s87, %s88
    %p97 = scmp.eq.s32.totalorder %s21, 0
    %p98 = por %p96, %p97
    %p99 = scmp.ne.s32.totalorder %s87, %s88
    %p100 = scmp.eq.s32.totalorder %s22, 1
    %p101 = por %p99, %p100
    %p103 = scmp.ne.s32.totalorder %s88, %s102
    %p104 = scmp.eq.s32.totalorder %s22, 0
    %p105 = por %p103, %p104
    %s107 = sadd.s32 %s106, 1
    %p110 = scmp.eq.s32.totalorder %s16, 1
    %p111 = scmp.ne.s32.totalorder %s106, %s108
    %p112 = scmp.eq.s32.totalorder %s16, 0
    %p113 = por %p111, %p112
    %p114 = scmp.ne.s32.totalorder %s106, %s108
    %p115 = scmp.eq.s32.totalorder %s21, 1
    %p116 = por %p114, %p115
    %p117 = scmp.ne.s32.totalorder %s108, %s109
    %p118 = scmp.eq.s32.totalorder %s21, 0
    %p119 = por %p117, %p118
    %p120 = scmp.ne.s32.totalorder %s108, %s109
    %p121 = scmp.eq.s32.totalorder %s22, 1
    %p122 = por %p120, %p121
    %p124 = scmp.ne.s32.totalorder %s109, %s123
    %p125 = scmp.eq.s32.totalorder %s22, 0
    %p126 = por %p124, %p125
    %s128 = sadd.s32 %s127, 1
    %p131 = scmp.eq.s32.totalorder %s16, 1
    %p132 = scmp.ne.s32.totalorder %s127, %s129
    %p133 = scmp.eq.s32.totalorder %s16, 0
    %p134 = por %p132, %p133
    %p135 = scmp.ne.s32.totalorder %s127, %s129
    %p136 = scmp.eq.s32.totalorder %s21, 1
    %p137 = por %p135, %p136
    %p138 = scmp.ne.s32.totalorder %s129, %s130
    %p139 = scmp.eq.s32.totalorder %s21, 0
    %p140 = por %p138, %p139
    %p141 = scmp.ne.s32.totalorder %s129, %s130
    %p142 = scmp.eq.s32.totalorder %s22, 1
    %p143 = por %p141, %p142
    %p145 = scmp.ne.s32.totalorder %s130, %s144
    %p146 = scmp.eq.s32.totalorder %s22, 0
    %p147 = por %p145, %p146
    %s149 = sadd.s32 %s148, 1
    %p152 = scmp.eq.s32.totalorder %s16, 1
    %p153 = scmp.ne.s32.totalorder %s148, %s150
    %p154 = scmp.eq.s32.totalorder %s16, 0
    %p155 = por %p153, %p154
    %p156 = scmp.ne.s32.totalorder %s148, %s150
    %p157 = scmp.eq.s32.totalorder %s21, 1
    %p158 = por %p156, %p157
    %p159 = scmp.ne.s32.totalorder %s150, %s151
    %p160 = scmp.eq.s32.totalorder %s21, 0
    %p161 = por %p159, %p160
    %p162 = scmp.ne.s32.totalorder %s150, %s151
    %p163 = scmp.eq.s32.totalorder %s22, 1
    %p164 = por %p162, %p163
    %p166 = scmp.ne.s32.totalorder %s151, %s165
    %p167 = scmp.eq.s32.totalorder %s22, 0
    %p168 = por %p166, %p167
    %s170 = sadd.s32 %s169, 1
    %p173 = scmp.eq.s32.totalorder %s16, 1
    %p174 = scmp.ne.s32.totalorder %s169, %s171
    %p175 = scmp.eq.s32.totalorder %s16, 0
    %p176 = por %p174, %p175
    %p177 = scmp.ne.s32.totalorder %s169, %s171
    %p178 = scmp.eq.s32.totalorder %s21, 1
    %p179 = por %p177, %p178
    %p180 = scmp.ne.s32.totalorder %s171, %s172
    %p181 = scmp.eq.s32.totalorder %s21, 0
    %p182 = por %p180, %p181
    %p183 = scmp.ne.s32.totalorder %s171, %s172
    %p184 = scmp.eq.s32.totalorder %s22, 1
    %p185 = por %p183, %p184
    %p187 = scmp.ne.s32.totalorder %s172, %s186
    %p188 = scmp.eq.s32.totalorder %s22, 0
    %p189 = por %p187, %p188
    %s191 = sadd.s32 %s190, 1
    %p194 = scmp.eq.s32.totalorder %s16, 1
    %p195 = scmp.ne.s32.totalorder %s190, %s192
    %p196 = scmp.eq.s32.totalorder %s16, 0
    %p197 = por %p195, %p196
    %p198 = scmp.ne.s32.totalorder %s190, %s192
    %p199 = scmp.eq.s32.totalorder %s21, 1
    %p200 = por %p198, %p199
    %p201 = scmp.ne.s32.totalorder %s192, %s193
    %p202 = scmp.eq.s32.totalorder %s21, 0
    %p203 = por %p201, %p202
    %p204 = scmp.ne.s32.totalorder %s192, %s193
    %p205 = scmp.eq.s32.totalorder %s22, 1
    %p206 = por %p204, %p205
    %p208 = scmp.ne.s32.totalorder %s193, %s207
    %p209 = scmp.eq.s32.totalorder %s22, 0
    %p210 = por %p208, %p209
    %s212 = sadd.s32 %s211, 1
    %p215 = scmp.eq.s32.totalorder %s16, 1
    %p216 = scmp.ne.s32.totalorder %s211, %s213
    %p217 = scmp.eq.s32.totalorder %s16, 0
    %p218 = por %p216, %p217
    %p219 = scmp.ne.s32.totalorder %s211, %s213
    %p220 = scmp.eq.s32.totalorder %s21, 1
    %p221 = por %p219, %p220
    %p222 = scmp.ne.s32.totalorder %s213, %s214
    %p223 = scmp.eq.s32.totalorder %s21, 0
    %p224 = por %p222, %p223
    %p225 = scmp.ne.s32.totalorder %s213, %s214
    %p226 = scmp.eq.s32.totalorder %s22, 1
    %p227 = por %p225, %p226
    %p229 = scmp.ne.s32.totalorder %s214, %s228
    %p230 = scmp.eq.s32.totalorder %s22, 0
    %p231 = por %p229, %p230
    %s233 = sadd.s32 %s232, 1
    %p236 = scmp.eq.s32.totalorder %s16, 1
    %p237 = scmp.ne.s32.totalorder %s232, %s234
    %p238 = scmp.eq.s32.totalorder %s16, 0
    %p239 = por %p237, %p238
    %p240 = scmp.ne.s32.totalorder %s232, %s234
    %p241 = scmp.eq.s32.totalorder %s21, 1
    %p242 = por %p240, %p241
    %p243 = scmp.ne.s32.totalorder %s234, %s235
    %p244 = scmp.eq.s32.totalorder %s21, 0
    %p245 = por %p243, %p244
    %p246 = scmp.ne.s32.totalorder %s234, %s235
    %p247 = scmp.eq.s32.totalorder %s22, 1
    %p248 = por %p246, %p247
    %p250 = scmp.ne.s32.totalorder %s235, %s249
    %p251 = scmp.eq.s32.totalorder %s22, 0
    %p252 = por %p250, %p251
    %s253 = ssub.s32 %s23, %s35
    %p254 = scmp.eq.s32.totalorder %s253, 0
    %s256 = sadd.s32 %s255, 1
    %s257 = scalar_select %p254, %s255, %s256
    %p260 = pneg %p254
    %p261 = scmp.eq.s32.totalorder %s16, 1
    %p262 = por %p260, %p261
    %p263 = scmp.ne.s32.totalorder %s255, %s258
    %p264 = scmp.eq.s32.totalorder %s16, 0
    %p265 = por %p263, %p264
    %p266 = scmp.ne.s32.totalorder %s255, %s258
    %p267 = scmp.eq.s32.totalorder %s21, 1
    %p268 = por %p266, %p267
    %p269 = scmp.ne.s32.totalorder %s258, %s259
    %p270 = scmp.eq.s32.totalorder %s21, 0
    %p271 = por %p269, %p270
    %p272 = scmp.ne.s32.totalorder %s258, %s259
    %p273 = scmp.eq.s32.totalorder %s22, 1
    %p274 = por %p272, %p273
    %p276 = scmp.ne.s32.totalorder %s259, %s275
    %p277 = scmp.eq.s32.totalorder %s22, 0
    %p278 = por %p276, %p277
    %p279 = scmp.le.s32.totalorder 1, %s16
    %p280 = scmp.lt.s32.totalorder %s16, 3
    %p281 = pnand %p279, %p280
    %p282 = pneg %p281
    // Predicated region
    $region9: #{pointnet_cls_forward.4} parent=5 // pred_check
      _
    $region10: #{pointnet_cls_forward.4} parent=5 // pred_check_branch
      %284 = sbr.rel (%p281) target = $region12
    $region11: #{pointnet_cls_forward.4} parent=5 // pred_region
      %s285 = ssub.s32 %s16, 1
      // Predicated region
      $region13: #{pointnet_cls_forward.4} parent=11 // pred_check
        %p286 = pneg %p77
      $region14: #{pointnet_cls_forward.4} parent=11 // pred_check_branch
        %288 = sbr.rel (%p286) target = $region16
      $region15: #{pointnet_cls_forward.4} parent=11 // pred_region
        _
      $region16: #{pointnet_cls_forward.4} parent=11 // pred_fallthru
        _
      // Predicated region
      $region17: #{pointnet_cls_forward.4} parent=11 // pred_check
        %p289 = pneg %p98
      $region18: #{pointnet_cls_forward.4} parent=11 // pred_check_branch
        %291 = sbr.rel (%p289) target = $region20
      $region19: #{pointnet_cls_forward.4} parent=11 // pred_region
        _
      $region20: #{pointnet_cls_forward.4} parent=11 // pred_fallthru
        _
      // Predicated region
      $region21: #{pointnet_cls_forward.4} parent=11 // pred_check
        %p292 = pneg %p119
      $region22: #{pointnet_cls_forward.4} parent=11 // pred_check_branch
        %294 = sbr.rel (%p292) target = $region24
      $region23: #{pointnet_cls_forward.4} parent=11 // pred_region
        _
      $region24: #{pointnet_cls_forward.4} parent=11 // pred_fallthru
        _
      // Predicated region
      $region25: #{pointnet_cls_forward.4} parent=11 // pred_check
        %p295 = pneg %p140
      $region26: #{pointnet_cls_forward.4} parent=11 // pred_check_branch
        %297 = sbr.rel (%p295) target = $region28
      $region27: #{pointnet_cls_forward.4} parent=11 // pred_region
        _
      $region28: #{pointnet_cls_forward.4} parent=11 // pred_fallthru
        _
      // Predicated region
      $region29: #{pointnet_cls_forward.4} parent=11 // pred_check
        %p298 = pneg %p161
      $region30: #{pointnet_cls_forward.4} parent=11 // pred_check_branch
        %300 = sbr.rel (%p298) target = $region32
      $region31: #{pointnet_cls_forward.4} parent=11 // pred_region
        _
      $region32: #{pointnet_cls_forward.4} parent=11 // pred_fallthru
        _
      // Predicated region
      $region33: #{pointnet_cls_forward.4} parent=11 // pred_check
        %p301 = pneg %p182
      $region34: #{pointnet_cls_forward.4} parent=11 // pred_check_branch
        %303 = sbr.rel (%p301) target = $region36
      $region35: #{pointnet_cls_forward.4} parent=11 // pred_region
        _
      $region36: #{pointnet_cls_forward.4} parent=11 // pred_fallthru
        _
      // Predicated region
      $region37: #{pointnet_cls_forward.4} parent=11 // pred_check
        %p304 = pneg %p203
      $region38: #{pointnet_cls_forward.4} parent=11 // pred_check_branch
        %306 = sbr.rel (%p304) target = $region40
      $region39: #{pointnet_cls_forward.4} parent=11 // pred_region
        _
      $region40: #{pointnet_cls_forward.4} parent=11 // pred_fallthru
        _
      // Predicated region
      $region41: #{pointnet_cls_forward.4} parent=11 // pred_check
        %p307 = pneg %p224
      $region42: #{pointnet_cls_forward.4} parent=11 // pred_check_branch
        %309 = sbr.rel (%p307) target = $region44
      $region43: #{pointnet_cls_forward.4} parent=11 // pred_region
        _
      $region44: #{pointnet_cls_forward.4} parent=11 // pred_fallthru
        _
      // Predicated region
      $region45: #{pointnet_cls_forward.4} parent=11 // pred_check
        %p310 = pneg %p245
      $region46: #{pointnet_cls_forward.4} parent=11 // pred_check_branch
        %312 = sbr.rel (%p310) target = $region48
      $region47: #{pointnet_cls_forward.4} parent=11 // pred_region
        _
      $region48: #{pointnet_cls_forward.4} parent=11 // pred_fallthru
        _
    $region12: #{pointnet_cls_forward.4} parent=5 // pred_fallthru
      _
    %p313 = scmp.lt.s32.totalorder %s16, 2
    // Predicated region
    $region49: #{pointnet_cls_forward.4} parent=5 // pred_check
      %p314 = pneg %p313
    $region50: #{pointnet_cls_forward.4} parent=5 // pred_check_branch
      %316 = sbr.rel (%p314) target = $region52
    $region51: #{pointnet_cls_forward.4} parent=5 // pred_region
      // Predicated region
      $region53: #{pointnet_cls_forward.4} parent=51 // pred_check
        %p317 = pneg %p50
      $region54: #{pointnet_cls_forward.4} parent=51 // pred_check_branch
        %319 = sbr.rel (%p317) target = $region56
      $region55: #{pointnet_cls_forward.4} parent=51 // pred_region
        %s320 = smul.u32 32, %s24
        %p321 = scmp.lt.s32.totalorder %s23, 1
        %s322 = scalar_select %p321, %s23, 1
        %p323 = scmp.lt.s32.totalorder %s320, 31
        %s324 = scalar_select %p323, %s320, 31
        %s325 = smul.addr %s322, 32
        %s326 = sadd.s32 %s324, %s325
        %s327 = smul.addr %s326, 8
        %s328 = scalar_lea.vmem %s0, %s327
        %s329 = smul.u32 32, %s24
      $region56: #{pointnet_cls_forward.4} parent=51 // pred_fallthru
        _
    $region52: #{pointnet_cls_forward.4} parent=5 // pred_fallthru
      _
    %p330 = scmp.le.s32.totalorder 1, %s16
    %p331 = scmp.lt.s32.totalorder %s16, 3
    %p332 = pnand %p330, %p331
    %p333 = pneg %p332
    // Predicated region
    $region57: #{pointnet_cls_forward.4} parent=5 // pred_check
      _
    $region58: #{pointnet_cls_forward.4} parent=5 // pred_check_branch
      %335 = sbr.rel (%p332) target = $region60
    $region59: #{pointnet_cls_forward.4} parent=5 // pred_region
      %s336 = ssub.s32 %s16, 1
      %s337 = smul.u32 32, %s26
      %p338 = scmp.lt.s32.totalorder %s25, 1
      %s339 = scalar_select %p338, %s25, 1
      %p340 = scmp.lt.s32.totalorder %s337, 31
      %s341 = scalar_select %p340, %s337, 31
      %s342 = smul.addr %s339, 32
      %s343 = sadd.s32 %s341, %s342
      %s344 = smul.addr %s343, 8
      %s345 = scalar_lea.vmem %s0, %s344
      %p346 = pneg %p56
      %p347 = pneg %p53
      %p348 = pneg %p77
      %p349 = pneg %p74
      %p350 = pneg %p98
      %p351 = pneg %p95
      %p352 = pneg %p119
      %p353 = pneg %p116
      %p354 = pneg %p140
      %p355 = pneg %p137
      %p356 = pneg %p161
      %p357 = pneg %p158
      %p358 = pneg %p182
      %p359 = pneg %p179
      %p360 = pneg %p203
      %p361 = pneg %p200
      %p362 = pneg %p224
      %p363 = pneg %p221
      %p364 = pneg %p245
      %p365 = pneg %p242
      %p366 = pneg %p271
      %p367 = pneg %p268
      %p368 = scmp.lt.s32.totalorder %s25, 1
      %s369 = scalar_select %p368, %s25, 1
      %s370 = smul.addr %s369, 8
      %s371 = scalar_lea.vmem %s10, %s370
      %s372 = smul.u32 32, %s26
      %p373 = scmp.lt.s32.totalorder %s25, 1
      %s374 = scalar_select %p373, %s25, 1
      %p375 = scmp.lt.s32.totalorder %s372, 31
      %s376 = scalar_select %p375, %s372, 31
      %s377 = smul.addr %s374, 32
      %s378 = sadd.s32 %s376, %s377
      %s379 = smul.addr %s378, 8
      %s380 = scalar_lea.vmem %s0, %s379
      %s381 = smul.u32 32, %s26
      %p382 = scmp.lt.s32.totalorder %s25, 1
      %s383 = scalar_select %p382, %s25, 1
      %s384 = smul.addr %s383, 8
      %s385 = scalar_lea.vmem %s10, %s384
      %p387 = scmp.eq.s32.totalorder %s26, 0
      // Predicated region
      $region61: #{pointnet_cls_forward.4} parent=59 // pred_check
        %p388 = pneg %p387
      $region62: #{pointnet_cls_forward.4} parent=59 // pred_check_branch
        %390 = sbr.rel (%p388) target = $region64
      $region63: #{pointnet_cls_forward.4} parent=59 // pred_region
        %391 = vst [vmem:[#allocation2] sm:$0xff] -inf
      $region64: #{pointnet_cls_forward.4} parent=59 // pred_fallthru
        _
      %v392 = vld [vmem:[%s380] sm:$0xff]
      %v393 = vld [vmem:[%s380 + $0x8] sm:$0xff]
      %v394 = vld [vmem:[%s380 + $0x10] sm:$0xff]
      %v395 = vld [vmem:[%s380 + $0x18] sm:$0xff]
      %v396 = vld [vmem:[%s380 + $0x20] sm:$0xff]
      %v397 = vld [vmem:[%s380 + $0x28] sm:$0xff]
      %v398 = vld [vmem:[%s380 + $0x30] sm:$0xff]
      %v399 = vld [vmem:[%s380 + $0x38] sm:$0xff]
      %v400 = vld [vmem:[%s380 + $0x40] sm:$0xff]
      %v401 = vld [vmem:[%s380 + $0x48] sm:$0xff]
      %v402 = vld [vmem:[%s380 + $0x50] sm:$0xff]
      %v403 = vld [vmem:[%s380 + $0x58] sm:$0xff]
      %v404 = vld [vmem:[%s380 + $0x60] sm:$0xff]
      %v405 = vld [vmem:[%s380 + $0x68] sm:$0xff]
      %v406 = vld [vmem:[%s380 + $0x70] sm:$0xff]
      %v407 = vld [vmem:[%s380 + $0x78] sm:$0xff]
      %v408 = vld [vmem:[%s380 + $0x80] sm:$0xff]
      %v409 = vld [vmem:[%s380 + $0x88] sm:$0xff]
      %v410 = vld [vmem:[%s380 + $0x90] sm:$0xff]
      %v411 = vld [vmem:[%s380 + $0x98] sm:$0xff]
      %v412 = vld [vmem:[%s380 + $0xa0] sm:$0xff]
      %v413 = vld [vmem:[%s380 + $0xa8] sm:$0xff]
      %v414 = vld [vmem:[%s380 + $0xb0] sm:$0xff]
      %v415 = vld [vmem:[%s380 + $0xb8] sm:$0xff]
      %v416 = vld [vmem:[%s380 + $0xc0] sm:$0xff]
      %v417 = vld [vmem:[%s380 + $0xc8] sm:$0xff]
      %v418 = vld [vmem:[%s380 + $0xd0] sm:$0xff]
      %v419 = vld [vmem:[%s380 + $0xd8] sm:$0xff]
      %v420 = vld [vmem:[%s380 + $0xe0] sm:$0xff]
      %v421 = vld [vmem:[%s380 + $0xe8] sm:$0xff]
      %v422 = vld [vmem:[%s380 + $0xf0] sm:$0xff]
      %v423 = vld [vmem:[%s380 + $0xf8] sm:$0xff]
      %v424 = vld [vmem:[%s1] sm:$0x7]
      %426 = vset.pattern.permute.xlu0 0
      %427 = vperm.xlu0 %426, %v392
      %v428 = vpop.permute.xlu0 %427
      %431 = vset.pattern.permute.xlu0 0
      %432 = vperm.xlu0 %431, %v393
      %v433 = vpop.permute.xlu0 %432
      %436 = vset.pattern.permute.xlu0 0
      %437 = vperm.xlu0 %436, %v394
      %v438 = vpop.permute.xlu0 %437
      %441 = vset.pattern.permute.xlu0 0
      %442 = vperm.xlu0 %441, %v395
      %v443 = vpop.permute.xlu0 %442
      %446 = vset.pattern.permute.xlu0 0
      %447 = vperm.xlu0 %446, %v396
      %v448 = vpop.permute.xlu0 %447
      %451 = vset.pattern.permute.xlu0 0
      %452 = vperm.xlu0 %451, %v397
      %v453 = vpop.permute.xlu0 %452
      %456 = vset.pattern.permute.xlu0 0
      %457 = vperm.xlu0 %456, %v398
      %v458 = vpop.permute.xlu0 %457
      %461 = vset.pattern.permute.xlu0 0
      %462 = vperm.xlu0 %461, %v399
      %v463 = vpop.permute.xlu0 %462
      %466 = vset.pattern.permute.xlu0 0
      %467 = vperm.xlu0 %466, %v400
      %v468 = vpop.permute.xlu0 %467
      %471 = vset.pattern.permute.xlu0 0
      %472 = vperm.xlu0 %471, %v401
      %v473 = vpop.permute.xlu0 %472
      %476 = vset.pattern.permute.xlu0 0
      %477 = vperm.xlu0 %476, %v402
      %v478 = vpop.permute.xlu0 %477
      %481 = vset.pattern.permute.xlu0 0
      %482 = vperm.xlu0 %481, %v403
      %v483 = vpop.permute.xlu0 %482
      %486 = vset.pattern.permute.xlu0 0
      %487 = vperm.xlu0 %486, %v404
      %v488 = vpop.permute.xlu0 %487
      %491 = vset.pattern.permute.xlu0 0
      %492 = vperm.xlu0 %491, %v405
      %v493 = vpop.permute.xlu0 %492
      %496 = vset.pattern.permute.xlu0 0
      %497 = vperm.xlu0 %496, %v406
      %v498 = vpop.permute.xlu0 %497
      %501 = vset.pattern.permute.xlu0 0
      %502 = vperm.xlu0 %501, %v407
      %v503 = vpop.permute.xlu0 %502
      %506 = vset.pattern.permute.xlu0 0
      %507 = vperm.xlu0 %506, %v408
      %v508 = vpop.permute.xlu0 %507
      %511 = vset.pattern.permute.xlu0 0
      %512 = vperm.xlu0 %511, %v409
      %v513 = vpop.permute.xlu0 %512
      %516 = vset.pattern.permute.xlu0 0
      %517 = vperm.xlu0 %516, %v410
      %v518 = vpop.permute.xlu0 %517
      %521 = vset.pattern.permute.xlu0 0
      %522 = vperm.xlu0 %521, %v411
      %v523 = vpop.permute.xlu0 %522
      %526 = vset.pattern.permute.xlu0 0
      %527 = vperm.xlu0 %526, %v412
      %v528 = vpop.permute.xlu0 %527
      %531 = vset.pattern.permute.xlu0 0
      %532 = vperm.xlu0 %531, %v413
      %v533 = vpop.permute.xlu0 %532
      %536 = vset.pattern.permute.xlu0 0
      %537 = vperm.xlu0 %536, %v414
      %v538 = vpop.permute.xlu0 %537
      %541 = vset.pattern.permute.xlu0 0
      %542 = vperm.xlu0 %541, %v415
      %v543 = vpop.permute.xlu0 %542
      %546 = vset.pattern.permute.xlu0 0
      %547 = vperm.xlu0 %546, %v416
      %v548 = vpop.permute.xlu0 %547
      %551 = vset.pattern.permute.xlu0 0
      %552 = vperm.xlu0 %551, %v417
      %v553 = vpop.permute.xlu0 %552
      %556 = vset.pattern.permute.xlu0 0
      %557 = vperm.xlu0 %556, %v418
      %v558 = vpop.permute.xlu0 %557
      %561 = vset.pattern.permute.xlu0 0
      %562 = vperm.xlu0 %561, %v419
      %v563 = vpop.permute.xlu0 %562
      %566 = vset.pattern.permute.xlu0 0
      %567 = vperm.xlu0 %566, %v420
      %v568 = vpop.permute.xlu0 %567
      %571 = vset.pattern.permute.xlu0 0
      %572 = vperm.xlu0 %571, %v421
      %v573 = vpop.permute.xlu0 %572
      %576 = vset.pattern.permute.xlu0 0
      %577 = vperm.xlu0 %576, %v422
      %v578 = vpop.permute.xlu0 %577
      %581 = vset.pattern.permute.xlu0 0
      %582 = vperm.xlu0 %581, %v423
      %v583 = vpop.permute.xlu0 %582
      %v585 = vlaneseq
      %v586 = vshrl.u32 %v585, 7
      %v587 = vsub.s32 0, %v586
      %v588 = vrot.slane %v424, %v587
      %v589 = vmul.f32 %v428, %v588
      %v590 = vmul.f32 %v433, %v588
      %v591 = vmul.f32 %v438, %v588
      %v592 = vmul.f32 %v443, %v588
      %v593 = vmul.f32 %v448, %v588
      %v594 = vmul.f32 %v453, %v588
      %v595 = vmul.f32 %v458, %v588
      %v596 = vmul.f32 %v463, %v588
      %v597 = vmul.f32 %v468, %v588
      %v598 = vmul.f32 %v473, %v588
      %v599 = vmul.f32 %v478, %v588
      %v600 = vmul.f32 %v483, %v588
      %v601 = vmul.f32 %v488, %v588
      %v602 = vmul.f32 %v493, %v588
      %v603 = vmul.f32 %v498, %v588
      %v604 = vmul.f32 %v503, %v588
      %v605 = vmul.f32 %v508, %v588
      %v606 = vmul.f32 %v513, %v588
      %v607 = vmul.f32 %v518, %v588
      %v608 = vmul.f32 %v523, %v588
      %v609 = vmul.f32 %v528, %v588
      %v610 = vmul.f32 %v533, %v588
      %v611 = vmul.f32 %v538, %v588
      %v612 = vmul.f32 %v543, %v588
      %v613 = vmul.f32 %v548, %v588
      %v614 = vmul.f32 %v553, %v588
      %v615 = vmul.f32 %v558, %v588
      %v616 = vmul.f32 %v563, %v588
      %v617 = vmul.f32 %v568, %v588
      %v618 = vmul.f32 %v573, %v588
      %v619 = vmul.f32 %v578, %v588
      %v620 = vmul.f32 %v583, %v588
      %621 = vset.pattern.permute.xlu0 1
      %622 = vperm.xlu0 %621, %v392
      %v623 = vpop.permute.xlu0 %622
      %625 = vset.pattern.permute.xlu0 1
      %626 = vperm.xlu0 %625, %v393
      %v627 = vpop.permute.xlu0 %626
      %629 = vset.pattern.permute.xlu0 1
      %630 = vperm.xlu0 %629, %v394
      %v631 = vpop.permute.xlu0 %630
      %633 = vset.pattern.permute.xlu0 1
      %634 = vperm.xlu0 %633, %v395
      %v635 = vpop.permute.xlu0 %634
      %637 = vset.pattern.permute.xlu0 1
      %638 = vperm.xlu0 %637, %v396
      %v639 = vpop.permute.xlu0 %638
      %641 = vset.pattern.permute.xlu0 1
      %642 = vperm.xlu0 %641, %v397
      %v643 = vpop.permute.xlu0 %642
      %645 = vset.pattern.permute.xlu0 1
      %646 = vperm.xlu0 %645, %v398
      %v647 = vpop.permute.xlu0 %646
      %649 = vset.pattern.permute.xlu0 1
      %650 = vperm.xlu0 %649, %v399
      %v651 = vpop.permute.xlu0 %650
      %653 = vset.pattern.permute.xlu0 1
      %654 = vperm.xlu0 %653, %v400
      %v655 = vpop.permute.xlu0 %654
      %657 = vset.pattern.permute.xlu0 1
      %658 = vperm.xlu0 %657, %v401
      %v659 = vpop.permute.xlu0 %658
      %661 = vset.pattern.permute.xlu0 1
      %662 = vperm.xlu0 %661, %v402
      %v663 = vpop.permute.xlu0 %662
      %665 = vset.pattern.permute.xlu0 1
      %666 = vperm.xlu0 %665, %v403
      %v667 = vpop.permute.xlu0 %666
      %669 = vset.pattern.permute.xlu0 1
      %670 = vperm.xlu0 %669, %v404
      %v671 = vpop.permute.xlu0 %670
      %673 = vset.pattern.permute.xlu0 1
      %674 = vperm.xlu0 %673, %v405
      %v675 = vpop.permute.xlu0 %674
      %677 = vset.pattern.permute.xlu0 1
      %678 = vperm.xlu0 %677, %v406
      %v679 = vpop.permute.xlu0 %678
      %681 = vset.pattern.permute.xlu0 1
      %682 = vperm.xlu0 %681, %v407
      %v683 = vpop.permute.xlu0 %682
      %685 = vset.pattern.permute.xlu0 1
      %686 = vperm.xlu0 %685, %v408
      %v687 = vpop.permute.xlu0 %686
      %689 = vset.pattern.permute.xlu0 1
      %690 = vperm.xlu0 %689, %v409
      %v691 = vpop.permute.xlu0 %690
      %693 = vset.pattern.permute.xlu0 1
      %694 = vperm.xlu0 %693, %v410
      %v695 = vpop.permute.xlu0 %694
      %697 = vset.pattern.permute.xlu0 1
      %698 = vperm.xlu0 %697, %v411
      %v699 = vpop.permute.xlu0 %698
      %701 = vset.pattern.permute.xlu0 1
      %702 = vperm.xlu0 %701, %v412
      %v703 = vpop.permute.xlu0 %702
      %705 = vset.pattern.permute.xlu0 1
      %706 = vperm.xlu0 %705, %v413
      %v707 = vpop.permute.xlu0 %706
      %709 = vset.pattern.permute.xlu0 1
      %710 = vperm.xlu0 %709, %v414
      %v711 = vpop.permute.xlu0 %710
      %713 = vset.pattern.permute.xlu0 1
      %714 = vperm.xlu0 %713, %v415
      %v715 = vpop.permute.xlu0 %714
      %717 = vset.pattern.permute.xlu0 1
      %718 = vperm.xlu0 %717, %v416
      %v719 = vpop.permute.xlu0 %718
      %721 = vset.pattern.permute.xlu0 1
      %722 = vperm.xlu0 %721, %v417
      %v723 = vpop.permute.xlu0 %722
      %725 = vset.pattern.permute.xlu0 1
      %726 = vperm.xlu0 %725, %v418
      %v727 = vpop.permute.xlu0 %726
      %729 = vset.pattern.permute.xlu0 1
      %730 = vperm.xlu0 %729, %v419
      %v731 = vpop.permute.xlu0 %730
      %733 = vset.pattern.permute.xlu0 1
      %734 = vperm.xlu0 %733, %v420
      %v735 = vpop.permute.xlu0 %734
      %737 = vset.pattern.permute.xlu0 1
      %738 = vperm.xlu0 %737, %v421
      %v739 = vpop.permute.xlu0 %738
      %741 = vset.pattern.permute.xlu0 1
      %742 = vperm.xlu0 %741, %v422
      %v743 = vpop.permute.xlu0 %742
      %745 = vset.pattern.permute.xlu0 1
      %746 = vperm.xlu0 %745, %v423
      %v747 = vpop.permute.xlu0 %746
      %v749 = vlaneseq
      %v750 = vshrl.u32 %v749, 7
      %v751 = vsub.s32 1, %v750
      %v752 = vrot.slane %v424, %v751
      %v753 = vmul.f32 %v623, %v752
      %v754 = vmul.f32 %v627, %v752
      %v755 = vmul.f32 %v631, %v752
      %v756 = vmul.f32 %v635, %v752
      %v757 = vmul.f32 %v639, %v752
      %v758 = vmul.f32 %v643, %v752
      %v759 = vmul.f32 %v647, %v752
      %v760 = vmul.f32 %v651, %v752
      %v761 = vmul.f32 %v655, %v752
      %v762 = vmul.f32 %v659, %v752
      %v763 = vmul.f32 %v663, %v752
      %v764 = vmul.f32 %v667, %v752
      %v765 = vmul.f32 %v671, %v752
      %v766 = vmul.f32 %v675, %v752
      %v767 = vmul.f32 %v679, %v752
      %v768 = vmul.f32 %v683, %v752
      %v769 = vmul.f32 %v687, %v752
      %v770 = vmul.f32 %v691, %v752
      %v771 = vmul.f32 %v695, %v752
      %v772 = vmul.f32 %v699, %v752
      %v773 = vmul.f32 %v703, %v752
      %v774 = vmul.f32 %v707, %v752
      %v775 = vmul.f32 %v711, %v752
      %v776 = vmul.f32 %v715, %v752
      %v777 = vmul.f32 %v719, %v752
      %v778 = vmul.f32 %v723, %v752
      %v779 = vmul.f32 %v727, %v752
      %v780 = vmul.f32 %v731, %v752
      %v781 = vmul.f32 %v735, %v752
      %v782 = vmul.f32 %v739, %v752
      %v783 = vmul.f32 %v743, %v752
      %v784 = vmul.f32 %v747, %v752
      %v785 = vadd.f32 %v589, %v753
      %v786 = vadd.f32 %v590, %v754
      %v787 = vadd.f32 %v591, %v755
      %v788 = vadd.f32 %v592, %v756
      %v789 = vadd.f32 %v593, %v757
      %v790 = vadd.f32 %v594, %v758
      %v791 = vadd.f32 %v595, %v759
      %v792 = vadd.f32 %v596, %v760
      %v793 = vadd.f32 %v597, %v761
      %v794 = vadd.f32 %v598, %v762
      %v795 = vadd.f32 %v599, %v763
      %v796 = vadd.f32 %v600, %v764
      %v797 = vadd.f32 %v601, %v765
      %v798 = vadd.f32 %v602, %v766
      %v799 = vadd.f32 %v603, %v767
      %v800 = vadd.f32 %v604, %v768
      %v801 = vadd.f32 %v605, %v769
      %v802 = vadd.f32 %v606, %v770
      %v803 = vadd.f32 %v607, %v771
      %v804 = vadd.f32 %v608, %v772
      %v805 = vadd.f32 %v609, %v773
      %v806 = vadd.f32 %v610, %v774
      %v807 = vadd.f32 %v611, %v775
      %v808 = vadd.f32 %v612, %v776
      %v809 = vadd.f32 %v613, %v777
      %v810 = vadd.f32 %v614, %v778
      %v811 = vadd.f32 %v615, %v779
      %v812 = vadd.f32 %v616, %v780
      %v813 = vadd.f32 %v617, %v781
      %v814 = vadd.f32 %v618, %v782
      %v815 = vadd.f32 %v619, %v783
      %v816 = vadd.f32 %v620, %v784
      %817 = vset.pattern.permute.xlu0 2
      %818 = vperm.xlu0 %817, %v392
      %v819 = vpop.permute.xlu0 %818
      %821 = vset.pattern.permute.xlu0 2
      %822 = vperm.xlu0 %821, %v393
      %v823 = vpop.permute.xlu0 %822
      %825 = vset.pattern.permute.xlu0 2
      %826 = vperm.xlu0 %825, %v394
      %v827 = vpop.permute.xlu0 %826
      %829 = vset.pattern.permute.xlu0 2
      %830 = vperm.xlu0 %829, %v395
      %v831 = vpop.permute.xlu0 %830
      %833 = vset.pattern.permute.xlu0 2
      %834 = vperm.xlu0 %833, %v396
      %v835 = vpop.permute.xlu0 %834
      %837 = vset.pattern.permute.xlu0 2
      %838 = vperm.xlu0 %837, %v397
      %v839 = vpop.permute.xlu0 %838
      %841 = vset.pattern.permute.xlu0 2
      %842 = vperm.xlu0 %841, %v398
      %v843 = vpop.permute.xlu0 %842
      %845 = vset.pattern.permute.xlu0 2
      %846 = vperm.xlu0 %845, %v399
      %v847 = vpop.permute.xlu0 %846
      %849 = vset.pattern.permute.xlu0 2
      %850 = vperm.xlu0 %849, %v400
      %v851 = vpop.permute.xlu0 %850
      %853 = vset.pattern.permute.xlu0 2
      %854 = vperm.xlu0 %853, %v401
      %v855 = vpop.permute.xlu0 %854
      %857 = vset.pattern.permute.xlu0 2
      %858 = vperm.xlu0 %857, %v402
      %v859 = vpop.permute.xlu0 %858
      %861 = vset.pattern.permute.xlu0 2
      %862 = vperm.xlu0 %861, %v403
      %v863 = vpop.permute.xlu0 %862
      %865 = vset.pattern.permute.xlu0 2
      %866 = vperm.xlu0 %865, %v404
      %v867 = vpop.permute.xlu0 %866
      %869 = vset.pattern.permute.xlu0 2
      %870 = vperm.xlu0 %869, %v405
      %v871 = vpop.permute.xlu0 %870
      %873 = vset.pattern.permute.xlu0 2
      %874 = vperm.xlu0 %873, %v406
      %v875 = vpop.permute.xlu0 %874
      %877 = vset.pattern.permute.xlu0 2
      %878 = vperm.xlu0 %877, %v407
      %v879 = vpop.permute.xlu0 %878
      %881 = vset.pattern.permute.xlu0 2
      %882 = vperm.xlu0 %881, %v408
      %v883 = vpop.permute.xlu0 %882
      %885 = vset.pattern.permute.xlu0 2
      %886 = vperm.xlu0 %885, %v409
      %v887 = vpop.permute.xlu0 %886
      %889 = vset.pattern.permute.xlu0 2
      %890 = vperm.xlu0 %889, %v410
      %v891 = vpop.permute.xlu0 %890
      %893 = vset.pattern.permute.xlu0 2
      %894 = vperm.xlu0 %893, %v411
      %v895 = vpop.permute.xlu0 %894
      %897 = vset.pattern.permute.xlu0 2
      %898 = vperm.xlu0 %897, %v412
      %v899 = vpop.permute.xlu0 %898
      %901 = vset.pattern.permute.xlu0 2
      %902 = vperm.xlu0 %901, %v413
      %v903 = vpop.permute.xlu0 %902
      %905 = vset.pattern.permute.xlu0 2
      %906 = vperm.xlu0 %905, %v414
      %v907 = vpop.permute.xlu0 %906
      %909 = vset.pattern.permute.xlu0 2
      %910 = vperm.xlu0 %909, %v415
      %v911 = vpop.permute.xlu0 %910
      %913 = vset.pattern.permute.xlu0 2
      %914 = vperm.xlu0 %913, %v416
      %v915 = vpop.permute.xlu0 %914
      %917 = vset.pattern.permute.xlu0 2
      %918 = vperm.xlu0 %917, %v417
      %v919 = vpop.permute.xlu0 %918
      %921 = vset.pattern.permute.xlu0 2
      %922 = vperm.xlu0 %921, %v418
      %v923 = vpop.permute.xlu0 %922
      %925 = vset.pattern.permute.xlu0 2
      %926 = vperm.xlu0 %925, %v419
      %v927 = vpop.permute.xlu0 %926
      %929 = vset.pattern.permute.xlu0 2
      %930 = vperm.xlu0 %929, %v420
      %v931 = vpop.permute.xlu0 %930
      %933 = vset.pattern.permute.xlu0 2
      %934 = vperm.xlu0 %933, %v421
      %v935 = vpop.permute.xlu0 %934
      %937 = vset.pattern.permute.xlu0 2
      %938 = vperm.xlu0 %937, %v422
      %v939 = vpop.permute.xlu0 %938
      %941 = vset.pattern.permute.xlu0 2
      %942 = vperm.xlu0 %941, %v423
      %v943 = vpop.permute.xlu0 %942
      %v945 = vlaneseq
      %v946 = vshrl.u32 %v945, 7
      %v947 = vsub.s32 2, %v946
      %v948 = vrot.slane %v424, %v947
      %v949 = vmul.f32 %v819, %v948
      %v950 = vmul.f32 %v823, %v948
      %v951 = vmul.f32 %v827, %v948
      %v952 = vmul.f32 %v831, %v948
      %v953 = vmul.f32 %v835, %v948
      %v954 = vmul.f32 %v839, %v948
      %v955 = vmul.f32 %v843, %v948
      %v956 = vmul.f32 %v847, %v948
      %v957 = vmul.f32 %v851, %v948
      %v958 = vmul.f32 %v855, %v948
      %v959 = vmul.f32 %v859, %v948
      %v960 = vmul.f32 %v863, %v948
      %v961 = vmul.f32 %v867, %v948
      %v962 = vmul.f32 %v871, %v948
      %v963 = vmul.f32 %v875, %v948
      %v964 = vmul.f32 %v879, %v948
      %v965 = vmul.f32 %v883, %v948
      %v966 = vmul.f32 %v887, %v948
      %v967 = vmul.f32 %v891, %v948
      %v968 = vmul.f32 %v895, %v948
      %v969 = vmul.f32 %v899, %v948
      %v970 = vmul.f32 %v903, %v948
      %v971 = vmul.f32 %v907, %v948
      %v972 = vmul.f32 %v911, %v948
      %v973 = vmul.f32 %v915, %v948
      %v974 = vmul.f32 %v919, %v948
      %v975 = vmul.f32 %v923, %v948
      %v976 = vmul.f32 %v927, %v948
      %v977 = vmul.f32 %v931, %v948
      %v978 = vmul.f32 %v935, %v948
      %v979 = vmul.f32 %v939, %v948
      %v980 = vmul.f32 %v943, %v948
      %v981 = vadd.f32 %v785, %v949
      %v982 = vadd.f32 %v786, %v950
      %v983 = vadd.f32 %v787, %v951
      %v984 = vadd.f32 %v788, %v952
      %v985 = vadd.f32 %v789, %v953
      %v986 = vadd.f32 %v790, %v954
      %v987 = vadd.f32 %v791, %v955
      %v988 = vadd.f32 %v792, %v956
      %v989 = vadd.f32 %v793, %v957
      %v990 = vadd.f32 %v794, %v958
      %v991 = vadd.f32 %v795, %v959
      %v992 = vadd.f32 %v796, %v960
      %v993 = vadd.f32 %v797, %v961
      %v994 = vadd.f32 %v798, %v962
      %v995 = vadd.f32 %v799, %v963
      %v996 = vadd.f32 %v800, %v964
      %v997 = vadd.f32 %v801, %v965
      %v998 = vadd.f32 %v802, %v966
      %v999 = vadd.f32 %v803, %v967
      %v1000 = vadd.f32 %v804, %v968
      %v1001 = vadd.f32 %v805, %v969
      %v1002 = vadd.f32 %v806, %v970
      %v1003 = vadd.f32 %v807, %v971
      %v1004 = vadd.f32 %v808, %v972
      %v1005 = vadd.f32 %v809, %v973
      %v1006 = vadd.f32 %v810, %v974
      %v1007 = vadd.f32 %v811, %v975
      %v1008 = vadd.f32 %v812, %v976
      %v1009 = vadd.f32 %v813, %v977
      %v1010 = vadd.f32 %v814, %v978
      %v1011 = vadd.f32 %v815, %v979
      %v1012 = vadd.f32 %v816, %v980
      %v1013 = vld [vmem:[%s2] sm:$0x1]
      %v1015 = vlaneseq
      %v1016 = vshrl.u32 %v1015, 7
      %v1017 = vsub.s32 0, %v1016
      %v1018 = vrot.slane %v1013, %v1017
      %v1020 = vmul.f32 %v981, %v1018
      %v1021 = vmul.f32 %v982, %v1018
      %v1022 = vmul.f32 %v983, %v1018
      %v1023 = vmul.f32 %v984, %v1018
      %v1024 = vmul.f32 %v985, %v1018
      %v1025 = vmul.f32 %v986, %v1018
      %v1026 = vmul.f32 %v987, %v1018
      %v1027 = vmul.f32 %v988, %v1018
      %v1028 = vmul.f32 %v989, %v1018
      %v1029 = vmul.f32 %v990, %v1018
      %v1030 = vmul.f32 %v991, %v1018
      %v1031 = vmul.f32 %v992, %v1018
      %v1032 = vmul.f32 %v993, %v1018
      %v1033 = vmul.f32 %v994, %v1018
      %v1034 = vmul.f32 %v995, %v1018
      %v1035 = vmul.f32 %v996, %v1018
      %v1036 = vmul.f32 %v997, %v1018
      %v1037 = vmul.f32 %v998, %v1018
      %v1038 = vmul.f32 %v999, %v1018
      %v1039 = vmul.f32 %v1000, %v1018
      %v1040 = vmul.f32 %v1001, %v1018
      %v1041 = vmul.f32 %v1002, %v1018
      %v1042 = vmul.f32 %v1003, %v1018
      %v1043 = vmul.f32 %v1004, %v1018
      %v1044 = vmul.f32 %v1005, %v1018
      %v1045 = vmul.f32 %v1006, %v1018
      %v1046 = vmul.f32 %v1007, %v1018
      %v1047 = vmul.f32 %v1008, %v1018
      %v1048 = vmul.f32 %v1009, %v1018
      %v1049 = vmul.f32 %v1010, %v1018
      %v1050 = vmul.f32 %v1011, %v1018
      %v1051 = vmul.f32 %v1012, %v1018
      %v1052 = vld [vmem:[%s3] sm:$0x1]
      %v1054 = vlaneseq
      %v1055 = vshrl.u32 %v1054, 7
      %v1056 = vsub.s32 0, %v1055
      %v1057 = vrot.slane %v1052, %v1056
      %v1059 = vadd.f32 %v1020, %v1057
      %v1060 = vadd.f32 %v1021, %v1057
      %v1061 = vadd.f32 %v1022, %v1057
      %v1062 = vadd.f32 %v1023, %v1057
      %v1063 = vadd.f32 %v1024, %v1057
      %v1064 = vadd.f32 %v1025, %v1057
      %v1065 = vadd.f32 %v1026, %v1057
      %v1066 = vadd.f32 %v1027, %v1057
      %v1067 = vadd.f32 %v1028, %v1057
      %v1068 = vadd.f32 %v1029, %v1057
      %v1069 = vadd.f32 %v1030, %v1057
      %v1070 = vadd.f32 %v1031, %v1057
      %v1071 = vadd.f32 %v1032, %v1057
      %v1072 = vadd.f32 %v1033, %v1057
      %v1073 = vadd.f32 %v1034, %v1057
      %v1074 = vadd.f32 %v1035, %v1057
      %v1075 = vadd.f32 %v1036, %v1057
      %v1076 = vadd.f32 %v1037, %v1057
      %v1077 = vadd.f32 %v1038, %v1057
      %v1078 = vadd.f32 %v1039, %v1057
      %v1079 = vadd.f32 %v1040, %v1057
      %v1080 = vadd.f32 %v1041, %v1057
      %v1081 = vadd.f32 %v1042, %v1057
      %v1082 = vadd.f32 %v1043, %v1057
      %v1083 = vadd.f32 %v1044, %v1057
      %v1084 = vadd.f32 %v1045, %v1057
      %v1085 = vadd.f32 %v1046, %v1057
      %v1086 = vadd.f32 %v1047, %v1057
      %v1087 = vadd.f32 %v1048, %v1057
      %v1088 = vadd.f32 %v1049, %v1057
      %v1089 = vadd.f32 %v1050, %v1057
      %v1090 = vadd.f32 %v1051, %v1057
      %v1091 = vmax.f32 %v1059, 0.0
      %v1092 = vmax.f32 %v1060, 0.0
      %v1093 = vmax.f32 %v1061, 0.0
      %v1094 = vmax.f32 %v1062, 0.0
      %v1095 = vmax.f32 %v1063, 0.0
      %v1096 = vmax.f32 %v1064, 0.0
      %v1097 = vmax.f32 %v1065, 0.0
      %v1098 = vmax.f32 %v1066, 0.0
      %v1099 = vmax.f32 %v1067, 0.0
      %v1100 = vmax.f32 %v1068, 0.0
      %v1101 = vmax.f32 %v1069, 0.0
      %v1102 = vmax.f32 %v1070, 0.0
      %v1103 = vmax.f32 %v1071, 0.0
      %v1104 = vmax.f32 %v1072, 0.0
      %v1105 = vmax.f32 %v1073, 0.0
      %v1106 = vmax.f32 %v1074, 0.0
      %v1107 = vmax.f32 %v1075, 0.0
      %v1108 = vmax.f32 %v1076, 0.0
      %v1109 = vmax.f32 %v1077, 0.0
      %v1110 = vmax.f32 %v1078, 0.0
      %v1111 = vmax.f32 %v1079, 0.0
      %v1112 = vmax.f32 %v1080, 0.0
      %v1113 = vmax.f32 %v1081, 0.0
      %v1114 = vmax.f32 %v1082, 0.0
      %v1115 = vmax.f32 %v1083, 0.0
      %v1116 = vmax.f32 %v1084, 0.0
      %v1117 = vmax.f32 %v1085, 0.0
      %v1118 = vmax.f32 %v1086, 0.0
      %v1119 = vmax.f32 %v1087, 0.0
      %v1120 = vmax.f32 %v1088, 0.0
      %v1121 = vmax.f32 %v1089, 0.0
      %v1122 = vmax.f32 %v1090, 0.0
      %v1123 = vpack.c.bf16 %v1092, %v1091
      %v1124 = vpack.c.bf16 %v1094, %v1093
      %v1125 = vpack.c.bf16 %v1096, %v1095
      %v1126 = vpack.c.bf16 %v1098, %v1097
      %v1127 = vpack.c.bf16 %v1100, %v1099
      %v1128 = vpack.c.bf16 %v1102, %v1101
      %v1129 = vpack.c.bf16 %v1104, %v1103
      %v1130 = vpack.c.bf16 %v1106, %v1105
      %v1131 = vpack.c.bf16 %v1108, %v1107
      %v1132 = vpack.c.bf16 %v1110, %v1109
      %v1133 = vpack.c.bf16 %v1112, %v1111
      %v1134 = vpack.c.bf16 %v1114, %v1113
      %v1135 = vpack.c.bf16 %v1116, %v1115
      %v1136 = vpack.c.bf16 %v1118, %v1117
      %v1137 = vpack.c.bf16 %v1120, %v1119
      %v1138 = vpack.c.bf16 %v1122, %v1121
      %v1139 = vld [vmem:[%s4] sm:$0xf]
      %v1140 = vld [vmem:[%s4 + $0x4] sm:$0xf]
      %v1141 = vld [vmem:[%s4 + $0x8] sm:$0xf]
      %v1142 = vld [vmem:[%s4 + $0xc] sm:$0xf]
      %v1143 = vld [vmem:[%s4 + $0x10] sm:$0xf]
      %v1144 = vld [vmem:[%s4 + $0x14] sm:$0xf]
      %v1145 = vld [vmem:[%s4 + $0x18] sm:$0xf]
      %v1146 = vld [vmem:[%s4 + $0x1c] sm:$0xf]
      %v1155 = vunpack.c.l.b16 %v1139
      %v1156 = vunpack.c.l.b16 %v1140
      %v1157 = vunpack.c.l.b16 %v1141
      %v1158 = vunpack.c.l.b16 %v1142
      %v1159 = vunpack.c.l.b16 %v1143
      %v1160 = vunpack.c.l.b16 %v1144
      %v1161 = vunpack.c.l.b16 %v1145
      %v1162 = vunpack.c.l.b16 %v1146
      %v1163 = vpack.c.b16 %v1156, %v1155
      %v1164 = vpack.c.b16 %v1158, %v1157
      %v1165 = vpack.c.b16 %v1160, %v1159
      %v1166 = vpack.c.b16 %v1162, %v1161
      %vm1171 = vcmask 523264
      %v1173 = vsel %vm1171, %v1123, 0
      %v1176 = vsel %vm1171, %v1124, 0
      %v1179 = vsel %vm1171, %v1125, 0
      %v1182 = vsel %vm1171, %v1126, 0
      %v1185 = vsel %vm1171, %v1127, 0
      %v1188 = vsel %vm1171, %v1128, 0
      %v1191 = vsel %vm1171, %v1129, 0
      %v1194 = vsel %vm1171, %v1130, 0
      %v1197 = vsel %vm1171, %v1131, 0
      %v1200 = vsel %vm1171, %v1132, 0
      %v1203 = vsel %vm1171, %v1133, 0
      %v1206 = vsel %vm1171, %v1134, 0
      %v1209 = vsel %vm1171, %v1135, 0
      %v1212 = vsel %vm1171, %v1136, 0
      %v1215 = vsel %vm1171, %v1137, 0
      %v1218 = vsel %vm1171, %v1138, 0
      %1220 = vmatprep.subr.bf16.mxu0 0
      %1221 = vmatpush1.bf16.msra.mxu0 %v1163
      %1222 = vmatprep.subr.bf16.mxu0 0
      %1223 = vmatpush1.bf16.msra.mxu0 %v1164
      %1224 = vmatprep.subr.bf16.mxu0 0
      %1225 = vmatpush1.bf16.msra.mxu0 %v1165
      %1226 = vmatprep.subr.bf16.mxu0 0
      %1227 = vmatpush1.bf16.msra.mxu0 %v1166
      %1228 = vmatprep.subr.bf16.mxu0 0
      %1229 = vmatpush1.bf16.msra.mxu0 0
      %1230 = vmatprep.subr.bf16.mxu0 0
      %1231 = vmatpush1.bf16.msra.mxu0 0
      %1232 = vmatprep.subr.bf16.mxu0 0
      %1233 = vmatpush1.bf16.msra.mxu0 0
      %1234 = vmatprep.subr.bf16.mxu0 0
      %1235 = vmatpush1.bf16.msra.mxu0 0
      %1236 = vmatprep.subr.bf16.mxu0 0
      %1237 = vmatpush1.bf16.msra.mxu0 0
      %1238 = vmatprep.subr.bf16.mxu0 0
      %1239 = vmatpush1.bf16.msra.mxu0 0
      %1240 = vmatprep.subr.bf16.mxu0 0
      %1241 = vmatpush1.bf16.msra.mxu0 0
      %1242 = vmatprep.subr.bf16.mxu0 0
      %1243 = vmatpush1.bf16.msra.mxu0 0
      %1244 = vmatprep.subr.bf16.mxu0 0
      %1245 = vmatpush1.bf16.msra.mxu0 0
      %1246 = vmatprep.subr.bf16.mxu0 0
      %1247 = vmatpush1.bf16.msra.mxu0 0
      %1248 = vmatprep.subr.bf16.mxu0 0
      %1249 = vmatpush1.bf16.msra.mxu0 0
      %1250 = vmatprep.subr.bf16.mxu0 0
      %1251 = vmatpush1.bf16.msra.mxu0 0
      %1252 = vmatprep.mubr.bf16.mxu0 0
      %1253 = vmatmul.mubr.bf16.gmra.mrb[0].mxu0 %v1173
      %v1254 = vpop.f32.mrb[0].mxu0
      %v1255 = vadd.f32 0.0, %v1254
      %v1256 = vpop.f32.mrb[0].mxu0
      %v1257 = vpop.f32.mrb[0].mxu0
      %v1258 = vadd.f32 0.0, %v1257
      %v1259 = vpop.f32.mrb[0].mxu0
      %1260 = vmatprep.mubr.bf16.mxu0 0
      %1261 = vmatmul.mubr.bf16.gmra.mrb[0].mxu0 %v1176
      %v1262 = vpop.f32.mrb[0].mxu0
      %v1263 = vadd.f32 0.0, %v1262
      %v1264 = vpop.f32.mrb[0].mxu0
      %v1265 = vpop.f32.mrb[0].mxu0
      %v1266 = vadd.f32 0.0, %v1265
      %v1267 = vpop.f32.mrb[0].mxu0
      %1268 = vmatprep.mubr.bf16.mxu0 0
      %1269 = vmatmul.mubr.bf16.gmra.mrb[0].mxu0 %v1179
      %v1270 = vpop.f32.mrb[0].mxu0
      %v1271 = vadd.f32 0.0, %v1270
      %v1272 = vpop.f32.mrb[0].mxu0
      %v1273 = vpop.f32.mrb[0].mxu0
      %v1274 = vadd.f32 0.0, %v1273
      %v1275 = vpop.f32.mrb[0].mxu0
      %1276 = vmatprep.mubr.bf16.mxu0 0
      %1277 = vmatmul.mubr.bf16.gmra.mrb[0].mxu0 %v1182
      %v1278 = vpop.f32.mrb[0].mxu0
      %v1279 = vadd.f32 0.0, %v1278
      %v1280 = vpop.f32.mrb[0].mxu0
      %v1281 = vpop.f32.mrb[0].mxu0
      %v1282 = vadd.f32 0.0, %v1281
      %v1283 = vpop.f32.mrb[0].mxu0
      %1284 = vmatprep.mubr.bf16.mxu0 0
      %1285 = vmatmul.mubr.bf16.gmra.mrb[0].mxu0 %v1185
      %v1286 = vpop.f32.mrb[0].mxu0
      %v1287 = vadd.f32 0.0, %v1286
      %v1288 = vpop.f32.mrb[0].mxu0
      %v1289 = vpop.f32.mrb[0].mxu0
      %v1290 = vadd.f32 0.0, %v1289
      %v1291 = vpop.f32.mrb[0].mxu0
      %1292 = vmatprep.mubr.bf16.mxu0 0
      %1293 = vmatmul.mubr.bf16.gmra.mrb[0].mxu0 %v1188
      %v1294 = vpop.f32.mrb[0].mxu0
      %v1295 = vadd.f32 0.0, %v1294
      %v1296 = vpop.f32.mrb[0].mxu0
      %v1297 = vpop.f32.mrb[0].mxu0
      %v1298 = vadd.f32 0.0, %v1297
      %v1299 = vpop.f32.mrb[0].mxu0
      %1300 = vmatprep.mubr.bf16.mxu0 0
      %1301 = vmatmul.mubr.bf16.gmra.mrb[0].mxu0 %v1191
      %v1302 = vpop.f32.mrb[0].mxu0
      %v1303 = vadd.f32 0.0, %v1302
      %v1304 = vpop.f32.mrb[0].mxu0
      %v1305 = vpop.f32.mrb[0].mxu0
      %v1306 = vadd.f32 0.0, %v1305
      %v1307 = vpop.f32.mrb[0].mxu0
      %1308 = vmatprep.mubr.bf16.mxu0 0
      %1309 = vmatmul.mubr.bf16.gmra.mrb[0].mxu0 %v1194
      %v1310 = vpop.f32.mrb[0].mxu0
      %v1311 = vadd.f32 0.0, %v1310
      %v1312 = vpop.f32.mrb[0].mxu0
      %v1313 = vpop.f32.mrb[0].mxu0
      %v1314 = vadd.f32 0.0, %v1313
      %v1315 = vpop.f32.mrb[0].mxu0
      %1316 = vmatprep.mubr.bf16.mxu0 0
      %1317 = vmatmul.mubr.bf16.gmra.mrb[0].mxu0 %v1197
      %v1318 = vpop.f32.mrb[0].mxu0
      %v1319 = vadd.f32 0.0, %v1318
      %v1320 = vpop.f32.mrb[0].mxu0
      %v1321 = vpop.f32.mrb[0].mxu0
      %v1322 = vadd.f32 0.0, %v1321
      %v1323 = vpop.f32.mrb[0].mxu0
      %1324 = vmatprep.mubr.bf16.mxu0 0
      %1325 = vmatmul.mubr.bf16.gmra.mrb[0].mxu0 %v1200
      %v1326 = vpop.f32.mrb[0].mxu0
      %v1327 = vadd.f32 0.0, %v1326
      %v1328 = vpop.f32.mrb[0].mxu0
      %v1329 = vpop.f32.mrb[0].mxu0
      %v1330 = vadd.f32 0.0, %v1329
      %v1331 = vpop.f32.mrb[0].mxu0
      %1332 = vmatprep.mubr.bf16.mxu0 0
      %1333 = vmatmul.mubr.bf16.gmra.mrb[0].mxu0 %v1203
      %v1334 = vpop.f32.mrb[0].mxu0
      %v1335 = vadd.f32 0.0, %v1334
      %v1336 = vpop.f32.mrb[0].mxu0
      %v1337 = vpop.f32.mrb[0].mxu0
      %v1338 = vadd.f32 0.0, %v1337
      %v1339 = vpop.f32.mrb[0].mxu0
      %1340 = vmatprep.mubr.bf16.mxu0 0
      %1341 = vmatmul.mubr.bf16.gmra.mrb[0].mxu0 %v1206
      %v1342 = vpop.f32.mrb[0].mxu0
      %v1343 = vadd.f32 0.0, %v1342
      %v1344 = vpop.f32.mrb[0].mxu0
      %v1345 = vpop.f32.mrb[0].mxu0
      %v1346 = vadd.f32 0.0, %v1345
      %v1347 = vpop.f32.mrb[0].mxu0
      %1348 = vmatprep.mubr.bf16.mxu0 0
      %1349 = vmatmul.mubr.bf16.gmra.mrb[0].mxu0 %v1209
      %v1350 = vpop.f32.mrb[0].mxu0
      %v1351 = vadd.f32 0.0, %v1350
      %v1352 = vpop.f32.mrb[0].mxu0
      %v1353 = vpop.f32.mrb[0].mxu0
      %v1354 = vadd.f32 0.0, %v1353
      %v1355 = vpop.f32.mrb[0].mxu0
      %1356 = vmatprep.mubr.bf16.mxu0 0
      %1357 = vmatmul.mubr.bf16.gmra.mrb[0].mxu0 %v1212
      %v1358 = vpop.f32.mrb[0].mxu0
      %v1359 = vadd.f32 0.0, %v1358
      %v1360 = vpop.f32.mrb[0].mxu0
      %v1361 = vpop.f32.mrb[0].mxu0
      %v1362 = vadd.f32 0.0, %v1361
      %v1363 = vpop.f32.mrb[0].mxu0
      %1364 = vmatprep.mubr.bf16.mxu0 0
      %1365 = vmatmul.mubr.bf16.gmra.mrb[0].mxu0 %v1215
      %v1366 = vpop.f32.mrb[0].mxu0
      %v1367 = vadd.f32 0.0, %v1366
      %v1368 = vpop.f32.mrb[0].mxu0
      %v1369 = vpop.f32.mrb[0].mxu0
      %v1370 = vadd.f32 0.0, %v1369
      %v1371 = vpop.f32.mrb[0].mxu0
      %1372 = vmatprep.mubr.bf16.mxu0 0
      %1373 = vmatmul.mubr.bf16.gmra.mrb[0].mxu0 %v1218
      %v1374 = vpop.f32.mrb[0].mxu0
      %v1375 = vadd.f32 0.0, %v1374
      %v1376 = vpop.f32.mrb[0].mxu0
      %v1377 = vpop.f32.mrb[0].mxu0
      %v1378 = vadd.f32 0.0, %v1377
      %v1379 = vpop.f32.mrb[0].mxu0
      %1380 = vdwg.mxu0
      %v1381 = vld [vmem:[%s5] sm:$0x1]
      %v1383 = vlaneseq
      %v1384 = vshrl.u32 %v1383, 7
      %v1385 = vsub.s32 0, %v1384
      %v1386 = vrot.slane %v1381, %v1385
      %v1388 = vmul.f32 %v1255, %v1386
      %v1389 = vmul.f32 %v1258, %v1386
      %v1390 = vmul.f32 %v1263, %v1386
      %v1391 = vmul.f32 %v1266, %v1386
      %v1392 = vmul.f32 %v1271, %v1386
      %v1393 = vmul.f32 %v1274, %v1386
      %v1394 = vmul.f32 %v1279, %v1386
      %v1395 = vmul.f32 %v1282, %v1386
      %v1396 = vmul.f32 %v1287, %v1386
      %v1397 = vmul.f32 %v1290, %v1386
      %v1398 = vmul.f32 %v1295, %v1386
      %v1399 = vmul.f32 %v1298, %v1386
      %v1400 = vmul.f32 %v1303, %v1386
      %v1401 = vmul.f32 %v1306, %v1386
      %v1402 = vmul.f32 %v1311, %v1386
      %v1403 = vmul.f32 %v1314, %v1386
      %v1404 = vmul.f32 %v1319, %v1386
      %v1405 = vmul.f32 %v1322, %v1386
      %v1406 = vmul.f32 %v1327, %v1386
      %v1407 = vmul.f32 %v1330, %v1386
      %v1408 = vmul.f32 %v1335, %v1386
      %v1409 = vmul.f32 %v1338, %v1386
      %v1410 = vmul.f32 %v1343, %v1386
      %v1411 = vmul.f32 %v1346, %v1386
      %v1412 = vmul.f32 %v1351, %v1386
      %v1413 = vmul.f32 %v1354, %v1386
      %v1414 = vmul.f32 %v1359, %v1386
      %v1415 = vmul.f32 %v1362, %v1386
      %v1416 = vmul.f32 %v1367, %v1386
      %v1417 = vmul.f32 %v1370, %v1386
      %v1418 = vmul.f32 %v1375, %v1386
      %v1419 = vmul.f32 %v1378, %v1386
      %v1420 = vld [vmem:[%s6] sm:$0x1]
      %v1422 = vlaneseq
      %v1423 = vshrl.u32 %v1422, 7
      %v1424 = vsub.s32 0, %v1423
      %v1425 = vrot.slane %v1420, %v1424
      %v1427 = vadd.f32 %v1388, %v1425
      %v1428 = vadd.f32 %v1389, %v1425
      %v1429 = vadd.f32 %v1390, %v1425
      %v1430 = vadd.f32 %v1391, %v1425
      %v1431 = vadd.f32 %v1392, %v1425
      %v1432 = vadd.f32 %v1393, %v1425
      %v1433 = vadd.f32 %v1394, %v1425
      %v1434 = vadd.f32 %v1395, %v1425
      %v1435 = vadd.f32 %v1396, %v1425
      %v1436 = vadd.f32 %v1397, %v1425
      %v1437 = vadd.f32 %v1398, %v1425
      %v1438 = vadd.f32 %v1399, %v1425
      %v1439 = vadd.f32 %v1400, %v1425
      %v1440 = vadd.f32 %v1401, %v1425
      %v1441 = vadd.f32 %v1402, %v1425
      %v1442 = vadd.f32 %v1403, %v1425
      %v1443 = vadd.f32 %v1404, %v1425
      %v1444 = vadd.f32 %v1405, %v1425
      %v1445 = vadd.f32 %v1406, %v1425
      %v1446 = vadd.f32 %v1407, %v1425
      %v1447 = vadd.f32 %v1408, %v1425
      %v1448 = vadd.f32 %v1409, %v1425
      %v1449 = vadd.f32 %v1410, %v1425
      %v1450 = vadd.f32 %v1411, %v1425
      %v1451 = vadd.f32 %v1412, %v1425
      %v1452 = vadd.f32 %v1413, %v1425
      %v1453 = vadd.f32 %v1414, %v1425
      %v1454 = vadd.f32 %v1415, %v1425
      %v1455 = vadd.f32 %v1416, %v1425
      %v1456 = vadd.f32 %v1417, %v1425
      %v1457 = vadd.f32 %v1418, %v1425
      %v1458 = vadd.f32 %v1419, %v1425
      %v1459 = vmax.f32 %v1427, 0.0
      %v1460 = vmax.f32 %v1428, 0.0
      %v1461 = vmax.f32 %v1429, 0.0
      %v1462 = vmax.f32 %v1430, 0.0
      %v1463 = vmax.f32 %v1431, 0.0
      %v1464 = vmax.f32 %v1432, 0.0
      %v1465 = vmax.f32 %v1433, 0.0
      %v1466 = vmax.f32 %v1434, 0.0
      %v1467 = vmax.f32 %v1435, 0.0
      %v1468 = vmax.f32 %v1436, 0.0
      %v1469 = vmax.f32 %v1437, 0.0
      %v1470 = vmax.f32 %v1438, 0.0
      %v1471 = vmax.f32 %v1439, 0.0
      %v1472 = vmax.f32 %v1440, 0.0
      %v1473 = vmax.f32 %v1441, 0.0
      %v1474 = vmax.f32 %v1442, 0.0
      %v1475 = vmax.f32 %v1443, 0.0
      %v1476 = vmax.f32 %v1444, 0.0
      %v1477 = vmax.f32 %v1445, 0.0
      %v1478 = vmax.f32 %v1446, 0.0
      %v1479 = vmax.f32 %v1447, 0.0
      %v1480 = vmax.f32 %v1448, 0.0
      %v1481 = vmax.f32 %v1449, 0.0
      %v1482 = vmax.f32 %v1450, 0.0
      %v1483 = vmax.f32 %v1451, 0.0
      %v1484 = vmax.f32 %v1452, 0.0
      %v1485 = vmax.f32 %v1453, 0.0
      %v1486 = vmax.f32 %v1454, 0.0
      %v1487 = vmax.f32 %v1455, 0.0
      %v1488 = vmax.f32 %v1456, 0.0
      %v1489 = vmax.f32 %v1457, 0.0
      %v1490 = vmax.f32 %v1458, 0.0
      %v1491 = vpack.c.bf16 %v1460, %v1459
      %v1492 = vpack.c.bf16 %v1462, %v1461
      %v1493 = vpack.c.bf16 %v1464, %v1463
      %v1494 = vpack.c.bf16 %v1466, %v1465
      %v1495 = vpack.c.bf16 %v1468, %v1467
      %v1496 = vpack.c.bf16 %v1470, %v1469
      %v1497 = vpack.c.bf16 %v1472, %v1471
      %v1498 = vpack.c.bf16 %v1474, %v1473
      %v1499 = vpack.c.bf16 %v1476, %v1475
      %v1500 = vpack.c.bf16 %v1478, %v1477
      %v1501 = vpack.c.bf16 %v1480, %v1479
      %v1502 = vpack.c.bf16 %v1482, %v1481
      %v1503 = vpack.c.bf16 %v1484, %v1483
      %v1504 = vpack.c.bf16 %v1486, %v1485
      %v1505 = vpack.c.bf16 %v1488, %v1487
      %v1506 = vpack.c.bf16 %v1490, %v1489
      %v1507 = vld [vmem:[%s7] sm:$0xff]
      %v1508 = vld [vmem:[%s7 + $0x8] sm:$0xff]
      %v1509 = vld [vmem:[%s7 + $0x10] sm:$0xff]
      %v1510 = vld [vmem:[%s7 + $0x18] sm:$0xff]
      %v1511 = vld [vmem:[%s7 + $0x20] sm:$0xff]
      %v1512 = vld [vmem:[%s7 + $0x28] sm:$0xff]
      %v1513 = vld [vmem:[%s7 + $0x30] sm:$0xff]
      %v1514 = vld [vmem:[%s7 + $0x38] sm:$0xff]
      %v1515 = vld [vmem:[%s7 + $0x40] sm:$0xff]
      %v1516 = vld [vmem:[%s7 + $0x48] sm:$0xff]
      %v1517 = vld [vmem:[%s7 + $0x50] sm:$0xff]
      %v1518 = vld [vmem:[%s7 + $0x58] sm:$0xff]
      %v1519 = vld [vmem:[%s7 + $0x60] sm:$0xff]
      %v1520 = vld [vmem:[%s7 + $0x68] sm:$0xff]
      %v1521 = vld [vmem:[%s7 + $0x70] sm:$0xff]
      %v1522 = vld [vmem:[%s7 + $0x78] sm:$0xff]
      %v1523 = vld [vmem:[%s7 + $0x80] sm:$0xff]
      %v1524 = vld [vmem:[%s7 + $0x88] sm:$0xff]
      %v1525 = vld [vmem:[%s7 + $0x90] sm:$0xff]
      %v1526 = vld [vmem:[%s7 + $0x98] sm:$0xff]
      %v1527 = vld [vmem:[%s7 + $0xa0] sm:$0xff]
      %v1528 = vld [vmem:[%s7 + $0xa8] sm:$0xff]
      %v1529 = vld [vmem:[%s7 + $0xb0] sm:$0xff]
      %v1530 = vld [vmem:[%s7 + $0xb8] sm:$0xff]
      %v1531 = vld [vmem:[%s7 + $0xc0] sm:$0xff]
      %v1532 = vld [vmem:[%s7 + $0xc8] sm:$0xff]
      %v1533 = vld [vmem:[%s7 + $0xd0] sm:$0xff]
      %v1534 = vld [vmem:[%s7 + $0xd8] sm:$0xff]
      %v1535 = vld [vmem:[%s7 + $0xe0] sm:$0xff]
      %v1536 = vld [vmem:[%s7 + $0xe8] sm:$0xff]
      %v1537 = vld [vmem:[%s7 + $0xf0] sm:$0xff]
      %v1538 = vld [vmem:[%s7 + $0xf8] sm:$0xff]
      %v1539 = vld [vmem:[%s7 + $0x100] sm:$0xff]
      %v1540 = vld [vmem:[%s7 + $0x108] sm:$0xff]
      %v1541 = vld [vmem:[%s7 + $0x110] sm:$0xff]
      %v1542 = vld [vmem:[%s7 + $0x118] sm:$0xff]
      %v1543 = vld [vmem:[%s7 + $0x120] sm:$0xff]
      %v1544 = vld [vmem:[%s7 + $0x128] sm:$0xff]
      %v1545 = vld [vmem:[%s7 + $0x130] sm:$0xff]
      %v1546 = vld [vmem:[%s7 + $0x138] sm:$0xff]
      %v1547 = vld [vmem:[%s7 + $0x140] sm:$0xff]
      %v1548 = vld [vmem:[%s7 + $0x148] sm:$0xff]
      %v1549 = vld [vmem:[%s7 + $0x150] sm:$0xff]
      %v1550 = vld [vmem:[%s7 + $0x158] sm:$0xff]
      %v1551 = vld [vmem:[%s7 + $0x160] sm:$0xff]
      %v1552 = vld [vmem:[%s7 + $0x168] sm:$0xff]
      %v1553 = vld [vmem:[%s7 + $0x170] sm:$0xff]
      %v1554 = vld [vmem:[%s7 + $0x178] sm:$0xff]
      %v1555 = vld [vmem:[%s7 + $0x180] sm:$0xff]
      %v1556 = vld [vmem:[%s7 + $0x188] sm:$0xff]
      %v1557 = vld [vmem:[%s7 + $0x190] sm:$0xff]
      %v1558 = vld [vmem:[%s7 + $0x198] sm:$0xff]
      %v1559 = vld [vmem:[%s7 + $0x1a0] sm:$0xff]
      %v1560 = vld [vmem:[%s7 + $0x1a8] sm:$0xff]
      %v1561 = vld [vmem:[%s7 + $0x1b0] sm:$0xff]
      %v1562 = vld [vmem:[%s7 + $0x1b8] sm:$0xff]
      %v1563 = vld [vmem:[%s7 + $0x1c0] sm:$0xff]
      %v1564 = vld [vmem:[%s7 + $0x1c8] sm:$0xff]
      %v1565 = vld [vmem:[%s7 + $0x1d0] sm:$0xff]
      %v1566 = vld [vmem:[%s7 + $0x1d8] sm:$0xff]
      %v1567 = vld [vmem:[%s7 + $0x1e0] sm:$0xff]
      %v1568 = vld [vmem:[%s7 + $0x1e8] sm:$0xff]
      %v1569 = vld [vmem:[%s7 + $0x1f0] sm:$0xff]
      %v1570 = vld [vmem:[%s7 + $0x1f8] sm:$0xff]
      %v1635 = vunpack.c.l.b16 %v1507
      %v1636 = vunpack.c.h.b16 %v1507
      %v1637 = vunpack.c.l.b16 %v1508
      %v1638 = vunpack.c.h.b16 %v1508
      %v1639 = vunpack.c.l.b16 %v1509
      %v1640 = vunpack.c.h.b16 %v1509
      %v1641 = vunpack.c.l.b16 %v1510
      %v1642 = vunpack.c.h.b16 %v1510
      %v1643 = vunpack.c.l.b16 %v1511
      %v1644 = vunpack.c.h.b16 %v1511
      %v1645 = vunpack.c.l.b16 %v1512
      %v1646 = vunpack.c.h.b16 %v1512
      %v1647 = vunpack.c.l.b16 %v1513
      %v1648 = vunpack.c.h.b16 %v1513
      %v1649 = vunpack.c.l.b16 %v1514
      %v1650 = vunpack.c.h.b16 %v1514
      %v1651 = vunpack.c.l.b16 %v1515
      %v1652 = vunpack.c.h.b16 %v1515
      %v1653 = vunpack.c.l.b16 %v1516
      %v1654 = vunpack.c.h.b16 %v1516
      %v1655 = vunpack.c.l.b16 %v1517
      %v1656 = vunpack.c.h.b16 %v1517
      %v1657 = vunpack.c.l.b16 %v1518
      %v1658 = vunpack.c.h.b16 %v1518
      %v1659 = vunpack.c.l.b16 %v1519
      %v1660 = vunpack.c.h.b16 %v1519
      %v1661 = vunpack.c.l.b16 %v1520
      %v1662 = vunpack.c.h.b16 %v1520
      %v1663 = vunpack.c.l.b16 %v1521
      %v1664 = vunpack.c.h.b16 %v1521
      %v1665 = vunpack.c.l.b16 %v1522
      %v1666 = vunpack.c.h.b16 %v1522
      %v1667 = vunpack.c.l.b16 %v1523
      %v1668 = vunpack.c.h.b16 %v1523
      %v1669 = vunpack.c.l.b16 %v1524
      %v1670 = vunpack.c.h.b16 %v1524
      %v1671 = vunpack.c.l.b16 %v1525
      %v1672 = vunpack.c.h.b16 %v1525
      %v1673 = vunpack.c.l.b16 %v1526
      %v1674 = vunpack.c.h.b16 %v1526
      %v1675 = vunpack.c.l.b16 %v1527
      %v1676 = vunpack.c.h.b16 %v1527
      %v1677 = vunpack.c.l.b16 %v1528
      %v1678 = vunpack.c.h.b16 %v1528
      %v1679 = vunpack.c.l.b16 %v1529
      %v1680 = vunpack.c.h.b16 %v1529
      %v1681 = vunpack.c.l.b16 %v1530
      %v1682 = vunpack.c.h.b16 %v1530
      %v1683 = vunpack.c.l.b16 %v1531
      %v1684 = vunpack.c.h.b16 %v1531
      %v1685 = vunpack.c.l.b16 %v1532
      %v1686 = vunpack.c.h.b16 %v1532
      %v1687 = vunpack.c.l.b16 %v1533
      %v1688 = vunpack.c.h.b16 %v1533
      %v1689 = vunpack.c.l.b16 %v1534
      %v1690 = vunpack.c.h.b16 %v1534
      %v1691 = vunpack.c.l.b16 %v1535
      %v1692 = vunpack.c.h.b16 %v1535
      %v1693 = vunpack.c.l.b16 %v1536
      %v1694 = vunpack.c.h.b16 %v1536
      %v1695 = vunpack.c.l.b16 %v1537
      %v1696 = vunpack.c.h.b16 %v1537
      %v1697 = vunpack.c.l.b16 %v1538
      %v1698 = vunpack.c.h.b16 %v1538
      %v1699 = vunpack.c.l.b16 %v1539
      %v1700 = vunpack.c.h.b16 %v1539
      %v1701 = vunpack.c.l.b16 %v1540
      %v1702 = vunpack.c.h.b16 %v1540
      %v1703 = vunpack.c.l.b16 %v1541
      %v1704 = vunpack.c.h.b16 %v1541
      %v1705 = vunpack.c.l.b16 %v1542
      %v1706 = vunpack.c.h.b16 %v1542
      %v1707 = vunpack.c.l.b16 %v1543
      %v1708 = vunpack.c.h.b16 %v1543
      %v1709 = vunpack.c.l.b16 %v1544
      %v1710 = vunpack.c.h.b16 %v1544
      %v1711 = vunpack.c.l.b16 %v1545
      %v1712 = vunpack.c.h.b16 %v1545
      %v1713 = vunpack.c.l.b16 %v1546
      %v1714 = vunpack.c.h.b16 %v1546
      %v1715 = vunpack.c.l.b16 %v1547
      %v1716 = vunpack.c.h.b16 %v1547
      %v1717 = vunpack.c.l.b16 %v1548
      %v1718 = vunpack.c.h.b16 %v1548
      %v1719 = vunpack.c.l.b16 %v1549
      %v1720 = vunpack.c.h.b16 %v1549
      %v1721 = vunpack.c.l.b16 %v1550
      %v1722 = vunpack.c.h.b16 %v1550
      %v1723 = vunpack.c.l.b16 %v1551
      %v1724 = vunpack.c.h.b16 %v1551
      %v1725 = vunpack.c.l.b16 %v1552
      %v1726 = vunpack.c.h.b16 %v1552
      %v1727 = vunpack.c.l.b16 %v1553
      %v1728 = vunpack.c.h.b16 %v1553
      %v1729 = vunpack.c.l.b16 %v1554
      %v1730 = vunpack.c.h.b16 %v1554
      %v1731 = vunpack.c.l.b16 %v1555
      %v1732 = vunpack.c.h.b16 %v1555
      %v1733 = vunpack.c.l.b16 %v1556
      %v1734 = vunpack.c.h.b16 %v1556
      %v1735 = vunpack.c.l.b16 %v1557
      %v1736 = vunpack.c.h.b16 %v1557
      %v1737 = vunpack.c.l.b16 %v1558
      %v1738 = vunpack.c.h.b16 %v1558
      %v1739 = vunpack.c.l.b16 %v1559
      %v1740 = vunpack.c.h.b16 %v1559
      %v1741 = vunpack.c.l.b16 %v1560
      %v1742 = vunpack.c.h.b16 %v1560
      %v1743 = vunpack.c.l.b16 %v1561
      %v1744 = vunpack.c.h.b16 %v1561
      %v1745 = vunpack.c.l.b16 %v1562
      %v1746 = vunpack.c.h.b16 %v1562
      %v1747 = vunpack.c.l.b16 %v1563
      %v1748 = vunpack.c.h.b16 %v1563
      %v1749 = vunpack.c.l.b16 %v1564
      %v1750 = vunpack.c.h.b16 %v1564
      %v1751 = vunpack.c.l.b16 %v1565
      %v1752 = vunpack.c.h.b16 %v1565
      %v1753 = vunpack.c.l.b16 %v1566
      %v1754 = vunpack.c.h.b16 %v1566
      %v1755 = vunpack.c.l.b16 %v1567
      %v1756 = vunpack.c.h.b16 %v1567
      %v1757 = vunpack.c.l.b16 %v1568
      %v1758 = vunpack.c.h.b16 %v1568
      %v1759 = vunpack.c.l.b16 %v1569
      %v1760 = vunpack.c.h.b16 %v1569
      %v1761 = vunpack.c.l.b16 %v1570
      %v1762 = vunpack.c.h.b16 %v1570
      %v1763 = vpack.c.b16 %v1643, %v1635
      %v1764 = vpack.c.b16 %v1644, %v1636
      %v1765 = vpack.c.b16 %v1645, %v1637
      %v1766 = vpack.c.b16 %v1646, %v1638
      %v1767 = vpack.c.b16 %v1647, %v1639
      %v1768 = vpack.c.b16 %v1648, %v1640
      %v1769 = vpack.c.b16 %v1649, %v1641
      %v1770 = vpack.c.b16 %v1650, %v1642
      %v1771 = vpack.c.b16 %v1659, %v1651
      %v1772 = vpack.c.b16 %v1660, %v1652
      %v1773 = vpack.c.b16 %v1661, %v1653
      %v1774 = vpack.c.b16 %v1662, %v1654
      %v1775 = vpack.c.b16 %v1663, %v1655
      %v1776 = vpack.c.b16 %v1664, %v1656
      %v1777 = vpack.c.b16 %v1665, %v1657
      %v1778 = vpack.c.b16 %v1666, %v1658
      %v1779 = vpack.c.b16 %v1675, %v1667
      %v1780 = vpack.c.b16 %v1676, %v1668
      %v1781 = vpack.c.b16 %v1677, %v1669
      %v1782 = vpack.c.b16 %v1678, %v1670
      %v1783 = vpack.c.b16 %v1679, %v1671
      %v1784 = vpack.c.b16 %v1680, %v1672
      %v1785 = vpack.c.b16 %v1681, %v1673
      %v1786 = vpack.c.b16 %v1682, %v1674
      %v1787 = vpack.c.b16 %v1691, %v1683
      %v1788 = vpack.c.b16 %v1692, %v1684
      %v1789 = vpack.c.b16 %v1693, %v1685
      %v1790 = vpack.c.b16 %v1694, %v1686
      %v1791 = vpack.c.b16 %v1695, %v1687
      %v1792 = vpack.c.b16 %v1696, %v1688
      %v1793 = vpack.c.b16 %v1697, %v1689
      %v1794 = vpack.c.b16 %v1698, %v1690
      %v1795 = vpack.c.b16 %v1707, %v1699
      %v1796 = vpack.c.b16 %v1708, %v1700
      %v1797 = vpack.c.b16 %v1709, %v1701
      %v1798 = vpack.c.b16 %v1710, %v1702
      %v1799 = vpack.c.b16 %v1711, %v1703
      %v1800 = vpack.c.b16 %v1712, %v1704
      %v1801 = vpack.c.b16 %v1713, %v1705
      %v1802 = vpack.c.b16 %v1714, %v1706
      %v1803 = vpack.c.b16 %v1723, %v1715
      %v1804 = vpack.c.b16 %v1724, %v1716
      %v1805 = vpack.c.b16 %v1725, %v1717
      %v1806 = vpack.c.b16 %v1726, %v1718
      %v1807 = vpack.c.b16 %v1727, %v1719
      %v1808 = vpack.c.b16 %v1728, %v1720
      %v1809 = vpack.c.b16 %v1729, %v1721
      %v1810 = vpack.c.b16 %v1730, %v1722
      %v1811 = vpack.c.b16 %v1739, %v1731
      %v1812 = vpack.c.b16 %v1740, %v1732
      %v1813 = vpack.c.b16 %v1741, %v1733
      %v1814 = vpack.c.b16 %v1742, %v1734
      %v1815 = vpack.c.b16 %v1743, %v1735
      %v1816 = vpack.c.b16 %v1744, %v1736
      %v1817 = vpack.c.b16 %v1745, %v1737
      %v1818 = vpack.c.b16 %v1746, %v1738
      %v1819 = vpack.c.b16 %v1755, %v1747
      %v1820 = vpack.c.b16 %v1756, %v1748
      %v1821 = vpack.c.b16 %v1757, %v1749
      %v1822 = vpack.c.b16 %v1758, %v1750
      %v1823 = vpack.c.b16 %v1759, %v1751
      %v1824 = vpack.c.b16 %v1760, %v1752
      %v1825 = vpack.c.b16 %v1761, %v1753
      %v1826 = vpack.c.b16 %v1762, %v1754
      %1891 = vmatprep.subr.bf16.mxu0 %v1764
      %1892 = vmatpush1.bf16.msra.mxu0 %v1763
      %1893 = vmatprep.subr.bf16.mxu0 %v1772
      %1894 = vmatpush1.bf16.msra.mxu0 %v1771
      %1895 = vmatprep.subr.bf16.mxu0 %v1780
      %1896 = vmatpush1.bf16.msra.mxu0 %v1779
      %1897 = vmatprep.subr.bf16.mxu0 %v1788
      %1898 = vmatpush1.bf16.msra.mxu0 %v1787
      %1899 = vmatprep.subr.bf16.mxu0 %v1796
      %1900 = vmatpush1.bf16.msra.mxu0 %v1795
      %1901 = vmatprep.subr.bf16.mxu0 %v1804
      %1902 = vmatpush1.bf16.msra.mxu0 %v1803
      %1903 = vmatprep.subr.bf16.mxu0 %v1812
      %1904 = vmatpush1.bf16.msra.mxu0 %v1811
      %1905 = vmatprep.subr.bf16.mxu0 %v1820
      %1906 = vmatpush1.bf16.msra.mxu0 %v1819
      %1907 = vmatprep.subr.bf16.mxu0 0
      %1908 = vmatpush1.bf16.msra.mxu0 0
      %1909 = vmatprep.subr.bf16.mxu0 0
      %1910 = vmatpush1.bf16.msra.mxu0 0
      %1911 = vmatprep.subr.bf16.mxu0 0
      %1912 = vmatpush1.bf16.msra.mxu0 0
      %1913 = vmatprep.subr.bf16.mxu0 0
      %1914 = vmatpush1.bf16.msra.mxu0 0
      %1915 = vmatprep.subr.bf16.mxu0 0
      %1916 = vmatpush1.bf16.msra.mxu0 0
      %1917 = vmatprep.subr.bf16.mxu0 0
      %1918 = vmatpush1.bf16.msra.mxu0 0
      %1919 = vmatprep.subr.bf16.mxu0 0
      %1920 = vmatpush1.bf16.msra.mxu0 0
      %1921 = vmatprep.subr.bf16.mxu0 0
      %1922 = vmatpush1.bf16.msra.mxu0 0
      %1923 = vmatprep.mubr.bf16.mxu0 0
      %1924 = vmatmul.mubr.bf16.gmra.mrb[0].mxu0 %v1491
      %v1925 = vpop.f32.mrb[0].mxu0
      %v1926 = vadd.f32 0.0, %v1925
      %v1927 = vpop.f32.mrb[0].mxu0
      %v1928 = vadd.f32 0.0, %v1927
      %v1929 = vpop.f32.mrb[0].mxu0
      %v1930 = vadd.f32 0.0, %v1929
      %v1931 = vpop.f32.mrb[0].mxu0
      %v1932 = vadd.f32 0.0, %v1931
      %1933 = vmatprep.mubr.bf16.mxu0 0
      %1934 = vmatmul.mubr.bf16.gmra.mrb[0].mxu0 %v1492
      %v1935 = vpop.f32.mrb[0].mxu0
      %v1936 = vadd.f32 0.0, %v1935
      %v1937 = vpop.f32.mrb[0].mxu0
      %v1938 = vadd.f32 0.0, %v1937
      %v1939 = vpop.f32.mrb[0].mxu0
      %v1940 = vadd.f32 0.0, %v1939
      %v1941 = vpop.f32.mrb[0].mxu0
      %v1942 = vadd.f32 0.0, %v1941
      %1943 = vmatprep.mubr.bf16.mxu0 0
      %1944 = vmatmul.mubr.bf16.gmra.mrb[0].mxu0 %v1493
      %v1945 = vpop.f32.mrb[0].mxu0
      %v1946 = vadd.f32 0.0, %v1945
      %v1947 = vpop.f32.mrb[0].mxu0
      %v1948 = vadd.f32 0.0, %v1947
      %v1949 = vpop.f32.mrb[0].mxu0
      %v1950 = vadd.f32 0.0, %v1949
      %v1951 = vpop.f32.mrb[0].mxu0
      %v1952 = vadd.f32 0.0, %v1951
      %1953 = vmatprep.mubr.bf16.mxu0 0
      %1954 = vmatmul.mubr.bf16.gmra.mrb[0].mxu0 %v1494
      %v1955 = vpop.f32.mrb[0].mxu0
      %v1956 = vadd.f32 0.0, %v1955
      %v1957 = vpop.f32.mrb[0].mxu0
      %v1958 = vadd.f32 0.0, %v1957
      %v1959 = vpop.f32.mrb[0].mxu0
      %v1960 = vadd.f32 0.0, %v1959
      %v1961 = vpop.f32.mrb[0].mxu0
      %v1962 = vadd.f32 0.0, %v1961
      %1963 = vmatprep.mubr.bf16.mxu0 0
      %1964 = vmatmul.mubr.bf16.gmra.mrb[0].mxu0 %v1495
      %v1965 = vpop.f32.mrb[0].mxu0
      %v1966 = vadd.f32 0.0, %v1965
      %v1967 = vpop.f32.mrb[0].mxu0
      %v1968 = vadd.f32 0.0, %v1967
      %v1969 = vpop.f32.mrb[0].mxu0
      %v1970 = vadd.f32 0.0, %v1969
      %v1971 = vpop.f32.mrb[0].mxu0
      %v1972 = vadd.f32 0.0, %v1971
      %1973 = vmatprep.mubr.bf16.mxu0 0
      %1974 = vmatmul.mubr.bf16.gmra.mrb[0].mxu0 %v1496
      %v1975 = vpop.f32.mrb[0].mxu0
      %v1976 = vadd.f32 0.0, %v1975
      %v1977 = vpop.f32.mrb[0].mxu0
      %v1978 = vadd.f32 0.0, %v1977
      %v1979 = vpop.f32.mrb[0].mxu0
      %v1980 = vadd.f32 0.0, %v1979
      %v1981 = vpop.f32.mrb[0].mxu0
      %v1982 = vadd.f32 0.0, %v1981
      %1983 = vmatprep.mubr.bf16.mxu0 0
      %1984 = vmatmul.mubr.bf16.gmra.mrb[0].mxu0 %v1497
      %v1985 = vpop.f32.mrb[0].mxu0
      %v1986 = vadd.f32 0.0, %v1985
      %v1987 = vpop.f32.mrb[0].mxu0
      %v1988 = vadd.f32 0.0, %v1987
      %v1989 = vpop.f32.mrb[0].mxu0
      %v1990 = vadd.f32 0.0, %v1989
      %v1991 = vpop.f32.mrb[0].mxu0
      %v1992 = vadd.f32 0.0, %v1991
      %1993 = vmatprep.mubr.bf16.mxu0 0
      %1994 = vmatmul.mubr.bf16.gmra.mrb[0].mxu0 %v1498
      %v1995 = vpop.f32.mrb[0].mxu0
      %v1996 = vadd.f32 0.0, %v1995
      %v1997 = vpop.f32.mrb[0].mxu0
      %v1998 = vadd.f32 0.0, %v1997
      %v1999 = vpop.f32.mrb[0].mxu0
      %v2000 = vadd.f32 0.0, %v1999
      %v2001 = vpop.f32.mrb[0].mxu0
      %v2002 = vadd.f32 0.0, %v2001
      %2003 = vmatprep.mubr.bf16.mxu0 0
      %2004 = vmatmul.mubr.bf16.gmra.mrb[0].mxu0 %v1499
      %v2005 = vpop.f32.mrb[0].mxu0
      %v2006 = vadd.f32 0.0, %v2005
      %v2007 = vpop.f32.mrb[0].mxu0
      %v2008 = vadd.f32 0.0, %v2007
      %v2009 = vpop.f32.mrb[0].mxu0
      %v2010 = vadd.f32 0.0, %v2009
      %v2011 = vpop.f32.mrb[0].mxu0
      %v2012 = vadd.f32 0.0, %v2011
      %2013 = vmatprep.mubr.bf16.mxu0 0
      %2014 = vmatmul.mubr.bf16.gmra.mrb[0].mxu0 %v1500
      %v2015 = vpop.f32.mrb[0].mxu0
      %v2016 = vadd.f32 0.0, %v2015
      %v2017 = vpop.f32.mrb[0].mxu0
      %v2018 = vadd.f32 0.0, %v2017
      %v2019 = vpop.f32.mrb[0].mxu0
      %v2020 = vadd.f32 0.0, %v2019
      %v2021 = vpop.f32.mrb[0].mxu0
      %v2022 = vadd.f32 0.0, %v2021
      %2023 = vmatprep.mubr.bf16.mxu0 0
      %2024 = vmatmul.mubr.bf16.gmra.mrb[0].mxu0 %v1501
      %v2025 = vpop.f32.mrb[0].mxu0
      %v2026 = vadd.f32 0.0, %v2025
      %v2027 = vpop.f32.mrb[0].mxu0
      %v2028 = vadd.f32 0.0, %v2027
      %v2029 = vpop.f32.mrb[0].mxu0
      %v2030 = vadd.f32 0.0, %v2029
      %v2031 = vpop.f32.mrb[0].mxu0
      %v2032 = vadd.f32 0.0, %v2031
      %2033 = vmatprep.mubr.bf16.mxu0 0
      %2034 = vmatmul.mubr.bf16.gmra.mrb[0].mxu0 %v1502
      %v2035 = vpop.f32.mrb[0].mxu0
      %v2036 = vadd.f32 0.0, %v2035
      %v2037 = vpop.f32.mrb[0].mxu0
      %v2038 = vadd.f32 0.0, %v2037
      %v2039 = vpop.f32.mrb[0].mxu0
      %v2040 = vadd.f32 0.0, %v2039
      %v2041 = vpop.f32.mrb[0].mxu0
      %v2042 = vadd.f32 0.0, %v2041
      %2043 = vmatprep.mubr.bf16.mxu0 0
      %2044 = vmatmul.mubr.bf16.gmra.mrb[0].mxu0 %v1503
      %v2045 = vpop.f32.mrb[0].mxu0
      %v2046 = vadd.f32 0.0, %v2045
      %v2047 = vpop.f32.mrb[0].mxu0
      %v2048 = vadd.f32 0.0, %v2047
      %v2049 = vpop.f32.mrb[0].mxu0
      %v2050 = vadd.f32 0.0, %v2049
      %v2051 = vpop.f32.mrb[0].mxu0
      %v2052 = vadd.f32 0.0, %v2051
      %2053 = vmatprep.mubr.bf16.mxu0 0
      %2054 = vmatmul.mubr.bf16.gmra.mrb[0].mxu0 %v1504
      %v2055 = vpop.f32.mrb[0].mxu0
      %v2056 = vadd.f32 0.0, %v2055
      %v2057 = vpop.f32.mrb[0].mxu0
      %v2058 = vadd.f32 0.0, %v2057
      %v2059 = vpop.f32.mrb[0].mxu0
      %v2060 = vadd.f32 0.0, %v2059
      %v2061 = vpop.f32.mrb[0].mxu0
      %v2062 = vadd.f32 0.0, %v2061
      %2063 = vmatprep.mubr.bf16.mxu0 0
      %2064 = vmatmul.mubr.bf16.gmra.mrb[0].mxu0 %v1505
      %v2065 = vpop.f32.mrb[0].mxu0
      %v2066 = vadd.f32 0.0, %v2065
      %v2067 = vpop.f32.mrb[0].mxu0
      %v2068 = vadd.f32 0.0, %v2067
      %v2069 = vpop.f32.mrb[0].mxu0
      %v2070 = vadd.f32 0.0, %v2069
      %v2071 = vpop.f32.mrb[0].mxu0
      %v2072 = vadd.f32 0.0, %v2071
      %2073 = vmatprep.mubr.bf16.mxu0 0
      %2074 = vmatmul.mubr.bf16.gmra.mrb[0].mxu0 %v1506
      %v2075 = vpop.f32.mrb[0].mxu0
      %v2076 = vadd.f32 0.0, %v2075
      %v2077 = vpop.f32.mrb[0].mxu0
      %v2078 = vadd.f32 0.0, %v2077
      %v2079 = vpop.f32.mrb[0].mxu0
      %v2080 = vadd.f32 0.0, %v2079
      %v2081 = vpop.f32.mrb[0].mxu0
      %v2082 = vadd.f32 0.0, %v2081
      %2083 = vdwg.mxu0
      %2084 = vmatprep.subr.bf16.mxu0 %v1766
      %2085 = vmatpush1.bf16.msra.mxu0 %v1765
      %2086 = vmatprep.subr.bf16.mxu0 %v1774
      %2087 = vmatpush1.bf16.msra.mxu0 %v1773
      %2088 = vmatprep.subr.bf16.mxu0 %v1782
      %2089 = vmatpush1.bf16.msra.mxu0 %v1781
      %2090 = vmatprep.subr.bf16.mxu0 %v1790
      %2091 = vmatpush1.bf16.msra.mxu0 %v1789
      %2092 = vmatprep.subr.bf16.mxu0 %v1798
      %2093 = vmatpush1.bf16.msra.mxu0 %v1797
      %2094 = vmatprep.subr.bf16.mxu0 %v1806
      %2095 = vmatpush1.bf16.msra.mxu0 %v1805
      %2096 = vmatprep.subr.bf16.mxu0 %v1814
      %2097 = vmatpush1.bf16.msra.mxu0 %v1813
      %2098 = vmatprep.subr.bf16.mxu0 %v1822
      %2099 = vmatpush1.bf16.msra.mxu0 %v1821
      %2100 = vmatprep.subr.bf16.mxu0 0
      %2101 = vmatpush1.bf16.msra.mxu0 0
      %2102 = vmatprep.subr.bf16.mxu0 0
      %2103 = vmatpush1.bf16.msra.mxu0 0
      %2104 = vmatprep.subr.bf16.mxu0 0
      %2105 = vmatpush1.bf16.msra.mxu0 0
      %2106 = vmatprep.subr.bf16.mxu0 0
      %2107 = vmatpush1.bf16.msra.mxu0 0
      %2108 = vmatprep.subr.bf16.mxu0 0
      %2109 = vmatpush1.bf16.msra.mxu0 0
      %2110 = vmatprep.subr.bf16.mxu0 0
      %2111 = vmatpush1.bf16.msra.mxu0 0
      %2112 = vmatprep.subr.bf16.mxu0 0
      %2113 = vmatpush1.bf16.msra.mxu0 0
      %2114 = vmatprep.subr.bf16.mxu0 0
      %2115 = vmatpush1.bf16.msra.mxu0 0
      %2116 = vmatprep.mubr.bf16.mxu0 0
      %2117 = vmatmul.mubr.bf16.gmra.mrb[0].mxu0 %v1491
      %v2118 = vpop.f32.mrb[0].mxu0
      %v2119 = vadd.f32 0.0, %v2118
      %v2120 = vpop.f32.mrb[0].mxu0
      %v2121 = vadd.f32 0.0, %v2120
      %v2122 = vpop.f32.mrb[0].mxu0
      %v2123 = vadd.f32 0.0, %v2122
      %v2124 = vpop.f32.mrb[0].mxu0
      %v2125 = vadd.f32 0.0, %v2124
      %2126 = vmatprep.mubr.bf16.mxu0 0
      %2127 = vmatmul.mubr.bf16.gmra.mrb[0].mxu0 %v1492
      %v2128 = vpop.f32.mrb[0].mxu0
      %v2129 = vadd.f32 0.0, %v2128
      %v2130 = vpop.f32.mrb[0].mxu0
      %v2131 = vadd.f32 0.0, %v2130
      %v2132 = vpop.f32.mrb[0].mxu0
      %v2133 = vadd.f32 0.0, %v2132
      %v2134 = vpop.f32.mrb[0].mxu0
      %v2135 = vadd.f32 0.0, %v2134
      %2136 = vmatprep.mubr.bf16.mxu0 0
      %2137 = vmatmul.mubr.bf16.gmra.mrb[0].mxu0 %v1493
      %v2138 = vpop.f32.mrb[0].mxu0
      %v2139 = vadd.f32 0.0, %v2138
      %v2140 = vpop.f32.mrb[0].mxu0
      %v2141 = vadd.f32 0.0, %v2140
      %v2142 = vpop.f32.mrb[0].mxu0
      %v2143 = vadd.f32 0.0, %v2142
      %v2144 = vpop.f32.mrb[0].mxu0
      %v2145 = vadd.f32 0.0, %v2144
      %2146 = vmatprep.mubr.bf16.mxu0 0
      %2147 = vmatmul.mubr.bf16.gmra.mrb[0].mxu0 %v1494
      %v2148 = vpop.f32.mrb[0].mxu0
      %v2149 = vadd.f32 0.0, %v2148
      %v2150 = vpop.f32.mrb[0].mxu0
      %v2151 = vadd.f32 0.0, %v2150
      %v2152 = vpop.f32.mrb[0].mxu0
      %v2153 = vadd.f32 0.0, %v2152
      %v2154 = vpop.f32.mrb[0].mxu0
      %v2155 = vadd.f32 0.0, %v2154
      %2156 = vmatprep.mubr.bf16.mxu0 0
      %2157 = vmatmul.mubr.bf16.gmra.mrb[0].mxu0 %v1495
      %v2158 = vpop.f32.mrb[0].mxu0
      %v2159 = vadd.f32 0.0, %v2158
      %v2160 = vpop.f32.mrb[0].mxu0
      %v2161 = vadd.f32 0.0, %v2160
      %v2162 = vpop.f32.mrb[0].mxu0
      %v2163 = vadd.f32 0.0, %v2162
      %v2164 = vpop.f32.mrb[0].mxu0
      %v2165 = vadd.f32 0.0, %v2164
      %2166 = vmatprep.mubr.bf16.mxu0 0
      %2167 = vmatmul.mubr.bf16.gmra.mrb[0].mxu0 %v1496
      %v2168 = vpop.f32.mrb[0].mxu0
      %v2169 = vadd.f32 0.0, %v2168
      %v2170 = vpop.f32.mrb[0].mxu0
      %v2171 = vadd.f32 0.0, %v2170
      %v2172 = vpop.f32.mrb[0].mxu0
      %v2173 = vadd.f32 0.0, %v2172
      %v2174 = vpop.f32.mrb[0].mxu0
      %v2175 = vadd.f32 0.0, %v2174
      %2176 = vmatprep.mubr.bf16.mxu0 0
      %2177 = vmatmul.mubr.bf16.gmra.mrb[0].mxu0 %v1497
      %v2178 = vpop.f32.mrb[0].mxu0
      %v2179 = vadd.f32 0.0, %v2178
      %v2180 = vpop.f32.mrb[0].mxu0
      %v2181 = vadd.f32 0.0, %v2180
      %v2182 = vpop.f32.mrb[0].mxu0
      %v2183 = vadd.f32 0.0, %v2182
      %v2184 = vpop.f32.mrb[0].mxu0
      %v2185 = vadd.f32 0.0, %v2184
      %2186 = vmatprep.mubr.bf16.mxu0 0
      %2187 = vmatmul.mubr.bf16.gmra.mrb[0].mxu0 %v1498
      %v2188 = vpop.f32.mrb[0].mxu0
      %v2189 = vadd.f32 0.0, %v2188
      %v2190 = vpop.f32.mrb[0].mxu0
      %v2191 = vadd.f32 0.0, %v2190
      %v2192 = vpop.f32.mrb[0].mxu0
      %v2193 = vadd.f32 0.0, %v2192
      %v2194 = vpop.f32.mrb[0].mxu0
      %v2195 = vadd.f32 0.0, %v2194
      %2196 = vmatprep.mubr.bf16.mxu0 0
      %2197 = vmatmul.mubr.bf16.gmra.mrb[0].mxu0 %v1499
      %v2198 = vpop.f32.mrb[0].mxu0
      %v2199 = vadd.f32 0.0, %v2198
      %v2200 = vpop.f32.mrb[0].mxu0
      %v2201 = vadd.f32 0.0, %v2200
      %v2202 = vpop.f32.mrb[0].mxu0
      %v2203 = vadd.f32 0.0, %v2202
      %v2204 = vpop.f32.mrb[0].mxu0
      %v2205 = vadd.f32 0.0, %v2204
      %2206 = vmatprep.mubr.bf16.mxu0 0
      %2207 = vmatmul.mubr.bf16.gmra.mrb[0].mxu0 %v1500
      %v2208 = vpop.f32.mrb[0].mxu0
      %v2209 = vadd.f32 0.0, %v2208
      %v2210 = vpop.f32.mrb[0].mxu0
      %v2211 = vadd.f32 0.0, %v2210
      %v2212 = vpop.f32.mrb[0].mxu0
      %v2213 = vadd.f32 0.0, %v2212
      %v2214 = vpop.f32.mrb[0].mxu0
      %v2215 = vadd.f32 0.0, %v2214
      %2216 = vmatprep.mubr.bf16.mxu0 0
      %2217 = vmatmul.mubr.bf16.gmra.mrb[0].mxu0 %v1501
      %v2218 = vpop.f32.mrb[0].mxu0
      %v2219 = vadd.f32 0.0, %v2218
      %v2220 = vpop.f32.mrb[0].mxu0
      %v2221 = vadd.f32 0.0, %v2220
      %v2222 = vpop.f32.mrb[0].mxu0
      %v2223 = vadd.f32 0.0, %v2222
      %v2224 = vpop.f32.mrb[0].mxu0
      %v2225 = vadd.f32 0.0, %v2224
      %2226 = vmatprep.mubr.bf16.mxu0 0
      %2227 = vmatmul.mubr.bf16.gmra.mrb[0].mxu0 %v1502
      %v2228 = vpop.f32.mrb[0].mxu0
      %v2229 = vadd.f32 0.0, %v2228
      %v2230 = vpop.f32.mrb[0].mxu0
      %v2231 = vadd.f32 0.0, %v2230
      %v2232 = vpop.f32.mrb[0].mxu0
      %v2233 = vadd.f32 0.0, %v2232
      %v2234 = vpop.f32.mrb[0].mxu0
      %v2235 = vadd.f32 0.0, %v2234
      %2236 = vmatprep.mubr.bf16.mxu0 0
      %2237 = vmatmul.mubr.bf16.gmra.mrb[0].mxu0 %v1503
      %v2238 = vpop.f32.mrb[0].mxu0
      %v2239 = vadd.f32 0.0, %v2238
      %v2240 = vpop.f32.mrb[0].mxu0
      %v2241 = vadd.f32 0.0, %v2240
      %v2242 = vpop.f32.mrb[0].mxu0
      %v2243 = vadd.f32 0.0, %v2242
      %v2244 = vpop.f32.mrb[0].mxu0
      %v2245 = vadd.f32 0.0, %v2244
      %2246 = vmatprep.mubr.bf16.mxu0 0
      %2247 = vmatmul.mubr.bf16.gmra.mrb[0].mxu0 %v1504
      %v2248 = vpop.f32.mrb[0].mxu0
      %v2249 = vadd.f32 0.0, %v2248
      %v2250 = vpop.f32.mrb[0].mxu0
      %v2251 = vadd.f32 0.0, %v2250
      %v2252 = vpop.f32.mrb[0].mxu0
      %v2253 = vadd.f32 0.0, %v2252
      %v2254 = vpop.f32.mrb[0].mxu0
      %v2255 = vadd.f32 0.0, %v2254
      %2256 = vmatprep.mubr.bf16.mxu0 0
      %2257 = vmatmul.mubr.bf16.gmra.mrb[0].mxu0 %v1505
      %v2258 = vpop.f32.mrb[0].mxu0
      %v2259 = vadd.f32 0.0, %v2258
      %v2260 = vpop.f32.mrb[0].mxu0
      %v2261 = vadd.f32 0.0, %v2260
      %v2262 = vpop.f32.mrb[0].mxu0
      %v2263 = vadd.f32 0.0, %v2262
      %v2264 = vpop.f32.mrb[0].mxu0
      %v2265 = vadd.f32 0.0, %v2264
      %2266 = vmatprep.mubr.bf16.mxu0 0
      %2267 = vmatmul.mubr.bf16.gmra.mrb[0].mxu0 %v1506
      %v2268 = vpop.f32.mrb[0].mxu0
      %v2269 = vadd.f32 0.0, %v2268
      %v2270 = vpop.f32.mrb[0].mxu0
      %v2271 = vadd.f32 0.0, %v2270
      %v2272 = vpop.f32.mrb[0].mxu0
      %v2273 = vadd.f32 0.0, %v2272
      %v2274 = vpop.f32.mrb[0].mxu0
      %v2275 = vadd.f32 0.0, %v2274
      %2276 = vdwg.mxu0
      %2277 = vmatprep.subr.bf16.mxu0 %v1768
      %2278 = vmatpush1.bf16.msra.mxu0 %v1767
      %2279 = vmatprep.subr.bf16.mxu0 %v1776
      %2280 = vmatpush1.bf16.msra.mxu0 %v1775
      %2281 = vmatprep.subr.bf16.mxu0 %v1784
      %2282 = vmatpush1.bf16.msra.mxu0 %v1783
      %2283 = vmatprep.subr.bf16.mxu0 %v1792
      %2284 = vmatpush1.bf16.msra.mxu0 %v1791
      %2285 = vmatprep.subr.bf16.mxu0 %v1800
      %2286 = vmatpush1.bf16.msra.mxu0 %v1799
      %2287 = vmatprep.subr.bf16.mxu0 %v1808
      %2288 = vmatpush1.bf16.msra.mxu0 %v1807
      %2289 = vmatprep.subr.bf16.mxu0 %v1816
      %2290 = vmatpush1.bf16.msra.mxu0 %v1815
      %2291 = vmatprep.subr.bf16.mxu0 %v1824
      %2292 = vmatpush1.bf16.msra.mxu0 %v1823
      %2293 = vmatprep.subr.bf16.mxu0 0
      %2294 = vmatpush1.bf16.msra.mxu0 0
      %2295 = vmatprep.subr.bf16.mxu0 0
      %2296 = vmatpush1.bf16.msra.mxu0 0
      %2297 = vmatprep.subr.bf16.mxu0 0
      %2298 = vmatpush1.bf16.msra.mxu0 0
      %2299 = vmatprep.subr.bf16.mxu0 0
      %2300 = vmatpush1.bf16.msra.mxu0 0
      %2301 = vmatprep.subr.bf16.mxu0 0
      %2302 = vmatpush1.bf16.msra.mxu0 0
      %2303 = vmatprep.subr.bf16.mxu0 0
      %2304 = vmatpush1.bf16.msra.mxu0 0
      %2305 = vmatprep.subr.bf16.mxu0 0
      %2306 = vmatpush1.bf16.msra.mxu0 0
      %2307 = vmatprep.subr.bf16.mxu0 0
      %2308 = vmatpush1.bf16.msra.mxu0 0
      %2309 = vmatprep.mubr.bf16.mxu0 0
      %2310 = vmatmul.mubr.bf16.gmra.mrb[0].mxu0 %v1491
      %v2311 = vpop.f32.mrb[0].mxu0
      %v2312 = vadd.f32 0.0, %v2311
      %v2313 = vpop.f32.mrb[0].mxu0
      %v2314 = vadd.f32 0.0, %v2313
      %v2315 = vpop.f32.mrb[0].mxu0
      %v2316 = vadd.f32 0.0, %v2315
      %v2317 = vpop.f32.mrb[0].mxu0
      %v2318 = vadd.f32 0.0, %v2317
      %2319 = vmatprep.mubr.bf16.mxu0 0
      %2320 = vmatmul.mubr.bf16.gmra.mrb[0].mxu0 %v1492
      %v2321 = vpop.f32.mrb[0].mxu0
      %v2322 = vadd.f32 0.0, %v2321
      %v2323 = vpop.f32.mrb[0].mxu0
      %v2324 = vadd.f32 0.0, %v2323
      %v2325 = vpop.f32.mrb[0].mxu0
      %v2326 = vadd.f32 0.0, %v2325
      %v2327 = vpop.f32.mrb[0].mxu0
      %v2328 = vadd.f32 0.0, %v2327
      %2329 = vmatprep.mubr.bf16.mxu0 0
      %2330 = vmatmul.mubr.bf16.gmra.mrb[0].mxu0 %v1493
      %v2331 = vpop.f32.mrb[0].mxu0
      %v2332 = vadd.f32 0.0, %v2331
      %v2333 = vpop.f32.mrb[0].mxu0
      %v2334 = vadd.f32 0.0, %v2333
      %v2335 = vpop.f32.mrb[0].mxu0
      %v2336 = vadd.f32 0.0, %v2335
      %v2337 = vpop.f32.mrb[0].mxu0
      %v2338 = vadd.f32 0.0, %v2337
      %2339 = vmatprep.mubr.bf16.mxu0 0
      %2340 = vmatmul.mubr.bf16.gmra.mrb[0].mxu0 %v1494
      %v2341 = vpop.f32.mrb[0].mxu0
      %v2342 = vadd.f32 0.0, %v2341
      %v2343 = vpop.f32.mrb[0].mxu0
      %v2344 = vadd.f32 0.0, %v2343
      %v2345 = vpop.f32.mrb[0].mxu0
      %v2346 = vadd.f32 0.0, %v2345
      %v2347 = vpop.f32.mrb[0].mxu0
      %v2348 = vadd.f32 0.0, %v2347
      %2349 = vmatprep.mubr.bf16.mxu0 0
      %2350 = vmatmul.mubr.bf16.gmra.mrb[0].mxu0 %v1495
      %v2351 = vpop.f32.mrb[0].mxu0
      %v2352 = vadd.f32 0.0, %v2351
      %v2353 = vpop.f32.mrb[0].mxu0
      %v2354 = vadd.f32 0.0, %v2353
      %v2355 = vpop.f32.mrb[0].mxu0
      %v2356 = vadd.f32 0.0, %v2355
      %v2357 = vpop.f32.mrb[0].mxu0
      %v2358 = vadd.f32 0.0, %v2357
      %2359 = vmatprep.mubr.bf16.mxu0 0
      %2360 = vmatmul.mubr.bf16.gmra.mrb[0].mxu0 %v1496
      %v2361 = vpop.f32.mrb[0].mxu0
      %v2362 = vadd.f32 0.0, %v2361
      %v2363 = vpop.f32.mrb[0].mxu0
      %v2364 = vadd.f32 0.0, %v2363
      %v2365 = vpop.f32.mrb[0].mxu0
      %v2366 = vadd.f32 0.0, %v2365
      %v2367 = vpop.f32.mrb[0].mxu0
      %v2368 = vadd.f32 0.0, %v2367
      %2369 = vmatprep.mubr.bf16.mxu0 0
      %2370 = vmatmul.mubr.bf16.gmra.mrb[0].mxu0 %v1497
      %v2371 = vpop.f32.mrb[0].mxu0
      %v2372 = vadd.f32 0.0, %v2371
      %v2373 = vpop.f32.mrb[0].mxu0
      %v2374 = vadd.f32 0.0, %v2373
      %v2375 = vpop.f32.mrb[0].mxu0
      %v2376 = vadd.f32 0.0, %v2375
      %v2377 = vpop.f32.mrb[0].mxu0
      %v2378 = vadd.f32 0.0, %v2377
      %2379 = vmatprep.mubr.bf16.mxu0 0
      %2380 = vmatmul.mubr.bf16.gmra.mrb[0].mxu0 %v1498
      %v2381 = vpop.f32.mrb[0].mxu0
      %v2382 = vadd.f32 0.0, %v2381
      %v2383 = vpop.f32.mrb[0].mxu0
      %v2384 = vadd.f32 0.0, %v2383
      %v2385 = vpop.f32.mrb[0].mxu0
      %v2386 = vadd.f32 0.0, %v2385
      %v2387 = vpop.f32.mrb[0].mxu0
      %v2388 = vadd.f32 0.0, %v2387
      %2389 = vmatprep.mubr.bf16.mxu0 0
      %2390 = vmatmul.mubr.bf16.gmra.mrb[0].mxu0 %v1499
      %v2391 = vpop.f32.mrb[0].mxu0
      %v2392 = vadd.f32 0.0, %v2391
      %v2393 = vpop.f32.mrb[0].mxu0
      %v2394 = vadd.f32 0.0, %v2393
      %v2395 = vpop.f32.mrb[0].mxu0
      %v2396 = vadd.f32 0.0, %v2395
      %v2397 = vpop.f32.mrb[0].mxu0
      %v2398 = vadd.f32 0.0, %v2397
      %2399 = vmatprep.mubr.bf16.mxu0 0
      %2400 = vmatmul.mubr.bf16.gmra.mrb[0].mxu0 %v1500
      %v2401 = vpop.f32.mrb[0].mxu0
      %v2402 = vadd.f32 0.0, %v2401
      %v2403 = vpop.f32.mrb[0].mxu0
      %v2404 = vadd.f32 0.0, %v2403
      %v2405 = vpop.f32.mrb[0].mxu0
      %v2406 = vadd.f32 0.0, %v2405
      %v2407 = vpop.f32.mrb[0].mxu0
      %v2408 = vadd.f32 0.0, %v2407
      %2409 = vmatprep.mubr.bf16.mxu0 0
      %2410 = vmatmul.mubr.bf16.gmra.mrb[0].mxu0 %v1501
      %v2411 = vpop.f32.mrb[0].mxu0
      %v2412 = vadd.f32 0.0, %v2411
      %v2413 = vpop.f32.mrb[0].mxu0
      %v2414 = vadd.f32 0.0, %v2413
      %v2415 = vpop.f32.mrb[0].mxu0
      %v2416 = vadd.f32 0.0, %v2415
      %v2417 = vpop.f32.mrb[0].mxu0
      %v2418 = vadd.f32 0.0, %v2417
      %2419 = vmatprep.mubr.bf16.mxu0 0
      %2420 = vmatmul.mubr.bf16.gmra.mrb[0].mxu0 %v1502
      %v2421 = vpop.f32.mrb[0].mxu0
      %v2422 = vadd.f32 0.0, %v2421
      %v2423 = vpop.f32.mrb[0].mxu0
      %v2424 = vadd.f32 0.0, %v2423
      %v2425 = vpop.f32.mrb[0].mxu0
      %v2426 = vadd.f32 0.0, %v2425
      %v2427 = vpop.f32.mrb[0].mxu0
      %v2428 = vadd.f32 0.0, %v2427
      %2429 = vmatprep.mubr.bf16.mxu0 0
      %2430 = vmatmul.mubr.bf16.gmra.mrb[0].mxu0 %v1503
      %v2431 = vpop.f32.mrb[0].mxu0
      %v2432 = vadd.f32 0.0, %v2431
      %v2433 = vpop.f32.mrb[0].mxu0
      %v2434 = vadd.f32 0.0, %v2433
      %v2435 = vpop.f32.mrb[0].mxu0
      %v2436 = vadd.f32 0.0, %v2435
      %v2437 = vpop.f32.mrb[0].mxu0
      %v2438 = vadd.f32 0.0, %v2437
      %2439 = vmatprep.mubr.bf16.mxu0 0
      %2440 = vmatmul.mubr.bf16.gmra.mrb[0].mxu0 %v1504
      %v2441 = vpop.f32.mrb[0].mxu0
      %v2442 = vadd.f32 0.0, %v2441
      %v2443 = vpop.f32.mrb[0].mxu0
      %v2444 = vadd.f32 0.0, %v2443
      %v2445 = vpop.f32.mrb[0].mxu0
      %v2446 = vadd.f32 0.0, %v2445
      %v2447 = vpop.f32.mrb[0].mxu0
      %v2448 = vadd.f32 0.0, %v2447
      %2449 = vmatprep.mubr.bf16.mxu0 0
      %2450 = vmatmul.mubr.bf16.gmra.mrb[0].mxu0 %v1505
      %v2451 = vpop.f32.mrb[0].mxu0
      %v2452 = vadd.f32 0.0, %v2451
      %v2453 = vpop.f32.mrb[0].mxu0
      %v2454 = vadd.f32 0.0, %v2453
      %v2455 = vpop.f32.mrb[0].mxu0
      %v2456 = vadd.f32 0.0, %v2455
      %v2457 = vpop.f32.mrb[0].mxu0
      %v2458 = vadd.f32 0.0, %v2457
      %2459 = vmatprep.mubr.bf16.mxu0 0
      %2460 = vmatmul.mubr.bf16.gmra.mrb[0].mxu0 %v1506
      %v2461 = vpop.f32.mrb[0].mxu0
      %v2462 = vadd.f32 0.0, %v2461
      %v2463 = vpop.f32.mrb[0].mxu0
      %v2464 = vadd.f32 0.0, %v2463
      %v2465 = vpop.f32.mrb[0].mxu0
      %v2466 = vadd.f32 0.0, %v2465
      %v2467 = vpop.f32.mrb[0].mxu0
      %v2468 = vadd.f32 0.0, %v2467
      %2469 = vdwg.mxu0
      %2470 = vmatprep.subr.bf16.mxu0 %v1770
      %2471 = vmatpush1.bf16.msra.mxu0 %v1769
      %2472 = vmatprep.subr.bf16.mxu0 %v1778
      %2473 = vmatpush1.bf16.msra.mxu0 %v1777
      %2474 = vmatprep.subr.bf16.mxu0 %v1786
      %2475 = vmatpush1.bf16.msra.mxu0 %v1785
      %2476 = vmatprep.subr.bf16.mxu0 %v1794
      %2477 = vmatpush1.bf16.msra.mxu0 %v1793
      %2478 = vmatprep.subr.bf16.mxu0 %v1802
      %2479 = vmatpush1.bf16.msra.mxu0 %v1801
      %2480 = vmatprep.subr.bf16.mxu0 %v1810
      %2481 = vmatpush1.bf16.msra.mxu0 %v1809
      %2482 = vmatprep.subr.bf16.mxu0 %v1818
      %2483 = vmatpush1.bf16.msra.mxu0 %v1817
      %2484 = vmatprep.subr.bf16.mxu0 %v1826
      %2485 = vmatpush1.bf16.msra.mxu0 %v1825
      %2486 = vmatprep.subr.bf16.mxu0 0
      %2487 = vmatpush1.bf16.msra.mxu0 0
      %2488 = vmatprep.subr.bf16.mxu0 0
      %2489 = vmatpush1.bf16.msra.mxu0 0
      %2490 = vmatprep.subr.bf16.mxu0 0
      %2491 = vmatpush1.bf16.msra.mxu0 0
      %2492 = vmatprep.subr.bf16.mxu0 0
      %2493 = vmatpush1.bf16.msra.mxu0 0
      %2494 = vmatprep.subr.bf16.mxu0 0
      %2495 = vmatpush1.bf16.msra.mxu0 0
      %2496 = vmatprep.subr.bf16.mxu0 0
      %2497 = vmatpush1.bf16.msra.mxu0 0
      %2498 = vmatprep.subr.bf16.mxu0 0
      %2499 = vmatpush1.bf16.msra.mxu0 0
      %2500 = vmatprep.subr.bf16.mxu0 0
      %2501 = vmatpush1.bf16.msra.mxu0 0
      %2502 = vmatprep.mubr.bf16.mxu0 0
      %2503 = vmatmul.mubr.bf16.gmra.mrb[0].mxu0 %v1491
      %v2504 = vpop.f32.mrb[0].mxu0
      %v2505 = vadd.f32 0.0, %v2504
      %v2506 = vpop.f32.mrb[0].mxu0
      %v2507 = vadd.f32 0.0, %v2506
      %v2508 = vpop.f32.mrb[0].mxu0
      %v2509 = vadd.f32 0.0, %v2508
      %v2510 = vpop.f32.mrb[0].mxu0
      %v2511 = vadd.f32 0.0, %v2510
      %2512 = vmatprep.mubr.bf16.mxu0 0
      %2513 = vmatmul.mubr.bf16.gmra.mrb[0].mxu0 %v1492
      %v2514 = vpop.f32.mrb[0].mxu0
      %v2515 = vadd.f32 0.0, %v2514
      %v2516 = vpop.f32.mrb[0].mxu0
      %v2517 = vadd.f32 0.0, %v2516
      %v2518 = vpop.f32.mrb[0].mxu0
      %v2519 = vadd.f32 0.0, %v2518
      %v2520 = vpop.f32.mrb[0].mxu0
      %v2521 = vadd.f32 0.0, %v2520
      %2522 = vmatprep.mubr.bf16.mxu0 0
      %2523 = vmatmul.mubr.bf16.gmra.mrb[0].mxu0 %v1493
      %v2524 = vpop.f32.mrb[0].mxu0
      %v2525 = vadd.f32 0.0, %v2524
      %v2526 = vpop.f32.mrb[0].mxu0
      %v2527 = vadd.f32 0.0, %v2526
      %v2528 = vpop.f32.mrb[0].mxu0
      %v2529 = vadd.f32 0.0, %v2528
      %v2530 = vpop.f32.mrb[0].mxu0
      %v2531 = vadd.f32 0.0, %v2530
      %2532 = vmatprep.mubr.bf16.mxu0 0
      %2533 = vmatmul.mubr.bf16.gmra.mrb[0].mxu0 %v1494
      %v2534 = vpop.f32.mrb[0].mxu0
      %v2535 = vadd.f32 0.0, %v2534
      %v2536 = vpop.f32.mrb[0].mxu0
      %v2537 = vadd.f32 0.0, %v2536
      %v2538 = vpop.f32.mrb[0].mxu0
      %v2539 = vadd.f32 0.0, %v2538
      %v2540 = vpop.f32.mrb[0].mxu0
      %v2541 = vadd.f32 0.0, %v2540
      %2542 = vmatprep.mubr.bf16.mxu0 0
      %2543 = vmatmul.mubr.bf16.gmra.mrb[0].mxu0 %v1495
      %v2544 = vpop.f32.mrb[0].mxu0
      %v2545 = vadd.f32 0.0, %v2544
      %v2546 = vpop.f32.mrb[0].mxu0
      %v2547 = vadd.f32 0.0, %v2546
      %v2548 = vpop.f32.mrb[0].mxu0
      %v2549 = vadd.f32 0.0, %v2548
      %v2550 = vpop.f32.mrb[0].mxu0
      %v2551 = vadd.f32 0.0, %v2550
      %2552 = vmatprep.mubr.bf16.mxu0 0
      %2553 = vmatmul.mubr.bf16.gmra.mrb[0].mxu0 %v1496
      %v2554 = vpop.f32.mrb[0].mxu0
      %v2555 = vadd.f32 0.0, %v2554
      %v2556 = vpop.f32.mrb[0].mxu0
      %v2557 = vadd.f32 0.0, %v2556
      %v2558 = vpop.f32.mrb[0].mxu0
      %v2559 = vadd.f32 0.0, %v2558
      %v2560 = vpop.f32.mrb[0].mxu0
      %v2561 = vadd.f32 0.0, %v2560
      %2562 = vmatprep.mubr.bf16.mxu0 0
      %2563 = vmatmul.mubr.bf16.gmra.mrb[0].mxu0 %v1497
      %v2564 = vpop.f32.mrb[0].mxu0
      %v2565 = vadd.f32 0.0, %v2564
      %v2566 = vpop.f32.mrb[0].mxu0
      %v2567 = vadd.f32 0.0, %v2566
      %v2568 = vpop.f32.mrb[0].mxu0
      %v2569 = vadd.f32 0.0, %v2568
      %v2570 = vpop.f32.mrb[0].mxu0
      %v2571 = vadd.f32 0.0, %v2570
      %2572 = vmatprep.mubr.bf16.mxu0 0
      %2573 = vmatmul.mubr.bf16.gmra.mrb[0].mxu0 %v1498
      %v2574 = vpop.f32.mrb[0].mxu0
      %v2575 = vadd.f32 0.0, %v2574
      %v2576 = vpop.f32.mrb[0].mxu0
      %v2577 = vadd.f32 0.0, %v2576
      %v2578 = vpop.f32.mrb[0].mxu0
      %v2579 = vadd.f32 0.0, %v2578
      %v2580 = vpop.f32.mrb[0].mxu0
      %v2581 = vadd.f32 0.0, %v2580
      %2582 = vmatprep.mubr.bf16.mxu0 0
      %2583 = vmatmul.mubr.bf16.gmra.mrb[0].mxu0 %v1499
      %v2584 = vpop.f32.mrb[0].mxu0
      %v2585 = vadd.f32 0.0, %v2584
      %v2586 = vpop.f32.mrb[0].mxu0
      %v2587 = vadd.f32 0.0, %v2586
      %v2588 = vpop.f32.mrb[0].mxu0
      %v2589 = vadd.f32 0.0, %v2588
      %v2590 = vpop.f32.mrb[0].mxu0
      %v2591 = vadd.f32 0.0, %v2590
      %2592 = vmatprep.mubr.bf16.mxu0 0
      %2593 = vmatmul.mubr.bf16.gmra.mrb[0].mxu0 %v1500
      %v2594 = vpop.f32.mrb[0].mxu0
      %v2595 = vadd.f32 0.0, %v2594
      %v2596 = vpop.f32.mrb[0].mxu0
      %v2597 = vadd.f32 0.0, %v2596
      %v2598 = vpop.f32.mrb[0].mxu0
      %v2599 = vadd.f32 0.0, %v2598
      %v2600 = vpop.f32.mrb[0].mxu0
      %v2601 = vadd.f32 0.0, %v2600
      %2602 = vmatprep.mubr.bf16.mxu0 0
      %2603 = vmatmul.mubr.bf16.gmra.mrb[0].mxu0 %v1501
      %v2604 = vpop.f32.mrb[0].mxu0
      %v2605 = vadd.f32 0.0, %v2604
      %v2606 = vpop.f32.mrb[0].mxu0
      %v2607 = vadd.f32 0.0, %v2606
      %v2608 = vpop.f32.mrb[0].mxu0
      %v2609 = vadd.f32 0.0, %v2608
      %v2610 = vpop.f32.mrb[0].mxu0
      %v2611 = vadd.f32 0.0, %v2610
      %2612 = vmatprep.mubr.bf16.mxu0 0
      %2613 = vmatmul.mubr.bf16.gmra.mrb[0].mxu0 %v1502
      %v2614 = vpop.f32.mrb[0].mxu0
      %v2615 = vadd.f32 0.0, %v2614
      %v2616 = vpop.f32.mrb[0].mxu0
      %v2617 = vadd.f32 0.0, %v2616
      %v2618 = vpop.f32.mrb[0].mxu0
      %v2619 = vadd.f32 0.0, %v2618
      %v2620 = vpop.f32.mrb[0].mxu0
      %v2621 = vadd.f32 0.0, %v2620
      %2622 = vmatprep.mubr.bf16.mxu0 0
      %2623 = vmatmul.mubr.bf16.gmra.mrb[0].mxu0 %v1503
      %v2624 = vpop.f32.mrb[0].mxu0
      %v2625 = vadd.f32 0.0, %v2624
      %v2626 = vpop.f32.mrb[0].mxu0
      %v2627 = vadd.f32 0.0, %v2626
      %v2628 = vpop.f32.mrb[0].mxu0
      %v2629 = vadd.f32 0.0, %v2628
      %v2630 = vpop.f32.mrb[0].mxu0
      %v2631 = vadd.f32 0.0, %v2630
      %2632 = vmatprep.mubr.bf16.mxu0 0
      %2633 = vmatmul.mubr.bf16.gmra.mrb[0].mxu0 %v1504
      %v2634 = vpop.f32.mrb[0].mxu0
      %v2635 = vadd.f32 0.0, %v2634
      %v2636 = vpop.f32.mrb[0].mxu0
      %v2637 = vadd.f32 0.0, %v2636
      %v2638 = vpop.f32.mrb[0].mxu0
      %v2639 = vadd.f32 0.0, %v2638
      %v2640 = vpop.f32.mrb[0].mxu0
      %v2641 = vadd.f32 0.0, %v2640
      %2642 = vmatprep.mubr.bf16.mxu0 0
      %2643 = vmatmul.mubr.bf16.gmra.mrb[0].mxu0 %v1505
      %v2644 = vpop.f32.mrb[0].mxu0
      %v2645 = vadd.f32 0.0, %v2644
      %v2646 = vpop.f32.mrb[0].mxu0
      %v2647 = vadd.f32 0.0, %v2646
      %v2648 = vpop.f32.mrb[0].mxu0
      %v2649 = vadd.f32 0.0, %v2648
      %v2650 = vpop.f32.mrb[0].mxu0
      %v2651 = vadd.f32 0.0, %v2650
      %2652 = vmatprep.mubr.bf16.mxu0 0
      %2653 = vmatmul.mubr.bf16.gmra.mrb[0].mxu0 %v1506
      %v2654 = vpop.f32.mrb[0].mxu0
      %v2655 = vadd.f32 0.0, %v2654
      %v2656 = vpop.f32.mrb[0].mxu0
      %v2657 = vadd.f32 0.0, %v2656
      %v2658 = vpop.f32.mrb[0].mxu0
      %v2659 = vadd.f32 0.0, %v2658
      %v2660 = vpop.f32.mrb[0].mxu0
      %v2661 = vadd.f32 0.0, %v2660
      %2662 = vdwg.mxu0
      %v2663 = vld [vmem:[%s8] sm:$0xff]
      %v2665 = vlaneseq
      %v2666 = vshrl.u32 %v2665, 7
      %v2667 = vsub.s32 0, %v2666
      %v2668 = vrot.slane %v2663, %v2667
      %v2669 = vlaneseq
      %v2670 = vshrl.u32 %v2669, 7
      %v2671 = vsub.s32 1, %v2670
      %v2672 = vrot.slane %v2663, %v2671
      %v2673 = vlaneseq
      %v2674 = vshrl.u32 %v2673, 7
      %v2675 = vsub.s32 2, %v2674
      %v2676 = vrot.slane %v2663, %v2675
      %v2677 = vlaneseq
      %v2678 = vshrl.u32 %v2677, 7
      %v2679 = vsub.s32 3, %v2678
      %v2680 = vrot.slane %v2663, %v2679
      %v2681 = vlaneseq
      %v2682 = vshrl.u32 %v2681, 7
      %v2683 = vsub.s32 4, %v2682
      %v2684 = vrot.slane %v2663, %v2683
      %v2685 = vlaneseq
      %v2686 = vshrl.u32 %v2685, 7
      %v2687 = vsub.s32 5, %v2686
      %v2688 = vrot.slane %v2663, %v2687
      %v2689 = vlaneseq
      %v2690 = vshrl.u32 %v2689, 7
      %v2691 = vsub.s32 6, %v2690
      %v2692 = vrot.slane %v2663, %v2691
      %v2693 = vlaneseq
      %v2694 = vshrl.u32 %v2693, 7
      %v2695 = vsub.s32 7, %v2694
      %v2696 = vrot.slane %v2663, %v2695
      %v2705 = vmul.f32 %v1926, %v2668
      %v2706 = vmul.f32 %v1928, %v2672
      %v2707 = vmul.f32 %v2119, %v2676
      %v2708 = vmul.f32 %v2121, %v2680
      %v2709 = vmul.f32 %v2312, %v2684
      %v2710 = vmul.f32 %v2314, %v2688
      %v2711 = vmul.f32 %v2505, %v2692
      %v2712 = vmul.f32 %v2507, %v2696
      %v2713 = vmul.f32 %v1930, %v2668
      %v2714 = vmul.f32 %v1932, %v2672
      %v2715 = vmul.f32 %v2123, %v2676
      %v2716 = vmul.f32 %v2125, %v2680
      %v2717 = vmul.f32 %v2316, %v2684
      %v2718 = vmul.f32 %v2318, %v2688
      %v2719 = vmul.f32 %v2509, %v2692
      %v2720 = vmul.f32 %v2511, %v2696
      %v2721 = vmul.f32 %v1936, %v2668
      %v2722 = vmul.f32 %v1938, %v2672
      %v2723 = vmul.f32 %v2129, %v2676
      %v2724 = vmul.f32 %v2131, %v2680
      %v2725 = vmul.f32 %v2322, %v2684
      %v2726 = vmul.f32 %v2324, %v2688
      %v2727 = vmul.f32 %v2515, %v2692
      %v2728 = vmul.f32 %v2517, %v2696
      %v2729 = vmul.f32 %v1940, %v2668
      %v2730 = vmul.f32 %v1942, %v2672
      %v2731 = vmul.f32 %v2133, %v2676
      %v2732 = vmul.f32 %v2135, %v2680
      %v2733 = vmul.f32 %v2326, %v2684
      %v2734 = vmul.f32 %v2328, %v2688
      %v2735 = vmul.f32 %v2519, %v2692
      %v2736 = vmul.f32 %v2521, %v2696
      %v2737 = vmul.f32 %v1946, %v2668
      %v2738 = vmul.f32 %v1948, %v2672
      %v2739 = vmul.f32 %v2139, %v2676
      %v2740 = vmul.f32 %v2141, %v2680
      %v2741 = vmul.f32 %v2332, %v2684
      %v2742 = vmul.f32 %v2334, %v2688
      %v2743 = vmul.f32 %v2525, %v2692
      %v2744 = vmul.f32 %v2527, %v2696
      %v2745 = vmul.f32 %v1950, %v2668
      %v2746 = vmul.f32 %v1952, %v2672
      %v2747 = vmul.f32 %v2143, %v2676
      %v2748 = vmul.f32 %v2145, %v2680
      %v2749 = vmul.f32 %v2336, %v2684
      %v2750 = vmul.f32 %v2338, %v2688
      %v2751 = vmul.f32 %v2529, %v2692
      %v2752 = vmul.f32 %v2531, %v2696
      %v2753 = vmul.f32 %v1956, %v2668
      %v2754 = vmul.f32 %v1958, %v2672
      %v2755 = vmul.f32 %v2149, %v2676
      %v2756 = vmul.f32 %v2151, %v2680
      %v2757 = vmul.f32 %v2342, %v2684
      %v2758 = vmul.f32 %v2344, %v2688
      %v2759 = vmul.f32 %v2535, %v2692
      %v2760 = vmul.f32 %v2537, %v2696
      %v2761 = vmul.f32 %v1960, %v2668
      %v2762 = vmul.f32 %v1962, %v2672
      %v2763 = vmul.f32 %v2153, %v2676
      %v2764 = vmul.f32 %v2155, %v2680
      %v2765 = vmul.f32 %v2346, %v2684
      %v2766 = vmul.f32 %v2348, %v2688
      %v2767 = vmul.f32 %v2539, %v2692
      %v2768 = vmul.f32 %v2541, %v2696
      %v2769 = vmul.f32 %v1966, %v2668
      %v2770 = vmul.f32 %v1968, %v2672
      %v2771 = vmul.f32 %v2159, %v2676
      %v2772 = vmul.f32 %v2161, %v2680
      %v2773 = vmul.f32 %v2352, %v2684
      %v2774 = vmul.f32 %v2354, %v2688
      %v2775 = vmul.f32 %v2545, %v2692
      %v2776 = vmul.f32 %v2547, %v2696
      %v2777 = vmul.f32 %v1970, %v2668
      %v2778 = vmul.f32 %v1972, %v2672
      %v2779 = vmul.f32 %v2163, %v2676
      %v2780 = vmul.f32 %v2165, %v2680
      %v2781 = vmul.f32 %v2356, %v2684
      %v2782 = vmul.f32 %v2358, %v2688
      %v2783 = vmul.f32 %v2549, %v2692
      %v2784 = vmul.f32 %v2551, %v2696
      %v2785 = vmul.f32 %v1976, %v2668
      %v2786 = vmul.f32 %v1978, %v2672
      %v2787 = vmul.f32 %v2169, %v2676
      %v2788 = vmul.f32 %v2171, %v2680
      %v2789 = vmul.f32 %v2362, %v2684
      %v2790 = vmul.f32 %v2364, %v2688
      %v2791 = vmul.f32 %v2555, %v2692
      %v2792 = vmul.f32 %v2557, %v2696
      %v2793 = vmul.f32 %v1980, %v2668
      %v2794 = vmul.f32 %v1982, %v2672
      %v2795 = vmul.f32 %v2173, %v2676
      %v2796 = vmul.f32 %v2175, %v2680
      %v2797 = vmul.f32 %v2366, %v2684
      %v2798 = vmul.f32 %v2368, %v2688
      %v2799 = vmul.f32 %v2559, %v2692
      %v2800 = vmul.f32 %v2561, %v2696
      %v2801 = vmul.f32 %v1986, %v2668
      %v2802 = vmul.f32 %v1988, %v2672
      %v2803 = vmul.f32 %v2179, %v2676
      %v2804 = vmul.f32 %v2181, %v2680
      %v2805 = vmul.f32 %v2372, %v2684
      %v2806 = vmul.f32 %v2374, %v2688
      %v2807 = vmul.f32 %v2565, %v2692
      %v2808 = vmul.f32 %v2567, %v2696
      %v2809 = vmul.f32 %v1990, %v2668
      %v2810 = vmul.f32 %v1992, %v2672
      %v2811 = vmul.f32 %v2183, %v2676
      %v2812 = vmul.f32 %v2185, %v2680
      %v2813 = vmul.f32 %v2376, %v2684
      %v2814 = vmul.f32 %v2378, %v2688
      %v2815 = vmul.f32 %v2569, %v2692
      %v2816 = vmul.f32 %v2571, %v2696
      %v2817 = vmul.f32 %v1996, %v2668
      %v2818 = vmul.f32 %v1998, %v2672
      %v2819 = vmul.f32 %v2189, %v2676
      %v2820 = vmul.f32 %v2191, %v2680
      %v2821 = vmul.f32 %v2382, %v2684
      %v2822 = vmul.f32 %v2384, %v2688
      %v2823 = vmul.f32 %v2575, %v2692
      %v2824 = vmul.f32 %v2577, %v2696
      %v2825 = vmul.f32 %v2000, %v2668
      %v2826 = vmul.f32 %v2002, %v2672
      %v2827 = vmul.f32 %v2193, %v2676
      %v2828 = vmul.f32 %v2195, %v2680
      %v2829 = vmul.f32 %v2386, %v2684
      %v2830 = vmul.f32 %v2388, %v2688
      %v2831 = vmul.f32 %v2579, %v2692
      %v2832 = vmul.f32 %v2581, %v2696
      %v2833 = vmul.f32 %v2006, %v2668
      %v2834 = vmul.f32 %v2008, %v2672
      %v2835 = vmul.f32 %v2199, %v2676
      %v2836 = vmul.f32 %v2201, %v2680
      %v2837 = vmul.f32 %v2392, %v2684
      %v2838 = vmul.f32 %v2394, %v2688
      %v2839 = vmul.f32 %v2585, %v2692
      %v2840 = vmul.f32 %v2587, %v2696
      %v2841 = vmul.f32 %v2010, %v2668
      %v2842 = vmul.f32 %v2012, %v2672
      %v2843 = vmul.f32 %v2203, %v2676
      %v2844 = vmul.f32 %v2205, %v2680
      %v2845 = vmul.f32 %v2396, %v2684
      %v2846 = vmul.f32 %v2398, %v2688
      %v2847 = vmul.f32 %v2589, %v2692
      %v2848 = vmul.f32 %v2591, %v2696
      %v2849 = vmul.f32 %v2016, %v2668
      %v2850 = vmul.f32 %v2018, %v2672
      %v2851 = vmul.f32 %v2209, %v2676
      %v2852 = vmul.f32 %v2211, %v2680
      %v2853 = vmul.f32 %v2402, %v2684
      %v2854 = vmul.f32 %v2404, %v2688
      %v2855 = vmul.f32 %v2595, %v2692
      %v2856 = vmul.f32 %v2597, %v2696
      %v2857 = vmul.f32 %v2020, %v2668
      %v2858 = vmul.f32 %v2022, %v2672
      %v2859 = vmul.f32 %v2213, %v2676
      %v2860 = vmul.f32 %v2215, %v2680
      %v2861 = vmul.f32 %v2406, %v2684
      %v2862 = vmul.f32 %v2408, %v2688
      %v2863 = vmul.f32 %v2599, %v2692
      %v2864 = vmul.f32 %v2601, %v2696
      %v2865 = vmul.f32 %v2026, %v2668
      %v2866 = vmul.f32 %v2028, %v2672
      %v2867 = vmul.f32 %v2219, %v2676
      %v2868 = vmul.f32 %v2221, %v2680
      %v2869 = vmul.f32 %v2412, %v2684
      %v2870 = vmul.f32 %v2414, %v2688
      %v2871 = vmul.f32 %v2605, %v2692
      %v2872 = vmul.f32 %v2607, %v2696
      %v2873 = vmul.f32 %v2030, %v2668
      %v2874 = vmul.f32 %v2032, %v2672
      %v2875 = vmul.f32 %v2223, %v2676
      %v2876 = vmul.f32 %v2225, %v2680
      %v2877 = vmul.f32 %v2416, %v2684
      %v2878 = vmul.f32 %v2418, %v2688
      %v2879 = vmul.f32 %v2609, %v2692
      %v2880 = vmul.f32 %v2611, %v2696
      %v2881 = vmul.f32 %v2036, %v2668
      %v2882 = vmul.f32 %v2038, %v2672
      %v2883 = vmul.f32 %v2229, %v2676
      %v2884 = vmul.f32 %v2231, %v2680
      %v2885 = vmul.f32 %v2422, %v2684
      %v2886 = vmul.f32 %v2424, %v2688
      %v2887 = vmul.f32 %v2615, %v2692
      %v2888 = vmul.f32 %v2617, %v2696
      %v2889 = vmul.f32 %v2040, %v2668
      %v2890 = vmul.f32 %v2042, %v2672
      %v2891 = vmul.f32 %v2233, %v2676
      %v2892 = vmul.f32 %v2235, %v2680
      %v2893 = vmul.f32 %v2426, %v2684
      %v2894 = vmul.f32 %v2428, %v2688
      %v2895 = vmul.f32 %v2619, %v2692
      %v2896 = vmul.f32 %v2621, %v2696
      %v2897 = vmul.f32 %v2046, %v2668
      %v2898 = vmul.f32 %v2048, %v2672
      %v2899 = vmul.f32 %v2239, %v2676
      %v2900 = vmul.f32 %v2241, %v2680
      %v2901 = vmul.f32 %v2432, %v2684
      %v2902 = vmul.f32 %v2434, %v2688
      %v2903 = vmul.f32 %v2625, %v2692
      %v2904 = vmul.f32 %v2627, %v2696
      %v2905 = vmul.f32 %v2050, %v2668
      %v2906 = vmul.f32 %v2052, %v2672
      %v2907 = vmul.f32 %v2243, %v2676
      %v2908 = vmul.f32 %v2245, %v2680
      %v2909 = vmul.f32 %v2436, %v2684
      %v2910 = vmul.f32 %v2438, %v2688
      %v2911 = vmul.f32 %v2629, %v2692
      %v2912 = vmul.f32 %v2631, %v2696
      %v2913 = vmul.f32 %v2056, %v2668
      %v2914 = vmul.f32 %v2058, %v2672
      %v2915 = vmul.f32 %v2249, %v2676
      %v2916 = vmul.f32 %v2251, %v2680
      %v2917 = vmul.f32 %v2442, %v2684
      %v2918 = vmul.f32 %v2444, %v2688
      %v2919 = vmul.f32 %v2635, %v2692
      %v2920 = vmul.f32 %v2637, %v2696
      %v2921 = vmul.f32 %v2060, %v2668
      %v2922 = vmul.f32 %v2062, %v2672
      %v2923 = vmul.f32 %v2253, %v2676
      %v2924 = vmul.f32 %v2255, %v2680
      %v2925 = vmul.f32 %v2446, %v2684
      %v2926 = vmul.f32 %v2448, %v2688
      %v2927 = vmul.f32 %v2639, %v2692
      %v2928 = vmul.f32 %v2641, %v2696
      %v2929 = vmul.f32 %v2066, %v2668
      %v2930 = vmul.f32 %v2068, %v2672
      %v2931 = vmul.f32 %v2259, %v2676
      %v2932 = vmul.f32 %v2261, %v2680
      %v2933 = vmul.f32 %v2452, %v2684
      %v2934 = vmul.f32 %v2454, %v2688
      %v2935 = vmul.f32 %v2645, %v2692
      %v2936 = vmul.f32 %v2647, %v2696
      %v2937 = vmul.f32 %v2070, %v2668
      %v2938 = vmul.f32 %v2072, %v2672
      %v2939 = vmul.f32 %v2263, %v2676
      %v2940 = vmul.f32 %v2265, %v2680
      %v2941 = vmul.f32 %v2456, %v2684
      %v2942 = vmul.f32 %v2458, %v2688
      %v2943 = vmul.f32 %v2649, %v2692
      %v2944 = vmul.f32 %v2651, %v2696
      %v2945 = vmul.f32 %v2076, %v2668
      %v2946 = vmul.f32 %v2078, %v2672
      %v2947 = vmul.f32 %v2269, %v2676
      %v2948 = vmul.f32 %v2271, %v2680
      %v2949 = vmul.f32 %v2462, %v2684
      %v2950 = vmul.f32 %v2464, %v2688
      %v2951 = vmul.f32 %v2655, %v2692
      %v2952 = vmul.f32 %v2657, %v2696
      %v2953 = vmul.f32 %v2080, %v2668
      %v2954 = vmul.f32 %v2082, %v2672
      %v2955 = vmul.f32 %v2273, %v2676
      %v2956 = vmul.f32 %v2275, %v2680
      %v2957 = vmul.f32 %v2466, %v2684
      %v2958 = vmul.f32 %v2468, %v2688
      %v2959 = vmul.f32 %v2659, %v2692
      %v2960 = vmul.f32 %v2661, %v2696
      %v2961 = vld [vmem:[%s9] sm:$0xff]
      %v2963 = vlaneseq
      %v2964 = vshrl.u32 %v2963, 7
      %v2965 = vsub.s32 0, %v2964
      %v2966 = vrot.slane %v2961, %v2965
      %v2967 = vlaneseq
      %v2968 = vshrl.u32 %v2967, 7
      %v2969 = vsub.s32 1, %v2968
      %v2970 = vrot.slane %v2961, %v2969
      %v2971 = vlaneseq
      %v2972 = vshrl.u32 %v2971, 7
      %v2973 = vsub.s32 2, %v2972
      %v2974 = vrot.slane %v2961, %v2973
      %v2975 = vlaneseq
      %v2976 = vshrl.u32 %v2975, 7
      %v2977 = vsub.s32 3, %v2976
      %v2978 = vrot.slane %v2961, %v2977
      %v2979 = vlaneseq
      %v2980 = vshrl.u32 %v2979, 7
      %v2981 = vsub.s32 4, %v2980
      %v2982 = vrot.slane %v2961, %v2981
      %v2983 = vlaneseq
      %v2984 = vshrl.u32 %v2983, 7
      %v2985 = vsub.s32 5, %v2984
      %v2986 = vrot.slane %v2961, %v2985
      %v2987 = vlaneseq
      %v2988 = vshrl.u32 %v2987, 7
      %v2989 = vsub.s32 6, %v2988
      %v2990 = vrot.slane %v2961, %v2989
      %v2991 = vlaneseq
      %v2992 = vshrl.u32 %v2991, 7
      %v2993 = vsub.s32 7, %v2992
      %v2994 = vrot.slane %v2961, %v2993
      %v3003 = vadd.f32 %v2705, %v2966
      %v3004 = vadd.f32 %v2706, %v2970
      %v3005 = vadd.f32 %v2707, %v2974
      %v3006 = vadd.f32 %v2708, %v2978
      %v3007 = vadd.f32 %v2709, %v2982
      %v3008 = vadd.f32 %v2710, %v2986
      %v3009 = vadd.f32 %v2711, %v2990
      %v3010 = vadd.f32 %v2712, %v2994
      %v3011 = vadd.f32 %v2713, %v2966
      %v3012 = vadd.f32 %v2714, %v2970
      %v3013 = vadd.f32 %v2715, %v2974
      %v3014 = vadd.f32 %v2716, %v2978
      %v3015 = vadd.f32 %v2717, %v2982
      %v3016 = vadd.f32 %v2718, %v2986
      %v3017 = vadd.f32 %v2719, %v2990
      %v3018 = vadd.f32 %v2720, %v2994
      %v3019 = vadd.f32 %v2721, %v2966
      %v3020 = vadd.f32 %v2722, %v2970
      %v3021 = vadd.f32 %v2723, %v2974
      %v3022 = vadd.f32 %v2724, %v2978
      %v3023 = vadd.f32 %v2725, %v2982
      %v3024 = vadd.f32 %v2726, %v2986
      %v3025 = vadd.f32 %v2727, %v2990
      %v3026 = vadd.f32 %v2728, %v2994
      %v3027 = vadd.f32 %v2729, %v2966
      %v3028 = vadd.f32 %v2730, %v2970
      %v3029 = vadd.f32 %v2731, %v2974
      %v3030 = vadd.f32 %v2732, %v2978
      %v3031 = vadd.f32 %v2733, %v2982
      %v3032 = vadd.f32 %v2734, %v2986
      %v3033 = vadd.f32 %v2735, %v2990
      %v3034 = vadd.f32 %v2736, %v2994
      %v3035 = vadd.f32 %v2737, %v2966
      %v3036 = vadd.f32 %v2738, %v2970
      %v3037 = vadd.f32 %v2739, %v2974
      %v3038 = vadd.f32 %v2740, %v2978
      %v3039 = vadd.f32 %v2741, %v2982
      %v3040 = vadd.f32 %v2742, %v2986
      %v3041 = vadd.f32 %v2743, %v2990
      %v3042 = vadd.f32 %v2744, %v2994
      %v3043 = vadd.f32 %v2745, %v2966
      %v3044 = vadd.f32 %v2746, %v2970
      %v3045 = vadd.f32 %v2747, %v2974
      %v3046 = vadd.f32 %v2748, %v2978
      %v3047 = vadd.f32 %v2749, %v2982
      %v3048 = vadd.f32 %v2750, %v2986
      %v3049 = vadd.f32 %v2751, %v2990
      %v3050 = vadd.f32 %v2752, %v2994
      %v3051 = vadd.f32 %v2753, %v2966
      %v3052 = vadd.f32 %v2754, %v2970
      %v3053 = vadd.f32 %v2755, %v2974
      %v3054 = vadd.f32 %v2756, %v2978
      %v3055 = vadd.f32 %v2757, %v2982
      %v3056 = vadd.f32 %v2758, %v2986
      %v3057 = vadd.f32 %v2759, %v2990
      %v3058 = vadd.f32 %v2760, %v2994
      %v3059 = vadd.f32 %v2761, %v2966
      %v3060 = vadd.f32 %v2762, %v2970
      %v3061 = vadd.f32 %v2763, %v2974
      %v3062 = vadd.f32 %v2764, %v2978
      %v3063 = vadd.f32 %v2765, %v2982
      %v3064 = vadd.f32 %v2766, %v2986
      %v3065 = vadd.f32 %v2767, %v2990
      %v3066 = vadd.f32 %v2768, %v2994
      %v3067 = vadd.f32 %v2769, %v2966
      %v3068 = vadd.f32 %v2770, %v2970
      %v3069 = vadd.f32 %v2771, %v2974
      %v3070 = vadd.f32 %v2772, %v2978
      %v3071 = vadd.f32 %v2773, %v2982
      %v3072 = vadd.f32 %v2774, %v2986
      %v3073 = vadd.f32 %v2775, %v2990
      %v3074 = vadd.f32 %v2776, %v2994
      %v3075 = vadd.f32 %v2777, %v2966
      %v3076 = vadd.f32 %v2778, %v2970
      %v3077 = vadd.f32 %v2779, %v2974
      %v3078 = vadd.f32 %v2780, %v2978
      %v3079 = vadd.f32 %v2781, %v2982
      %v3080 = vadd.f32 %v2782, %v2986
      %v3081 = vadd.f32 %v2783, %v2990
      %v3082 = vadd.f32 %v2784, %v2994
      %v3083 = vadd.f32 %v2785, %v2966
      %v3084 = vadd.f32 %v2786, %v2970
      %v3085 = vadd.f32 %v2787, %v2974
      %v3086 = vadd.f32 %v2788, %v2978
      %v3087 = vadd.f32 %v2789, %v2982
      %v3088 = vadd.f32 %v2790, %v2986
      %v3089 = vadd.f32 %v2791, %v2990
      %v3090 = vadd.f32 %v2792, %v2994
      %v3091 = vadd.f32 %v2793, %v2966
      %v3092 = vadd.f32 %v2794, %v2970
      %v3093 = vadd.f32 %v2795, %v2974
      %v3094 = vadd.f32 %v2796, %v2978
      %v3095 = vadd.f32 %v2797, %v2982
      %v3096 = vadd.f32 %v2798, %v2986
      %v3097 = vadd.f32 %v2799, %v2990
      %v3098 = vadd.f32 %v2800, %v2994
      %v3099 = vadd.f32 %v2801, %v2966
      %v3100 = vadd.f32 %v2802, %v2970
      %v3101 = vadd.f32 %v2803, %v2974
      %v3102 = vadd.f32 %v2804, %v2978
      %v3103 = vadd.f32 %v2805, %v2982
      %v3104 = vadd.f32 %v2806, %v2986
      %v3105 = vadd.f32 %v2807, %v2990
      %v3106 = vadd.f32 %v2808, %v2994
      %v3107 = vadd.f32 %v2809, %v2966
      %v3108 = vadd.f32 %v2810, %v2970
      %v3109 = vadd.f32 %v2811, %v2974
      %v3110 = vadd.f32 %v2812, %v2978
      %v3111 = vadd.f32 %v2813, %v2982
      %v3112 = vadd.f32 %v2814, %v2986
      %v3113 = vadd.f32 %v2815, %v2990
      %v3114 = vadd.f32 %v2816, %v2994
      %v3115 = vadd.f32 %v2817, %v2966
      %v3116 = vadd.f32 %v2818, %v2970
      %v3117 = vadd.f32 %v2819, %v2974
      %v3118 = vadd.f32 %v2820, %v2978
      %v3119 = vadd.f32 %v2821, %v2982
      %v3120 = vadd.f32 %v2822, %v2986
      %v3121 = vadd.f32 %v2823, %v2990
      %v3122 = vadd.f32 %v2824, %v2994
      %v3123 = vadd.f32 %v2825, %v2966
      %v3124 = vadd.f32 %v2826, %v2970
      %v3125 = vadd.f32 %v2827, %v2974
      %v3126 = vadd.f32 %v2828, %v2978
      %v3127 = vadd.f32 %v2829, %v2982
      %v3128 = vadd.f32 %v2830, %v2986
      %v3129 = vadd.f32 %v2831, %v2990
      %v3130 = vadd.f32 %v2832, %v2994
      %v3131 = vadd.f32 %v2833, %v2966
      %v3132 = vadd.f32 %v2834, %v2970
      %v3133 = vadd.f32 %v2835, %v2974
      %v3134 = vadd.f32 %v2836, %v2978
      %v3135 = vadd.f32 %v2837, %v2982
      %v3136 = vadd.f32 %v2838, %v2986
      %v3137 = vadd.f32 %v2839, %v2990
      %v3138 = vadd.f32 %v2840, %v2994
      %v3139 = vadd.f32 %v2841, %v2966
      %v3140 = vadd.f32 %v2842, %v2970
      %v3141 = vadd.f32 %v2843, %v2974
      %v3142 = vadd.f32 %v2844, %v2978
      %v3143 = vadd.f32 %v2845, %v2982
      %v3144 = vadd.f32 %v2846, %v2986
      %v3145 = vadd.f32 %v2847, %v2990
      %v3146 = vadd.f32 %v2848, %v2994
      %v3147 = vadd.f32 %v2849, %v2966
      %v3148 = vadd.f32 %v2850, %v2970
      %v3149 = vadd.f32 %v2851, %v2974
      %v3150 = vadd.f32 %v2852, %v2978
      %v3151 = vadd.f32 %v2853, %v2982
      %v3152 = vadd.f32 %v2854, %v2986
      %v3153 = vadd.f32 %v2855, %v2990
      %v3154 = vadd.f32 %v2856, %v2994
      %v3155 = vadd.f32 %v2857, %v2966
      %v3156 = vadd.f32 %v2858, %v2970
      %v3157 = vadd.f32 %v2859, %v2974
      %v3158 = vadd.f32 %v2860, %v2978
      %v3159 = vadd.f32 %v2861, %v2982
      %v3160 = vadd.f32 %v2862, %v2986
      %v3161 = vadd.f32 %v2863, %v2990
      %v3162 = vadd.f32 %v2864, %v2994
      %v3163 = vadd.f32 %v2865, %v2966
      %v3164 = vadd.f32 %v2866, %v2970
      %v3165 = vadd.f32 %v2867, %v2974
      %v3166 = vadd.f32 %v2868, %v2978
      %v3167 = vadd.f32 %v2869, %v2982
      %v3168 = vadd.f32 %v2870, %v2986
      %v3169 = vadd.f32 %v2871, %v2990
      %v3170 = vadd.f32 %v2872, %v2994
      %v3171 = vadd.f32 %v2873, %v2966
      %v3172 = vadd.f32 %v2874, %v2970
      %v3173 = vadd.f32 %v2875, %v2974
      %v3174 = vadd.f32 %v2876, %v2978
      %v3175 = vadd.f32 %v2877, %v2982
      %v3176 = vadd.f32 %v2878, %v2986
      %v3177 = vadd.f32 %v2879, %v2990
      %v3178 = vadd.f32 %v2880, %v2994
      %v3179 = vadd.f32 %v2881, %v2966
      %v3180 = vadd.f32 %v2882, %v2970
      %v3181 = vadd.f32 %v2883, %v2974
      %v3182 = vadd.f32 %v2884, %v2978
      %v3183 = vadd.f32 %v2885, %v2982
      %v3184 = vadd.f32 %v2886, %v2986
      %v3185 = vadd.f32 %v2887, %v2990
      %v3186 = vadd.f32 %v2888, %v2994
      %v3187 = vadd.f32 %v2889, %v2966
      %v3188 = vadd.f32 %v2890, %v2970
      %v3189 = vadd.f32 %v2891, %v2974
      %v3190 = vadd.f32 %v2892, %v2978
      %v3191 = vadd.f32 %v2893, %v2982
      %v3192 = vadd.f32 %v2894, %v2986
      %v3193 = vadd.f32 %v2895, %v2990
      %v3194 = vadd.f32 %v2896, %v2994
      %v3195 = vadd.f32 %v2897, %v2966
      %v3196 = vadd.f32 %v2898, %v2970
      %v3197 = vadd.f32 %v2899, %v2974
      %v3198 = vadd.f32 %v2900, %v2978
      %v3199 = vadd.f32 %v2901, %v2982
      %v3200 = vadd.f32 %v2902, %v2986
      %v3201 = vadd.f32 %v2903, %v2990
      %v3202 = vadd.f32 %v2904, %v2994
      %v3203 = vadd.f32 %v2905, %v2966
      %v3204 = vadd.f32 %v2906, %v2970
      %v3205 = vadd.f32 %v2907, %v2974
      %v3206 = vadd.f32 %v2908, %v2978
      %v3207 = vadd.f32 %v2909, %v2982
      %v3208 = vadd.f32 %v2910, %v2986
      %v3209 = vadd.f32 %v2911, %v2990
      %v3210 = vadd.f32 %v2912, %v2994
      %v3211 = vadd.f32 %v2913, %v2966
      %v3212 = vadd.f32 %v2914, %v2970
      %v3213 = vadd.f32 %v2915, %v2974
      %v3214 = vadd.f32 %v2916, %v2978
      %v3215 = vadd.f32 %v2917, %v2982
      %v3216 = vadd.f32 %v2918, %v2986
      %v3217 = vadd.f32 %v2919, %v2990
      %v3218 = vadd.f32 %v2920, %v2994
      %v3219 = vadd.f32 %v2921, %v2966
      %v3220 = vadd.f32 %v2922, %v2970
      %v3221 = vadd.f32 %v2923, %v2974
      %v3222 = vadd.f32 %v2924, %v2978
      %v3223 = vadd.f32 %v2925, %v2982
      %v3224 = vadd.f32 %v2926, %v2986
      %v3225 = vadd.f32 %v2927, %v2990
      %v3226 = vadd.f32 %v2928, %v2994
      %v3227 = vadd.f32 %v2929, %v2966
      %v3228 = vadd.f32 %v2930, %v2970
      %v3229 = vadd.f32 %v2931, %v2974
      %v3230 = vadd.f32 %v2932, %v2978
      %v3231 = vadd.f32 %v2933, %v2982
      %v3232 = vadd.f32 %v2934, %v2986
      %v3233 = vadd.f32 %v2935, %v2990
      %v3234 = vadd.f32 %v2936, %v2994
      %v3235 = vadd.f32 %v2937, %v2966
      %v3236 = vadd.f32 %v2938, %v2970
      %v3237 = vadd.f32 %v2939, %v2974
      %v3238 = vadd.f32 %v2940, %v2978
      %v3239 = vadd.f32 %v2941, %v2982
      %v3240 = vadd.f32 %v2942, %v2986
      %v3241 = vadd.f32 %v2943, %v2990
      %v3242 = vadd.f32 %v2944, %v2994
      %v3243 = vadd.f32 %v2945, %v2966
      %v3244 = vadd.f32 %v2946, %v2970
      %v3245 = vadd.f32 %v2947, %v2974
      %v3246 = vadd.f32 %v2948, %v2978
      %v3247 = vadd.f32 %v2949, %v2982
      %v3248 = vadd.f32 %v2950, %v2986
      %v3249 = vadd.f32 %v2951, %v2990
      %v3250 = vadd.f32 %v2952, %v2994
      %v3251 = vadd.f32 %v2953, %v2966
      %v3252 = vadd.f32 %v2954, %v2970
      %v3253 = vadd.f32 %v2955, %v2974
      %v3254 = vadd.f32 %v2956, %v2978
      %v3255 = vadd.f32 %v2957, %v2982
      %v3256 = vadd.f32 %v2958, %v2986
      %v3257 = vadd.f32 %v2959, %v2990
      %v3258 = vadd.f32 %v2960, %v2994
      %v3259 = vld [vmem:[#allocation2] sm:$0xff]
      %v3260 = vmax.f32 %v3003, %v3011
      %v3261 = vmax.f32 %v3260, %v3019
      %v3262 = vmax.f32 %v3261, %v3027
      %v3263 = vmax.f32 %v3262, %v3035
      %v3264 = vmax.f32 %v3263, %v3043
      %v3265 = vmax.f32 %v3264, %v3051
      %v3266 = vmax.f32 %v3265, %v3059
      %v3267 = vmax.f32 %v3266, %v3067
      %v3268 = vmax.f32 %v3267, %v3075
      %v3269 = vmax.f32 %v3268, %v3083
      %v3270 = vmax.f32 %v3269, %v3091
      %v3271 = vmax.f32 %v3270, %v3099
      %v3272 = vmax.f32 %v3271, %v3107
      %v3273 = vmax.f32 %v3272, %v3115
      %v3274 = vmax.f32 %v3273, %v3123
      %v3275 = vmax.f32 %v3274, %v3131
      %v3276 = vmax.f32 %v3275, %v3139
      %v3277 = vmax.f32 %v3276, %v3147
      %v3278 = vmax.f32 %v3277, %v3155
      %v3279 = vmax.f32 %v3278, %v3163
      %v3280 = vmax.f32 %v3279, %v3171
      %v3281 = vmax.f32 %v3280, %v3179
      %v3282 = vmax.f32 %v3281, %v3187
      %v3283 = vmax.f32 %v3282, %v3195
      %v3284 = vmax.f32 %v3283, %v3203
      %v3285 = vmax.f32 %v3284, %v3211
      %v3286 = vmax.f32 %v3285, %v3219
      %v3287 = vmax.f32 %v3286, %v3227
      %v3288 = vmax.f32 %v3287, %v3235
      %v3289 = vmax.f32 %v3288, %v3243
      %v3290 = vmax.f32 %v3289, %v3251
      %v3291 = vrot.slane %v3290, 4
      %v3292 = vmax.f32 %v3290, %v3291
      %v3293 = vrot.slane %v3292, 2
      %v3294 = vmax.f32 %v3292, %v3293
      %v3295 = vrot.slane %v3294, 1
      %v3296 = vmax.f32 %v3294, %v3295
      %v3297 = vmax.f32 %v3004, %v3012
      %v3298 = vmax.f32 %v3297, %v3020
      %v3299 = vmax.f32 %v3298, %v3028
      %v3300 = vmax.f32 %v3299, %v3036
      %v3301 = vmax.f32 %v3300, %v3044
      %v3302 = vmax.f32 %v3301, %v3052
      %v3303 = vmax.f32 %v3302, %v3060
      %v3304 = vmax.f32 %v3303, %v3068
      %v3305 = vmax.f32 %v3304, %v3076
      %v3306 = vmax.f32 %v3305, %v3084
      %v3307 = vmax.f32 %v3306, %v3092
      %v3308 = vmax.f32 %v3307, %v3100
      %v3309 = vmax.f32 %v3308, %v3108
      %v3310 = vmax.f32 %v3309, %v3116
      %v3311 = vmax.f32 %v3310, %v3124
      %v3312 = vmax.f32 %v3311, %v3132
      %v3313 = vmax.f32 %v3312, %v3140
      %v3314 = vmax.f32 %v3313, %v3148
      %v3315 = vmax.f32 %v3314, %v3156
      %v3316 = vmax.f32 %v3315, %v3164
      %v3317 = vmax.f32 %v3316, %v3172
      %v3318 = vmax.f32 %v3317, %v3180
      %v3319 = vmax.f32 %v3318, %v3188
      %v3320 = vmax.f32 %v3319, %v3196
      %v3321 = vmax.f32 %v3320, %v3204
      %v3322 = vmax.f32 %v3321, %v3212
      %v3323 = vmax.f32 %v3322, %v3220
      %v3324 = vmax.f32 %v3323, %v3228
      %v3325 = vmax.f32 %v3324, %v3236
      %v3326 = vmax.f32 %v3325, %v3244
      %v3327 = vmax.f32 %v3326, %v3252
      %v3328 = vrot.slane %v3327, 4
      %v3329 = vmax.f32 %v3327, %v3328
      %v3330 = vrot.slane %v3329, 2
      %v3331 = vmax.f32 %v3329, %v3330
      %v3332 = vrot.slane %v3331, 1
      %v3333 = vmax.f32 %v3331, %v3332
      %v3334 = vmax.f32 %v3005, %v3013
      %v3335 = vmax.f32 %v3334, %v3021
      %v3336 = vmax.f32 %v3335, %v3029
      %v3337 = vmax.f32 %v3336, %v3037
      %v3338 = vmax.f32 %v3337, %v3045
      %v3339 = vmax.f32 %v3338, %v3053
      %v3340 = vmax.f32 %v3339, %v3061
      %v3341 = vmax.f32 %v3340, %v3069
      %v3342 = vmax.f32 %v3341, %v3077
      %v3343 = vmax.f32 %v3342, %v3085
      %v3344 = vmax.f32 %v3343, %v3093
      %v3345 = vmax.f32 %v3344, %v3101
      %v3346 = vmax.f32 %v3345, %v3109
      %v3347 = vmax.f32 %v3346, %v3117
      %v3348 = vmax.f32 %v3347, %v3125
      %v3349 = vmax.f32 %v3348, %v3133
      %v3350 = vmax.f32 %v3349, %v3141
      %v3351 = vmax.f32 %v3350, %v3149
      %v3352 = vmax.f32 %v3351, %v3157
      %v3353 = vmax.f32 %v3352, %v3165
      %v3354 = vmax.f32 %v3353, %v3173
      %v3355 = vmax.f32 %v3354, %v3181
      %v3356 = vmax.f32 %v3355, %v3189
      %v3357 = vmax.f32 %v3356, %v3197
      %v3358 = vmax.f32 %v3357, %v3205
      %v3359 = vmax.f32 %v3358, %v3213
      %v3360 = vmax.f32 %v3359, %v3221
      %v3361 = vmax.f32 %v3360, %v3229
      %v3362 = vmax.f32 %v3361, %v3237
      %v3363 = vmax.f32 %v3362, %v3245
      %v3364 = vmax.f32 %v3363, %v3253
      %v3365 = vrot.slane %v3364, 4
      %v3366 = vmax.f32 %v3364, %v3365
      %v3367 = vrot.slane %v3366, 2
      %v3368 = vmax.f32 %v3366, %v3367
      %v3369 = vrot.slane %v3368, 1
      %v3370 = vmax.f32 %v3368, %v3369
      %v3371 = vmax.f32 %v3006, %v3014
      %v3372 = vmax.f32 %v3371, %v3022
      %v3373 = vmax.f32 %v3372, %v3030
      %v3374 = vmax.f32 %v3373, %v3038
      %v3375 = vmax.f32 %v3374, %v3046
      %v3376 = vmax.f32 %v3375, %v3054
      %v3377 = vmax.f32 %v3376, %v3062
      %v3378 = vmax.f32 %v3377, %v3070
      %v3379 = vmax.f32 %v3378, %v3078
      %v3380 = vmax.f32 %v3379, %v3086
      %v3381 = vmax.f32 %v3380, %v3094
      %v3382 = vmax.f32 %v3381, %v3102
      %v3383 = vmax.f32 %v3382, %v3110
      %v3384 = vmax.f32 %v3383, %v3118
      %v3385 = vmax.f32 %v3384, %v3126
      %v3386 = vmax.f32 %v3385, %v3134
      %v3387 = vmax.f32 %v3386, %v3142
      %v3388 = vmax.f32 %v3387, %v3150
      %v3389 = vmax.f32 %v3388, %v3158
      %v3390 = vmax.f32 %v3389, %v3166
      %v3391 = vmax.f32 %v3390, %v3174
      %v3392 = vmax.f32 %v3391, %v3182
      %v3393 = vmax.f32 %v3392, %v3190
      %v3394 = vmax.f32 %v3393, %v3198
      %v3395 = vmax.f32 %v3394, %v3206
      %v3396 = vmax.f32 %v3395, %v3214
      %v3397 = vmax.f32 %v3396, %v3222
      %v3398 = vmax.f32 %v3397, %v3230
      %v3399 = vmax.f32 %v3398, %v3238
      %v3400 = vmax.f32 %v3399, %v3246
      %v3401 = vmax.f32 %v3400, %v3254
      %v3402 = vrot.slane %v3401, 4
      %v3403 = vmax.f32 %v3401, %v3402
      %v3404 = vrot.slane %v3403, 2
      %v3405 = vmax.f32 %v3403, %v3404
      %v3406 = vrot.slane %v3405, 1
      %v3407 = vmax.f32 %v3405, %v3406
      %v3408 = vmax.f32 %v3007, %v3015
      %v3409 = vmax.f32 %v3408, %v3023
      %v3410 = vmax.f32 %v3409, %v3031
      %v3411 = vmax.f32 %v3410, %v3039
      %v3412 = vmax.f32 %v3411, %v3047
      %v3413 = vmax.f32 %v3412, %v3055
      %v3414 = vmax.f32 %v3413, %v3063
      %v3415 = vmax.f32 %v3414, %v3071
      %v3416 = vmax.f32 %v3415, %v3079
      %v3417 = vmax.f32 %v3416, %v3087
      %v3418 = vmax.f32 %v3417, %v3095
      %v3419 = vmax.f32 %v3418, %v3103
      %v3420 = vmax.f32 %v3419, %v3111
      %v3421 = vmax.f32 %v3420, %v3119
      %v3422 = vmax.f32 %v3421, %v3127
      %v3423 = vmax.f32 %v3422, %v3135
      %v3424 = vmax.f32 %v3423, %v3143
      %v3425 = vmax.f32 %v3424, %v3151
      %v3426 = vmax.f32 %v3425, %v3159
      %v3427 = vmax.f32 %v3426, %v3167
      %v3428 = vmax.f32 %v3427, %v3175
      %v3429 = vmax.f32 %v3428, %v3183
      %v3430 = vmax.f32 %v3429, %v3191
      %v3431 = vmax.f32 %v3430, %v3199
      %v3432 = vmax.f32 %v3431, %v3207
      %v3433 = vmax.f32 %v3432, %v3215
      %v3434 = vmax.f32 %v3433, %v3223
      %v3435 = vmax.f32 %v3434, %v3231
      %v3436 = vmax.f32 %v3435, %v3239
      %v3437 = vmax.f32 %v3436, %v3247
      %v3438 = vmax.f32 %v3437, %v3255
      %v3439 = vrot.slane %v3438, 4
      %v3440 = vmax.f32 %v3438, %v3439
      %v3441 = vrot.slane %v3440, 2
      %v3442 = vmax.f32 %v3440, %v3441
      %v3443 = vrot.slane %v3442, 1
      %v3444 = vmax.f32 %v3442, %v3443
      %v3445 = vmax.f32 %v3008, %v3016
      %v3446 = vmax.f32 %v3445, %v3024
      %v3447 = vmax.f32 %v3446, %v3032
      %v3448 = vmax.f32 %v3447, %v3040
      %v3449 = vmax.f32 %v3448, %v3048
      %v3450 = vmax.f32 %v3449, %v3056
      %v3451 = vmax.f32 %v3450, %v3064
      %v3452 = vmax.f32 %v3451, %v3072
      %v3453 = vmax.f32 %v3452, %v3080
      %v3454 = vmax.f32 %v3453, %v3088
      %v3455 = vmax.f32 %v3454, %v3096
      %v3456 = vmax.f32 %v3455, %v3104
      %v3457 = vmax.f32 %v3456, %v3112
      %v3458 = vmax.f32 %v3457, %v3120
      %v3459 = vmax.f32 %v3458, %v3128
      %v3460 = vmax.f32 %v3459, %v3136
      %v3461 = vmax.f32 %v3460, %v3144
      %v3462 = vmax.f32 %v3461, %v3152
      %v3463 = vmax.f32 %v3462, %v3160
      %v3464 = vmax.f32 %v3463, %v3168
      %v3465 = vmax.f32 %v3464, %v3176
      %v3466 = vmax.f32 %v3465, %v3184
      %v3467 = vmax.f32 %v3466, %v3192
      %v3468 = vmax.f32 %v3467, %v3200
      %v3469 = vmax.f32 %v3468, %v3208
      %v3470 = vmax.f32 %v3469, %v3216
      %v3471 = vmax.f32 %v3470, %v3224
      %v3472 = vmax.f32 %v3471, %v3232
      %v3473 = vmax.f32 %v3472, %v3240
      %v3474 = vmax.f32 %v3473, %v3248
      %v3475 = vmax.f32 %v3474, %v3256
      %v3476 = vrot.slane %v3475, 4
      %v3477 = vmax.f32 %v3475, %v3476
      %v3478 = vrot.slane %v3477, 2
      %v3479 = vmax.f32 %v3477, %v3478
      %v3480 = vrot.slane %v3479, 1
      %v3481 = vmax.f32 %v3479, %v3480
      %v3482 = vmax.f32 %v3009, %v3017
      %v3483 = vmax.f32 %v3482, %v3025
      %v3484 = vmax.f32 %v3483, %v3033
      %v3485 = vmax.f32 %v3484, %v3041
      %v3486 = vmax.f32 %v3485, %v3049
      %v3487 = vmax.f32 %v3486, %v3057
      %v3488 = vmax.f32 %v3487, %v3065
      %v3489 = vmax.f32 %v3488, %v3073
      %v3490 = vmax.f32 %v3489, %v3081
      %v3491 = vmax.f32 %v3490, %v3089
      %v3492 = vmax.f32 %v3491, %v3097
      %v3493 = vmax.f32 %v3492, %v3105
      %v3494 = vmax.f32 %v3493, %v3113
      %v3495 = vmax.f32 %v3494, %v3121
      %v3496 = vmax.f32 %v3495, %v3129
      %v3497 = vmax.f32 %v3496, %v3137
      %v3498 = vmax.f32 %v3497, %v3145
      %v3499 = vmax.f32 %v3498, %v3153
      %v3500 = vmax.f32 %v3499, %v3161
      %v3501 = vmax.f32 %v3500, %v3169
      %v3502 = vmax.f32 %v3501, %v3177
      %v3503 = vmax.f32 %v3502, %v3185
      %v3504 = vmax.f32 %v3503, %v3193
      %v3505 = vmax.f32 %v3504, %v3201
      %v3506 = vmax.f32 %v3505, %v3209
      %v3507 = vmax.f32 %v3506, %v3217
      %v3508 = vmax.f32 %v3507, %v3225
      %v3509 = vmax.f32 %v3508, %v3233
      %v3510 = vmax.f32 %v3509, %v3241
      %v3511 = vmax.f32 %v3510, %v3249
      %v3512 = vmax.f32 %v3511, %v3257
      %v3513 = vrot.slane %v3512, 4
      %v3514 = vmax.f32 %v3512, %v3513
      %v3515 = vrot.slane %v3514, 2
      %v3516 = vmax.f32 %v3514, %v3515
      %v3517 = vrot.slane %v3516, 1
      %v3518 = vmax.f32 %v3516, %v3517
      %v3519 = vmax.f32 %v3010, %v3018
      %v3520 = vmax.f32 %v3519, %v3026
      %v3521 = vmax.f32 %v3520, %v3034
      %v3522 = vmax.f32 %v3521, %v3042
      %v3523 = vmax.f32 %v3522, %v3050
      %v3524 = vmax.f32 %v3523, %v3058
      %v3525 = vmax.f32 %v3524, %v3066
      %v3526 = vmax.f32 %v3525, %v3074
      %v3527 = vmax.f32 %v3526, %v3082
      %v3528 = vmax.f32 %v3527, %v3090
      %v3529 = vmax.f32 %v3528, %v3098
      %v3530 = vmax.f32 %v3529, %v3106
      %v3531 = vmax.f32 %v3530, %v3114
      %v3532 = vmax.f32 %v3531, %v3122
      %v3533 = vmax.f32 %v3532, %v3130
      %v3534 = vmax.f32 %v3533, %v3138
      %v3535 = vmax.f32 %v3534, %v3146
      %v3536 = vmax.f32 %v3535, %v3154
      %v3537 = vmax.f32 %v3536, %v3162
      %v3538 = vmax.f32 %v3537, %v3170
      %v3539 = vmax.f32 %v3538, %v3178
      %v3540 = vmax.f32 %v3539, %v3186
      %v3541 = vmax.f32 %v3540, %v3194
      %v3542 = vmax.f32 %v3541, %v3202
      %v3543 = vmax.f32 %v3542, %v3210
      %v3544 = vmax.f32 %v3543, %v3218
      %v3545 = vmax.f32 %v3544, %v3226
      %v3546 = vmax.f32 %v3545, %v3234
      %v3547 = vmax.f32 %v3546, %v3242
      %v3548 = vmax.f32 %v3547, %v3250
      %v3549 = vmax.f32 %v3548, %v3258
      %v3550 = vrot.slane %v3549, 4
      %v3551 = vmax.f32 %v3549, %v3550
      %v3552 = vrot.slane %v3551, 2
      %v3553 = vmax.f32 %v3551, %v3552
      %v3554 = vrot.slane %v3553, 1
      %v3555 = vmax.f32 %v3553, %v3554
      %v3564 = vcombine.low %v3296, %v3333
      %v3565 = vcombine.low %v3370, %v3407
      %v3566 = vcombine.low %v3444, %v3481
      %v3567 = vcombine.low %v3518, %v3555
      %v3569 = vunpack.c.l.s4 1966171168
      %v3570 = vunpack.c.0.s8 %v3569
      %v3571 = vlaneseq
      %v3572 = vshrl.u32 %v3571, 7
      %v3573 = vsub.s32 %v3570, %v3572
      %v3574 = vrot.slane %v3564, %v3573
      %v3576 = vunpack.c.l.s4 1966171168
      %v3577 = vunpack.c.0.s8 %v3576
      %v3578 = vlaneseq
      %v3579 = vshrl.u32 %v3578, 7
      %v3580 = vsub.s32 %v3577, %v3579
      %v3581 = vrot.slane %v3565, %v3580
      %v3583 = vunpack.c.l.s4 1966171168
      %v3584 = vunpack.c.0.s8 %v3583
      %v3585 = vlaneseq
      %v3586 = vshrl.u32 %v3585, 7
      %v3587 = vsub.s32 %v3584, %v3586
      %v3588 = vrot.slane %v3566, %v3587
      %v3590 = vunpack.c.l.s4 1966171168
      %v3591 = vunpack.c.0.s8 %v3590
      %v3592 = vlaneseq
      %v3593 = vshrl.u32 %v3592, 7
      %v3594 = vsub.s32 %v3591, %v3593
      %v3595 = vrot.slane %v3567, %v3594
      %v3596 = vcombine.low %v3574, %v3581
      %v3597 = vcombine.low %v3588, %v3595
      %v3599 = vunpack.c.l.s4 1966171168
      %v3600 = vunpack.c.0.s8 %v3599
      %v3601 = vlaneseq
      %v3602 = vshrl.u32 %v3601, 7
      %v3603 = vsub.s32 %v3600, %v3602
      %v3604 = vrot.slane %v3596, %v3603
      %v3606 = vunpack.c.l.s4 1966171168
      %v3607 = vunpack.c.0.s8 %v3606
      %v3608 = vlaneseq
      %v3609 = vshrl.u32 %v3608, 7
      %v3610 = vsub.s32 %v3607, %v3609
      %v3611 = vrot.slane %v3597, %v3610
      %v3612 = vcombine.low %v3604, %v3611
      %v3614 = vmax.f32 %v3259, %v3612
      %3615 = vst [vmem:[#allocation2] sm:$0xff] %v3614
      // Predicated region
      $region65: #{pointnet_cls_forward.4} parent=59 // pred_check
        %p3616 = pneg %p387
      $region66: #{pointnet_cls_forward.4} parent=59 // pred_check_branch
        %3618 = sbr.rel (%p3616) target = $region68
      $region67: #{pointnet_cls_forward.4} parent=59 // pred_region
        %v3619 = vld [vmem:[#allocation2] sm:$0xff]
        %v3620 = vmax.f32 %v3619, 0.0
        %3621 = vst [vmem:[%s385] sm:$0xff] %v3620
      $region68: #{pointnet_cls_forward.4} parent=59 // pred_fallthru
        _
      %p3622 = scmp.lt.s32.totalorder %s25, 1
      %s3623 = scalar_select %p3622, %s25, 1
      %s3624 = smul.addr %s3623, 8
      %s3625 = scalar_lea.vmem %s10, %s3624
      // Predicated region
      $region69: #{pointnet_cls_forward.4} parent=59 // pred_check
        %p3626 = pneg %p268
      $region70: #{pointnet_cls_forward.4} parent=59 // pred_check_branch
        %3628 = sbr.rel (%p3626) target = $region72
      $region71: #{pointnet_cls_forward.4} parent=59 // pred_region
        _
      $region72: #{pointnet_cls_forward.4} parent=59 // pred_fallthru
        _
    $region60: #{pointnet_cls_forward.4} parent=5 // pred_fallthru
      _
    %p3629 = scmp.le.s32.totalorder 2, %s16
    // Predicated region
    $region73: #{pointnet_cls_forward.4} parent=5 // pred_check
      %p3630 = pneg %p3629
    $region74: #{pointnet_cls_forward.4} parent=5 // pred_check_branch
      %3632 = sbr.rel (%p3630) target = $region76
    $region75: #{pointnet_cls_forward.4} parent=5 // pred_region
      %s3633 = ssub.s32 %s16, 2
      // Predicated region
      $region77: #{pointnet_cls_forward.4} parent=75 // pred_check
        %p3634 = pneg %p274
      $region78: #{pointnet_cls_forward.4} parent=75 // pred_check_branch
        %3636 = sbr.rel (%p3634) target = $region80
      $region79: #{pointnet_cls_forward.4} parent=75 // pred_region
        %p3637 = scmp.lt.s32.totalorder %s27, 1
        %s3638 = scalar_select %p3637, %s27, 1
        %s3639 = smul.addr %s3638, 8
        %s3640 = scalar_lea.vmem %s10, %s3639
      $region80: #{pointnet_cls_forward.4} parent=75 // pred_fallthru
        _
    $region76: #{pointnet_cls_forward.4} parent=5 // pred_fallthru
      _
  $region6: #{pointnet_cls_forward.4} parent=0 // loop_footer
    %s20 = sadd.s32 1, %s16
  $region7: #{pointnet_cls_forward.4} parent=0 // loop_footer_branch
    %15 = sbr.rel target = $region3
  $region8: #{pointnet_cls_forward.4} parent=0 // loop_exit
    _

// kernel: pointnet_cls_forward.5
$region0: #{pointnet_cls_forward.5}
  #allocation0 [shape = 'u32[]', space=smem, size = 0x4, offset = 0x4, fixed_abs, tag = 'smem constant byte address 0x4 - core index']
  #allocation1 [shape = 'u32[144,128]{1,0:T(1,128)}', space=vmem, size = 0x12000, scoped, tag = 'internal scratch']
  %s0 = inlined_call_operand.vmem [shape: f32[2,1024], index: 0, kind: input, shape index: {}]
  %s1 = inlined_call_operand.hbm [shape: bf16[1024,512], index: 1, kind: input, shape index: {}]
  %s2 = inlined_call_operand.vmem [shape: f32[1,512], index: 2, kind: input, shape index: {}]
  %s3 = inlined_call_operand.vmem [shape: f32[1,512], index: 3, kind: input, shape index: {}]
  %s4 = inlined_call_operand.vmem [shape: bf16[512,256], index: 4, kind: input, shape index: {}]
  %s5 = inlined_call_operand.vmem [shape: f32[1,256], index: 5, kind: input, shape index: {}]
  %s6 = inlined_call_operand.vmem [shape: f32[1,256], index: 6, kind: input, shape index: {}]
  %s7 = inlined_call_operand.vmem [shape: f32[256,9], index: 7, kind: input, shape index: {}]
  %s8 = inlined_call_operand.vmem [shape: f32[1,9], index: 8, kind: input, shape index: {}]
  %s9 = inlined_call_operand.vmem [shape: f32[2,9], index: 9, kind: output, shape index: {}]
  %s10 = sld [smem:[#allocation0]]
  $region50: #{pointnet_cls_forward.5} parent=0
    _
  %s12 = ssub.s32 1, %s10
  %s13 = scalar_select 0, %s12, %s10
  $region1: #{pointnet_cls_forward.5} parent=0
    #allocation2 [shape = 'u8[1048576]{0}', space=vmem, size = 0x100000, scoped, tag = 'input window, operand 1, single buffered']
    #allocation3 [shape = 's32[1]{0}', space=sflag, size = 0x4, scoped, tag = 'scoped memory for pointnet_cls_forward.5']
    %14 = vsyncpa [#allocation3], 0
    // Predicated region
    $region2: #{pointnet_cls_forward.5} parent=1 // pred_check
      _
    $region3: #{pointnet_cls_forward.5} parent=1 // pred_check_branch
      %16 = sbr.rel (0) target = $region5
    $region4: #{pointnet_cls_forward.5} parent=1 // pred_region
      _
    $region5: #{pointnet_cls_forward.5} parent=1 // pred_fallthru
      _
    // Predicated region
    $region6: #{pointnet_cls_forward.5} parent=1 // pred_check
      _
    $region7: #{pointnet_cls_forward.5} parent=1 // pred_check_branch
      %18 = sbr.rel (0) target = $region9
    $region8: #{pointnet_cls_forward.5} parent=1 // pred_region
      %s20 = ssub.s32 32768, 32768
      %21 = vsyncadd [#allocation3], %s20
      %s22 = sshll.u32 [#allocation2], 4
      %s23 = int_to_ptr.vmem [resolvable:$true] %s22
      %28 = dma.hbm_to_vmem [thread:$0]  %s1, 32768, %s23, [#allocation3], 256, 256, 16
    $region9: #{pointnet_cls_forward.5} parent=1 // pred_fallthru
      _
    // Predicated region
    $region10: #{pointnet_cls_forward.5} parent=1 // pred_check
      _
    $region11: #{pointnet_cls_forward.5} parent=1 // pred_check_branch
      %30 = sbr.rel (0) target = $region13
    $region12: #{pointnet_cls_forward.5} parent=1 // pred_region
      _
    $region13: #{pointnet_cls_forward.5} parent=1 // pred_fallthru
      _
    // Predicated region
    $region14: #{pointnet_cls_forward.5} parent=1 // pred_check
      _
    $region15: #{pointnet_cls_forward.5} parent=1 // pred_check_branch
      %32 = sbr.rel (0) target = $region17
    $region16: #{pointnet_cls_forward.5} parent=1 // pred_region
      _
    $region17: #{pointnet_cls_forward.5} parent=1 // pred_fallthru
      _
    // Predicated region
    $region18: #{pointnet_cls_forward.5} parent=1 // pred_check
      _
    $region19: #{pointnet_cls_forward.5} parent=1 // pred_check_branch
      %34 = sbr.rel (0) target = $region21
    $region20: #{pointnet_cls_forward.5} parent=1 // pred_region
      _
    $region21: #{pointnet_cls_forward.5} parent=1 // pred_fallthru
      _
    // Predicated region
    $region22: #{pointnet_cls_forward.5} parent=1 // pred_check
      _
    $region23: #{pointnet_cls_forward.5} parent=1 // pred_check_branch
      %36 = sbr.rel (0) target = $region25
    $region24: #{pointnet_cls_forward.5} parent=1 // pred_region
      _
    $region25: #{pointnet_cls_forward.5} parent=1 // pred_fallthru
      _
    // Predicated region
    $region26: #{pointnet_cls_forward.5} parent=1 // pred_check
      _
    $region27: #{pointnet_cls_forward.5} parent=1 // pred_check_branch
      %38 = sbr.rel (0) target = $region29
    $region28: #{pointnet_cls_forward.5} parent=1 // pred_region
      _
    $region29: #{pointnet_cls_forward.5} parent=1 // pred_fallthru
      _
    // Predicated region
    $region30: #{pointnet_cls_forward.5} parent=1 // pred_check
      _
    $region31: #{pointnet_cls_forward.5} parent=1 // pred_check_branch
      %40 = sbr.rel (0) target = $region33
    $region32: #{pointnet_cls_forward.5} parent=1 // pred_region
      _
    $region33: #{pointnet_cls_forward.5} parent=1 // pred_fallthru
      _
    // Predicated region
    $region34: #{pointnet_cls_forward.5} parent=1 // pred_check
      _
    $region35: #{pointnet_cls_forward.5} parent=1 // pred_check_branch
      %42 = sbr.rel (0) target = $region37
    $region36: #{pointnet_cls_forward.5} parent=1 // pred_region
      _
    $region37: #{pointnet_cls_forward.5} parent=1 // pred_fallthru
      _
    // Predicated region
    $region38: #{pointnet_cls_forward.5} parent=1 // pred_check
      _
    $region39: #{pointnet_cls_forward.5} parent=1 // pred_check_branch
      %44 = sbr.rel (0) target = $region41
    $region40: #{pointnet_cls_forward.5} parent=1 // pred_region
      %45 = dma.done [#allocation3], 32768
    $region41: #{pointnet_cls_forward.5} parent=1 // pred_fallthru
      _
    %v46 = vld [vmem:[%s0] sm:$0xff]
    %v47 = vld [vmem:[%s0 + $0x8] sm:$0xff]
    %v50 = vcombine.high %v46, %v46
    %v52 = vunpack.c.l.s4 1983009808
    %v53 = vunpack.c.0.s8 %v52
    %v54 = vlaneseq
    %v55 = vshrl.u32 %v54, 7
    %v56 = vsub.s32 %v53, %v55
    %v57 = vrot.slane %v46, %v56
    %v59 = vunpack.c.l.s4 1983009808
    %v60 = vunpack.c.0.s8 %v59
    %v61 = vlaneseq
    %v62 = vshrl.u32 %v61, 7
    %v63 = vsub.s32 %v60, %v62
    %v64 = vrot.slane %v50, %v63
    %v65 = vcombine.high %v57, %v57
    %v66 = vcombine.high %v64, %v64
    %v67 = vcombine.high %v47, %v47
    %v69 = vunpack.c.l.s4 1983009808
    %v70 = vunpack.c.0.s8 %v69
    %v71 = vlaneseq
    %v72 = vshrl.u32 %v71, 7
    %v73 = vsub.s32 %v70, %v72
    %v74 = vrot.slane %v47, %v73
    %v76 = vunpack.c.l.s4 1983009808
    %v77 = vunpack.c.0.s8 %v76
    %v78 = vlaneseq
    %v79 = vshrl.u32 %v78, 7
    %v80 = vsub.s32 %v77, %v79
    %v81 = vrot.slane %v67, %v80
    %v82 = vcombine.high %v74, %v74
    %v83 = vcombine.high %v81, %v81
    %v92 = vpack.c.bf16 %v57, %v57
    %v93 = vpack.c.bf16 %v65, %v65
    %v94 = vpack.c.bf16 %v64, %v64
    %v95 = vpack.c.bf16 %v66, %v66
    %v96 = vpack.c.bf16 %v74, %v74
    %v97 = vpack.c.bf16 %v82, %v82
    %v98 = vpack.c.bf16 %v81, %v81
    %v99 = vpack.c.bf16 %v83, %v83
    %v100 = vld [vmem:[#allocation2] sm:$0xff]
    %v101 = vld [vmem:[#allocation2 + $0x8] sm:$0xff]
    %v102 = vld [vmem:[#allocation2 + $0x10] sm:$0xff]
    %v103 = vld [vmem:[#allocation2 + $0x18] sm:$0xff]
    %v104 = vld [vmem:[#allocation2 + $0x20] sm:$0xff]
    %v105 = vld [vmem:[#allocation2 + $0x28] sm:$0xff]
    %v106 = vld [vmem:[#allocation2 + $0x30] sm:$0xff]
    %v107 = vld [vmem:[#allocation2 + $0x38] sm:$0xff]
    %v108 = vld [vmem:[#allocation2 + $0x40] sm:$0xff]
    %v109 = vld [vmem:[#allocation2 + $0x48] sm:$0xff]
    %v110 = vld [vmem:[#allocation2 + $0x50] sm:$0xff]
    %v111 = vld [vmem:[#allocation2 + $0x58] sm:$0xff]
    %v112 = vld [vmem:[#allocation2 + $0x60] sm:$0xff]
    %v113 = vld [vmem:[#allocation2 + $0x68] sm:$0xff]
    %v114 = vld [vmem:[#allocation2 + $0x70] sm:$0xff]
    %v115 = vld [vmem:[#allocation2 + $0x78] sm:$0xff]
    %v116 = vld [vmem:[#allocation2 + $0x80] sm:$0xff]
    %v117 = vld [vmem:[#allocation2 + $0x88] sm:$0xff]
    %v118 = vld [vmem:[#allocation2 + $0x90] sm:$0xff]
    %v119 = vld [vmem:[#allocation2 + $0x98] sm:$0xff]
    %v120 = vld [vmem:[#allocation2 + $0xa0] sm:$0xff]
    %v121 = vld [vmem:[#allocation2 + $0xa8] sm:$0xff]
    %v122 = vld [vmem:[#allocation2 + $0xb0] sm:$0xff]
    %v123 = vld [vmem:[#allocation2 + $0xb8] sm:$0xff]
    %v124 = vld [vmem:[#allocation2 + $0xc0] sm:$0xff]
    %v125 = vld [vmem:[#allocation2 + $0xc8] sm:$0xff]
    %v126 = vld [vmem:[#allocation2 + $0xd0] sm:$0xff]
    %v127 = vld [vmem:[#allocation2 + $0xd8] sm:$0xff]
    %v128 = vld [vmem:[#allocation2 + $0xe0] sm:$0xff]
    %v129 = vld [vmem:[#allocation2 + $0xe8] sm:$0xff]
    %v130 = vld [vmem:[#allocation2 + $0xf0] sm:$0xff]
    %v131 = vld [vmem:[#allocation2 + $0xf8] sm:$0xff]
    %v132 = vld [vmem:[#allocation2 + $0x100] sm:$0xff]
    %v133 = vld [vmem:[#allocation2 + $0x108] sm:$0xff]
    %v134 = vld [vmem:[#allocation2 + $0x110] sm:$0xff]
    %v135 = vld [vmem:[#allocation2 + $0x118] sm:$0xff]
    %v136 = vld [vmem:[#allocation2 + $0x120] sm:$0xff]
    %v137 = vld [vmem:[#allocation2 + $0x128] sm:$0xff]
    %v138 = vld [vmem:[#allocation2 + $0x130] sm:$0xff]
    %v139 = vld [vmem:[#allocation2 + $0x138] sm:$0xff]
    %v140 = vld [vmem:[#allocation2 + $0x140] sm:$0xff]
    %v141 = vld [vmem:[#allocation2 + $0x148] sm:$0xff]
    %v142 = vld [vmem:[#allocation2 + $0x150] sm:$0xff]
    %v143 = vld [vmem:[#allocation2 + $0x158] sm:$0xff]
    %v144 = vld [vmem:[#allocation2 + $0x160] sm:$0xff]
    %v145 = vld [vmem:[#allocation2 + $0x168] sm:$0xff]
    %v146 = vld [vmem:[#allocation2 + $0x170] sm:$0xff]
    %v147 = vld [vmem:[#allocation2 + $0x178] sm:$0xff]
    %v148 = vld [vmem:[#allocation2 + $0x180] sm:$0xff]
    %v149 = vld [vmem:[#allocation2 + $0x188] sm:$0xff]
    %v150 = vld [vmem:[#allocation2 + $0x190] sm:$0xff]
    %v151 = vld [vmem:[#allocation2 + $0x198] sm:$0xff]
    %v152 = vld [vmem:[#allocation2 + $0x1a0] sm:$0xff]
    %v153 = vld [vmem:[#allocation2 + $0x1a8] sm:$0xff]
    %v154 = vld [vmem:[#allocation2 + $0x1b0] sm:$0xff]
    %v155 = vld [vmem:[#allocation2 + $0x1b8] sm:$0xff]
    %v156 = vld [vmem:[#allocation2 + $0x1c0] sm:$0xff]
    %v157 = vld [vmem:[#allocation2 + $0x1c8] sm:$0xff]
    %v158 = vld [vmem:[#allocation2 + $0x1d0] sm:$0xff]
    %v159 = vld [vmem:[#allocation2 + $0x1d8] sm:$0xff]
    %v160 = vld [vmem:[#allocation2 + $0x1e0] sm:$0xff]
    %v161 = vld [vmem:[#allocation2 + $0x1e8] sm:$0xff]
    %v162 = vld [vmem:[#allocation2 + $0x1f0] sm:$0xff]
    %v163 = vld [vmem:[#allocation2 + $0x1f8] sm:$0xff]
    %v164 = vld [vmem:[#allocation2 + $0x200] sm:$0xff]
    %v165 = vld [vmem:[#allocation2 + $0x208] sm:$0xff]
    %v166 = vld [vmem:[#allocation2 + $0x210] sm:$0xff]
    %v167 = vld [vmem:[#allocation2 + $0x218] sm:$0xff]
    %v168 = vld [vmem:[#allocation2 + $0x220] sm:$0xff]
    %v169 = vld [vmem:[#allocation2 + $0x228] sm:$0xff]
    %v170 = vld [vmem:[#allocation2 + $0x230] sm:$0xff]
    %v171 = vld [vmem:[#allocation2 + $0x238] sm:$0xff]
    %v172 = vld [vmem:[#allocation2 + $0x240] sm:$0xff]
    %v173 = vld [vmem:[#allocation2 + $0x248] sm:$0xff]
    %v174 = vld [vmem:[#allocation2 + $0x250] sm:$0xff]
    %v175 = vld [vmem:[#allocation2 + $0x258] sm:$0xff]
    %v176 = vld [vmem:[#allocation2 + $0x260] sm:$0xff]
    %v177 = vld [vmem:[#allocation2 + $0x268] sm:$0xff]
    %v178 = vld [vmem:[#allocation2 + $0x270] sm:$0xff]
    %v179 = vld [vmem:[#allocation2 + $0x278] sm:$0xff]
    %v180 = vld [vmem:[#allocation2 + $0x280] sm:$0xff]
    %v181 = vld [vmem:[#allocation2 + $0x288] sm:$0xff]
    %v182 = vld [vmem:[#allocation2 + $0x290] sm:$0xff]
    %v183 = vld [vmem:[#allocation2 + $0x298] sm:$0xff]
    %v184 = vld [vmem:[#allocation2 + $0x2a0] sm:$0xff]
    %v185 = vld [vmem:[#allocation2 + $0x2a8] sm:$0xff]
    %v186 = vld [vmem:[#allocation2 + $0x2b0] sm:$0xff]
    %v187 = vld [vmem:[#allocation2 + $0x2b8] sm:$0xff]
    %v188 = vld [vmem:[#allocation2 + $0x2c0] sm:$0xff]
    %v189 = vld [vmem:[#allocation2 + $0x2c8] sm:$0xff]
    %v190 = vld [vmem:[#allocation2 + $0x2d0] sm:$0xff]
    %v191 = vld [vmem:[#allocation2 + $0x2d8] sm:$0xff]
    %v192 = vld [vmem:[#allocation2 + $0x2e0] sm:$0xff]
    %v193 = vld [vmem:[#allocation2 + $0x2e8] sm:$0xff]
    %v194 = vld [vmem:[#allocation2 + $0x2f0] sm:$0xff]
    %v195 = vld [vmem:[#allocation2 + $0x2f8] sm:$0xff]
    %v196 = vld [vmem:[#allocation2 + $0x300] sm:$0xff]
    %v197 = vld [vmem:[#allocation2 + $0x308] sm:$0xff]
    %v198 = vld [vmem:[#allocation2 + $0x310] sm:$0xff]
    %v199 = vld [vmem:[#allocation2 + $0x318] sm:$0xff]
    %v200 = vld [vmem:[#allocation2 + $0x320] sm:$0xff]
    %v201 = vld [vmem:[#allocation2 + $0x328] sm:$0xff]
    %v202 = vld [vmem:[#allocation2 + $0x330] sm:$0xff]
    %v203 = vld [vmem:[#allocation2 + $0x338] sm:$0xff]
    %v204 = vld [vmem:[#allocation2 + $0x340] sm:$0xff]
    %v205 = vld [vmem:[#allocation2 + $0x348] sm:$0xff]
    %v206 = vld [vmem:[#allocation2 + $0x350] sm:$0xff]
    %v207 = vld [vmem:[#allocation2 + $0x358] sm:$0xff]
    %v208 = vld [vmem:[#allocation2 + $0x360] sm:$0xff]
    %v209 = vld [vmem:[#allocation2 + $0x368] sm:$0xff]
    %v210 = vld [vmem:[#allocation2 + $0x370] sm:$0xff]
    %v211 = vld [vmem:[#allocation2 + $0x378] sm:$0xff]
    %v212 = vld [vmem:[#allocation2 + $0x380] sm:$0xff]
    %v213 = vld [vmem:[#allocation2 + $0x388] sm:$0xff]
    %v214 = vld [vmem:[#allocation2 + $0x390] sm:$0xff]
    %v215 = vld [vmem:[#allocation2 + $0x398] sm:$0xff]
    %v216 = vld [vmem:[#allocation2 + $0x3a0] sm:$0xff]
    %v217 = vld [vmem:[#allocation2 + $0x3a8] sm:$0xff]
    %v218 = vld [vmem:[#allocation2 + $0x3b0] sm:$0xff]
    %v219 = vld [vmem:[#allocation2 + $0x3b8] sm:$0xff]
    %v220 = vld [vmem:[#allocation2 + $0x3c0] sm:$0xff]
    %v221 = vld [vmem:[#allocation2 + $0x3c8] sm:$0xff]
    %v222 = vld [vmem:[#allocation2 + $0x3d0] sm:$0xff]
    %v223 = vld [vmem:[#allocation2 + $0x3d8] sm:$0xff]
    %v224 = vld [vmem:[#allocation2 + $0x3e0] sm:$0xff]
    %v225 = vld [vmem:[#allocation2 + $0x3e8] sm:$0xff]
    %v226 = vld [vmem:[#allocation2 + $0x3f0] sm:$0xff]
    %v227 = vld [vmem:[#allocation2 + $0x3f8] sm:$0xff]
    %v228 = vld [vmem:[#allocation2 + $0x400] sm:$0xff]
    %v229 = vld [vmem:[#allocation2 + $0x408] sm:$0xff]
    %v230 = vld [vmem:[#allocation2 + $0x410] sm:$0xff]
    %v231 = vld [vmem:[#allocation2 + $0x418] sm:$0xff]
    %v232 = vld [vmem:[#allocation2 + $0x420] sm:$0xff]
    %v233 = vld [vmem:[#allocation2 + $0x428] sm:$0xff]
    %v234 = vld [vmem:[#allocation2 + $0x430] sm:$0xff]
    %v235 = vld [vmem:[#allocation2 + $0x438] sm:$0xff]
    %v236 = vld [vmem:[#allocation2 + $0x440] sm:$0xff]
    %v237 = vld [vmem:[#allocation2 + $0x448] sm:$0xff]
    %v238 = vld [vmem:[#allocation2 + $0x450] sm:$0xff]
    %v239 = vld [vmem:[#allocation2 + $0x458] sm:$0xff]
    %v240 = vld [vmem:[#allocation2 + $0x460] sm:$0xff]
    %v241 = vld [vmem:[#allocation2 + $0x468] sm:$0xff]
    %v242 = vld [vmem:[#allocation2 + $0x470] sm:$0xff]
    %v243 = vld [vmem:[#allocation2 + $0x478] sm:$0xff]
    %v244 = vld [vmem:[#allocation2 + $0x480] sm:$0xff]
    %v245 = vld [vmem:[#allocation2 + $0x488] sm:$0xff]
    %v246 = vld [vmem:[#allocation2 + $0x490] sm:$0xff]
    %v247 = vld [vmem:[#allocation2 + $0x498] sm:$0xff]
    %v248 = vld [vmem:[#allocation2 + $0x4a0] sm:$0xff]
    %v249 = vld [vmem:[#allocation2 + $0x4a8] sm:$0xff]
    %v250 = vld [vmem:[#allocation2 + $0x4b0] sm:$0xff]
    %v251 = vld [vmem:[#allocation2 + $0x4b8] sm:$0xff]
    %v252 = vld [vmem:[#allocation2 + $0x4c0] sm:$0xff]
    %v253 = vld [vmem:[#allocation2 + $0x4c8] sm:$0xff]
    %v254 = vld [vmem:[#allocation2 + $0x4d0] sm:$0xff]
    %v255 = vld [vmem:[#allocation2 + $0x4d8] sm:$0xff]
    %v256 = vld [vmem:[#allocation2 + $0x4e0] sm:$0xff]
    %v257 = vld [vmem:[#allocation2 + $0x4e8] sm:$0xff]
    %v258 = vld [vmem:[#allocation2 + $0x4f0] sm:$0xff]
    %v259 = vld [vmem:[#allocation2 + $0x4f8] sm:$0xff]
    %v260 = vld [vmem:[#allocation2 + $0x500] sm:$0xff]
    %v261 = vld [vmem:[#allocation2 + $0x508] sm:$0xff]
    %v262 = vld [vmem:[#allocation2 + $0x510] sm:$0xff]
    %v263 = vld [vmem:[#allocation2 + $0x518] sm:$0xff]
    %v264 = vld [vmem:[#allocation2 + $0x520] sm:$0xff]
    %v265 = vld [vmem:[#allocation2 + $0x528] sm:$0xff]
    %v266 = vld [vmem:[#allocation2 + $0x530] sm:$0xff]
    %v267 = vld [vmem:[#allocation2 + $0x538] sm:$0xff]
    %v268 = vld [vmem:[#allocation2 + $0x540] sm:$0xff]
    %v269 = vld [vmem:[#allocation2 + $0x548] sm:$0xff]
    %v270 = vld [vmem:[#allocation2 + $0x550] sm:$0xff]
    %v271 = vld [vmem:[#allocation2 + $0x558] sm:$0xff]
    %v272 = vld [vmem:[#allocation2 + $0x560] sm:$0xff]
    %v273 = vld [vmem:[#allocation2 + $0x568] sm:$0xff]
    %v274 = vld [vmem:[#allocation2 + $0x570] sm:$0xff]
    %v275 = vld [vmem:[#allocation2 + $0x578] sm:$0xff]
    %v276 = vld [vmem:[#allocation2 + $0x580] sm:$0xff]
    %v277 = vld [vmem:[#allocation2 + $0x588] sm:$0xff]
    %v278 = vld [vmem:[#allocation2 + $0x590] sm:$0xff]
    %v279 = vld [vmem:[#allocation2 + $0x598] sm:$0xff]
    %v280 = vld [vmem:[#allocation2 + $0x5a0] sm:$0xff]
    %v281 = vld [vmem:[#allocation2 + $0x5a8] sm:$0xff]
    %v282 = vld [vmem:[#allocation2 + $0x5b0] sm:$0xff]
    %v283 = vld [vmem:[#allocation2 + $0x5b8] sm:$0xff]
    %v284 = vld [vmem:[#allocation2 + $0x5c0] sm:$0xff]
    %v285 = vld [vmem:[#allocation2 + $0x5c8] sm:$0xff]
    %v286 = vld [vmem:[#allocation2 + $0x5d0] sm:$0xff]
    %v287 = vld [vmem:[#allocation2 + $0x5d8] sm:$0xff]
    %v288 = vld [vmem:[#allocation2 + $0x5e0] sm:$0xff]
    %v289 = vld [vmem:[#allocation2 + $0x5e8] sm:$0xff]
    %v290 = vld [vmem:[#allocation2 + $0x5f0] sm:$0xff]
    %v291 = vld [vmem:[#allocation2 + $0x5f8] sm:$0xff]
    %v292 = vld [vmem:[#allocation2 + $0x600] sm:$0xff]
    %v293 = vld [vmem:[#allocation2 + $0x608] sm:$0xff]
    %v294 = vld [vmem:[#allocation2 + $0x610] sm:$0xff]
    %v295 = vld [vmem:[#allocation2 + $0x618] sm:$0xff]
    %v296 = vld [vmem:[#allocation2 + $0x620] sm:$0xff]
    %v297 = vld [vmem:[#allocation2 + $0x628] sm:$0xff]
    %v298 = vld [vmem:[#allocation2 + $0x630] sm:$0xff]
    %v299 = vld [vmem:[#allocation2 + $0x638] sm:$0xff]
    %v300 = vld [vmem:[#allocation2 + $0x640] sm:$0xff]
    %v301 = vld [vmem:[#allocation2 + $0x648] sm:$0xff]
    %v302 = vld [vmem:[#allocation2 + $0x650] sm:$0xff]
    %v303 = vld [vmem:[#allocation2 + $0x658] sm:$0xff]
    %v304 = vld [vmem:[#allocation2 + $0x660] sm:$0xff]
    %v305 = vld [vmem:[#allocation2 + $0x668] sm:$0xff]
    %v306 = vld [vmem:[#allocation2 + $0x670] sm:$0xff]
    %v307 = vld [vmem:[#allocation2 + $0x678] sm:$0xff]
    %v308 = vld [vmem:[#allocation2 + $0x680] sm:$0xff]
    %v309 = vld [vmem:[#allocation2 + $0x688] sm:$0xff]
    %v310 = vld [vmem:[#allocation2 + $0x690] sm:$0xff]
    %v311 = vld [vmem:[#allocation2 + $0x698] sm:$0xff]
    %v312 = vld [vmem:[#allocation2 + $0x6a0] sm:$0xff]
    %v313 = vld [vmem:[#allocation2 + $0x6a8] sm:$0xff]
    %v314 = vld [vmem:[#allocation2 + $0x6b0] sm:$0xff]
    %v315 = vld [vmem:[#allocation2 + $0x6b8] sm:$0xff]
    %v316 = vld [vmem:[#allocation2 + $0x6c0] sm:$0xff]
    %v317 = vld [vmem:[#allocation2 + $0x6c8] sm:$0xff]
    %v318 = vld [vmem:[#allocation2 + $0x6d0] sm:$0xff]
    %v319 = vld [vmem:[#allocation2 + $0x6d8] sm:$0xff]
    %v320 = vld [vmem:[#allocation2 + $0x6e0] sm:$0xff]
    %v321 = vld [vmem:[#allocation2 + $0x6e8] sm:$0xff]
    %v322 = vld [vmem:[#allocation2 + $0x6f0] sm:$0xff]
    %v323 = vld [vmem:[#allocation2 + $0x6f8] sm:$0xff]
    %v324 = vld [vmem:[#allocation2 + $0x700] sm:$0xff]
    %v325 = vld [vmem:[#allocation2 + $0x708] sm:$0xff]
    %v326 = vld [vmem:[#allocation2 + $0x710] sm:$0xff]
    %v327 = vld [vmem:[#allocation2 + $0x718] sm:$0xff]
    %v328 = vld [vmem:[#allocation2 + $0x720] sm:$0xff]
    %v329 = vld [vmem:[#allocation2 + $0x728] sm:$0xff]
    %v330 = vld [vmem:[#allocation2 + $0x730] sm:$0xff]
    %v331 = vld [vmem:[#allocation2 + $0x738] sm:$0xff]
    %v332 = vld [vmem:[#allocation2 + $0x740] sm:$0xff]
    %v333 = vld [vmem:[#allocation2 + $0x748] sm:$0xff]
    %v334 = vld [vmem:[#allocation2 + $0x750] sm:$0xff]
    %v335 = vld [vmem:[#allocation2 + $0x758] sm:$0xff]
    %v336 = vld [vmem:[#allocation2 + $0x760] sm:$0xff]
    %v337 = vld [vmem:[#allocation2 + $0x768] sm:$0xff]
    %v338 = vld [vmem:[#allocation2 + $0x770] sm:$0xff]
    %v339 = vld [vmem:[#allocation2 + $0x778] sm:$0xff]
    %v340 = vld [vmem:[#allocation2 + $0x780] sm:$0xff]
    %v341 = vld [vmem:[#allocation2 + $0x788] sm:$0xff]
    %v342 = vld [vmem:[#allocation2 + $0x790] sm:$0xff]
    %v343 = vld [vmem:[#allocation2 + $0x798] sm:$0xff]
    %v344 = vld [vmem:[#allocation2 + $0x7a0] sm:$0xff]
    %v345 = vld [vmem:[#allocation2 + $0x7a8] sm:$0xff]
    %v346 = vld [vmem:[#allocation2 + $0x7b0] sm:$0xff]
    %v347 = vld [vmem:[#allocation2 + $0x7b8] sm:$0xff]
    %v348 = vld [vmem:[#allocation2 + $0x7c0] sm:$0xff]
    %v349 = vld [vmem:[#allocation2 + $0x7c8] sm:$0xff]
    %v350 = vld [vmem:[#allocation2 + $0x7d0] sm:$0xff]
    %v351 = vld [vmem:[#allocation2 + $0x7d8] sm:$0xff]
    %v352 = vld [vmem:[#allocation2 + $0x7e0] sm:$0xff]
    %v353 = vld [vmem:[#allocation2 + $0x7e8] sm:$0xff]
    %v354 = vld [vmem:[#allocation2 + $0x7f0] sm:$0xff]
    %v355 = vld [vmem:[#allocation2 + $0x7f8] sm:$0xff]
    %v612 = vunpack.c.l.b16 %v100
    %v613 = vunpack.c.h.b16 %v100
    %v614 = vunpack.c.l.b16 %v101
    %v615 = vunpack.c.h.b16 %v101
    %v616 = vunpack.c.l.b16 %v102
    %v617 = vunpack.c.h.b16 %v102
    %v618 = vunpack.c.l.b16 %v103
    %v619 = vunpack.c.h.b16 %v103
    %v620 = vunpack.c.l.b16 %v104
    %v621 = vunpack.c.h.b16 %v104
    %v622 = vunpack.c.l.b16 %v105
    %v623 = vunpack.c.h.b16 %v105
    %v624 = vunpack.c.l.b16 %v106
    %v625 = vunpack.c.h.b16 %v106
    %v626 = vunpack.c.l.b16 %v107
    %v627 = vunpack.c.h.b16 %v107
    %v628 = vunpack.c.l.b16 %v108
    %v629 = vunpack.c.h.b16 %v108
    %v630 = vunpack.c.l.b16 %v109
    %v631 = vunpack.c.h.b16 %v109
    %v632 = vunpack.c.l.b16 %v110
    %v633 = vunpack.c.h.b16 %v110
    %v634 = vunpack.c.l.b16 %v111
    %v635 = vunpack.c.h.b16 %v111
    %v636 = vunpack.c.l.b16 %v112
    %v637 = vunpack.c.h.b16 %v112
    %v638 = vunpack.c.l.b16 %v113
    %v639 = vunpack.c.h.b16 %v113
    %v640 = vunpack.c.l.b16 %v114
    %v641 = vunpack.c.h.b16 %v114
    %v642 = vunpack.c.l.b16 %v115
    %v643 = vunpack.c.h.b16 %v115
    %v644 = vunpack.c.l.b16 %v116
    %v645 = vunpack.c.h.b16 %v116
    %v646 = vunpack.c.l.b16 %v117
    %v647 = vunpack.c.h.b16 %v117
    %v648 = vunpack.c.l.b16 %v118
    %v649 = vunpack.c.h.b16 %v118
    %v650 = vunpack.c.l.b16 %v119
    %v651 = vunpack.c.h.b16 %v119
    %v652 = vunpack.c.l.b16 %v120
    %v653 = vunpack.c.h.b16 %v120
    %v654 = vunpack.c.l.b16 %v121
    %v655 = vunpack.c.h.b16 %v121
    %v656 = vunpack.c.l.b16 %v122
    %v657 = vunpack.c.h.b16 %v122
    %v658 = vunpack.c.l.b16 %v123
    %v659 = vunpack.c.h.b16 %v123
    %v660 = vunpack.c.l.b16 %v124
    %v661 = vunpack.c.h.b16 %v124
    %v662 = vunpack.c.l.b16 %v125
    %v663 = vunpack.c.h.b16 %v125
    %v664 = vunpack.c.l.b16 %v126
    %v665 = vunpack.c.h.b16 %v126
    %v666 = vunpack.c.l.b16 %v127
    %v667 = vunpack.c.h.b16 %v127
    %v668 = vunpack.c.l.b16 %v128
    %v669 = vunpack.c.h.b16 %v128
    %v670 = vunpack.c.l.b16 %v129
    %v671 = vunpack.c.h.b16 %v129
    %v672 = vunpack.c.l.b16 %v130
    %v673 = vunpack.c.h.b16 %v130
    %v674 = vunpack.c.l.b16 %v131
    %v675 = vunpack.c.h.b16 %v131
    %v676 = vunpack.c.l.b16 %v132
    %v677 = vunpack.c.h.b16 %v132
    %v678 = vunpack.c.l.b16 %v133
    %v679 = vunpack.c.h.b16 %v133
    %v680 = vunpack.c.l.b16 %v134
    %v681 = vunpack.c.h.b16 %v134
    %v682 = vunpack.c.l.b16 %v135
    %v683 = vunpack.c.h.b16 %v135
    %v684 = vunpack.c.l.b16 %v136
    %v685 = vunpack.c.h.b16 %v136
    %v686 = vunpack.c.l.b16 %v137
    %v687 = vunpack.c.h.b16 %v137
    %v688 = vunpack.c.l.b16 %v138
    %v689 = vunpack.c.h.b16 %v138
    %v690 = vunpack.c.l.b16 %v139
    %v691 = vunpack.c.h.b16 %v139
    %v692 = vunpack.c.l.b16 %v140
    %v693 = vunpack.c.h.b16 %v140
    %v694 = vunpack.c.l.b16 %v141
    %v695 = vunpack.c.h.b16 %v141
    %v696 = vunpack.c.l.b16 %v142
    %v697 = vunpack.c.h.b16 %v142
    %v698 = vunpack.c.l.b16 %v143
    %v699 = vunpack.c.h.b16 %v143
    %v700 = vunpack.c.l.b16 %v144
    %v701 = vunpack.c.h.b16 %v144
    %v702 = vunpack.c.l.b16 %v145
    %v703 = vunpack.c.h.b16 %v145
    %v704 = vunpack.c.l.b16 %v146
    %v705 = vunpack.c.h.b16 %v146
    %v706 = vunpack.c.l.b16 %v147
    %v707 = vunpack.c.h.b16 %v147
    %v708 = vunpack.c.l.b16 %v148
    %v709 = vunpack.c.h.b16 %v148
    %v710 = vunpack.c.l.b16 %v149
    %v711 = vunpack.c.h.b16 %v149
    %v712 = vunpack.c.l.b16 %v150
    %v713 = vunpack.c.h.b16 %v150
    %v714 = vunpack.c.l.b16 %v151
    %v715 = vunpack.c.h.b16 %v151
    %v716 = vunpack.c.l.b16 %v152
    %v717 = vunpack.c.h.b16 %v152
    %v718 = vunpack.c.l.b16 %v153
    %v719 = vunpack.c.h.b16 %v153
    %v720 = vunpack.c.l.b16 %v154
    %v721 = vunpack.c.h.b16 %v154
    %v722 = vunpack.c.l.b16 %v155
    %v723 = vunpack.c.h.b16 %v155
    %v724 = vunpack.c.l.b16 %v156
    %v725 = vunpack.c.h.b16 %v156
    %v726 = vunpack.c.l.b16 %v157
    %v727 = vunpack.c.h.b16 %v157
    %v728 = vunpack.c.l.b16 %v158
    %v729 = vunpack.c.h.b16 %v158
    %v730 = vunpack.c.l.b16 %v159
    %v731 = vunpack.c.h.b16 %v159
    %v732 = vunpack.c.l.b16 %v160
    %v733 = vunpack.c.h.b16 %v160
    %v734 = vunpack.c.l.b16 %v161
    %v735 = vunpack.c.h.b16 %v161
    %v736 = vunpack.c.l.b16 %v162
    %v737 = vunpack.c.h.b16 %v162
    %v738 = vunpack.c.l.b16 %v163
    %v739 = vunpack.c.h.b16 %v163
    %v740 = vunpack.c.l.b16 %v164
    %v741 = vunpack.c.h.b16 %v164
    %v742 = vunpack.c.l.b16 %v165
    %v743 = vunpack.c.h.b16 %v165
    %v744 = vunpack.c.l.b16 %v166
    %v745 = vunpack.c.h.b16 %v166
    %v746 = vunpack.c.l.b16 %v167
    %v747 = vunpack.c.h.b16 %v167
    %v748 = vunpack.c.l.b16 %v168
    %v749 = vunpack.c.h.b16 %v168
    %v750 = vunpack.c.l.b16 %v169
    %v751 = vunpack.c.h.b16 %v169
    %v752 = vunpack.c.l.b16 %v170
    %v753 = vunpack.c.h.b16 %v170
    %v754 = vunpack.c.l.b16 %v171
    %v755 = vunpack.c.h.b16 %v171
    %v756 = vunpack.c.l.b16 %v172
    %v757 = vunpack.c.h.b16 %v172
    %v758 = vunpack.c.l.b16 %v173
    %v759 = vunpack.c.h.b16 %v173
    %v760 = vunpack.c.l.b16 %v174
    %v761 = vunpack.c.h.b16 %v174
    %v762 = vunpack.c.l.b16 %v175
    %v763 = vunpack.c.h.b16 %v175
    %v764 = vunpack.c.l.b16 %v176
    %v765 = vunpack.c.h.b16 %v176
    %v766 = vunpack.c.l.b16 %v177
    %v767 = vunpack.c.h.b16 %v177
    %v768 = vunpack.c.l.b16 %v178
    %v769 = vunpack.c.h.b16 %v178
    %v770 = vunpack.c.l.b16 %v179
    %v771 = vunpack.c.h.b16 %v179
    %v772 = vunpack.c.l.b16 %v180
    %v773 = vunpack.c.h.b16 %v180
    %v774 = vunpack.c.l.b16 %v181
    %v775 = vunpack.c.h.b16 %v181
    %v776 = vunpack.c.l.b16 %v182
    %v777 = vunpack.c.h.b16 %v182
    %v778 = vunpack.c.l.b16 %v183
    %v779 = vunpack.c.h.b16 %v183
    %v780 = vunpack.c.l.b16 %v184
    %v781 = vunpack.c.h.b16 %v184
    %v782 = vunpack.c.l.b16 %v185
    %v783 = vunpack.c.h.b16 %v185
    %v784 = vunpack.c.l.b16 %v186
    %v785 = vunpack.c.h.b16 %v186
    %v786 = vunpack.c.l.b16 %v187
    %v787 = vunpack.c.h.b16 %v187
    %v788 = vunpack.c.l.b16 %v188
    %v789 = vunpack.c.h.b16 %v188
    %v790 = vunpack.c.l.b16 %v189
    %v791 = vunpack.c.h.b16 %v189
    %v792 = vunpack.c.l.b16 %v190
    %v793 = vunpack.c.h.b16 %v190
    %v794 = vunpack.c.l.b16 %v191
    %v795 = vunpack.c.h.b16 %v191
    %v796 = vunpack.c.l.b16 %v192
    %v797 = vunpack.c.h.b16 %v192
    %v798 = vunpack.c.l.b16 %v193
    %v799 = vunpack.c.h.b16 %v193
    %v800 = vunpack.c.l.b16 %v194
    %v801 = vunpack.c.h.b16 %v194
    %v802 = vunpack.c.l.b16 %v195
    %v803 = vunpack.c.h.b16 %v195
    %v804 = vunpack.c.l.b16 %v196
    %v805 = vunpack.c.h.b16 %v196
    %v806 = vunpack.c.l.b16 %v197
    %v807 = vunpack.c.h.b16 %v197
    %v808 = vunpack.c.l.b16 %v198
    %v809 = vunpack.c.h.b16 %v198
    %v810 = vunpack.c.l.b16 %v199
    %v811 = vunpack.c.h.b16 %v199
    %v812 = vunpack.c.l.b16 %v200
    %v813 = vunpack.c.h.b16 %v200
    %v814 = vunpack.c.l.b16 %v201
    %v815 = vunpack.c.h.b16 %v201
    %v816 = vunpack.c.l.b16 %v202
    %v817 = vunpack.c.h.b16 %v202
    %v818 = vunpack.c.l.b16 %v203
    %v819 = vunpack.c.h.b16 %v203
    %v820 = vunpack.c.l.b16 %v204
    %v821 = vunpack.c.h.b16 %v204
    %v822 = vunpack.c.l.b16 %v205
    %v823 = vunpack.c.h.b16 %v205
    %v824 = vunpack.c.l.b16 %v206
    %v825 = vunpack.c.h.b16 %v206
    %v826 = vunpack.c.l.b16 %v207
    %v827 = vunpack.c.h.b16 %v207
    %v828 = vunpack.c.l.b16 %v208
    %v829 = vunpack.c.h.b16 %v208
    %v830 = vunpack.c.l.b16 %v209
    %v831 = vunpack.c.h.b16 %v209
    %v832 = vunpack.c.l.b16 %v210
    %v833 = vunpack.c.h.b16 %v210
    %v834 = vunpack.c.l.b16 %v211
    %v835 = vunpack.c.h.b16 %v211
    %v836 = vunpack.c.l.b16 %v212
    %v837 = vunpack.c.h.b16 %v212
    %v838 = vunpack.c.l.b16 %v213
    %v839 = vunpack.c.h.b16 %v213
    %v840 = vunpack.c.l.b16 %v214
    %v841 = vunpack.c.h.b16 %v214
    %v842 = vunpack.c.l.b16 %v215
    %v843 = vunpack.c.h.b16 %v215
    %v844 = vunpack.c.l.b16 %v216
    %v845 = vunpack.c.h.b16 %v216
    %v846 = vunpack.c.l.b16 %v217
    %v847 = vunpack.c.h.b16 %v217
    %v848 = vunpack.c.l.b16 %v218
    %v849 = vunpack.c.h.b16 %v218
    %v850 = vunpack.c.l.b16 %v219
    %v851 = vunpack.c.h.b16 %v219
    %v852 = vunpack.c.l.b16 %v220
    %v853 = vunpack.c.h.b16 %v220
    %v854 = vunpack.c.l.b16 %v221
    %v855 = vunpack.c.h.b16 %v221
    %v856 = vunpack.c.l.b16 %v222
    %v857 = vunpack.c.h.b16 %v222
    %v858 = vunpack.c.l.b16 %v223
    %v859 = vunpack.c.h.b16 %v223
    %v860 = vunpack.c.l.b16 %v224
    %v861 = vunpack.c.h.b16 %v224
    %v862 = vunpack.c.l.b16 %v225
    %v863 = vunpack.c.h.b16 %v225
    %v864 = vunpack.c.l.b16 %v226
    %v865 = vunpack.c.h.b16 %v226
    %v866 = vunpack.c.l.b16 %v227
    %v867 = vunpack.c.h.b16 %v227
    %v868 = vunpack.c.l.b16 %v228
    %v869 = vunpack.c.h.b16 %v228
    %v870 = vunpack.c.l.b16 %v229
    %v871 = vunpack.c.h.b16 %v229
    %v872 = vunpack.c.l.b16 %v230
    %v873 = vunpack.c.h.b16 %v230
    %v874 = vunpack.c.l.b16 %v231
    %v875 = vunpack.c.h.b16 %v231
    %v876 = vunpack.c.l.b16 %v232
    %v877 = vunpack.c.h.b16 %v232
    %v878 = vunpack.c.l.b16 %v233
    %v879 = vunpack.c.h.b16 %v233
    %v880 = vunpack.c.l.b16 %v234
    %v881 = vunpack.c.h.b16 %v234
    %v882 = vunpack.c.l.b16 %v235
    %v883 = vunpack.c.h.b16 %v235
    %v884 = vunpack.c.l.b16 %v236
    %v885 = vunpack.c.h.b16 %v236
    %v886 = vunpack.c.l.b16 %v237
    %v887 = vunpack.c.h.b16 %v237
    %v888 = vunpack.c.l.b16 %v238
    %v889 = vunpack.c.h.b16 %v238
    %v890 = vunpack.c.l.b16 %v239
    %v891 = vunpack.c.h.b16 %v239
    %v892 = vunpack.c.l.b16 %v240
    %v893 = vunpack.c.h.b16 %v240
    %v894 = vunpack.c.l.b16 %v241
    %v895 = vunpack.c.h.b16 %v241
    %v896 = vunpack.c.l.b16 %v242
    %v897 = vunpack.c.h.b16 %v242
    %v898 = vunpack.c.l.b16 %v243
    %v899 = vunpack.c.h.b16 %v243
    %v900 = vunpack.c.l.b16 %v244
    %v901 = vunpack.c.h.b16 %v244
    %v902 = vunpack.c.l.b16 %v245
    %v903 = vunpack.c.h.b16 %v245
    %v904 = vunpack.c.l.b16 %v246
    %v905 = vunpack.c.h.b16 %v246
    %v906 = vunpack.c.l.b16 %v247
    %v907 = vunpack.c.h.b16 %v247
    %v908 = vunpack.c.l.b16 %v248
    %v909 = vunpack.c.h.b16 %v248
    %v910 = vunpack.c.l.b16 %v249
    %v911 = vunpack.c.h.b16 %v249
    %v912 = vunpack.c.l.b16 %v250
    %v913 = vunpack.c.h.b16 %v250
    %v914 = vunpack.c.l.b16 %v251
    %v915 = vunpack.c.h.b16 %v251
    %v916 = vunpack.c.l.b16 %v252
    %v917 = vunpack.c.h.b16 %v252
    %v918 = vunpack.c.l.b16 %v253
    %v919 = vunpack.c.h.b16 %v253
    %v920 = vunpack.c.l.b16 %v254
    %v921 = vunpack.c.h.b16 %v254
    %v922 = vunpack.c.l.b16 %v255
    %v923 = vunpack.c.h.b16 %v255
    %v924 = vunpack.c.l.b16 %v256
    %v925 = vunpack.c.h.b16 %v256
    %v926 = vunpack.c.l.b16 %v257
    %v927 = vunpack.c.h.b16 %v257
    %v928 = vunpack.c.l.b16 %v258
    %v929 = vunpack.c.h.b16 %v258
    %v930 = vunpack.c.l.b16 %v259
    %v931 = vunpack.c.h.b16 %v259
    %v932 = vunpack.c.l.b16 %v260
    %v933 = vunpack.c.h.b16 %v260
    %v934 = vunpack.c.l.b16 %v261
    %v935 = vunpack.c.h.b16 %v261
    %v936 = vunpack.c.l.b16 %v262
    %v937 = vunpack.c.h.b16 %v262
    %v938 = vunpack.c.l.b16 %v263
    %v939 = vunpack.c.h.b16 %v263
    %v940 = vunpack.c.l.b16 %v264
    %v941 = vunpack.c.h.b16 %v264
    %v942 = vunpack.c.l.b16 %v265
    %v943 = vunpack.c.h.b16 %v265
    %v944 = vunpack.c.l.b16 %v266
    %v945 = vunpack.c.h.b16 %v266
    %v946 = vunpack.c.l.b16 %v267
    %v947 = vunpack.c.h.b16 %v267
    %v948 = vunpack.c.l.b16 %v268
    %v949 = vunpack.c.h.b16 %v268
    %v950 = vunpack.c.l.b16 %v269
    %v951 = vunpack.c.h.b16 %v269
    %v952 = vunpack.c.l.b16 %v270
    %v953 = vunpack.c.h.b16 %v270
    %v954 = vunpack.c.l.b16 %v271
    %v955 = vunpack.c.h.b16 %v271
    %v956 = vunpack.c.l.b16 %v272
    %v957 = vunpack.c.h.b16 %v272
    %v958 = vunpack.c.l.b16 %v273
    %v959 = vunpack.c.h.b16 %v273
    %v960 = vunpack.c.l.b16 %v274
    %v961 = vunpack.c.h.b16 %v274
    %v962 = vunpack.c.l.b16 %v275
    %v963 = vunpack.c.h.b16 %v275
    %v964 = vunpack.c.l.b16 %v276
    %v965 = vunpack.c.h.b16 %v276
    %v966 = vunpack.c.l.b16 %v277
    %v967 = vunpack.c.h.b16 %v277
    %v968 = vunpack.c.l.b16 %v278
    %v969 = vunpack.c.h.b16 %v278
    %v970 = vunpack.c.l.b16 %v279
    %v971 = vunpack.c.h.b16 %v279
    %v972 = vunpack.c.l.b16 %v280
    %v973 = vunpack.c.h.b16 %v280
    %v974 = vunpack.c.l.b16 %v281
    %v975 = vunpack.c.h.b16 %v281
    %v976 = vunpack.c.l.b16 %v282
    %v977 = vunpack.c.h.b16 %v282
    %v978 = vunpack.c.l.b16 %v283
    %v979 = vunpack.c.h.b16 %v283
    %v980 = vunpack.c.l.b16 %v284
    %v981 = vunpack.c.h.b16 %v284
    %v982 = vunpack.c.l.b16 %v285
    %v983 = vunpack.c.h.b16 %v285
    %v984 = vunpack.c.l.b16 %v286
    %v985 = vunpack.c.h.b16 %v286
    %v986 = vunpack.c.l.b16 %v287
    %v987 = vunpack.c.h.b16 %v287
    %v988 = vunpack.c.l.b16 %v288
    %v989 = vunpack.c.h.b16 %v288
    %v990 = vunpack.c.l.b16 %v289
    %v991 = vunpack.c.h.b16 %v289
    %v992 = vunpack.c.l.b16 %v290
    %v993 = vunpack.c.h.b16 %v290
    %v994 = vunpack.c.l.b16 %v291
    %v995 = vunpack.c.h.b16 %v291
    %v996 = vunpack.c.l.b16 %v292
    %v997 = vunpack.c.h.b16 %v292
    %v998 = vunpack.c.l.b16 %v293
    %v999 = vunpack.c.h.b16 %v293
    %v1000 = vunpack.c.l.b16 %v294
    %v1001 = vunpack.c.h.b16 %v294
    %v1002 = vunpack.c.l.b16 %v295
    %v1003 = vunpack.c.h.b16 %v295
    %v1004 = vunpack.c.l.b16 %v296
    %v1005 = vunpack.c.h.b16 %v296
    %v1006 = vunpack.c.l.b16 %v297
    %v1007 = vunpack.c.h.b16 %v297
    %v1008 = vunpack.c.l.b16 %v298
    %v1009 = vunpack.c.h.b16 %v298
    %v1010 = vunpack.c.l.b16 %v299
    %v1011 = vunpack.c.h.b16 %v299
    %v1012 = vunpack.c.l.b16 %v300
    %v1013 = vunpack.c.h.b16 %v300
    %v1014 = vunpack.c.l.b16 %v301
    %v1015 = vunpack.c.h.b16 %v301
    %v1016 = vunpack.c.l.b16 %v302
    %v1017 = vunpack.c.h.b16 %v302
    %v1018 = vunpack.c.l.b16 %v303
    %v1019 = vunpack.c.h.b16 %v303
    %v1020 = vunpack.c.l.b16 %v304
    %v1021 = vunpack.c.h.b16 %v304
    %v1022 = vunpack.c.l.b16 %v305
    %v1023 = vunpack.c.h.b16 %v305
    %v1024 = vunpack.c.l.b16 %v306
    %v1025 = vunpack.c.h.b16 %v306
    %v1026 = vunpack.c.l.b16 %v307
    %v1027 = vunpack.c.h.b16 %v307
    %v1028 = vunpack.c.l.b16 %v308
    %v1029 = vunpack.c.h.b16 %v308
    %v1030 = vunpack.c.l.b16 %v309
    %v1031 = vunpack.c.h.b16 %v309
    %v1032 = vunpack.c.l.b16 %v310
    %v1033 = vunpack.c.h.b16 %v310
    %v1034 = vunpack.c.l.b16 %v311
    %v1035 = vunpack.c.h.b16 %v311
    %v1036 = vunpack.c.l.b16 %v312
    %v1037 = vunpack.c.h.b16 %v312
    %v1038 = vunpack.c.l.b16 %v313
    %v1039 = vunpack.c.h.b16 %v313
    %v1040 = vunpack.c.l.b16 %v314
    %v1041 = vunpack.c.h.b16 %v314
    %v1042 = vunpack.c.l.b16 %v315
    %v1043 = vunpack.c.h.b16 %v315
    %v1044 = vunpack.c.l.b16 %v316
    %v1045 = vunpack.c.h.b16 %v316
    %v1046 = vunpack.c.l.b16 %v317
    %v1047 = vunpack.c.h.b16 %v317
    %v1048 = vunpack.c.l.b16 %v318
    %v1049 = vunpack.c.h.b16 %v318
    %v1050 = vunpack.c.l.b16 %v319
    %v1051 = vunpack.c.h.b16 %v319
    %v1052 = vunpack.c.l.b16 %v320
    %v1053 = vunpack.c.h.b16 %v320
    %v1054 = vunpack.c.l.b16 %v321
    %v1055 = vunpack.c.h.b16 %v321
    %v1056 = vunpack.c.l.b16 %v322
    %v1057 = vunpack.c.h.b16 %v322
    %v1058 = vunpack.c.l.b16 %v323
    %v1059 = vunpack.c.h.b16 %v323
    %v1060 = vunpack.c.l.b16 %v324
    %v1061 = vunpack.c.h.b16 %v324
    %v1062 = vunpack.c.l.b16 %v325
    %v1063 = vunpack.c.h.b16 %v325
    %v1064 = vunpack.c.l.b16 %v326
    %v1065 = vunpack.c.h.b16 %v326
    %v1066 = vunpack.c.l.b16 %v327
    %v1067 = vunpack.c.h.b16 %v327
    %v1068 = vunpack.c.l.b16 %v328
    %v1069 = vunpack.c.h.b16 %v328
    %v1070 = vunpack.c.l.b16 %v329
    %v1071 = vunpack.c.h.b16 %v329
    %v1072 = vunpack.c.l.b16 %v330
    %v1073 = vunpack.c.h.b16 %v330
    %v1074 = vunpack.c.l.b16 %v331
    %v1075 = vunpack.c.h.b16 %v331
    %v1076 = vunpack.c.l.b16 %v332
    %v1077 = vunpack.c.h.b16 %v332
    %v1078 = vunpack.c.l.b16 %v333
    %v1079 = vunpack.c.h.b16 %v333
    %v1080 = vunpack.c.l.b16 %v334
    %v1081 = vunpack.c.h.b16 %v334
    %v1082 = vunpack.c.l.b16 %v335
    %v1083 = vunpack.c.h.b16 %v335
    %v1084 = vunpack.c.l.b16 %v336
    %v1085 = vunpack.c.h.b16 %v336
    %v1086 = vunpack.c.l.b16 %v337
    %v1087 = vunpack.c.h.b16 %v337
    %v1088 = vunpack.c.l.b16 %v338
    %v1089 = vunpack.c.h.b16 %v338
    %v1090 = vunpack.c.l.b16 %v339
    %v1091 = vunpack.c.h.b16 %v339
    %v1092 = vunpack.c.l.b16 %v340
    %v1093 = vunpack.c.h.b16 %v340
    %v1094 = vunpack.c.l.b16 %v341
    %v1095 = vunpack.c.h.b16 %v341
    %v1096 = vunpack.c.l.b16 %v342
    %v1097 = vunpack.c.h.b16 %v342
    %v1098 = vunpack.c.l.b16 %v343
    %v1099 = vunpack.c.h.b16 %v343
    %v1100 = vunpack.c.l.b16 %v344
    %v1101 = vunpack.c.h.b16 %v344
    %v1102 = vunpack.c.l.b16 %v345
    %v1103 = vunpack.c.h.b16 %v345
    %v1104 = vunpack.c.l.b16 %v346
    %v1105 = vunpack.c.h.b16 %v346
    %v1106 = vunpack.c.l.b16 %v347
    %v1107 = vunpack.c.h.b16 %v347
    %v1108 = vunpack.c.l.b16 %v348
    %v1109 = vunpack.c.h.b16 %v348
    %v1110 = vunpack.c.l.b16 %v349
    %v1111 = vunpack.c.h.b16 %v349
    %v1112 = vunpack.c.l.b16 %v350
    %v1113 = vunpack.c.h.b16 %v350
    %v1114 = vunpack.c.l.b16 %v351
    %v1115 = vunpack.c.h.b16 %v351
    %v1116 = vunpack.c.l.b16 %v352
    %v1117 = vunpack.c.h.b16 %v352
    %v1118 = vunpack.c.l.b16 %v353
    %v1119 = vunpack.c.h.b16 %v353
    %v1120 = vunpack.c.l.b16 %v354
    %v1121 = vunpack.c.h.b16 %v354
    %v1122 = vunpack.c.l.b16 %v355
    %v1123 = vunpack.c.h.b16 %v355
    %v1124 = vpack.c.b16 %v616, %v612
    %v1125 = vpack.c.b16 %v617, %v613
    %v1126 = vpack.c.b16 %v618, %v614
    %v1127 = vpack.c.b16 %v619, %v615
    %v1128 = vpack.c.b16 %v624, %v620
    %v1129 = vpack.c.b16 %v625, %v621
    %v1130 = vpack.c.b16 %v626, %v622
    %v1131 = vpack.c.b16 %v627, %v623
    %v1132 = vpack.c.b16 %v632, %v628
    %v1133 = vpack.c.b16 %v633, %v629
    %v1134 = vpack.c.b16 %v634, %v630
    %v1135 = vpack.c.b16 %v635, %v631
    %v1136 = vpack.c.b16 %v640, %v636
    %v1137 = vpack.c.b16 %v641, %v637
    %v1138 = vpack.c.b16 %v642, %v638
    %v1139 = vpack.c.b16 %v643, %v639
    %v1140 = vpack.c.b16 %v648, %v644
    %v1141 = vpack.c.b16 %v649, %v645
    %v1142 = vpack.c.b16 %v650, %v646
    %v1143 = vpack.c.b16 %v651, %v647
    %v1144 = vpack.c.b16 %v656, %v652
    %v1145 = vpack.c.b16 %v657, %v653
    %v1146 = vpack.c.b16 %v658, %v654
    %v1147 = vpack.c.b16 %v659, %v655
    %v1148 = vpack.c.b16 %v664, %v660
    %v1149 = vpack.c.b16 %v665, %v661
    %v1150 = vpack.c.b16 %v666, %v662
    %v1151 = vpack.c.b16 %v667, %v663
    %v1152 = vpack.c.b16 %v672, %v668
    %v1153 = vpack.c.b16 %v673, %v669
    %v1154 = vpack.c.b16 %v674, %v670
    %v1155 = vpack.c.b16 %v675, %v671
    %v1156 = vpack.c.b16 %v680, %v676
    %v1157 = vpack.c.b16 %v681, %v677
    %v1158 = vpack.c.b16 %v682, %v678
    %v1159 = vpack.c.b16 %v683, %v679
    %v1160 = vpack.c.b16 %v688, %v684
    %v1161 = vpack.c.b16 %v689, %v685
    %v1162 = vpack.c.b16 %v690, %v686
    %v1163 = vpack.c.b16 %v691, %v687
    %v1164 = vpack.c.b16 %v696, %v692
    %v1165 = vpack.c.b16 %v697, %v693
    %v1166 = vpack.c.b16 %v698, %v694
    %v1167 = vpack.c.b16 %v699, %v695
    %v1168 = vpack.c.b16 %v704, %v700
    %v1169 = vpack.c.b16 %v705, %v701
    %v1170 = vpack.c.b16 %v706, %v702
    %v1171 = vpack.c.b16 %v707, %v703
    %v1172 = vpack.c.b16 %v712, %v708
    %v1173 = vpack.c.b16 %v713, %v709
    %v1174 = vpack.c.b16 %v714, %v710
    %v1175 = vpack.c.b16 %v715, %v711
    %v1176 = vpack.c.b16 %v720, %v716
    %v1177 = vpack.c.b16 %v721, %v717
    %v1178 = vpack.c.b16 %v722, %v718
    %v1179 = vpack.c.b16 %v723, %v719
    %v1180 = vpack.c.b16 %v728, %v724
    %v1181 = vpack.c.b16 %v729, %v725
    %v1182 = vpack.c.b16 %v730, %v726
    %v1183 = vpack.c.b16 %v731, %v727
    %v1184 = vpack.c.b16 %v736, %v732
    %v1185 = vpack.c.b16 %v737, %v733
    %v1186 = vpack.c.b16 %v738, %v734
    %v1187 = vpack.c.b16 %v739, %v735
    %v1188 = vpack.c.b16 %v744, %v740
    %v1189 = vpack.c.b16 %v745, %v741
    %v1190 = vpack.c.b16 %v746, %v742
    %v1191 = vpack.c.b16 %v747, %v743
    %v1192 = vpack.c.b16 %v752, %v748
    %v1193 = vpack.c.b16 %v753, %v749
    %v1194 = vpack.c.b16 %v754, %v750
    %v1195 = vpack.c.b16 %v755, %v751
    %v1196 = vpack.c.b16 %v760, %v756
    %v1197 = vpack.c.b16 %v761, %v757
    %v1198 = vpack.c.b16 %v762, %v758
    %v1199 = vpack.c.b16 %v763, %v759
    %v1200 = vpack.c.b16 %v768, %v764
    %v1201 = vpack.c.b16 %v769, %v765
    %v1202 = vpack.c.b16 %v770, %v766
    %v1203 = vpack.c.b16 %v771, %v767
    %v1204 = vpack.c.b16 %v776, %v772
    %v1205 = vpack.c.b16 %v777, %v773
    %v1206 = vpack.c.b16 %v778, %v774
    %v1207 = vpack.c.b16 %v779, %v775
    %v1208 = vpack.c.b16 %v784, %v780
    %v1209 = vpack.c.b16 %v785, %v781
    %v1210 = vpack.c.b16 %v786, %v782
    %v1211 = vpack.c.b16 %v787, %v783
    %v1212 = vpack.c.b16 %v792, %v788
    %v1213 = vpack.c.b16 %v793, %v789
    %v1214 = vpack.c.b16 %v794, %v790
    %v1215 = vpack.c.b16 %v795, %v791
    %v1216 = vpack.c.b16 %v800, %v796
    %v1217 = vpack.c.b16 %v801, %v797
    %v1218 = vpack.c.b16 %v802, %v798
    %v1219 = vpack.c.b16 %v803, %v799
    %v1220 = vpack.c.b16 %v808, %v804
    %v1221 = vpack.c.b16 %v809, %v805
    %v1222 = vpack.c.b16 %v810, %v806
    %v1223 = vpack.c.b16 %v811, %v807
    %v1224 = vpack.c.b16 %v816, %v812
    %v1225 = vpack.c.b16 %v817, %v813
    %v1226 = vpack.c.b16 %v818, %v814
    %v1227 = vpack.c.b16 %v819, %v815
    %v1228 = vpack.c.b16 %v824, %v820
    %v1229 = vpack.c.b16 %v825, %v821
    %v1230 = vpack.c.b16 %v826, %v822
    %v1231 = vpack.c.b16 %v827, %v823
    %v1232 = vpack.c.b16 %v832, %v828
    %v1233 = vpack.c.b16 %v833, %v829
    %v1234 = vpack.c.b16 %v834, %v830
    %v1235 = vpack.c.b16 %v835, %v831
    %v1236 = vpack.c.b16 %v840, %v836
    %v1237 = vpack.c.b16 %v841, %v837
    %v1238 = vpack.c.b16 %v842, %v838
    %v1239 = vpack.c.b16 %v843, %v839
    %v1240 = vpack.c.b16 %v848, %v844
    %v1241 = vpack.c.b16 %v849, %v845
    %v1242 = vpack.c.b16 %v850, %v846
    %v1243 = vpack.c.b16 %v851, %v847
    %v1244 = vpack.c.b16 %v856, %v852
    %v1245 = vpack.c.b16 %v857, %v853
    %v1246 = vpack.c.b16 %v858, %v854
    %v1247 = vpack.c.b16 %v859, %v855
    %v1248 = vpack.c.b16 %v864, %v860
    %v1249 = vpack.c.b16 %v865, %v861
    %v1250 = vpack.c.b16 %v866, %v862
    %v1251 = vpack.c.b16 %v867, %v863
    %v1252 = vpack.c.b16 %v872, %v868
    %v1253 = vpack.c.b16 %v873, %v869
    %v1254 = vpack.c.b16 %v874, %v870
    %v1255 = vpack.c.b16 %v875, %v871
    %v1256 = vpack.c.b16 %v880, %v876
    %v1257 = vpack.c.b16 %v881, %v877
    %v1258 = vpack.c.b16 %v882, %v878
    %v1259 = vpack.c.b16 %v883, %v879
    %v1260 = vpack.c.b16 %v888, %v884
    %v1261 = vpack.c.b16 %v889, %v885
    %v1262 = vpack.c.b16 %v890, %v886
    %v1263 = vpack.c.b16 %v891, %v887
    %v1264 = vpack.c.b16 %v896, %v892
    %v1265 = vpack.c.b16 %v897, %v893
    %v1266 = vpack.c.b16 %v898, %v894
    %v1267 = vpack.c.b16 %v899, %v895
    %v1268 = vpack.c.b16 %v904, %v900
    %v1269 = vpack.c.b16 %v905, %v901
    %v1270 = vpack.c.b16 %v906, %v902
    %v1271 = vpack.c.b16 %v907, %v903
    %v1272 = vpack.c.b16 %v912, %v908
    %v1273 = vpack.c.b16 %v913, %v909
    %v1274 = vpack.c.b16 %v914, %v910
    %v1275 = vpack.c.b16 %v915, %v911
    %v1276 = vpack.c.b16 %v920, %v916
    %v1277 = vpack.c.b16 %v921, %v917
    %v1278 = vpack.c.b16 %v922, %v918
    %v1279 = vpack.c.b16 %v923, %v919
    %v1280 = vpack.c.b16 %v928, %v924
    %v1281 = vpack.c.b16 %v929, %v925
    %v1282 = vpack.c.b16 %v930, %v926
    %v1283 = vpack.c.b16 %v931, %v927
    %v1284 = vpack.c.b16 %v936, %v932
    %v1285 = vpack.c.b16 %v937, %v933
    %v1286 = vpack.c.b16 %v938, %v934
    %v1287 = vpack.c.b16 %v939, %v935
    %v1288 = vpack.c.b16 %v944, %v940
    %v1289 = vpack.c.b16 %v945, %v941
    %v1290 = vpack.c.b16 %v946, %v942
    %v1291 = vpack.c.b16 %v947, %v943
    %v1292 = vpack.c.b16 %v952, %v948
    %v1293 = vpack.c.b16 %v953, %v949
    %v1294 = vpack.c.b16 %v954, %v950
    %v1295 = vpack.c.b16 %v955, %v951
    %v1296 = vpack.c.b16 %v960, %v956
    %v1297 = vpack.c.b16 %v961, %v957
    %v1298 = vpack.c.b16 %v962, %v958
    %v1299 = vpack.c.b16 %v963, %v959
    %v1300 = vpack.c.b16 %v968, %v964
    %v1301 = vpack.c.b16 %v969, %v965
    %v1302 = vpack.c.b16 %v970, %v966
    %v1303 = vpack.c.b16 %v971, %v967
    %v1304 = vpack.c.b16 %v976, %v972
    %v1305 = vpack.c.b16 %v977, %v973
    %v1306 = vpack.c.b16 %v978, %v974
    %v1307 = vpack.c.b16 %v979, %v975
    %v1308 = vpack.c.b16 %v984, %v980
    %v1309 = vpack.c.b16 %v985, %v981
    %v1310 = vpack.c.b16 %v986, %v982
    %v1311 = vpack.c.b16 %v987, %v983
    %v1312 = vpack.c.b16 %v992, %v988
    %v1313 = vpack.c.b16 %v993, %v989
    %v1314 = vpack.c.b16 %v994, %v990
    %v1315 = vpack.c.b16 %v995, %v991
    %v1316 = vpack.c.b16 %v1000, %v996
    %v1317 = vpack.c.b16 %v1001, %v997
    %v1318 = vpack.c.b16 %v1002, %v998
    %v1319 = vpack.c.b16 %v1003, %v999
    %v1320 = vpack.c.b16 %v1008, %v1004
    %v1321 = vpack.c.b16 %v1009, %v1005
    %v1322 = vpack.c.b16 %v1010, %v1006
    %v1323 = vpack.c.b16 %v1011, %v1007
    %v1324 = vpack.c.b16 %v1016, %v1012
    %v1325 = vpack.c.b16 %v1017, %v1013
    %v1326 = vpack.c.b16 %v1018, %v1014
    %v1327 = vpack.c.b16 %v1019, %v1015
    %v1328 = vpack.c.b16 %v1024, %v1020
    %v1329 = vpack.c.b16 %v1025, %v1021
    %v1330 = vpack.c.b16 %v1026, %v1022
    %v1331 = vpack.c.b16 %v1027, %v1023
    %v1332 = vpack.c.b16 %v1032, %v1028
    %v1333 = vpack.c.b16 %v1033, %v1029
    %v1334 = vpack.c.b16 %v1034, %v1030
    %v1335 = vpack.c.b16 %v1035, %v1031
    %v1336 = vpack.c.b16 %v1040, %v1036
    %v1337 = vpack.c.b16 %v1041, %v1037
    %v1338 = vpack.c.b16 %v1042, %v1038
    %v1339 = vpack.c.b16 %v1043, %v1039
    %v1340 = vpack.c.b16 %v1048, %v1044
    %v1341 = vpack.c.b16 %v1049, %v1045
    %v1342 = vpack.c.b16 %v1050, %v1046
    %v1343 = vpack.c.b16 %v1051, %v1047
    %v1344 = vpack.c.b16 %v1056, %v1052
    %v1345 = vpack.c.b16 %v1057, %v1053
    %v1346 = vpack.c.b16 %v1058, %v1054
    %v1347 = vpack.c.b16 %v1059, %v1055
    %v1348 = vpack.c.b16 %v1064, %v1060
    %v1349 = vpack.c.b16 %v1065, %v1061
    %v1350 = vpack.c.b16 %v1066, %v1062
    %v1351 = vpack.c.b16 %v1067, %v1063
    %v1352 = vpack.c.b16 %v1072, %v1068
    %v1353 = vpack.c.b16 %v1073, %v1069
    %v1354 = vpack.c.b16 %v1074, %v1070
    %v1355 = vpack.c.b16 %v1075, %v1071
    %v1356 = vpack.c.b16 %v1080, %v1076
    %v1357 = vpack.c.b16 %v1081, %v1077
    %v1358 = vpack.c.b16 %v1082, %v1078
    %v1359 = vpack.c.b16 %v1083, %v1079
    %v1360 = vpack.c.b16 %v1088, %v1084
    %v1361 = vpack.c.b16 %v1089, %v1085
    %v1362 = vpack.c.b16 %v1090, %v1086
    %v1363 = vpack.c.b16 %v1091, %v1087
    %v1364 = vpack.c.b16 %v1096, %v1092
    %v1365 = vpack.c.b16 %v1097, %v1093
    %v1366 = vpack.c.b16 %v1098, %v1094
    %v1367 = vpack.c.b16 %v1099, %v1095
    %v1368 = vpack.c.b16 %v1104, %v1100
    %v1369 = vpack.c.b16 %v1105, %v1101
    %v1370 = vpack.c.b16 %v1106, %v1102
    %v1371 = vpack.c.b16 %v1107, %v1103
    %v1372 = vpack.c.b16 %v1112, %v1108
    %v1373 = vpack.c.b16 %v1113, %v1109
    %v1374 = vpack.c.b16 %v1114, %v1110
    %v1375 = vpack.c.b16 %v1115, %v1111
    %v1376 = vpack.c.b16 %v1120, %v1116
    %v1377 = vpack.c.b16 %v1121, %v1117
    %v1378 = vpack.c.b16 %v1122, %v1118
    %v1379 = vpack.c.b16 %v1123, %v1119
    %1636 = vmatprep.subr.bf16.mxu0 %v1125
    %1637 = vmatpush1.bf16.msra.mxu0 %v1124
    %1638 = vmatprep.subr.bf16.mxu0 %v1129
    %1639 = vmatpush1.bf16.msra.mxu0 %v1128
    %1640 = vmatprep.subr.bf16.mxu0 %v1133
    %1641 = vmatpush1.bf16.msra.mxu0 %v1132
    %1642 = vmatprep.subr.bf16.mxu0 %v1137
    %1643 = vmatpush1.bf16.msra.mxu0 %v1136
    %1644 = vmatprep.subr.bf16.mxu0 %v1141
    %1645 = vmatpush1.bf16.msra.mxu0 %v1140
    %1646 = vmatprep.subr.bf16.mxu0 %v1145
    %1647 = vmatpush1.bf16.msra.mxu0 %v1144
    %1648 = vmatprep.subr.bf16.mxu0 %v1149
    %1649 = vmatpush1.bf16.msra.mxu0 %v1148
    %1650 = vmatprep.subr.bf16.mxu0 %v1153
    %1651 = vmatpush1.bf16.msra.mxu0 %v1152
    %1652 = vmatprep.subr.bf16.mxu0 %v1157
    %1653 = vmatpush1.bf16.msra.mxu0 %v1156
    %1654 = vmatprep.subr.bf16.mxu0 %v1161
    %1655 = vmatpush1.bf16.msra.mxu0 %v1160
    %1656 = vmatprep.subr.bf16.mxu0 %v1165
    %1657 = vmatpush1.bf16.msra.mxu0 %v1164
    %1658 = vmatprep.subr.bf16.mxu0 %v1169
    %1659 = vmatpush1.bf16.msra.mxu0 %v1168
    %1660 = vmatprep.subr.bf16.mxu0 %v1173
    %1661 = vmatpush1.bf16.msra.mxu0 %v1172
    %1662 = vmatprep.subr.bf16.mxu0 %v1177
    %1663 = vmatpush1.bf16.msra.mxu0 %v1176
    %1664 = vmatprep.subr.bf16.mxu0 %v1181
    %1665 = vmatpush1.bf16.msra.mxu0 %v1180
    %1666 = vmatprep.subr.bf16.mxu0 %v1185
    %1667 = vmatpush1.bf16.msra.mxu0 %v1184
    %1668 = vmatprep.mubr.bf16.mxu0 %v93
    %1669 = vmatmul.mubr.bf16.gmra.mrb[0].mxu0 %v92
    %v1670 = vpop.f32.mrb[0].mxu0
    %v1671 = vadd.f32 0.0, %v1670
    %v1672 = vpop.f32.mrb[0].mxu0
    %v1673 = vadd.f32 0.0, %v1672
    %v1674 = vpop.f32.mrb[0].mxu0
    %v1675 = vpop.f32.mrb[0].mxu0
    %1676 = vdwg.mxu0
    %1677 = vmatprep.subr.bf16.mxu0 %v1189
    %1678 = vmatpush1.bf16.msra.mxu0 %v1188
    %1679 = vmatprep.subr.bf16.mxu0 %v1193
    %1680 = vmatpush1.bf16.msra.mxu0 %v1192
    %1681 = vmatprep.subr.bf16.mxu0 %v1197
    %1682 = vmatpush1.bf16.msra.mxu0 %v1196
    %1683 = vmatprep.subr.bf16.mxu0 %v1201
    %1684 = vmatpush1.bf16.msra.mxu0 %v1200
    %1685 = vmatprep.subr.bf16.mxu0 %v1205
    %1686 = vmatpush1.bf16.msra.mxu0 %v1204
    %1687 = vmatprep.subr.bf16.mxu0 %v1209
    %1688 = vmatpush1.bf16.msra.mxu0 %v1208
    %1689 = vmatprep.subr.bf16.mxu0 %v1213
    %1690 = vmatpush1.bf16.msra.mxu0 %v1212
    %1691 = vmatprep.subr.bf16.mxu0 %v1217
    %1692 = vmatpush1.bf16.msra.mxu0 %v1216
    %1693 = vmatprep.subr.bf16.mxu0 %v1221
    %1694 = vmatpush1.bf16.msra.mxu0 %v1220
    %1695 = vmatprep.subr.bf16.mxu0 %v1225
    %1696 = vmatpush1.bf16.msra.mxu0 %v1224
    %1697 = vmatprep.subr.bf16.mxu0 %v1229
    %1698 = vmatpush1.bf16.msra.mxu0 %v1228
    %1699 = vmatprep.subr.bf16.mxu0 %v1233
    %1700 = vmatpush1.bf16.msra.mxu0 %v1232
    %1701 = vmatprep.subr.bf16.mxu0 %v1237
    %1702 = vmatpush1.bf16.msra.mxu0 %v1236
    %1703 = vmatprep.subr.bf16.mxu0 %v1241
    %1704 = vmatpush1.bf16.msra.mxu0 %v1240
    %1705 = vmatprep.subr.bf16.mxu0 %v1245
    %1706 = vmatpush1.bf16.msra.mxu0 %v1244
    %1707 = vmatprep.subr.bf16.mxu0 %v1249
    %1708 = vmatpush1.bf16.msra.mxu0 %v1248
    %1709 = vmatprep.mubr.bf16.mxu0 %v95
    %1710 = vmatmul.mubr.bf16.gmra.mrb[0].mxu0 %v94
    %v1711 = vpop.f32.mrb[0].mxu0
    %v1712 = vadd.f32 %v1671, %v1711
    %v1713 = vpop.f32.mrb[0].mxu0
    %v1714 = vadd.f32 %v1673, %v1713
    %v1715 = vpop.f32.mrb[0].mxu0
    %v1716 = vpop.f32.mrb[0].mxu0
    %1717 = vdwg.mxu0
    %1718 = vmatprep.subr.bf16.mxu0 %v1253
    %1719 = vmatpush1.bf16.msra.mxu0 %v1252
    %1720 = vmatprep.subr.bf16.mxu0 %v1257
    %1721 = vmatpush1.bf16.msra.mxu0 %v1256
    %1722 = vmatprep.subr.bf16.mxu0 %v1261
    %1723 = vmatpush1.bf16.msra.mxu0 %v1260
    %1724 = vmatprep.subr.bf16.mxu0 %v1265
    %1725 = vmatpush1.bf16.msra.mxu0 %v1264
    %1726 = vmatprep.subr.bf16.mxu0 %v1269
    %1727 = vmatpush1.bf16.msra.mxu0 %v1268
    %1728 = vmatprep.subr.bf16.mxu0 %v1273
    %1729 = vmatpush1.bf16.msra.mxu0 %v1272
    %1730 = vmatprep.subr.bf16.mxu0 %v1277
    %1731 = vmatpush1.bf16.msra.mxu0 %v1276
    %1732 = vmatprep.subr.bf16.mxu0 %v1281
    %1733 = vmatpush1.bf16.msra.mxu0 %v1280
    %1734 = vmatprep.subr.bf16.mxu0 %v1285
    %1735 = vmatpush1.bf16.msra.mxu0 %v1284
    %1736 = vmatprep.subr.bf16.mxu0 %v1289
    %1737 = vmatpush1.bf16.msra.mxu0 %v1288
    %1738 = vmatprep.subr.bf16.mxu0 %v1293
    %1739 = vmatpush1.bf16.msra.mxu0 %v1292
    %1740 = vmatprep.subr.bf16.mxu0 %v1297
    %1741 = vmatpush1.bf16.msra.mxu0 %v1296
    %1742 = vmatprep.subr.bf16.mxu0 %v1301
    %1743 = vmatpush1.bf16.msra.mxu0 %v1300
    %1744 = vmatprep.subr.bf16.mxu0 %v1305
    %1745 = vmatpush1.bf16.msra.mxu0 %v1304
    %1746 = vmatprep.subr.bf16.mxu0 %v1309
    %1747 = vmatpush1.bf16.msra.mxu0 %v1308
    %1748 = vmatprep.subr.bf16.mxu0 %v1313
    %1749 = vmatpush1.bf16.msra.mxu0 %v1312
    %1750 = vmatprep.mubr.bf16.mxu0 %v97
    %1751 = vmatmul.mubr.bf16.gmra.mrb[0].mxu0 %v96
    %v1752 = vpop.f32.mrb[0].mxu0
    %v1753 = vadd.f32 %v1712, %v1752
    %v1754 = vpop.f32.mrb[0].mxu0
    %v1755 = vadd.f32 %v1714, %v1754
    %v1756 = vpop.f32.mrb[0].mxu0
    %v1757 = vpop.f32.mrb[0].mxu0
    %1758 = vdwg.mxu0
    %1759 = vmatprep.subr.bf16.mxu0 %v1317
    %1760 = vmatpush1.bf16.msra.mxu0 %v1316
    %1761 = vmatprep.subr.bf16.mxu0 %v1321
    %1762 = vmatpush1.bf16.msra.mxu0 %v1320
    %1763 = vmatprep.subr.bf16.mxu0 %v1325
    %1764 = vmatpush1.bf16.msra.mxu0 %v1324
    %1765 = vmatprep.subr.bf16.mxu0 %v1329
    %1766 = vmatpush1.bf16.msra.mxu0 %v1328
    %1767 = vmatprep.subr.bf16.mxu0 %v1333
    %1768 = vmatpush1.bf16.msra.mxu0 %v1332
    %1769 = vmatprep.subr.bf16.mxu0 %v1337
    %1770 = vmatpush1.bf16.msra.mxu0 %v1336
    %1771 = vmatprep.subr.bf16.mxu0 %v1341
    %1772 = vmatpush1.bf16.msra.mxu0 %v1340
    %1773 = vmatprep.subr.bf16.mxu0 %v1345
    %1774 = vmatpush1.bf16.msra.mxu0 %v1344
    %1775 = vmatprep.subr.bf16.mxu0 %v1349
    %1776 = vmatpush1.bf16.msra.mxu0 %v1348
    %1777 = vmatprep.subr.bf16.mxu0 %v1353
    %1778 = vmatpush1.bf16.msra.mxu0 %v1352
    %1779 = vmatprep.subr.bf16.mxu0 %v1357
    %1780 = vmatpush1.bf16.msra.mxu0 %v1356
    %1781 = vmatprep.subr.bf16.mxu0 %v1361
    %1782 = vmatpush1.bf16.msra.mxu0 %v1360
    %1783 = vmatprep.subr.bf16.mxu0 %v1365
    %1784 = vmatpush1.bf16.msra.mxu0 %v1364
    %1785 = vmatprep.subr.bf16.mxu0 %v1369
    %1786 = vmatpush1.bf16.msra.mxu0 %v1368
    %1787 = vmatprep.subr.bf16.mxu0 %v1373
    %1788 = vmatpush1.bf16.msra.mxu0 %v1372
    %1789 = vmatprep.subr.bf16.mxu0 %v1377
    %1790 = vmatpush1.bf16.msra.mxu0 %v1376
    %1791 = vmatprep.mubr.bf16.mxu0 %v99
    %1792 = vmatmul.mubr.bf16.gmra.mrb[0].mxu0 %v98
    %v1793 = vpop.f32.mrb[0].mxu0
    %v1794 = vadd.f32 %v1753, %v1793
    %v1795 = vpop.f32.mrb[0].mxu0
    %v1796 = vadd.f32 %v1755, %v1795
    %v1797 = vpop.f32.mrb[0].mxu0
    %v1798 = vpop.f32.mrb[0].mxu0
    %1799 = vdwg.mxu0
    %1800 = vmatprep.subr.bf16.mxu0 %v1127
    %1801 = vmatpush1.bf16.msra.mxu0 %v1126
    %1802 = vmatprep.subr.bf16.mxu0 %v1131
    %1803 = vmatpush1.bf16.msra.mxu0 %v1130
    %1804 = vmatprep.subr.bf16.mxu0 %v1135
    %1805 = vmatpush1.bf16.msra.mxu0 %v1134
    %1806 = vmatprep.subr.bf16.mxu0 %v1139
    %1807 = vmatpush1.bf16.msra.mxu0 %v1138
    %1808 = vmatprep.subr.bf16.mxu0 %v1143
    %1809 = vmatpush1.bf16.msra.mxu0 %v1142
    %1810 = vmatprep.subr.bf16.mxu0 %v1147
    %1811 = vmatpush1.bf16.msra.mxu0 %v1146
    %1812 = vmatprep.subr.bf16.mxu0 %v1151
    %1813 = vmatpush1.bf16.msra.mxu0 %v1150
    %1814 = vmatprep.subr.bf16.mxu0 %v1155
    %1815 = vmatpush1.bf16.msra.mxu0 %v1154
    %1816 = vmatprep.subr.bf16.mxu0 %v1159
    %1817 = vmatpush1.bf16.msra.mxu0 %v1158
    %1818 = vmatprep.subr.bf16.mxu0 %v1163
    %1819 = vmatpush1.bf16.msra.mxu0 %v1162
    %1820 = vmatprep.subr.bf16.mxu0 %v1167
    %1821 = vmatpush1.bf16.msra.mxu0 %v1166
    %1822 = vmatprep.subr.bf16.mxu0 %v1171
    %1823 = vmatpush1.bf16.msra.mxu0 %v1170
    %1824 = vmatprep.subr.bf16.mxu0 %v1175
    %1825 = vmatpush1.bf16.msra.mxu0 %v1174
    %1826 = vmatprep.subr.bf16.mxu0 %v1179
    %1827 = vmatpush1.bf16.msra.mxu0 %v1178
    %1828 = vmatprep.subr.bf16.mxu0 %v1183
    %1829 = vmatpush1.bf16.msra.mxu0 %v1182
    %1830 = vmatprep.subr.bf16.mxu0 %v1187
    %1831 = vmatpush1.bf16.msra.mxu0 %v1186
    %1832 = vmatprep.mubr.bf16.mxu0 %v93
    %1833 = vmatmul.mubr.bf16.gmra.mrb[0].mxu0 %v92
    %v1834 = vpop.f32.mrb[0].mxu0
    %v1835 = vadd.f32 0.0, %v1834
    %v1836 = vpop.f32.mrb[0].mxu0
    %v1837 = vadd.f32 0.0, %v1836
    %v1838 = vpop.f32.mrb[0].mxu0
    %v1839 = vpop.f32.mrb[0].mxu0
    %1840 = vdwg.mxu0
    %1841 = vmatprep.subr.bf16.mxu0 %v1191
    %1842 = vmatpush1.bf16.msra.mxu0 %v1190
    %1843 = vmatprep.subr.bf16.mxu0 %v1195
    %1844 = vmatpush1.bf16.msra.mxu0 %v1194
    %1845 = vmatprep.subr.bf16.mxu0 %v1199
    %1846 = vmatpush1.bf16.msra.mxu0 %v1198
    %1847 = vmatprep.subr.bf16.mxu0 %v1203
    %1848 = vmatpush1.bf16.msra.mxu0 %v1202
    %1849 = vmatprep.subr.bf16.mxu0 %v1207
    %1850 = vmatpush1.bf16.msra.mxu0 %v1206
    %1851 = vmatprep.subr.bf16.mxu0 %v1211
    %1852 = vmatpush1.bf16.msra.mxu0 %v1210
    %1853 = vmatprep.subr.bf16.mxu0 %v1215
    %1854 = vmatpush1.bf16.msra.mxu0 %v1214
    %1855 = vmatprep.subr.bf16.mxu0 %v1219
    %1856 = vmatpush1.bf16.msra.mxu0 %v1218
    %1857 = vmatprep.subr.bf16.mxu0 %v1223
    %1858 = vmatpush1.bf16.msra.mxu0 %v1222
    %1859 = vmatprep.subr.bf16.mxu0 %v1227
    %1860 = vmatpush1.bf16.msra.mxu0 %v1226
    %1861 = vmatprep.subr.bf16.mxu0 %v1231
    %1862 = vmatpush1.bf16.msra.mxu0 %v1230
    %1863 = vmatprep.subr.bf16.mxu0 %v1235
    %1864 = vmatpush1.bf16.msra.mxu0 %v1234
    %1865 = vmatprep.subr.bf16.mxu0 %v1239
    %1866 = vmatpush1.bf16.msra.mxu0 %v1238
    %1867 = vmatprep.subr.bf16.mxu0 %v1243
    %1868 = vmatpush1.bf16.msra.mxu0 %v1242
    %1869 = vmatprep.subr.bf16.mxu0 %v1247
    %1870 = vmatpush1.bf16.msra.mxu0 %v1246
    %1871 = vmatprep.subr.bf16.mxu0 %v1251
    %1872 = vmatpush1.bf16.msra.mxu0 %v1250
    %1873 = vmatprep.mubr.bf16.mxu0 %v95
    %1874 = vmatmul.mubr.bf16.gmra.mrb[0].mxu0 %v94
    %v1875 = vpop.f32.mrb[0].mxu0
    %v1876 = vadd.f32 %v1835, %v1875
    %v1877 = vpop.f32.mrb[0].mxu0
    %v1878 = vadd.f32 %v1837, %v1877
    %v1879 = vpop.f32.mrb[0].mxu0
    %v1880 = vpop.f32.mrb[0].mxu0
    %1881 = vdwg.mxu0
    %1882 = vmatprep.subr.bf16.mxu0 %v1255
    %1883 = vmatpush1.bf16.msra.mxu0 %v1254
    %1884 = vmatprep.subr.bf16.mxu0 %v1259
    %1885 = vmatpush1.bf16.msra.mxu0 %v1258
    %1886 = vmatprep.subr.bf16.mxu0 %v1263
    %1887 = vmatpush1.bf16.msra.mxu0 %v1262
    %1888 = vmatprep.subr.bf16.mxu0 %v1267
    %1889 = vmatpush1.bf16.msra.mxu0 %v1266
    %1890 = vmatprep.subr.bf16.mxu0 %v1271
    %1891 = vmatpush1.bf16.msra.mxu0 %v1270
    %1892 = vmatprep.subr.bf16.mxu0 %v1275
    %1893 = vmatpush1.bf16.msra.mxu0 %v1274
    %1894 = vmatprep.subr.bf16.mxu0 %v1279
    %1895 = vmatpush1.bf16.msra.mxu0 %v1278
    %1896 = vmatprep.subr.bf16.mxu0 %v1283
    %1897 = vmatpush1.bf16.msra.mxu0 %v1282
    %1898 = vmatprep.subr.bf16.mxu0 %v1287
    %1899 = vmatpush1.bf16.msra.mxu0 %v1286
    %1900 = vmatprep.subr.bf16.mxu0 %v1291
    %1901 = vmatpush1.bf16.msra.mxu0 %v1290
    %1902 = vmatprep.subr.bf16.mxu0 %v1295
    %1903 = vmatpush1.bf16.msra.mxu0 %v1294
    %1904 = vmatprep.subr.bf16.mxu0 %v1299
    %1905 = vmatpush1.bf16.msra.mxu0 %v1298
    %1906 = vmatprep.subr.bf16.mxu0 %v1303
    %1907 = vmatpush1.bf16.msra.mxu0 %v1302
    %1908 = vmatprep.subr.bf16.mxu0 %v1307
    %1909 = vmatpush1.bf16.msra.mxu0 %v1306
    %1910 = vmatprep.subr.bf16.mxu0 %v1311
    %1911 = vmatpush1.bf16.msra.mxu0 %v1310
    %1912 = vmatprep.subr.bf16.mxu0 %v1315
    %1913 = vmatpush1.bf16.msra.mxu0 %v1314
    %1914 = vmatprep.mubr.bf16.mxu0 %v97
    %1915 = vmatmul.mubr.bf16.gmra.mrb[0].mxu0 %v96
    %v1916 = vpop.f32.mrb[0].mxu0
    %v1917 = vadd.f32 %v1876, %v1916
    %v1918 = vpop.f32.mrb[0].mxu0
    %v1919 = vadd.f32 %v1878, %v1918
    %v1920 = vpop.f32.mrb[0].mxu0
    %v1921 = vpop.f32.mrb[0].mxu0
    %1922 = vdwg.mxu0
    %1923 = vmatprep.subr.bf16.mxu0 %v1319
    %1924 = vmatpush1.bf16.msra.mxu0 %v1318
    %1925 = vmatprep.subr.bf16.mxu0 %v1323
    %1926 = vmatpush1.bf16.msra.mxu0 %v1322
    %1927 = vmatprep.subr.bf16.mxu0 %v1327
    %1928 = vmatpush1.bf16.msra.mxu0 %v1326
    %1929 = vmatprep.subr.bf16.mxu0 %v1331
    %1930 = vmatpush1.bf16.msra.mxu0 %v1330
    %1931 = vmatprep.subr.bf16.mxu0 %v1335
    %1932 = vmatpush1.bf16.msra.mxu0 %v1334
    %1933 = vmatprep.subr.bf16.mxu0 %v1339
    %1934 = vmatpush1.bf16.msra.mxu0 %v1338
    %1935 = vmatprep.subr.bf16.mxu0 %v1343
    %1936 = vmatpush1.bf16.msra.mxu0 %v1342
    %1937 = vmatprep.subr.bf16.mxu0 %v1347
    %1938 = vmatpush1.bf16.msra.mxu0 %v1346
    %1939 = vmatprep.subr.bf16.mxu0 %v1351
    %1940 = vmatpush1.bf16.msra.mxu0 %v1350
    %1941 = vmatprep.subr.bf16.mxu0 %v1355
    %1942 = vmatpush1.bf16.msra.mxu0 %v1354
    %1943 = vmatprep.subr.bf16.mxu0 %v1359
    %1944 = vmatpush1.bf16.msra.mxu0 %v1358
    %1945 = vmatprep.subr.bf16.mxu0 %v1363
    %1946 = vmatpush1.bf16.msra.mxu0 %v1362
    %1947 = vmatprep.subr.bf16.mxu0 %v1367
    %1948 = vmatpush1.bf16.msra.mxu0 %v1366
    %1949 = vmatprep.subr.bf16.mxu0 %v1371
    %1950 = vmatpush1.bf16.msra.mxu0 %v1370
    %1951 = vmatprep.subr.bf16.mxu0 %v1375
    %1952 = vmatpush1.bf16.msra.mxu0 %v1374
    %1953 = vmatprep.subr.bf16.mxu0 %v1379
    %1954 = vmatpush1.bf16.msra.mxu0 %v1378
    %1955 = vmatprep.mubr.bf16.mxu0 %v99
    %1956 = vmatmul.mubr.bf16.gmra.mrb[0].mxu0 %v98
    %v1957 = vpop.f32.mrb[0].mxu0
    %v1958 = vadd.f32 %v1917, %v1957
    %v1959 = vpop.f32.mrb[0].mxu0
    %v1960 = vadd.f32 %v1919, %v1959
    %v1961 = vpop.f32.mrb[0].mxu0
    %v1962 = vpop.f32.mrb[0].mxu0
    %1963 = vdwg.mxu0
    %v1964 = vld [vmem:[%s2] sm:$0xf]
    %v1966 = vlaneseq
    %v1967 = vshrl.u32 %v1966, 7
    %v1968 = vsub.s32 0, %v1967
    %v1969 = vrot.slane %v1964, %v1968
    %v1970 = vlaneseq
    %v1971 = vshrl.u32 %v1970, 7
    %v1972 = vsub.s32 1, %v1971
    %v1973 = vrot.slane %v1964, %v1972
    %v1974 = vlaneseq
    %v1975 = vshrl.u32 %v1974, 7
    %v1976 = vsub.s32 2, %v1975
    %v1977 = vrot.slane %v1964, %v1976
    %v1978 = vlaneseq
    %v1979 = vshrl.u32 %v1978, 7
    %v1980 = vsub.s32 3, %v1979
    %v1981 = vrot.slane %v1964, %v1980
    %v1986 = vmul.f32 %v1794, %v1969
    %v1987 = vmul.f32 %v1796, %v1973
    %v1988 = vmul.f32 %v1958, %v1977
    %v1989 = vmul.f32 %v1960, %v1981
    %v1990 = vld [vmem:[%s3] sm:$0xf]
    %v1992 = vlaneseq
    %v1993 = vshrl.u32 %v1992, 7
    %v1994 = vsub.s32 0, %v1993
    %v1995 = vrot.slane %v1990, %v1994
    %v1996 = vlaneseq
    %v1997 = vshrl.u32 %v1996, 7
    %v1998 = vsub.s32 1, %v1997
    %v1999 = vrot.slane %v1990, %v1998
    %v2000 = vlaneseq
    %v2001 = vshrl.u32 %v2000, 7
    %v2002 = vsub.s32 2, %v2001
    %v2003 = vrot.slane %v1990, %v2002
    %v2004 = vlaneseq
    %v2005 = vshrl.u32 %v2004, 7
    %v2006 = vsub.s32 3, %v2005
    %v2007 = vrot.slane %v1990, %v2006
    %v2012 = vadd.f32 %v1986, %v1995
    %v2013 = vadd.f32 %v1987, %v1999
    %v2014 = vadd.f32 %v1988, %v2003
    %v2015 = vadd.f32 %v1989, %v2007
    %v2016 = vmax.f32 %v2012, 0.0
    %v2017 = vmax.f32 %v2013, 0.0
    %v2018 = vmax.f32 %v2014, 0.0
    %v2019 = vmax.f32 %v2015, 0.0
    %v2020 = vpack.c.bf16 %v2016, %v2016
    %v2021 = vpack.c.bf16 %v2017, %v2017
    %v2022 = vpack.c.bf16 %v2018, %v2018
    %v2023 = vpack.c.bf16 %v2019, %v2019
    %v2024 = vld [vmem:[%s4] sm:$0xff]
    %v2025 = vld [vmem:[%s4 + $0x8] sm:$0xff]
    %v2026 = vld [vmem:[%s4 + $0x10] sm:$0xff]
    %v2027 = vld [vmem:[%s4 + $0x18] sm:$0xff]
    %v2028 = vld [vmem:[%s4 + $0x20] sm:$0xff]
    %v2029 = vld [vmem:[%s4 + $0x28] sm:$0xff]
    %v2030 = vld [vmem:[%s4 + $0x30] sm:$0xff]
    %v2031 = vld [vmem:[%s4 + $0x38] sm:$0xff]
    %v2032 = vld [vmem:[%s4 + $0x40] sm:$0xff]
    %v2033 = vld [vmem:[%s4 + $0x48] sm:$0xff]
    %v2034 = vld [vmem:[%s4 + $0x50] sm:$0xff]
    %v2035 = vld [vmem:[%s4 + $0x58] sm:$0xff]
    %v2036 = vld [vmem:[%s4 + $0x60] sm:$0xff]
    %v2037 = vld [vmem:[%s4 + $0x68] sm:$0xff]
    %v2038 = vld [vmem:[%s4 + $0x70] sm:$0xff]
    %v2039 = vld [vmem:[%s4 + $0x78] sm:$0xff]
    %v2040 = vld [vmem:[%s4 + $0x80] sm:$0xff]
    %v2041 = vld [vmem:[%s4 + $0x88] sm:$0xff]
    %v2042 = vld [vmem:[%s4 + $0x90] sm:$0xff]
    %v2043 = vld [vmem:[%s4 + $0x98] sm:$0xff]
    %v2044 = vld [vmem:[%s4 + $0xa0] sm:$0xff]
    %v2045 = vld [vmem:[%s4 + $0xa8] sm:$0xff]
    %v2046 = vld [vmem:[%s4 + $0xb0] sm:$0xff]
    %v2047 = vld [vmem:[%s4 + $0xb8] sm:$0xff]
    %v2048 = vld [vmem:[%s4 + $0xc0] sm:$0xff]
    %v2049 = vld [vmem:[%s4 + $0xc8] sm:$0xff]
    %v2050 = vld [vmem:[%s4 + $0xd0] sm:$0xff]
    %v2051 = vld [vmem:[%s4 + $0xd8] sm:$0xff]
    %v2052 = vld [vmem:[%s4 + $0xe0] sm:$0xff]
    %v2053 = vld [vmem:[%s4 + $0xe8] sm:$0xff]
    %v2054 = vld [vmem:[%s4 + $0xf0] sm:$0xff]
    %v2055 = vld [vmem:[%s4 + $0xf8] sm:$0xff]
    %v2056 = vld [vmem:[%s4 + $0x100] sm:$0xff]
    %v2057 = vld [vmem:[%s4 + $0x108] sm:$0xff]
    %v2058 = vld [vmem:[%s4 + $0x110] sm:$0xff]
    %v2059 = vld [vmem:[%s4 + $0x118] sm:$0xff]
    %v2060 = vld [vmem:[%s4 + $0x120] sm:$0xff]
    %v2061 = vld [vmem:[%s4 + $0x128] sm:$0xff]
    %v2062 = vld [vmem:[%s4 + $0x130] sm:$0xff]
    %v2063 = vld [vmem:[%s4 + $0x138] sm:$0xff]
    %v2064 = vld [vmem:[%s4 + $0x140] sm:$0xff]
    %v2065 = vld [vmem:[%s4 + $0x148] sm:$0xff]
    %v2066 = vld [vmem:[%s4 + $0x150] sm:$0xff]
    %v2067 = vld [vmem:[%s4 + $0x158] sm:$0xff]
    %v2068 = vld [vmem:[%s4 + $0x160] sm:$0xff]
    %v2069 = vld [vmem:[%s4 + $0x168] sm:$0xff]
    %v2070 = vld [vmem:[%s4 + $0x170] sm:$0xff]
    %v2071 = vld [vmem:[%s4 + $0x178] sm:$0xff]
    %v2072 = vld [vmem:[%s4 + $0x180] sm:$0xff]
    %v2073 = vld [vmem:[%s4 + $0x188] sm:$0xff]
    %v2074 = vld [vmem:[%s4 + $0x190] sm:$0xff]
    %v2075 = vld [vmem:[%s4 + $0x198] sm:$0xff]
    %v2076 = vld [vmem:[%s4 + $0x1a0] sm:$0xff]
    %v2077 = vld [vmem:[%s4 + $0x1a8] sm:$0xff]
    %v2078 = vld [vmem:[%s4 + $0x1b0] sm:$0xff]
    %v2079 = vld [vmem:[%s4 + $0x1b8] sm:$0xff]
    %v2080 = vld [vmem:[%s4 + $0x1c0] sm:$0xff]
    %v2081 = vld [vmem:[%s4 + $0x1c8] sm:$0xff]
    %v2082 = vld [vmem:[%s4 + $0x1d0] sm:$0xff]
    %v2083 = vld [vmem:[%s4 + $0x1d8] sm:$0xff]
    %v2084 = vld [vmem:[%s4 + $0x1e0] sm:$0xff]
    %v2085 = vld [vmem:[%s4 + $0x1e8] sm:$0xff]
    %v2086 = vld [vmem:[%s4 + $0x1f0] sm:$0xff]
    %v2087 = vld [vmem:[%s4 + $0x1f8] sm:$0xff]
    %v2152 = vunpack.c.l.b16 %v2024
    %v2153 = vunpack.c.h.b16 %v2024
    %v2154 = vunpack.c.l.b16 %v2025
    %v2155 = vunpack.c.h.b16 %v2025
    %v2156 = vunpack.c.l.b16 %v2026
    %v2157 = vunpack.c.h.b16 %v2026
    %v2158 = vunpack.c.l.b16 %v2027
    %v2159 = vunpack.c.h.b16 %v2027
    %v2160 = vunpack.c.l.b16 %v2028
    %v2161 = vunpack.c.h.b16 %v2028
    %v2162 = vunpack.c.l.b16 %v2029
    %v2163 = vunpack.c.h.b16 %v2029
    %v2164 = vunpack.c.l.b16 %v2030
    %v2165 = vunpack.c.h.b16 %v2030
    %v2166 = vunpack.c.l.b16 %v2031
    %v2167 = vunpack.c.h.b16 %v2031
    %v2168 = vunpack.c.l.b16 %v2032
    %v2169 = vunpack.c.h.b16 %v2032
    %v2170 = vunpack.c.l.b16 %v2033
    %v2171 = vunpack.c.h.b16 %v2033
    %v2172 = vunpack.c.l.b16 %v2034
    %v2173 = vunpack.c.h.b16 %v2034
    %v2174 = vunpack.c.l.b16 %v2035
    %v2175 = vunpack.c.h.b16 %v2035
    %v2176 = vunpack.c.l.b16 %v2036
    %v2177 = vunpack.c.h.b16 %v2036
    %v2178 = vunpack.c.l.b16 %v2037
    %v2179 = vunpack.c.h.b16 %v2037
    %v2180 = vunpack.c.l.b16 %v2038
    %v2181 = vunpack.c.h.b16 %v2038
    %v2182 = vunpack.c.l.b16 %v2039
    %v2183 = vunpack.c.h.b16 %v2039
    %v2184 = vunpack.c.l.b16 %v2040
    %v2185 = vunpack.c.h.b16 %v2040
    %v2186 = vunpack.c.l.b16 %v2041
    %v2187 = vunpack.c.h.b16 %v2041
    %v2188 = vunpack.c.l.b16 %v2042
    %v2189 = vunpack.c.h.b16 %v2042
    %v2190 = vunpack.c.l.b16 %v2043
    %v2191 = vunpack.c.h.b16 %v2043
    %v2192 = vunpack.c.l.b16 %v2044
    %v2193 = vunpack.c.h.b16 %v2044
    %v2194 = vunpack.c.l.b16 %v2045
    %v2195 = vunpack.c.h.b16 %v2045
    %v2196 = vunpack.c.l.b16 %v2046
    %v2197 = vunpack.c.h.b16 %v2046
    %v2198 = vunpack.c.l.b16 %v2047
    %v2199 = vunpack.c.h.b16 %v2047
    %v2200 = vunpack.c.l.b16 %v2048
    %v2201 = vunpack.c.h.b16 %v2048
    %v2202 = vunpack.c.l.b16 %v2049
    %v2203 = vunpack.c.h.b16 %v2049
    %v2204 = vunpack.c.l.b16 %v2050
    %v2205 = vunpack.c.h.b16 %v2050
    %v2206 = vunpack.c.l.b16 %v2051
    %v2207 = vunpack.c.h.b16 %v2051
    %v2208 = vunpack.c.l.b16 %v2052
    %v2209 = vunpack.c.h.b16 %v2052
    %v2210 = vunpack.c.l.b16 %v2053
    %v2211 = vunpack.c.h.b16 %v2053
    %v2212 = vunpack.c.l.b16 %v2054
    %v2213 = vunpack.c.h.b16 %v2054
    %v2214 = vunpack.c.l.b16 %v2055
    %v2215 = vunpack.c.h.b16 %v2055
    %v2216 = vunpack.c.l.b16 %v2056
    %v2217 = vunpack.c.h.b16 %v2056
    %v2218 = vunpack.c.l.b16 %v2057
    %v2219 = vunpack.c.h.b16 %v2057
    %v2220 = vunpack.c.l.b16 %v2058
    %v2221 = vunpack.c.h.b16 %v2058
    %v2222 = vunpack.c.l.b16 %v2059
    %v2223 = vunpack.c.h.b16 %v2059
    %v2224 = vunpack.c.l.b16 %v2060
    %v2225 = vunpack.c.h.b16 %v2060
    %v2226 = vunpack.c.l.b16 %v2061
    %v2227 = vunpack.c.h.b16 %v2061
    %v2228 = vunpack.c.l.b16 %v2062
    %v2229 = vunpack.c.h.b16 %v2062
    %v2230 = vunpack.c.l.b16 %v2063
    %v2231 = vunpack.c.h.b16 %v2063
    %v2232 = vunpack.c.l.b16 %v2064
    %v2233 = vunpack.c.h.b16 %v2064
    %v2234 = vunpack.c.l.b16 %v2065
    %v2235 = vunpack.c.h.b16 %v2065
    %v2236 = vunpack.c.l.b16 %v2066
    %v2237 = vunpack.c.h.b16 %v2066
    %v2238 = vunpack.c.l.b16 %v2067
    %v2239 = vunpack.c.h.b16 %v2067
    %v2240 = vunpack.c.l.b16 %v2068
    %v2241 = vunpack.c.h.b16 %v2068
    %v2242 = vunpack.c.l.b16 %v2069
    %v2243 = vunpack.c.h.b16 %v2069
    %v2244 = vunpack.c.l.b16 %v2070
    %v2245 = vunpack.c.h.b16 %v2070
    %v2246 = vunpack.c.l.b16 %v2071
    %v2247 = vunpack.c.h.b16 %v2071
    %v2248 = vunpack.c.l.b16 %v2072
    %v2249 = vunpack.c.h.b16 %v2072
    %v2250 = vunpack.c.l.b16 %v2073
    %v2251 = vunpack.c.h.b16 %v2073
    %v2252 = vunpack.c.l.b16 %v2074
    %v2253 = vunpack.c.h.b16 %v2074
    %v2254 = vunpack.c.l.b16 %v2075
    %v2255 = vunpack.c.h.b16 %v2075
    %v2256 = vunpack.c.l.b16 %v2076
    %v2257 = vunpack.c.h.b16 %v2076
    %v2258 = vunpack.c.l.b16 %v2077
    %v2259 = vunpack.c.h.b16 %v2077
    %v2260 = vunpack.c.l.b16 %v2078
    %v2261 = vunpack.c.h.b16 %v2078
    %v2262 = vunpack.c.l.b16 %v2079
    %v2263 = vunpack.c.h.b16 %v2079
    %v2264 = vunpack.c.l.b16 %v2080
    %v2265 = vunpack.c.h.b16 %v2080
    %v2266 = vunpack.c.l.b16 %v2081
    %v2267 = vunpack.c.h.b16 %v2081
    %v2268 = vunpack.c.l.b16 %v2082
    %v2269 = vunpack.c.h.b16 %v2082
    %v2270 = vunpack.c.l.b16 %v2083
    %v2271 = vunpack.c.h.b16 %v2083
    %v2272 = vunpack.c.l.b16 %v2084
    %v2273 = vunpack.c.h.b16 %v2084
    %v2274 = vunpack.c.l.b16 %v2085
    %v2275 = vunpack.c.h.b16 %v2085
    %v2276 = vunpack.c.l.b16 %v2086
    %v2277 = vunpack.c.h.b16 %v2086
    %v2278 = vunpack.c.l.b16 %v2087
    %v2279 = vunpack.c.h.b16 %v2087
    %v2280 = vpack.c.b16 %v2154, %v2152
    %v2281 = vpack.c.b16 %v2155, %v2153
    %v2282 = vpack.c.b16 %v2158, %v2156
    %v2283 = vpack.c.b16 %v2159, %v2157
    %v2284 = vpack.c.b16 %v2162, %v2160
    %v2285 = vpack.c.b16 %v2163, %v2161
    %v2286 = vpack.c.b16 %v2166, %v2164
    %v2287 = vpack.c.b16 %v2167, %v2165
    %v2288 = vpack.c.b16 %v2170, %v2168
    %v2289 = vpack.c.b16 %v2171, %v2169
    %v2290 = vpack.c.b16 %v2174, %v2172
    %v2291 = vpack.c.b16 %v2175, %v2173
    %v2292 = vpack.c.b16 %v2178, %v2176
    %v2293 = vpack.c.b16 %v2179, %v2177
    %v2294 = vpack.c.b16 %v2182, %v2180
    %v2295 = vpack.c.b16 %v2183, %v2181
    %v2296 = vpack.c.b16 %v2186, %v2184
    %v2297 = vpack.c.b16 %v2187, %v2185
    %v2298 = vpack.c.b16 %v2190, %v2188
    %v2299 = vpack.c.b16 %v2191, %v2189
    %v2300 = vpack.c.b16 %v2194, %v2192
    %v2301 = vpack.c.b16 %v2195, %v2193
    %v2302 = vpack.c.b16 %v2198, %v2196
    %v2303 = vpack.c.b16 %v2199, %v2197
    %v2304 = vpack.c.b16 %v2202, %v2200
    %v2305 = vpack.c.b16 %v2203, %v2201
    %v2306 = vpack.c.b16 %v2206, %v2204
    %v2307 = vpack.c.b16 %v2207, %v2205
    %v2308 = vpack.c.b16 %v2210, %v2208
    %v2309 = vpack.c.b16 %v2211, %v2209
    %v2310 = vpack.c.b16 %v2214, %v2212
    %v2311 = vpack.c.b16 %v2215, %v2213
    %v2312 = vpack.c.b16 %v2218, %v2216
    %v2313 = vpack.c.b16 %v2219, %v2217
    %v2314 = vpack.c.b16 %v2222, %v2220
    %v2315 = vpack.c.b16 %v2223, %v2221
    %v2316 = vpack.c.b16 %v2226, %v2224
    %v2317 = vpack.c.b16 %v2227, %v2225
    %v2318 = vpack.c.b16 %v2230, %v2228
    %v2319 = vpack.c.b16 %v2231, %v2229
    %v2320 = vpack.c.b16 %v2234, %v2232
    %v2321 = vpack.c.b16 %v2235, %v2233
    %v2322 = vpack.c.b16 %v2238, %v2236
    %v2323 = vpack.c.b16 %v2239, %v2237
    %v2324 = vpack.c.b16 %v2242, %v2240
    %v2325 = vpack.c.b16 %v2243, %v2241
    %v2326 = vpack.c.b16 %v2246, %v2244
    %v2327 = vpack.c.b16 %v2247, %v2245
    %v2328 = vpack.c.b16 %v2250, %v2248
    %v2329 = vpack.c.b16 %v2251, %v2249
    %v2330 = vpack.c.b16 %v2254, %v2252
    %v2331 = vpack.c.b16 %v2255, %v2253
    %v2332 = vpack.c.b16 %v2258, %v2256
    %v2333 = vpack.c.b16 %v2259, %v2257
    %v2334 = vpack.c.b16 %v2262, %v2260
    %v2335 = vpack.c.b16 %v2263, %v2261
    %v2336 = vpack.c.b16 %v2266, %v2264
    %v2337 = vpack.c.b16 %v2267, %v2265
    %v2338 = vpack.c.b16 %v2270, %v2268
    %v2339 = vpack.c.b16 %v2271, %v2269
    %v2340 = vpack.c.b16 %v2274, %v2272
    %v2341 = vpack.c.b16 %v2275, %v2273
    %v2342 = vpack.c.b16 %v2278, %v2276
    %v2343 = vpack.c.b16 %v2279, %v2277
    %2408 = vmatprep.subr.bf16.mxu0 %v2281
    %2409 = vmatpush1.bf16.msra.mxu0 %v2280
    %2410 = vmatprep.subr.bf16.mxu0 %v2283
    %2411 = vmatpush1.bf16.msra.mxu0 %v2282
    %2412 = vmatprep.subr.bf16.mxu0 %v2285
    %2413 = vmatpush1.bf16.msra.mxu0 %v2284
    %2414 = vmatprep.subr.bf16.mxu0 %v2287
    %2415 = vmatpush1.bf16.msra.mxu0 %v2286
    %2416 = vmatprep.subr.bf16.mxu0 %v2289
    %2417 = vmatpush1.bf16.msra.mxu0 %v2288
    %2418 = vmatprep.subr.bf16.mxu0 %v2291
    %2419 = vmatpush1.bf16.msra.mxu0 %v2290
    %2420 = vmatprep.subr.bf16.mxu0 %v2293
    %2421 = vmatpush1.bf16.msra.mxu0 %v2292
    %2422 = vmatprep.subr.bf16.mxu0 %v2295
    %2423 = vmatpush1.bf16.msra.mxu0 %v2294
    %2424 = vmatprep.subr.bf16.mxu0 %v2297
    %2425 = vmatpush1.bf16.msra.mxu0 %v2296
    %2426 = vmatprep.subr.bf16.mxu0 %v2299
    %2427 = vmatpush1.bf16.msra.mxu0 %v2298
    %2428 = vmatprep.subr.bf16.mxu0 %v2301
    %2429 = vmatpush1.bf16.msra.mxu0 %v2300
    %2430 = vmatprep.subr.bf16.mxu0 %v2303
    %2431 = vmatpush1.bf16.msra.mxu0 %v2302
    %2432 = vmatprep.subr.bf16.mxu0 %v2305
    %2433 = vmatpush1.bf16.msra.mxu0 %v2304
    %2434 = vmatprep.subr.bf16.mxu0 %v2307
    %2435 = vmatpush1.bf16.msra.mxu0 %v2306
    %2436 = vmatprep.subr.bf16.mxu0 %v2309
    %2437 = vmatpush1.bf16.msra.mxu0 %v2308
    %2438 = vmatprep.subr.bf16.mxu0 %v2311
    %2439 = vmatpush1.bf16.msra.mxu0 %v2310
    %2440 = vmatprep.mubr.bf16.mxu0 %v2021
    %2441 = vmatmul.mubr.bf16.gmra.mrb[0].mxu0 %v2020
    %v2442 = vpop.f32.mrb[0].mxu0
    %v2443 = vadd.f32 0.0, %v2442
    %v2444 = vpop.f32.mrb[0].mxu0
    %v2445 = vadd.f32 0.0, %v2444
    %v2446 = vpop.f32.mrb[0].mxu0
    %v2447 = vpop.f32.mrb[0].mxu0
    %2448 = vdwg.mxu0
    %2449 = vmatprep.subr.bf16.mxu0 %v2313
    %2450 = vmatpush1.bf16.msra.mxu0 %v2312
    %2451 = vmatprep.subr.bf16.mxu0 %v2315
    %2452 = vmatpush1.bf16.msra.mxu0 %v2314
    %2453 = vmatprep.subr.bf16.mxu0 %v2317
    %2454 = vmatpush1.bf16.msra.mxu0 %v2316
    %2455 = vmatprep.subr.bf16.mxu0 %v2319
    %2456 = vmatpush1.bf16.msra.mxu0 %v2318
    %2457 = vmatprep.subr.bf16.mxu0 %v2321
    %2458 = vmatpush1.bf16.msra.mxu0 %v2320
    %2459 = vmatprep.subr.bf16.mxu0 %v2323
    %2460 = vmatpush1.bf16.msra.mxu0 %v2322
    %2461 = vmatprep.subr.bf16.mxu0 %v2325
    %2462 = vmatpush1.bf16.msra.mxu0 %v2324
    %2463 = vmatprep.subr.bf16.mxu0 %v2327
    %2464 = vmatpush1.bf16.msra.mxu0 %v2326
    %2465 = vmatprep.subr.bf16.mxu0 %v2329
    %2466 = vmatpush1.bf16.msra.mxu0 %v2328
    %2467 = vmatprep.subr.bf16.mxu0 %v2331
    %2468 = vmatpush1.bf16.msra.mxu0 %v2330
    %2469 = vmatprep.subr.bf16.mxu0 %v2333
    %2470 = vmatpush1.bf16.msra.mxu0 %v2332
    %2471 = vmatprep.subr.bf16.mxu0 %v2335
    %2472 = vmatpush1.bf16.msra.mxu0 %v2334
    %2473 = vmatprep.subr.bf16.mxu0 %v2337
    %2474 = vmatpush1.bf16.msra.mxu0 %v2336
    %2475 = vmatprep.subr.bf16.mxu0 %v2339
    %2476 = vmatpush1.bf16.msra.mxu0 %v2338
    %2477 = vmatprep.subr.bf16.mxu0 %v2341
    %2478 = vmatpush1.bf16.msra.mxu0 %v2340
    %2479 = vmatprep.subr.bf16.mxu0 %v2343
    %2480 = vmatpush1.bf16.msra.mxu0 %v2342
    %2481 = vmatprep.mubr.bf16.mxu0 %v2023
    %2482 = vmatmul.mubr.bf16.gmra.mrb[0].mxu0 %v2022
    %v2483 = vpop.f32.mrb[0].mxu0
    %v2484 = vadd.f32 %v2443, %v2483
    %v2485 = vpop.f32.mrb[0].mxu0
    %v2486 = vadd.f32 %v2445, %v2485
    %v2487 = vpop.f32.mrb[0].mxu0
    %v2488 = vpop.f32.mrb[0].mxu0
    %2489 = vdwg.mxu0
    %v2490 = vld [vmem:[%s5] sm:$0x3]
    %v2492 = vlaneseq
    %v2493 = vshrl.u32 %v2492, 7
    %v2494 = vsub.s32 0, %v2493
    %v2495 = vrot.slane %v2490, %v2494
    %v2496 = vlaneseq
    %v2497 = vshrl.u32 %v2496, 7
    %v2498 = vsub.s32 1, %v2497
    %v2499 = vrot.slane %v2490, %v2498
    %v2502 = vmul.f32 %v2484, %v2495
    %v2503 = vmul.f32 %v2486, %v2499
    %v2504 = vld [vmem:[%s6] sm:$0x3]
    %v2506 = vlaneseq
    %v2507 = vshrl.u32 %v2506, 7
    %v2508 = vsub.s32 0, %v2507
    %v2509 = vrot.slane %v2504, %v2508
    %v2510 = vlaneseq
    %v2511 = vshrl.u32 %v2510, 7
    %v2512 = vsub.s32 1, %v2511
    %v2513 = vrot.slane %v2504, %v2512
    %v2516 = vadd.f32 %v2502, %v2509
    %v2517 = vadd.f32 %v2503, %v2513
    %v2518 = vmax.f32 %v2516, 0.0
    %v2519 = vmax.f32 %v2517, 0.0
    %v2520 = vld [vmem:[%s7] sm:$0xff]
    %v2521 = vld [vmem:[%s7 + $0x8] sm:$0xff]
    %v2522 = vld [vmem:[%s7 + $0x10] sm:$0xff]
    %v2523 = vld [vmem:[%s7 + $0x18] sm:$0xff]
    %v2524 = vld [vmem:[%s7 + $0x20] sm:$0xff]
    %v2525 = vld [vmem:[%s7 + $0x28] sm:$0xff]
    %v2526 = vld [vmem:[%s7 + $0x30] sm:$0xff]
    %v2527 = vld [vmem:[%s7 + $0x38] sm:$0xff]
    %v2528 = vld [vmem:[%s7 + $0x40] sm:$0xff]
    %v2529 = vld [vmem:[%s7 + $0x48] sm:$0xff]
    %v2530 = vld [vmem:[%s7 + $0x50] sm:$0xff]
    %v2531 = vld [vmem:[%s7 + $0x58] sm:$0xff]
    %v2532 = vld [vmem:[%s7 + $0x60] sm:$0xff]
    %v2533 = vld [vmem:[%s7 + $0x68] sm:$0xff]
    %v2534 = vld [vmem:[%s7 + $0x70] sm:$0xff]
    %v2535 = vld [vmem:[%s7 + $0x78] sm:$0xff]
    %v2536 = vld [vmem:[%s7 + $0x80] sm:$0xff]
    %v2537 = vld [vmem:[%s7 + $0x88] sm:$0xff]
    %v2538 = vld [vmem:[%s7 + $0x90] sm:$0xff]
    %v2539 = vld [vmem:[%s7 + $0x98] sm:$0xff]
    %v2540 = vld [vmem:[%s7 + $0xa0] sm:$0xff]
    %v2541 = vld [vmem:[%s7 + $0xa8] sm:$0xff]
    %v2542 = vld [vmem:[%s7 + $0xb0] sm:$0xff]
    %v2543 = vld [vmem:[%s7 + $0xb8] sm:$0xff]
    %v2544 = vld [vmem:[%s7 + $0xc0] sm:$0xff]
    %v2545 = vld [vmem:[%s7 + $0xc8] sm:$0xff]
    %v2546 = vld [vmem:[%s7 + $0xd0] sm:$0xff]
    %v2547 = vld [vmem:[%s7 + $0xd8] sm:$0xff]
    %v2548 = vld [vmem:[%s7 + $0xe0] sm:$0xff]
    %v2549 = vld [vmem:[%s7 + $0xe8] sm:$0xff]
    %v2550 = vld [vmem:[%s7 + $0xf0] sm:$0xff]
    %v2551 = vld [vmem:[%s7 + $0xf8] sm:$0xff]
    %v2552 = vld [vmem:[%s8] sm:$0x1]
    %v2554 = vlaneseq
    %v2555 = vshrl.u32 %v2554, 7
    %v2556 = vsub.s32 0, %v2555
    %v2557 = vrot.slane %v2552, %v2556
    %2559 = vmatprep.subr.mxu0 0.0
    %2560 = vmatpush1.msra.mxu0 %v2520
    %2561 = vmatprep.subr.mxu0 0.0
    %2562 = vmatpush1.msra.mxu0 %v2521
    %2563 = vmatprep.subr.mxu0 0.0
    %2564 = vmatpush1.msra.mxu0 %v2522
    %2565 = vmatprep.subr.mxu0 0.0
    %2566 = vmatpush1.msra.mxu0 %v2523
    %2567 = vmatprep.subr.mxu0 0.0
    %2568 = vmatpush1.msra.mxu0 %v2524
    %2569 = vmatprep.subr.mxu0 0.0
    %2570 = vmatpush1.msra.mxu0 %v2525
    %2571 = vmatprep.subr.mxu0 0.0
    %2572 = vmatpush1.msra.mxu0 %v2526
    %2573 = vmatprep.subr.mxu0 0.0
    %2574 = vmatpush1.msra.mxu0 %v2527
    %2575 = vmatprep.subr.mxu0 0.0
    %2576 = vmatpush1.msra.mxu0 %v2528
    %2577 = vmatprep.subr.mxu0 0.0
    %2578 = vmatpush1.msra.mxu0 %v2529
    %2579 = vmatprep.subr.mxu0 0.0
    %2580 = vmatpush1.msra.mxu0 %v2530
    %2581 = vmatprep.subr.mxu0 0.0
    %2582 = vmatpush1.msra.mxu0 %v2531
    %2583 = vmatprep.subr.mxu0 0.0
    %2584 = vmatpush1.msra.mxu0 %v2532
    %2585 = vmatprep.subr.mxu0 0.0
    %2586 = vmatpush1.msra.mxu0 %v2533
    %2587 = vmatprep.subr.mxu0 0.0
    %2588 = vmatpush1.msra.mxu0 %v2534
    %2589 = vmatprep.subr.mxu0 0.0
    %2590 = vmatpush1.msra.mxu0 %v2535
    %2591 = vmatprep.subr.mxu0 0.0
    %2592 = vmatpush1.msra.mxu0 %v2536
    %2593 = vmatprep.subr.mxu0 0.0
    %2594 = vmatpush1.msra.mxu0 %v2537
    %2595 = vmatprep.subr.mxu0 0.0
    %2596 = vmatpush1.msra.mxu0 %v2538
    %2597 = vmatprep.subr.mxu0 0.0
    %2598 = vmatpush1.msra.mxu0 %v2539
    %2599 = vmatprep.subr.mxu0 0.0
    %2600 = vmatpush1.msra.mxu0 %v2540
    %2601 = vmatprep.subr.mxu0 0.0
    %2602 = vmatpush1.msra.mxu0 %v2541
    %2603 = vmatprep.subr.mxu0 0.0
    %2604 = vmatpush1.msra.mxu0 %v2542
    %2605 = vmatprep.subr.mxu0 0.0
    %2606 = vmatpush1.msra.mxu0 %v2543
    %2607 = vmatprep.subr.mxu0 0.0
    %2608 = vmatpush1.msra.mxu0 %v2544
    %2609 = vmatprep.subr.mxu0 0.0
    %2610 = vmatpush1.msra.mxu0 %v2545
    %2611 = vmatprep.subr.mxu0 0.0
    %2612 = vmatpush1.msra.mxu0 %v2546
    %2613 = vmatprep.subr.mxu0 0.0
    %2614 = vmatpush1.msra.mxu0 %v2547
    %2615 = vmatprep.subr.mxu0 0.0
    %2616 = vmatpush1.msra.mxu0 %v2548
    %2617 = vmatprep.subr.mxu0 0.0
    %2618 = vmatpush1.msra.mxu0 %v2549
    %2619 = vmatprep.subr.mxu0 0.0
    %2620 = vmatpush1.msra.mxu0 %v2550
    %2621 = vmatprep.subr.mxu0 0.0
    %2622 = vmatpush1.msra.mxu0 %v2551
    %2623 = vmatprep.mubr.f32.mxu0 %v2519
    %2624 = vmatmul.mubr.f32.gmra.mrb[0].mxu0 %v2518
    %v2625 = vpop.f32.mrb[0].mxu0
    %v2626 = vadd.f32 %v2557, %v2625
    %v2627 = vpop.f32.mrb[0].mxu0
    %2628 = vdwg.mxu0
    %vm2629 = vcmask 66560
    %2630 = vst.msk [vmem:[%s9] sm:$0x3] %vm2629, %v2626
    // Predicated region
    $region42: #{pointnet_cls_forward.5} parent=1 // pred_check
      _
    $region43: #{pointnet_cls_forward.5} parent=1 // pred_check_branch
      %2632 = sbr.rel (0) target = $region45
    $region44: #{pointnet_cls_forward.5} parent=1 // pred_region
      _
    $region45: #{pointnet_cls_forward.5} parent=1 // pred_fallthru
      _
    // Predicated region
    $region46: #{pointnet_cls_forward.5} parent=1 // pred_check
      _
    $region47: #{pointnet_cls_forward.5} parent=1 // pred_check_branch
      %2634 = sbr.rel (0) target = $region49
    $region48: #{pointnet_cls_forward.5} parent=1 // pred_region
      _
    $region49: #{pointnet_cls_forward.5} parent=1 // pred_fallthru
      _
    %2635 = vsyncpa [#allocation3], 1

// kernel: pointnet_cls_forward.6
$region0: #{pointnet_cls_forward.6}
  #allocation0 [shape = 'u32[]', space=smem, size = 0x4, offset = 0x4, fixed_abs, tag = 'smem constant byte address 0x4 - core index']
  #allocation1 [shape = 'u32[144,128]{1,0:T(1,128)}', space=vmem, size = 0x12000, scoped, tag = 'internal scratch']
  #allocation2 [shape = 'f32[1,1024]{1,0:T(1,128)}', space=vmem, size = 0x1000, scoped, tag = 'scratch operand']
  %s0 = inlined_call_operand.vmem [shape: f32[2,256,3], index: 0, kind: input, shape index: {}]
  %s1 = inlined_call_operand.vmem [shape: f32[2,3,64], index: 1, kind: input, shape index: {}]
  %s2 = inlined_call_operand.vmem [shape: f32[1,64], index: 2, kind: input, shape index: {}]
  %s3 = inlined_call_operand.vmem [shape: f32[1,64], index: 3, kind: input, shape index: {}]
  %s4 = inlined_call_operand.vmem [shape: bf16[64,128], index: 4, kind: input, shape index: {}]
  %s5 = inlined_call_operand.vmem [shape: f32[1,128], index: 5, kind: input, shape index: {}]
  %s6 = inlined_call_operand.vmem [shape: f32[1,128], index: 6, kind: input, shape index: {}]
  %s7 = inlined_call_operand.vmem [shape: bf16[128,1024], index: 7, kind: input, shape index: {}]
  %s8 = inlined_call_operand.vmem [shape: f32[1,1024], index: 8, kind: input, shape index: {}]
  %s9 = inlined_call_operand.vmem [shape: f32[1,1024], index: 9, kind: input, shape index: {}]
  %s10 = inlined_call_operand.vmem [shape: f32[2,1,1024], index: 10, kind: output, shape index: {}]
  %s11 = sld [smem:[#allocation0]]
  $region81: #{pointnet_cls_forward.6} parent=0
    _
  %s13 = ssub.s32 1, %s11
  %s14 = scalar_select 0, %s13, %s11
  loop: start=0, step=1, limit=4
  $region2: #{pointnet_cls_forward.6} parent=0 // loop_pre_header
    _
  $region3: #{pointnet_cls_forward.6} parent=0 // loop_header
    %s16 = sphi 0, %s20
    %p17 = scmp.ge.s32.totalorder %s16, 4
    %s23 = sphi 0, %s35
    %s24 = sphi 0, %s31
    %s25 = sphi 0, %s23
    %s26 = sphi 0, %s24
    %s27 = sphi 0, %s25
    %s28 = sphi 0, %s26
    %s40 = sphi 0, %s42
    %s43 = sphi 0, %s40
    %s44 = sphi 0, %s43
    %s60 = sphi 0, %s44
    %s66 = sphi 0, %s68
    %s69 = sphi 0, %s66
    %s70 = sphi 0, %s69
    %s86 = sphi 0, %s70
    %s90 = sphi 0, %s90
    %s92 = sphi 0, %s90
    %s93 = sphi 0, %s92
    %s107 = sphi 0, %s93
    %s111 = sphi 0, %s111
    %s113 = sphi 0, %s111
    %s114 = sphi 0, %s113
    %s128 = sphi 0, %s114
    %s132 = sphi 0, %s132
    %s134 = sphi 0, %s132
    %s135 = sphi 0, %s134
    %s149 = sphi 0, %s135
    %s153 = sphi 0, %s153
    %s155 = sphi 0, %s153
    %s156 = sphi 0, %s155
    %s170 = sphi 0, %s156
    %s174 = sphi 0, %s174
    %s176 = sphi 0, %s174
    %s177 = sphi 0, %s176
    %s191 = sphi 0, %s177
    %s195 = sphi 0, %s195
    %s197 = sphi 0, %s195
    %s198 = sphi 0, %s197
    %s212 = sphi 0, %s198
    %s216 = sphi 0, %s216
    %s218 = sphi 0, %s216
    %s219 = sphi 0, %s218
    %s233 = sphi 0, %s219
    %s237 = sphi 0, %s237
    %s239 = sphi 0, %s237
    %s240 = sphi 0, %s239
    %s254 = sphi 0, %s240
    %s260 = sphi 0, %s262
    %s263 = sphi 0, %s260
    %s264 = sphi 0, %s263
    %s280 = sphi 0, %s264
  $region4: #{pointnet_cls_forward.6} parent=0 // loop_header_branch
    %19 = sbr.rel (%p17) target = $region8
  $region5: #{pointnet_cls_forward.6} parent=0 // loop_body
    %s21 = ssub.s32 %s16, 1
    %s22 = ssub.s32 %s16, 2
    %s29 = sadd.s32 1, %s24
    %p30 = scmp.ge.s32.totalorder %s29, 1
    %s31 = scalar_select %p30, 0, %s29
    %s32 = sadd.s32 1, %s23
    %s33 = scalar_select %p30, %s32, %s23
    %p34 = scmp.ge.s32.totalorder %s33, 2
    %s35 = scalar_select %p34, 0, %s33
    %s36 = ssub.s32 %s23, %s35
    %s37 = ssub.s32 %s24, %s31
    %s38 = sor.u32 %s36, %s37
    %p39 = scmp.eq.s32.totalorder %s38, 0
    %s41 = sadd.s32 %s40, 1
    %s42 = scalar_select %p39, %s40, %s41
    %p45 = pneg %p39
    %p46 = scmp.eq.s32.totalorder %s16, 1
    %p47 = por %p45, %p46
    %p48 = scmp.ne.s32.totalorder %s40, %s43
    %p49 = scmp.eq.s32.totalorder %s16, 0
    %p50 = por %p48, %p49
    %p51 = scmp.ne.s32.totalorder %s40, %s43
    %p52 = scmp.eq.s32.totalorder %s21, 1
    %p53 = por %p51, %p52
    %p54 = scmp.ne.s32.totalorder %s43, %s44
    %p55 = scmp.eq.s32.totalorder %s21, 0
    %p56 = por %p54, %p55
    %p57 = scmp.ne.s32.totalorder %s43, %s44
    %p58 = scmp.eq.s32.totalorder %s22, 1
    %p59 = por %p57, %p58
    %p61 = scmp.ne.s32.totalorder %s44, %s60
    %p62 = scmp.eq.s32.totalorder %s22, 0
    %p63 = por %p61, %p62
    %s64 = ssub.s32 %s23, %s35
    %p65 = scmp.eq.s32.totalorder %s64, 0
    %s67 = sadd.s32 %s66, 1
    %s68 = scalar_select %p65, %s66, %s67
    %p71 = pneg %p65
    %p72 = scmp.eq.s32.totalorder %s16, 1
    %p73 = por %p71, %p72
    %p74 = scmp.ne.s32.totalorder %s66, %s69
    %p75 = scmp.eq.s32.totalorder %s16, 0
    %p76 = por %p74, %p75
    %p77 = scmp.ne.s32.totalorder %s66, %s69
    %p78 = scmp.eq.s32.totalorder %s21, 1
    %p79 = por %p77, %p78
    %p80 = scmp.ne.s32.totalorder %s69, %s70
    %p81 = scmp.eq.s32.totalorder %s21, 0
    %p82 = por %p80, %p81
    %p83 = scmp.ne.s32.totalorder %s69, %s70
    %p84 = scmp.eq.s32.totalorder %s22, 1
    %p85 = por %p83, %p84
    %p87 = scmp.ne.s32.totalorder %s70, %s86
    %p88 = scmp.eq.s32.totalorder %s22, 0
    %p89 = por %p87, %p88
    %s91 = sadd.s32 %s90, 1
    %p94 = scmp.eq.s32.totalorder %s16, 1
    %p95 = scmp.ne.s32.totalorder %s90, %s92
    %p96 = scmp.eq.s32.totalorder %s16, 0
    %p97 = por %p95, %p96
    %p98 = scmp.ne.s32.totalorder %s90, %s92
    %p99 = scmp.eq.s32.totalorder %s21, 1
    %p100 = por %p98, %p99
    %p101 = scmp.ne.s32.totalorder %s92, %s93
    %p102 = scmp.eq.s32.totalorder %s21, 0
    %p103 = por %p101, %p102
    %p104 = scmp.ne.s32.totalorder %s92, %s93
    %p105 = scmp.eq.s32.totalorder %s22, 1
    %p106 = por %p104, %p105
    %p108 = scmp.ne.s32.totalorder %s93, %s107
    %p109 = scmp.eq.s32.totalorder %s22, 0
    %p110 = por %p108, %p109
    %s112 = sadd.s32 %s111, 1
    %p115 = scmp.eq.s32.totalorder %s16, 1
    %p116 = scmp.ne.s32.totalorder %s111, %s113
    %p117 = scmp.eq.s32.totalorder %s16, 0
    %p118 = por %p116, %p117
    %p119 = scmp.ne.s32.totalorder %s111, %s113
    %p120 = scmp.eq.s32.totalorder %s21, 1
    %p121 = por %p119, %p120
    %p122 = scmp.ne.s32.totalorder %s113, %s114
    %p123 = scmp.eq.s32.totalorder %s21, 0
    %p124 = por %p122, %p123
    %p125 = scmp.ne.s32.totalorder %s113, %s114
    %p126 = scmp.eq.s32.totalorder %s22, 1
    %p127 = por %p125, %p126
    %p129 = scmp.ne.s32.totalorder %s114, %s128
    %p130 = scmp.eq.s32.totalorder %s22, 0
    %p131 = por %p129, %p130
    %s133 = sadd.s32 %s132, 1
    %p136 = scmp.eq.s32.totalorder %s16, 1
    %p137 = scmp.ne.s32.totalorder %s132, %s134
    %p138 = scmp.eq.s32.totalorder %s16, 0
    %p139 = por %p137, %p138
    %p140 = scmp.ne.s32.totalorder %s132, %s134
    %p141 = scmp.eq.s32.totalorder %s21, 1
    %p142 = por %p140, %p141
    %p143 = scmp.ne.s32.totalorder %s134, %s135
    %p144 = scmp.eq.s32.totalorder %s21, 0
    %p145 = por %p143, %p144
    %p146 = scmp.ne.s32.totalorder %s134, %s135
    %p147 = scmp.eq.s32.totalorder %s22, 1
    %p148 = por %p146, %p147
    %p150 = scmp.ne.s32.totalorder %s135, %s149
    %p151 = scmp.eq.s32.totalorder %s22, 0
    %p152 = por %p150, %p151
    %s154 = sadd.s32 %s153, 1
    %p157 = scmp.eq.s32.totalorder %s16, 1
    %p158 = scmp.ne.s32.totalorder %s153, %s155
    %p159 = scmp.eq.s32.totalorder %s16, 0
    %p160 = por %p158, %p159
    %p161 = scmp.ne.s32.totalorder %s153, %s155
    %p162 = scmp.eq.s32.totalorder %s21, 1
    %p163 = por %p161, %p162
    %p164 = scmp.ne.s32.totalorder %s155, %s156
    %p165 = scmp.eq.s32.totalorder %s21, 0
    %p166 = por %p164, %p165
    %p167 = scmp.ne.s32.totalorder %s155, %s156
    %p168 = scmp.eq.s32.totalorder %s22, 1
    %p169 = por %p167, %p168
    %p171 = scmp.ne.s32.totalorder %s156, %s170
    %p172 = scmp.eq.s32.totalorder %s22, 0
    %p173 = por %p171, %p172
    %s175 = sadd.s32 %s174, 1
    %p178 = scmp.eq.s32.totalorder %s16, 1
    %p179 = scmp.ne.s32.totalorder %s174, %s176
    %p180 = scmp.eq.s32.totalorder %s16, 0
    %p181 = por %p179, %p180
    %p182 = scmp.ne.s32.totalorder %s174, %s176
    %p183 = scmp.eq.s32.totalorder %s21, 1
    %p184 = por %p182, %p183
    %p185 = scmp.ne.s32.totalorder %s176, %s177
    %p186 = scmp.eq.s32.totalorder %s21, 0
    %p187 = por %p185, %p186
    %p188 = scmp.ne.s32.totalorder %s176, %s177
    %p189 = scmp.eq.s32.totalorder %s22, 1
    %p190 = por %p188, %p189
    %p192 = scmp.ne.s32.totalorder %s177, %s191
    %p193 = scmp.eq.s32.totalorder %s22, 0
    %p194 = por %p192, %p193
    %s196 = sadd.s32 %s195, 1
    %p199 = scmp.eq.s32.totalorder %s16, 1
    %p200 = scmp.ne.s32.totalorder %s195, %s197
    %p201 = scmp.eq.s32.totalorder %s16, 0
    %p202 = por %p200, %p201
    %p203 = scmp.ne.s32.totalorder %s195, %s197
    %p204 = scmp.eq.s32.totalorder %s21, 1
    %p205 = por %p203, %p204
    %p206 = scmp.ne.s32.totalorder %s197, %s198
    %p207 = scmp.eq.s32.totalorder %s21, 0
    %p208 = por %p206, %p207
    %p209 = scmp.ne.s32.totalorder %s197, %s198
    %p210 = scmp.eq.s32.totalorder %s22, 1
    %p211 = por %p209, %p210
    %p213 = scmp.ne.s32.totalorder %s198, %s212
    %p214 = scmp.eq.s32.totalorder %s22, 0
    %p215 = por %p213, %p214
    %s217 = sadd.s32 %s216, 1
    %p220 = scmp.eq.s32.totalorder %s16, 1
    %p221 = scmp.ne.s32.totalorder %s216, %s218
    %p222 = scmp.eq.s32.totalorder %s16, 0
    %p223 = por %p221, %p222
    %p224 = scmp.ne.s32.totalorder %s216, %s218
    %p225 = scmp.eq.s32.totalorder %s21, 1
    %p226 = por %p224, %p225
    %p227 = scmp.ne.s32.totalorder %s218, %s219
    %p228 = scmp.eq.s32.totalorder %s21, 0
    %p229 = por %p227, %p228
    %p230 = scmp.ne.s32.totalorder %s218, %s219
    %p231 = scmp.eq.s32.totalorder %s22, 1
    %p232 = por %p230, %p231
    %p234 = scmp.ne.s32.totalorder %s219, %s233
    %p235 = scmp.eq.s32.totalorder %s22, 0
    %p236 = por %p234, %p235
    %s238 = sadd.s32 %s237, 1
    %p241 = scmp.eq.s32.totalorder %s16, 1
    %p242 = scmp.ne.s32.totalorder %s237, %s239
    %p243 = scmp.eq.s32.totalorder %s16, 0
    %p244 = por %p242, %p243
    %p245 = scmp.ne.s32.totalorder %s237, %s239
    %p246 = scmp.eq.s32.totalorder %s21, 1
    %p247 = por %p245, %p246
    %p248 = scmp.ne.s32.totalorder %s239, %s240
    %p249 = scmp.eq.s32.totalorder %s21, 0
    %p250 = por %p248, %p249
    %p251 = scmp.ne.s32.totalorder %s239, %s240
    %p252 = scmp.eq.s32.totalorder %s22, 1
    %p253 = por %p251, %p252
    %p255 = scmp.ne.s32.totalorder %s240, %s254
    %p256 = scmp.eq.s32.totalorder %s22, 0
    %p257 = por %p255, %p256
    %s258 = ssub.s32 %s23, %s35
    %p259 = scmp.eq.s32.totalorder %s258, 0
    %s261 = sadd.s32 %s260, 1
    %s262 = scalar_select %p259, %s260, %s261
    %p265 = pneg %p259
    %p266 = scmp.eq.s32.totalorder %s16, 1
    %p267 = por %p265, %p266
    %p268 = scmp.ne.s32.totalorder %s260, %s263
    %p269 = scmp.eq.s32.totalorder %s16, 0
    %p270 = por %p268, %p269
    %p271 = scmp.ne.s32.totalorder %s260, %s263
    %p272 = scmp.eq.s32.totalorder %s21, 1
    %p273 = por %p271, %p272
    %p274 = scmp.ne.s32.totalorder %s263, %s264
    %p275 = scmp.eq.s32.totalorder %s21, 0
    %p276 = por %p274, %p275
    %p277 = scmp.ne.s32.totalorder %s263, %s264
    %p278 = scmp.eq.s32.totalorder %s22, 1
    %p279 = por %p277, %p278
    %p281 = scmp.ne.s32.totalorder %s264, %s280
    %p282 = scmp.eq.s32.totalorder %s22, 0
    %p283 = por %p281, %p282
    %p284 = scmp.le.s32.totalorder 1, %s16
    %p285 = scmp.lt.s32.totalorder %s16, 3
    %p286 = pnand %p284, %p285
    %p287 = pneg %p286
    // Predicated region
    $region9: #{pointnet_cls_forward.6} parent=5 // pred_check
      _
    $region10: #{pointnet_cls_forward.6} parent=5 // pred_check_branch
      %289 = sbr.rel (%p286) target = $region12
    $region11: #{pointnet_cls_forward.6} parent=5 // pred_region
      %s290 = ssub.s32 %s16, 1
      // Predicated region
      $region13: #{pointnet_cls_forward.6} parent=11 // pred_check
        %p291 = pneg %p103
      $region14: #{pointnet_cls_forward.6} parent=11 // pred_check_branch
        %293 = sbr.rel (%p291) target = $region16
      $region15: #{pointnet_cls_forward.6} parent=11 // pred_region
        _
      $region16: #{pointnet_cls_forward.6} parent=11 // pred_fallthru
        _
      // Predicated region
      $region17: #{pointnet_cls_forward.6} parent=11 // pred_check
        %p294 = pneg %p124
      $region18: #{pointnet_cls_forward.6} parent=11 // pred_check_branch
        %296 = sbr.rel (%p294) target = $region20
      $region19: #{pointnet_cls_forward.6} parent=11 // pred_region
        _
      $region20: #{pointnet_cls_forward.6} parent=11 // pred_fallthru
        _
      // Predicated region
      $region21: #{pointnet_cls_forward.6} parent=11 // pred_check
        %p297 = pneg %p145
      $region22: #{pointnet_cls_forward.6} parent=11 // pred_check_branch
        %299 = sbr.rel (%p297) target = $region24
      $region23: #{pointnet_cls_forward.6} parent=11 // pred_region
        _
      $region24: #{pointnet_cls_forward.6} parent=11 // pred_fallthru
        _
      // Predicated region
      $region25: #{pointnet_cls_forward.6} parent=11 // pred_check
        %p300 = pneg %p166
      $region26: #{pointnet_cls_forward.6} parent=11 // pred_check_branch
        %302 = sbr.rel (%p300) target = $region28
      $region27: #{pointnet_cls_forward.6} parent=11 // pred_region
        _
      $region28: #{pointnet_cls_forward.6} parent=11 // pred_fallthru
        _
      // Predicated region
      $region29: #{pointnet_cls_forward.6} parent=11 // pred_check
        %p303 = pneg %p187
      $region30: #{pointnet_cls_forward.6} parent=11 // pred_check_branch
        %305 = sbr.rel (%p303) target = $region32
      $region31: #{pointnet_cls_forward.6} parent=11 // pred_region
        _
      $region32: #{pointnet_cls_forward.6} parent=11 // pred_fallthru
        _
      // Predicated region
      $region33: #{pointnet_cls_forward.6} parent=11 // pred_check
        %p306 = pneg %p208
      $region34: #{pointnet_cls_forward.6} parent=11 // pred_check_branch
        %308 = sbr.rel (%p306) target = $region36
      $region35: #{pointnet_cls_forward.6} parent=11 // pred_region
        _
      $region36: #{pointnet_cls_forward.6} parent=11 // pred_fallthru
        _
      // Predicated region
      $region37: #{pointnet_cls_forward.6} parent=11 // pred_check
        %p309 = pneg %p229
      $region38: #{pointnet_cls_forward.6} parent=11 // pred_check_branch
        %311 = sbr.rel (%p309) target = $region40
      $region39: #{pointnet_cls_forward.6} parent=11 // pred_region
        _
      $region40: #{pointnet_cls_forward.6} parent=11 // pred_fallthru
        _
      // Predicated region
      $region41: #{pointnet_cls_forward.6} parent=11 // pred_check
        %p312 = pneg %p250
      $region42: #{pointnet_cls_forward.6} parent=11 // pred_check_branch
        %314 = sbr.rel (%p312) target = $region44
      $region43: #{pointnet_cls_forward.6} parent=11 // pred_region
        _
      $region44: #{pointnet_cls_forward.6} parent=11 // pred_fallthru
        _
    $region12: #{pointnet_cls_forward.6} parent=5 // pred_fallthru
      _
    %p315 = scmp.lt.s32.totalorder %s16, 2
    // Predicated region
    $region45: #{pointnet_cls_forward.6} parent=5 // pred_check
      %p316 = pneg %p315
    $region46: #{pointnet_cls_forward.6} parent=5 // pred_check_branch
      %318 = sbr.rel (%p316) target = $region48
    $region47: #{pointnet_cls_forward.6} parent=5 // pred_region
      // Predicated region
      $region49: #{pointnet_cls_forward.6} parent=47 // pred_check
        %p319 = pneg %p50
      $region50: #{pointnet_cls_forward.6} parent=47 // pred_check_branch
        %321 = sbr.rel (%p319) target = $region52
      $region51: #{pointnet_cls_forward.6} parent=47 // pred_region
        %s322 = smul.u32 32, %s24
        %p323 = scmp.lt.s32.totalorder %s23, 1
        %s324 = scalar_select %p323, %s23, 1
        %p325 = scmp.lt.s32.totalorder %s322, 31
        %s326 = scalar_select %p325, %s322, 31
        %s327 = smul.addr %s324, 32
        %s328 = sadd.s32 %s326, %s327
        %s329 = smul.addr %s328, 8
        %s330 = scalar_lea.vmem %s0, %s329
        %s331 = smul.u32 32, %s24
      $region52: #{pointnet_cls_forward.6} parent=47 // pred_fallthru
        _
      // Predicated region
      $region53: #{pointnet_cls_forward.6} parent=47 // pred_check
        %p332 = pneg %p76
      $region54: #{pointnet_cls_forward.6} parent=47 // pred_check_branch
        %334 = sbr.rel (%p332) target = $region56
      $region55: #{pointnet_cls_forward.6} parent=47 // pred_region
        %p335 = scmp.lt.s32.totalorder %s23, 1
        %s336 = scalar_select %p335, %s23, 1
        %s337 = smul.addr %s336, 4
        %s338 = scalar_lea.vmem %s1, %s337
      $region56: #{pointnet_cls_forward.6} parent=47 // pred_fallthru
        _
    $region48: #{pointnet_cls_forward.6} parent=5 // pred_fallthru
      _
    %p339 = scmp.le.s32.totalorder 1, %s16
    %p340 = scmp.lt.s32.totalorder %s16, 3
    %p341 = pnand %p339, %p340
    %p342 = pneg %p341
    // Predicated region
    $region57: #{pointnet_cls_forward.6} parent=5 // pred_check
      _
    $region58: #{pointnet_cls_forward.6} parent=5 // pred_check_branch
      %344 = sbr.rel (%p341) target = $region60
    $region59: #{pointnet_cls_forward.6} parent=5 // pred_region
      %s345 = ssub.s32 %s16, 1
      %s346 = smul.u32 32, %s26
      %p347 = scmp.lt.s32.totalorder %s25, 1
      %s348 = scalar_select %p347, %s25, 1
      %p349 = scmp.lt.s32.totalorder %s346, 31
      %s350 = scalar_select %p349, %s346, 31
      %s351 = smul.addr %s348, 32
      %s352 = sadd.s32 %s350, %s351
      %s353 = smul.addr %s352, 8
      %s354 = scalar_lea.vmem %s0, %s353
      %p355 = pneg %p56
      %p356 = pneg %p53
      %p357 = scmp.lt.s32.totalorder %s25, 1
      %s358 = scalar_select %p357, %s25, 1
      %s359 = smul.addr %s358, 4
      %s360 = scalar_lea.vmem %s1, %s359
      %p361 = pneg %p82
      %p362 = pneg %p79
      %p363 = pneg %p103
      %p364 = pneg %p100
      %p365 = pneg %p124
      %p366 = pneg %p121
      %p367 = pneg %p145
      %p368 = pneg %p142
      %p369 = pneg %p166
      %p370 = pneg %p163
      %p371 = pneg %p187
      %p372 = pneg %p184
      %p373 = pneg %p208
      %p374 = pneg %p205
      %p375 = pneg %p229
      %p376 = pneg %p226
      %p377 = pneg %p250
      %p378 = pneg %p247
      %p379 = pneg %p276
      %p380 = pneg %p273
      %p381 = scmp.lt.s32.totalorder %s25, 1
      %s382 = scalar_select %p381, %s25, 1
      %s383 = smul.addr %s382, 8
      %s384 = scalar_lea.vmem %s10, %s383
      %s385 = smul.u32 32, %s26
      %p386 = scmp.lt.s32.totalorder %s25, 1
      %s387 = scalar_select %p386, %s25, 1
      %p388 = scmp.lt.s32.totalorder %s385, 31
      %s389 = scalar_select %p388, %s385, 31
      %s390 = smul.addr %s387, 32
      %s391 = sadd.s32 %s389, %s390
      %s392 = smul.addr %s391, 8
      %s393 = scalar_lea.vmem %s0, %s392
      %s394 = smul.u32 32, %s26
      %p395 = scmp.lt.s32.totalorder %s25, 1
      %s396 = scalar_select %p395, %s25, 1
      %s397 = smul.addr %s396, 4
      %s398 = scalar_lea.vmem %s1, %s397
      %p399 = scmp.lt.s32.totalorder %s25, 1
      %s400 = scalar_select %p399, %s25, 1
      %s401 = smul.addr %s400, 8
      %s402 = scalar_lea.vmem %s10, %s401
      %p404 = scmp.eq.s32.totalorder %s26, 0
      // Predicated region
      $region61: #{pointnet_cls_forward.6} parent=59 // pred_check
        %p405 = pneg %p404
      $region62: #{pointnet_cls_forward.6} parent=59 // pred_check_branch
        %407 = sbr.rel (%p405) target = $region64
      $region63: #{pointnet_cls_forward.6} parent=59 // pred_region
        %408 = vst [vmem:[#allocation2] sm:$0xff] -inf
      $region64: #{pointnet_cls_forward.6} parent=59 // pred_fallthru
        _
      %v409 = vld [vmem:[%s393] sm:$0xff]
      %v410 = vld [vmem:[%s393 + $0x8] sm:$0xff]
      %v411 = vld [vmem:[%s393 + $0x10] sm:$0xff]
      %v412 = vld [vmem:[%s393 + $0x18] sm:$0xff]
      %v413 = vld [vmem:[%s393 + $0x20] sm:$0xff]
      %v414 = vld [vmem:[%s393 + $0x28] sm:$0xff]
      %v415 = vld [vmem:[%s393 + $0x30] sm:$0xff]
      %v416 = vld [vmem:[%s393 + $0x38] sm:$0xff]
      %v417 = vld [vmem:[%s393 + $0x40] sm:$0xff]
      %v418 = vld [vmem:[%s393 + $0x48] sm:$0xff]
      %v419 = vld [vmem:[%s393 + $0x50] sm:$0xff]
      %v420 = vld [vmem:[%s393 + $0x58] sm:$0xff]
      %v421 = vld [vmem:[%s393 + $0x60] sm:$0xff]
      %v422 = vld [vmem:[%s393 + $0x68] sm:$0xff]
      %v423 = vld [vmem:[%s393 + $0x70] sm:$0xff]
      %v424 = vld [vmem:[%s393 + $0x78] sm:$0xff]
      %v425 = vld [vmem:[%s393 + $0x80] sm:$0xff]
      %v426 = vld [vmem:[%s393 + $0x88] sm:$0xff]
      %v427 = vld [vmem:[%s393 + $0x90] sm:$0xff]
      %v428 = vld [vmem:[%s393 + $0x98] sm:$0xff]
      %v429 = vld [vmem:[%s393 + $0xa0] sm:$0xff]
      %v430 = vld [vmem:[%s393 + $0xa8] sm:$0xff]
      %v431 = vld [vmem:[%s393 + $0xb0] sm:$0xff]
      %v432 = vld [vmem:[%s393 + $0xb8] sm:$0xff]
      %v433 = vld [vmem:[%s393 + $0xc0] sm:$0xff]
      %v434 = vld [vmem:[%s393 + $0xc8] sm:$0xff]
      %v435 = vld [vmem:[%s393 + $0xd0] sm:$0xff]
      %v436 = vld [vmem:[%s393 + $0xd8] sm:$0xff]
      %v437 = vld [vmem:[%s393 + $0xe0] sm:$0xff]
      %v438 = vld [vmem:[%s393 + $0xe8] sm:$0xff]
      %v439 = vld [vmem:[%s393 + $0xf0] sm:$0xff]
      %v440 = vld [vmem:[%s393 + $0xf8] sm:$0xff]
      %v441 = vld [vmem:[%s398] sm:$0x7]
      %443 = vset.pattern.permute.xlu0 0
      %444 = vperm.xlu0 %443, %v409
      %v445 = vpop.permute.xlu0 %444
      %448 = vset.pattern.permute.xlu0 0
      %449 = vperm.xlu0 %448, %v410
      %v450 = vpop.permute.xlu0 %449
      %453 = vset.pattern.permute.xlu0 0
      %454 = vperm.xlu0 %453, %v411
      %v455 = vpop.permute.xlu0 %454
      %458 = vset.pattern.permute.xlu0 0
      %459 = vperm.xlu0 %458, %v412
      %v460 = vpop.permute.xlu0 %459
      %463 = vset.pattern.permute.xlu0 0
      %464 = vperm.xlu0 %463, %v413
      %v465 = vpop.permute.xlu0 %464
      %468 = vset.pattern.permute.xlu0 0
      %469 = vperm.xlu0 %468, %v414
      %v470 = vpop.permute.xlu0 %469
      %473 = vset.pattern.permute.xlu0 0
      %474 = vperm.xlu0 %473, %v415
      %v475 = vpop.permute.xlu0 %474
      %478 = vset.pattern.permute.xlu0 0
      %479 = vperm.xlu0 %478, %v416
      %v480 = vpop.permute.xlu0 %479
      %483 = vset.pattern.permute.xlu0 0
      %484 = vperm.xlu0 %483, %v417
      %v485 = vpop.permute.xlu0 %484
      %488 = vset.pattern.permute.xlu0 0
      %489 = vperm.xlu0 %488, %v418
      %v490 = vpop.permute.xlu0 %489
      %493 = vset.pattern.permute.xlu0 0
      %494 = vperm.xlu0 %493, %v419
      %v495 = vpop.permute.xlu0 %494
      %498 = vset.pattern.permute.xlu0 0
      %499 = vperm.xlu0 %498, %v420
      %v500 = vpop.permute.xlu0 %499
      %503 = vset.pattern.permute.xlu0 0
      %504 = vperm.xlu0 %503, %v421
      %v505 = vpop.permute.xlu0 %504
      %508 = vset.pattern.permute.xlu0 0
      %509 = vperm.xlu0 %508, %v422
      %v510 = vpop.permute.xlu0 %509
      %513 = vset.pattern.permute.xlu0 0
      %514 = vperm.xlu0 %513, %v423
      %v515 = vpop.permute.xlu0 %514
      %518 = vset.pattern.permute.xlu0 0
      %519 = vperm.xlu0 %518, %v424
      %v520 = vpop.permute.xlu0 %519
      %523 = vset.pattern.permute.xlu0 0
      %524 = vperm.xlu0 %523, %v425
      %v525 = vpop.permute.xlu0 %524
      %528 = vset.pattern.permute.xlu0 0
      %529 = vperm.xlu0 %528, %v426
      %v530 = vpop.permute.xlu0 %529
      %533 = vset.pattern.permute.xlu0 0
      %534 = vperm.xlu0 %533, %v427
      %v535 = vpop.permute.xlu0 %534
      %538 = vset.pattern.permute.xlu0 0
      %539 = vperm.xlu0 %538, %v428
      %v540 = vpop.permute.xlu0 %539
      %543 = vset.pattern.permute.xlu0 0
      %544 = vperm.xlu0 %543, %v429
      %v545 = vpop.permute.xlu0 %544
      %548 = vset.pattern.permute.xlu0 0
      %549 = vperm.xlu0 %548, %v430
      %v550 = vpop.permute.xlu0 %549
      %553 = vset.pattern.permute.xlu0 0
      %554 = vperm.xlu0 %553, %v431
      %v555 = vpop.permute.xlu0 %554
      %558 = vset.pattern.permute.xlu0 0
      %559 = vperm.xlu0 %558, %v432
      %v560 = vpop.permute.xlu0 %559
      %563 = vset.pattern.permute.xlu0 0
      %564 = vperm.xlu0 %563, %v433
      %v565 = vpop.permute.xlu0 %564
      %568 = vset.pattern.permute.xlu0 0
      %569 = vperm.xlu0 %568, %v434
      %v570 = vpop.permute.xlu0 %569
      %573 = vset.pattern.permute.xlu0 0
      %574 = vperm.xlu0 %573, %v435
      %v575 = vpop.permute.xlu0 %574
      %578 = vset.pattern.permute.xlu0 0
      %579 = vperm.xlu0 %578, %v436
      %v580 = vpop.permute.xlu0 %579
      %583 = vset.pattern.permute.xlu0 0
      %584 = vperm.xlu0 %583, %v437
      %v585 = vpop.permute.xlu0 %584
      %588 = vset.pattern.permute.xlu0 0
      %589 = vperm.xlu0 %588, %v438
      %v590 = vpop.permute.xlu0 %589
      %593 = vset.pattern.permute.xlu0 0
      %594 = vperm.xlu0 %593, %v439
      %v595 = vpop.permute.xlu0 %594
      %598 = vset.pattern.permute.xlu0 0
      %599 = vperm.xlu0 %598, %v440
      %v600 = vpop.permute.xlu0 %599
      %v602 = vlaneseq
      %v603 = vshrl.u32 %v602, 7
      %v604 = vsub.s32 0, %v603
      %v605 = vrot.slane %v441, %v604
      %v606 = vmul.f32 %v445, %v605
      %v607 = vmul.f32 %v450, %v605
      %v608 = vmul.f32 %v455, %v605
      %v609 = vmul.f32 %v460, %v605
      %v610 = vmul.f32 %v465, %v605
      %v611 = vmul.f32 %v470, %v605
      %v612 = vmul.f32 %v475, %v605
      %v613 = vmul.f32 %v480, %v605
      %v614 = vmul.f32 %v485, %v605
      %v615 = vmul.f32 %v490, %v605
      %v616 = vmul.f32 %v495, %v605
      %v617 = vmul.f32 %v500, %v605
      %v618 = vmul.f32 %v505, %v605
      %v619 = vmul.f32 %v510, %v605
      %v620 = vmul.f32 %v515, %v605
      %v621 = vmul.f32 %v520, %v605
      %v622 = vmul.f32 %v525, %v605
      %v623 = vmul.f32 %v530, %v605
      %v624 = vmul.f32 %v535, %v605
      %v625 = vmul.f32 %v540, %v605
      %v626 = vmul.f32 %v545, %v605
      %v627 = vmul.f32 %v550, %v605
      %v628 = vmul.f32 %v555, %v605
      %v629 = vmul.f32 %v560, %v605
      %v630 = vmul.f32 %v565, %v605
      %v631 = vmul.f32 %v570, %v605
      %v632 = vmul.f32 %v575, %v605
      %v633 = vmul.f32 %v580, %v605
      %v634 = vmul.f32 %v585, %v605
      %v635 = vmul.f32 %v590, %v605
      %v636 = vmul.f32 %v595, %v605
      %v637 = vmul.f32 %v600, %v605
      %638 = vset.pattern.permute.xlu0 1
      %639 = vperm.xlu0 %638, %v409
      %v640 = vpop.permute.xlu0 %639
      %642 = vset.pattern.permute.xlu0 1
      %643 = vperm.xlu0 %642, %v410
      %v644 = vpop.permute.xlu0 %643
      %646 = vset.pattern.permute.xlu0 1
      %647 = vperm.xlu0 %646, %v411
      %v648 = vpop.permute.xlu0 %647
      %650 = vset.pattern.permute.xlu0 1
      %651 = vperm.xlu0 %650, %v412
      %v652 = vpop.permute.xlu0 %651
      %654 = vset.pattern.permute.xlu0 1
      %655 = vperm.xlu0 %654, %v413
      %v656 = vpop.permute.xlu0 %655
      %658 = vset.pattern.permute.xlu0 1
      %659 = vperm.xlu0 %658, %v414
      %v660 = vpop.permute.xlu0 %659
      %662 = vset.pattern.permute.xlu0 1
      %663 = vperm.xlu0 %662, %v415
      %v664 = vpop.permute.xlu0 %663
      %666 = vset.pattern.permute.xlu0 1
      %667 = vperm.xlu0 %666, %v416
      %v668 = vpop.permute.xlu0 %667
      %670 = vset.pattern.permute.xlu0 1
      %671 = vperm.xlu0 %670, %v417
      %v672 = vpop.permute.xlu0 %671
      %674 = vset.pattern.permute.xlu0 1
      %675 = vperm.xlu0 %674, %v418
      %v676 = vpop.permute.xlu0 %675
      %678 = vset.pattern.permute.xlu0 1
      %679 = vperm.xlu0 %678, %v419
      %v680 = vpop.permute.xlu0 %679
      %682 = vset.pattern.permute.xlu0 1
      %683 = vperm.xlu0 %682, %v420
      %v684 = vpop.permute.xlu0 %683
      %686 = vset.pattern.permute.xlu0 1
      %687 = vperm.xlu0 %686, %v421
      %v688 = vpop.permute.xlu0 %687
      %690 = vset.pattern.permute.xlu0 1
      %691 = vperm.xlu0 %690, %v422
      %v692 = vpop.permute.xlu0 %691
      %694 = vset.pattern.permute.xlu0 1
      %695 = vperm.xlu0 %694, %v423
      %v696 = vpop.permute.xlu0 %695
      %698 = vset.pattern.permute.xlu0 1
      %699 = vperm.xlu0 %698, %v424
      %v700 = vpop.permute.xlu0 %699
      %702 = vset.pattern.permute.xlu0 1
      %703 = vperm.xlu0 %702, %v425
      %v704 = vpop.permute.xlu0 %703
      %706 = vset.pattern.permute.xlu0 1
      %707 = vperm.xlu0 %706, %v426
      %v708 = vpop.permute.xlu0 %707
      %710 = vset.pattern.permute.xlu0 1
      %711 = vperm.xlu0 %710, %v427
      %v712 = vpop.permute.xlu0 %711
      %714 = vset.pattern.permute.xlu0 1
      %715 = vperm.xlu0 %714, %v428
      %v716 = vpop.permute.xlu0 %715
      %718 = vset.pattern.permute.xlu0 1
      %719 = vperm.xlu0 %718, %v429
      %v720 = vpop.permute.xlu0 %719
      %722 = vset.pattern.permute.xlu0 1
      %723 = vperm.xlu0 %722, %v430
      %v724 = vpop.permute.xlu0 %723
      %726 = vset.pattern.permute.xlu0 1
      %727 = vperm.xlu0 %726, %v431
      %v728 = vpop.permute.xlu0 %727
      %730 = vset.pattern.permute.xlu0 1
      %731 = vperm.xlu0 %730, %v432
      %v732 = vpop.permute.xlu0 %731
      %734 = vset.pattern.permute.xlu0 1
      %735 = vperm.xlu0 %734, %v433
      %v736 = vpop.permute.xlu0 %735
      %738 = vset.pattern.permute.xlu0 1
      %739 = vperm.xlu0 %738, %v434
      %v740 = vpop.permute.xlu0 %739
      %742 = vset.pattern.permute.xlu0 1
      %743 = vperm.xlu0 %742, %v435
      %v744 = vpop.permute.xlu0 %743
      %746 = vset.pattern.permute.xlu0 1
      %747 = vperm.xlu0 %746, %v436
      %v748 = vpop.permute.xlu0 %747
      %750 = vset.pattern.permute.xlu0 1
      %751 = vperm.xlu0 %750, %v437
      %v752 = vpop.permute.xlu0 %751
      %754 = vset.pattern.permute.xlu0 1
      %755 = vperm.xlu0 %754, %v438
      %v756 = vpop.permute.xlu0 %755
      %758 = vset.pattern.permute.xlu0 1
      %759 = vperm.xlu0 %758, %v439
      %v760 = vpop.permute.xlu0 %759
      %762 = vset.pattern.permute.xlu0 1
      %763 = vperm.xlu0 %762, %v440
      %v764 = vpop.permute.xlu0 %763
      %v766 = vlaneseq
      %v767 = vshrl.u32 %v766, 7
      %v768 = vsub.s32 1, %v767
      %v769 = vrot.slane %v441, %v768
      %v770 = vmul.f32 %v640, %v769
      %v771 = vmul.f32 %v644, %v769
      %v772 = vmul.f32 %v648, %v769
      %v773 = vmul.f32 %v652, %v769
      %v774 = vmul.f32 %v656, %v769
      %v775 = vmul.f32 %v660, %v769
      %v776 = vmul.f32 %v664, %v769
      %v777 = vmul.f32 %v668, %v769
      %v778 = vmul.f32 %v672, %v769
      %v779 = vmul.f32 %v676, %v769
      %v780 = vmul.f32 %v680, %v769
      %v781 = vmul.f32 %v684, %v769
      %v782 = vmul.f32 %v688, %v769
      %v783 = vmul.f32 %v692, %v769
      %v784 = vmul.f32 %v696, %v769
      %v785 = vmul.f32 %v700, %v769
      %v786 = vmul.f32 %v704, %v769
      %v787 = vmul.f32 %v708, %v769
      %v788 = vmul.f32 %v712, %v769
      %v789 = vmul.f32 %v716, %v769
      %v790 = vmul.f32 %v720, %v769
      %v791 = vmul.f32 %v724, %v769
      %v792 = vmul.f32 %v728, %v769
      %v793 = vmul.f32 %v732, %v769
      %v794 = vmul.f32 %v736, %v769
      %v795 = vmul.f32 %v740, %v769
      %v796 = vmul.f32 %v744, %v769
      %v797 = vmul.f32 %v748, %v769
      %v798 = vmul.f32 %v752, %v769
      %v799 = vmul.f32 %v756, %v769
      %v800 = vmul.f32 %v760, %v769
      %v801 = vmul.f32 %v764, %v769
      %v802 = vadd.f32 %v606, %v770
      %v803 = vadd.f32 %v607, %v771
      %v804 = vadd.f32 %v608, %v772
      %v805 = vadd.f32 %v609, %v773
      %v806 = vadd.f32 %v610, %v774
      %v807 = vadd.f32 %v611, %v775
      %v808 = vadd.f32 %v612, %v776
      %v809 = vadd.f32 %v613, %v777
      %v810 = vadd.f32 %v614, %v778
      %v811 = vadd.f32 %v615, %v779
      %v812 = vadd.f32 %v616, %v780
      %v813 = vadd.f32 %v617, %v781
      %v814 = vadd.f32 %v618, %v782
      %v815 = vadd.f32 %v619, %v783
      %v816 = vadd.f32 %v620, %v784
      %v817 = vadd.f32 %v621, %v785
      %v818 = vadd.f32 %v622, %v786
      %v819 = vadd.f32 %v623, %v787
      %v820 = vadd.f32 %v624, %v788
      %v821 = vadd.f32 %v625, %v789
      %v822 = vadd.f32 %v626, %v790
      %v823 = vadd.f32 %v627, %v791
      %v824 = vadd.f32 %v628, %v792
      %v825 = vadd.f32 %v629, %v793
      %v826 = vadd.f32 %v630, %v794
      %v827 = vadd.f32 %v631, %v795
      %v828 = vadd.f32 %v632, %v796
      %v829 = vadd.f32 %v633, %v797
      %v830 = vadd.f32 %v634, %v798
      %v831 = vadd.f32 %v635, %v799
      %v832 = vadd.f32 %v636, %v800
      %v833 = vadd.f32 %v637, %v801
      %834 = vset.pattern.permute.xlu0 2
      %835 = vperm.xlu0 %834, %v409
      %v836 = vpop.permute.xlu0 %835
      %838 = vset.pattern.permute.xlu0 2
      %839 = vperm.xlu0 %838, %v410
      %v840 = vpop.permute.xlu0 %839
      %842 = vset.pattern.permute.xlu0 2
      %843 = vperm.xlu0 %842, %v411
      %v844 = vpop.permute.xlu0 %843
      %846 = vset.pattern.permute.xlu0 2
      %847 = vperm.xlu0 %846, %v412
      %v848 = vpop.permute.xlu0 %847
      %850 = vset.pattern.permute.xlu0 2
      %851 = vperm.xlu0 %850, %v413
      %v852 = vpop.permute.xlu0 %851
      %854 = vset.pattern.permute.xlu0 2
      %855 = vperm.xlu0 %854, %v414
      %v856 = vpop.permute.xlu0 %855
      %858 = vset.pattern.permute.xlu0 2
      %859 = vperm.xlu0 %858, %v415
      %v860 = vpop.permute.xlu0 %859
      %862 = vset.pattern.permute.xlu0 2
      %863 = vperm.xlu0 %862, %v416
      %v864 = vpop.permute.xlu0 %863
      %866 = vset.pattern.permute.xlu0 2
      %867 = vperm.xlu0 %866, %v417
      %v868 = vpop.permute.xlu0 %867
      %870 = vset.pattern.permute.xlu0 2
      %871 = vperm.xlu0 %870, %v418
      %v872 = vpop.permute.xlu0 %871
      %874 = vset.pattern.permute.xlu0 2
      %875 = vperm.xlu0 %874, %v419
      %v876 = vpop.permute.xlu0 %875
      %878 = vset.pattern.permute.xlu0 2
      %879 = vperm.xlu0 %878, %v420
      %v880 = vpop.permute.xlu0 %879
      %882 = vset.pattern.permute.xlu0 2
      %883 = vperm.xlu0 %882, %v421
      %v884 = vpop.permute.xlu0 %883
      %886 = vset.pattern.permute.xlu0 2
      %887 = vperm.xlu0 %886, %v422
      %v888 = vpop.permute.xlu0 %887
      %890 = vset.pattern.permute.xlu0 2
      %891 = vperm.xlu0 %890, %v423
      %v892 = vpop.permute.xlu0 %891
      %894 = vset.pattern.permute.xlu0 2
      %895 = vperm.xlu0 %894, %v424
      %v896 = vpop.permute.xlu0 %895
      %898 = vset.pattern.permute.xlu0 2
      %899 = vperm.xlu0 %898, %v425
      %v900 = vpop.permute.xlu0 %899
      %902 = vset.pattern.permute.xlu0 2
      %903 = vperm.xlu0 %902, %v426
      %v904 = vpop.permute.xlu0 %903
      %906 = vset.pattern.permute.xlu0 2
      %907 = vperm.xlu0 %906, %v427
      %v908 = vpop.permute.xlu0 %907
      %910 = vset.pattern.permute.xlu0 2
      %911 = vperm.xlu0 %910, %v428
      %v912 = vpop.permute.xlu0 %911
      %914 = vset.pattern.permute.xlu0 2
      %915 = vperm.xlu0 %914, %v429
      %v916 = vpop.permute.xlu0 %915
      %918 = vset.pattern.permute.xlu0 2
      %919 = vperm.xlu0 %918, %v430
      %v920 = vpop.permute.xlu0 %919
      %922 = vset.pattern.permute.xlu0 2
      %923 = vperm.xlu0 %922, %v431
      %v924 = vpop.permute.xlu0 %923
      %926 = vset.pattern.permute.xlu0 2
      %927 = vperm.xlu0 %926, %v432
      %v928 = vpop.permute.xlu0 %927
      %930 = vset.pattern.permute.xlu0 2
      %931 = vperm.xlu0 %930, %v433
      %v932 = vpop.permute.xlu0 %931
      %934 = vset.pattern.permute.xlu0 2
      %935 = vperm.xlu0 %934, %v434
      %v936 = vpop.permute.xlu0 %935
      %938 = vset.pattern.permute.xlu0 2
      %939 = vperm.xlu0 %938, %v435
      %v940 = vpop.permute.xlu0 %939
      %942 = vset.pattern.permute.xlu0 2
      %943 = vperm.xlu0 %942, %v436
      %v944 = vpop.permute.xlu0 %943
      %946 = vset.pattern.permute.xlu0 2
      %947 = vperm.xlu0 %946, %v437
      %v948 = vpop.permute.xlu0 %947
      %950 = vset.pattern.permute.xlu0 2
      %951 = vperm.xlu0 %950, %v438
      %v952 = vpop.permute.xlu0 %951
      %954 = vset.pattern.permute.xlu0 2
      %955 = vperm.xlu0 %954, %v439
      %v956 = vpop.permute.xlu0 %955
      %958 = vset.pattern.permute.xlu0 2
      %959 = vperm.xlu0 %958, %v440
      %v960 = vpop.permute.xlu0 %959
      %v962 = vlaneseq
      %v963 = vshrl.u32 %v962, 7
      %v964 = vsub.s32 2, %v963
      %v965 = vrot.slane %v441, %v964
      %v966 = vmul.f32 %v836, %v965
      %v967 = vmul.f32 %v840, %v965
      %v968 = vmul.f32 %v844, %v965
      %v969 = vmul.f32 %v848, %v965
      %v970 = vmul.f32 %v852, %v965
      %v971 = vmul.f32 %v856, %v965
      %v972 = vmul.f32 %v860, %v965
      %v973 = vmul.f32 %v864, %v965
      %v974 = vmul.f32 %v868, %v965
      %v975 = vmul.f32 %v872, %v965
      %v976 = vmul.f32 %v876, %v965
      %v977 = vmul.f32 %v880, %v965
      %v978 = vmul.f32 %v884, %v965
      %v979 = vmul.f32 %v888, %v965
      %v980 = vmul.f32 %v892, %v965
      %v981 = vmul.f32 %v896, %v965
      %v982 = vmul.f32 %v900, %v965
      %v983 = vmul.f32 %v904, %v965
      %v984 = vmul.f32 %v908, %v965
      %v985 = vmul.f32 %v912, %v965
      %v986 = vmul.f32 %v916, %v965
      %v987 = vmul.f32 %v920, %v965
      %v988 = vmul.f32 %v924, %v965
      %v989 = vmul.f32 %v928, %v965
      %v990 = vmul.f32 %v932, %v965
      %v991 = vmul.f32 %v936, %v965
      %v992 = vmul.f32 %v940, %v965
      %v993 = vmul.f32 %v944, %v965
      %v994 = vmul.f32 %v948, %v965
      %v995 = vmul.f32 %v952, %v965
      %v996 = vmul.f32 %v956, %v965
      %v997 = vmul.f32 %v960, %v965
      %v998 = vadd.f32 %v802, %v966
      %v999 = vadd.f32 %v803, %v967
      %v1000 = vadd.f32 %v804, %v968
      %v1001 = vadd.f32 %v805, %v969
      %v1002 = vadd.f32 %v806, %v970
      %v1003 = vadd.f32 %v807, %v971
      %v1004 = vadd.f32 %v808, %v972
      %v1005 = vadd.f32 %v809, %v973
      %v1006 = vadd.f32 %v810, %v974
      %v1007 = vadd.f32 %v811, %v975
      %v1008 = vadd.f32 %v812, %v976
      %v1009 = vadd.f32 %v813, %v977
      %v1010 = vadd.f32 %v814, %v978
      %v1011 = vadd.f32 %v815, %v979
      %v1012 = vadd.f32 %v816, %v980
      %v1013 = vadd.f32 %v817, %v981
      %v1014 = vadd.f32 %v818, %v982
      %v1015 = vadd.f32 %v819, %v983
      %v1016 = vadd.f32 %v820, %v984
      %v1017 = vadd.f32 %v821, %v985
      %v1018 = vadd.f32 %v822, %v986
      %v1019 = vadd.f32 %v823, %v987
      %v1020 = vadd.f32 %v824, %v988
      %v1021 = vadd.f32 %v825, %v989
      %v1022 = vadd.f32 %v826, %v990
      %v1023 = vadd.f32 %v827, %v991
      %v1024 = vadd.f32 %v828, %v992
      %v1025 = vadd.f32 %v829, %v993
      %v1026 = vadd.f32 %v830, %v994
      %v1027 = vadd.f32 %v831, %v995
      %v1028 = vadd.f32 %v832, %v996
      %v1029 = vadd.f32 %v833, %v997
      %v1030 = vld [vmem:[%s2] sm:$0x1]
      %v1032 = vlaneseq
      %v1033 = vshrl.u32 %v1032, 7
      %v1034 = vsub.s32 0, %v1033
      %v1035 = vrot.slane %v1030, %v1034
      %v1037 = vmul.f32 %v998, %v1035
      %v1038 = vmul.f32 %v999, %v1035
      %v1039 = vmul.f32 %v1000, %v1035
      %v1040 = vmul.f32 %v1001, %v1035
      %v1041 = vmul.f32 %v1002, %v1035
      %v1042 = vmul.f32 %v1003, %v1035
      %v1043 = vmul.f32 %v1004, %v1035
      %v1044 = vmul.f32 %v1005, %v1035
      %v1045 = vmul.f32 %v1006, %v1035
      %v1046 = vmul.f32 %v1007, %v1035
      %v1047 = vmul.f32 %v1008, %v1035
      %v1048 = vmul.f32 %v1009, %v1035
      %v1049 = vmul.f32 %v1010, %v1035
      %v1050 = vmul.f32 %v1011, %v1035
      %v1051 = vmul.f32 %v1012, %v1035
      %v1052 = vmul.f32 %v1013, %v1035
      %v1053 = vmul.f32 %v1014, %v1035
      %v1054 = vmul.f32 %v1015, %v1035
      %v1055 = vmul.f32 %v1016, %v1035
      %v1056 = vmul.f32 %v1017, %v1035
      %v1057 = vmul.f32 %v1018, %v1035
      %v1058 = vmul.f32 %v1019, %v1035
      %v1059 = vmul.f32 %v1020, %v1035
      %v1060 = vmul.f32 %v1021, %v1035
      %v1061 = vmul.f32 %v1022, %v1035
      %v1062 = vmul.f32 %v1023, %v1035
      %v1063 = vmul.f32 %v1024, %v1035
      %v1064 = vmul.f32 %v1025, %v1035
      %v1065 = vmul.f32 %v1026, %v1035
      %v1066 = vmul.f32 %v1027, %v1035
      %v1067 = vmul.f32 %v1028, %v1035
      %v1068 = vmul.f32 %v1029, %v1035
      %v1069 = vld [vmem:[%s3] sm:$0x1]
      %v1071 = vlaneseq
      %v1072 = vshrl.u32 %v1071, 7
      %v1073 = vsub.s32 0, %v1072
      %v1074 = vrot.slane %v1069, %v1073
      %v1076 = vadd.f32 %v1037, %v1074
      %v1077 = vadd.f32 %v1038, %v1074
      %v1078 = vadd.f32 %v1039, %v1074
      %v1079 = vadd.f32 %v1040, %v1074
      %v1080 = vadd.f32 %v1041, %v1074
      %v1081 = vadd.f32 %v1042, %v1074
      %v1082 = vadd.f32 %v1043, %v1074
      %v1083 = vadd.f32 %v1044, %v1074
      %v1084 = vadd.f32 %v1045, %v1074
      %v1085 = vadd.f32 %v1046, %v1074
      %v1086 = vadd.f32 %v1047, %v1074
      %v1087 = vadd.f32 %v1048, %v1074
      %v1088 = vadd.f32 %v1049, %v1074
      %v1089 = vadd.f32 %v1050, %v1074
      %v1090 = vadd.f32 %v1051, %v1074
      %v1091 = vadd.f32 %v1052, %v1074
      %v1092 = vadd.f32 %v1053, %v1074
      %v1093 = vadd.f32 %v1054, %v1074
      %v1094 = vadd.f32 %v1055, %v1074
      %v1095 = vadd.f32 %v1056, %v1074
      %v1096 = vadd.f32 %v1057, %v1074
      %v1097 = vadd.f32 %v1058, %v1074
      %v1098 = vadd.f32 %v1059, %v1074
      %v1099 = vadd.f32 %v1060, %v1074
      %v1100 = vadd.f32 %v1061, %v1074
      %v1101 = vadd.f32 %v1062, %v1074
      %v1102 = vadd.f32 %v1063, %v1074
      %v1103 = vadd.f32 %v1064, %v1074
      %v1104 = vadd.f32 %v1065, %v1074
      %v1105 = vadd.f32 %v1066, %v1074
      %v1106 = vadd.f32 %v1067, %v1074
      %v1107 = vadd.f32 %v1068, %v1074
      %v1108 = vmax.f32 %v1076, 0.0
      %v1109 = vmax.f32 %v1077, 0.0
      %v1110 = vmax.f32 %v1078, 0.0
      %v1111 = vmax.f32 %v1079, 0.0
      %v1112 = vmax.f32 %v1080, 0.0
      %v1113 = vmax.f32 %v1081, 0.0
      %v1114 = vmax.f32 %v1082, 0.0
      %v1115 = vmax.f32 %v1083, 0.0
      %v1116 = vmax.f32 %v1084, 0.0
      %v1117 = vmax.f32 %v1085, 0.0
      %v1118 = vmax.f32 %v1086, 0.0
      %v1119 = vmax.f32 %v1087, 0.0
      %v1120 = vmax.f32 %v1088, 0.0
      %v1121 = vmax.f32 %v1089, 0.0
      %v1122 = vmax.f32 %v1090, 0.0
      %v1123 = vmax.f32 %v1091, 0.0
      %v1124 = vmax.f32 %v1092, 0.0
      %v1125 = vmax.f32 %v1093, 0.0
      %v1126 = vmax.f32 %v1094, 0.0
      %v1127 = vmax.f32 %v1095, 0.0
      %v1128 = vmax.f32 %v1096, 0.0
      %v1129 = vmax.f32 %v1097, 0.0
      %v1130 = vmax.f32 %v1098, 0.0
      %v1131 = vmax.f32 %v1099, 0.0
      %v1132 = vmax.f32 %v1100, 0.0
      %v1133 = vmax.f32 %v1101, 0.0
      %v1134 = vmax.f32 %v1102, 0.0
      %v1135 = vmax.f32 %v1103, 0.0
      %v1136 = vmax.f32 %v1104, 0.0
      %v1137 = vmax.f32 %v1105, 0.0
      %v1138 = vmax.f32 %v1106, 0.0
      %v1139 = vmax.f32 %v1107, 0.0
      %v1140 = vpack.c.bf16 %v1109, %v1108
      %v1141 = vpack.c.bf16 %v1111, %v1110
      %v1142 = vpack.c.bf16 %v1113, %v1112
      %v1143 = vpack.c.bf16 %v1115, %v1114
      %v1144 = vpack.c.bf16 %v1117, %v1116
      %v1145 = vpack.c.bf16 %v1119, %v1118
      %v1146 = vpack.c.bf16 %v1121, %v1120
      %v1147 = vpack.c.bf16 %v1123, %v1122
      %v1148 = vpack.c.bf16 %v1125, %v1124
      %v1149 = vpack.c.bf16 %v1127, %v1126
      %v1150 = vpack.c.bf16 %v1129, %v1128
      %v1151 = vpack.c.bf16 %v1131, %v1130
      %v1152 = vpack.c.bf16 %v1133, %v1132
      %v1153 = vpack.c.bf16 %v1135, %v1134
      %v1154 = vpack.c.bf16 %v1137, %v1136
      %v1155 = vpack.c.bf16 %v1139, %v1138
      %v1156 = vld [vmem:[%s4] sm:$0xf]
      %v1157 = vld [vmem:[%s4 + $0x4] sm:$0xf]
      %v1158 = vld [vmem:[%s4 + $0x8] sm:$0xf]
      %v1159 = vld [vmem:[%s4 + $0xc] sm:$0xf]
      %v1160 = vld [vmem:[%s4 + $0x10] sm:$0xf]
      %v1161 = vld [vmem:[%s4 + $0x14] sm:$0xf]
      %v1162 = vld [vmem:[%s4 + $0x18] sm:$0xf]
      %v1163 = vld [vmem:[%s4 + $0x1c] sm:$0xf]
      %v1172 = vunpack.c.l.b16 %v1156
      %v1173 = vunpack.c.l.b16 %v1157
      %v1174 = vunpack.c.l.b16 %v1158
      %v1175 = vunpack.c.l.b16 %v1159
      %v1176 = vunpack.c.l.b16 %v1160
      %v1177 = vunpack.c.l.b16 %v1161
      %v1178 = vunpack.c.l.b16 %v1162
      %v1179 = vunpack.c.l.b16 %v1163
      %v1180 = vpack.c.b16 %v1173, %v1172
      %v1181 = vpack.c.b16 %v1175, %v1174
      %v1182 = vpack.c.b16 %v1177, %v1176
      %v1183 = vpack.c.b16 %v1179, %v1178
      %vm1188 = vcmask 523264
      %v1190 = vsel %vm1188, %v1140, 0
      %v1193 = vsel %vm1188, %v1141, 0
      %v1196 = vsel %vm1188, %v1142, 0
      %v1199 = vsel %vm1188, %v1143, 0
      %v1202 = vsel %vm1188, %v1144, 0
      %v1205 = vsel %vm1188, %v1145, 0
      %v1208 = vsel %vm1188, %v1146, 0
      %v1211 = vsel %vm1188, %v1147, 0
      %v1214 = vsel %vm1188, %v1148, 0
      %v1217 = vsel %vm1188, %v1149, 0
      %v1220 = vsel %vm1188, %v1150, 0
      %v1223 = vsel %vm1188, %v1151, 0
      %v1226 = vsel %vm1188, %v1152, 0
      %v1229 = vsel %vm1188, %v1153, 0
      %v1232 = vsel %vm1188, %v1154, 0
      %v1235 = vsel %vm1188, %v1155, 0
      %1237 = vmatprep.subr.bf16.mxu0 0
      %1238 = vmatpush1.bf16.msra.mxu0 %v1180
      %1239 = vmatprep.subr.bf16.mxu0 0
      %1240 = vmatpush1.bf16.msra.mxu0 %v1181
      %1241 = vmatprep.subr.bf16.mxu0 0
      %1242 = vmatpush1.bf16.msra.mxu0 %v1182
      %1243 = vmatprep.subr.bf16.mxu0 0
      %1244 = vmatpush1.bf16.msra.mxu0 %v1183
      %1245 = vmatprep.subr.bf16.mxu0 0
      %1246 = vmatpush1.bf16.msra.mxu0 0
      %1247 = vmatprep.subr.bf16.mxu0 0
      %1248 = vmatpush1.bf16.msra.mxu0 0
      %1249 = vmatprep.subr.bf16.mxu0 0
      %1250 = vmatpush1.bf16.msra.mxu0 0
      %1251 = vmatprep.subr.bf16.mxu0 0
      %1252 = vmatpush1.bf16.msra.mxu0 0
      %1253 = vmatprep.subr.bf16.mxu0 0
      %1254 = vmatpush1.bf16.msra.mxu0 0
      %1255 = vmatprep.subr.bf16.mxu0 0
      %1256 = vmatpush1.bf16.msra.mxu0 0
      %1257 = vmatprep.subr.bf16.mxu0 0
      %1258 = vmatpush1.bf16.msra.mxu0 0
      %1259 = vmatprep.subr.bf16.mxu0 0
      %1260 = vmatpush1.bf16.msra.mxu0 0
      %1261 = vmatprep.subr.bf16.mxu0 0
      %1262 = vmatpush1.bf16.msra.mxu0 0
      %1263 = vmatprep.subr.bf16.mxu0 0
      %1264 = vmatpush1.bf16.msra.mxu0 0
      %1265 = vmatprep.subr.bf16.mxu0 0
      %1266 = vmatpush1.bf16.msra.mxu0 0
      %1267 = vmatprep.subr.bf16.mxu0 0
      %1268 = vmatpush1.bf16.msra.mxu0 0
      %1269 = vmatprep.mubr.bf16.mxu0 0
      %1270 = vmatmul.mubr.bf16.gmra.mrb[0].mxu0 %v1190
      %v1271 = vpop.f32.mrb[0].mxu0
      %v1272 = vadd.f32 0.0, %v1271
      %v1273 = vpop.f32.mrb[0].mxu0
      %v1274 = vpop.f32.mrb[0].mxu0
      %v1275 = vadd.f32 0.0, %v1274
      %v1276 = vpop.f32.mrb[0].mxu0
      %1277 = vmatprep.mubr.bf16.mxu0 0
      %1278 = vmatmul.mubr.bf16.gmra.mrb[0].mxu0 %v1193
      %v1279 = vpop.f32.mrb[0].mxu0
      %v1280 = vadd.f32 0.0, %v1279
      %v1281 = vpop.f32.mrb[0].mxu0
      %v1282 = vpop.f32.mrb[0].mxu0
      %v1283 = vadd.f32 0.0, %v1282
      %v1284 = vpop.f32.mrb[0].mxu0
      %1285 = vmatprep.mubr.bf16.mxu0 0
      %1286 = vmatmul.mubr.bf16.gmra.mrb[0].mxu0 %v1196
      %v1287 = vpop.f32.mrb[0].mxu0
      %v1288 = vadd.f32 0.0, %v1287
      %v1289 = vpop.f32.mrb[0].mxu0
      %v1290 = vpop.f32.mrb[0].mxu0
      %v1291 = vadd.f32 0.0, %v1290
      %v1292 = vpop.f32.mrb[0].mxu0
      %1293 = vmatprep.mubr.bf16.mxu0 0
      %1294 = vmatmul.mubr.bf16.gmra.mrb[0].mxu0 %v1199
      %v1295 = vpop.f32.mrb[0].mxu0
      %v1296 = vadd.f32 0.0, %v1295
      %v1297 = vpop.f32.mrb[0].mxu0
      %v1298 = vpop.f32.mrb[0].mxu0
      %v1299 = vadd.f32 0.0, %v1298
      %v1300 = vpop.f32.mrb[0].mxu0
      %1301 = vmatprep.mubr.bf16.mxu0 0
      %1302 = vmatmul.mubr.bf16.gmra.mrb[0].mxu0 %v1202
      %v1303 = vpop.f32.mrb[0].mxu0
      %v1304 = vadd.f32 0.0, %v1303
      %v1305 = vpop.f32.mrb[0].mxu0
      %v1306 = vpop.f32.mrb[0].mxu0
      %v1307 = vadd.f32 0.0, %v1306
      %v1308 = vpop.f32.mrb[0].mxu0
      %1309 = vmatprep.mubr.bf16.mxu0 0
      %1310 = vmatmul.mubr.bf16.gmra.mrb[0].mxu0 %v1205
      %v1311 = vpop.f32.mrb[0].mxu0
      %v1312 = vadd.f32 0.0, %v1311
      %v1313 = vpop.f32.mrb[0].mxu0
      %v1314 = vpop.f32.mrb[0].mxu0
      %v1315 = vadd.f32 0.0, %v1314
      %v1316 = vpop.f32.mrb[0].mxu0
      %1317 = vmatprep.mubr.bf16.mxu0 0
      %1318 = vmatmul.mubr.bf16.gmra.mrb[0].mxu0 %v1208
      %v1319 = vpop.f32.mrb[0].mxu0
      %v1320 = vadd.f32 0.0, %v1319
      %v1321 = vpop.f32.mrb[0].mxu0
      %v1322 = vpop.f32.mrb[0].mxu0
      %v1323 = vadd.f32 0.0, %v1322
      %v1324 = vpop.f32.mrb[0].mxu0
      %1325 = vmatprep.mubr.bf16.mxu0 0
      %1326 = vmatmul.mubr.bf16.gmra.mrb[0].mxu0 %v1211
      %v1327 = vpop.f32.mrb[0].mxu0
      %v1328 = vadd.f32 0.0, %v1327
      %v1329 = vpop.f32.mrb[0].mxu0
      %v1330 = vpop.f32.mrb[0].mxu0
      %v1331 = vadd.f32 0.0, %v1330
      %v1332 = vpop.f32.mrb[0].mxu0
      %1333 = vmatprep.mubr.bf16.mxu0 0
      %1334 = vmatmul.mubr.bf16.gmra.mrb[0].mxu0 %v1214
      %v1335 = vpop.f32.mrb[0].mxu0
      %v1336 = vadd.f32 0.0, %v1335
      %v1337 = vpop.f32.mrb[0].mxu0
      %v1338 = vpop.f32.mrb[0].mxu0
      %v1339 = vadd.f32 0.0, %v1338
      %v1340 = vpop.f32.mrb[0].mxu0
      %1341 = vmatprep.mubr.bf16.mxu0 0
      %1342 = vmatmul.mubr.bf16.gmra.mrb[0].mxu0 %v1217
      %v1343 = vpop.f32.mrb[0].mxu0
      %v1344 = vadd.f32 0.0, %v1343
      %v1345 = vpop.f32.mrb[0].mxu0
      %v1346 = vpop.f32.mrb[0].mxu0
      %v1347 = vadd.f32 0.0, %v1346
      %v1348 = vpop.f32.mrb[0].mxu0
      %1349 = vmatprep.mubr.bf16.mxu0 0
      %1350 = vmatmul.mubr.bf16.gmra.mrb[0].mxu0 %v1220
      %v1351 = vpop.f32.mrb[0].mxu0
      %v1352 = vadd.f32 0.0, %v1351
      %v1353 = vpop.f32.mrb[0].mxu0
      %v1354 = vpop.f32.mrb[0].mxu0
      %v1355 = vadd.f32 0.0, %v1354
      %v1356 = vpop.f32.mrb[0].mxu0
      %1357 = vmatprep.mubr.bf16.mxu0 0
      %1358 = vmatmul.mubr.bf16.gmra.mrb[0].mxu0 %v1223
      %v1359 = vpop.f32.mrb[0].mxu0
      %v1360 = vadd.f32 0.0, %v1359
      %v1361 = vpop.f32.mrb[0].mxu0
      %v1362 = vpop.f32.mrb[0].mxu0
      %v1363 = vadd.f32 0.0, %v1362
      %v1364 = vpop.f32.mrb[0].mxu0
      %1365 = vmatprep.mubr.bf16.mxu0 0
      %1366 = vmatmul.mubr.bf16.gmra.mrb[0].mxu0 %v1226
      %v1367 = vpop.f32.mrb[0].mxu0
      %v1368 = vadd.f32 0.0, %v1367
      %v1369 = vpop.f32.mrb[0].mxu0
      %v1370 = vpop.f32.mrb[0].mxu0
      %v1371 = vadd.f32 0.0, %v1370
      %v1372 = vpop.f32.mrb[0].mxu0
      %1373 = vmatprep.mubr.bf16.mxu0 0
      %1374 = vmatmul.mubr.bf16.gmra.mrb[0].mxu0 %v1229
      %v1375 = vpop.f32.mrb[0].mxu0
      %v1376 = vadd.f32 0.0, %v1375
      %v1377 = vpop.f32.mrb[0].mxu0
      %v1378 = vpop.f32.mrb[0].mxu0
      %v1379 = vadd.f32 0.0, %v1378
      %v1380 = vpop.f32.mrb[0].mxu0
      %1381 = vmatprep.mubr.bf16.mxu0 0
      %1382 = vmatmul.mubr.bf16.gmra.mrb[0].mxu0 %v1232
      %v1383 = vpop.f32.mrb[0].mxu0
      %v1384 = vadd.f32 0.0, %v1383
      %v1385 = vpop.f32.mrb[0].mxu0
      %v1386 = vpop.f32.mrb[0].mxu0
      %v1387 = vadd.f32 0.0, %v1386
      %v1388 = vpop.f32.mrb[0].mxu0
      %1389 = vmatprep.mubr.bf16.mxu0 0
      %1390 = vmatmul.mubr.bf16.gmra.mrb[0].mxu0 %v1235
      %v1391 = vpop.f32.mrb[0].mxu0
      %v1392 = vadd.f32 0.0, %v1391
      %v1393 = vpop.f32.mrb[0].mxu0
      %v1394 = vpop.f32.mrb[0].mxu0
      %v1395 = vadd.f32 0.0, %v1394
      %v1396 = vpop.f32.mrb[0].mxu0
      %1397 = vdwg.mxu0
      %v1398 = vld [vmem:[%s5] sm:$0x1]
      %v1400 = vlaneseq
      %v1401 = vshrl.u32 %v1400, 7
      %v1402 = vsub.s32 0, %v1401
      %v1403 = vrot.slane %v1398, %v1402
      %v1405 = vmul.f32 %v1272, %v1403
      %v1406 = vmul.f32 %v1275, %v1403
      %v1407 = vmul.f32 %v1280, %v1403
      %v1408 = vmul.f32 %v1283, %v1403
      %v1409 = vmul.f32 %v1288, %v1403
      %v1410 = vmul.f32 %v1291, %v1403
      %v1411 = vmul.f32 %v1296, %v1403
      %v1412 = vmul.f32 %v1299, %v1403
      %v1413 = vmul.f32 %v1304, %v1403
      %v1414 = vmul.f32 %v1307, %v1403
      %v1415 = vmul.f32 %v1312, %v1403
      %v1416 = vmul.f32 %v1315, %v1403
      %v1417 = vmul.f32 %v1320, %v1403
      %v1418 = vmul.f32 %v1323, %v1403
      %v1419 = vmul.f32 %v1328, %v1403
      %v1420 = vmul.f32 %v1331, %v1403
      %v1421 = vmul.f32 %v1336, %v1403
      %v1422 = vmul.f32 %v1339, %v1403
      %v1423 = vmul.f32 %v1344, %v1403
      %v1424 = vmul.f32 %v1347, %v1403
      %v1425 = vmul.f32 %v1352, %v1403
      %v1426 = vmul.f32 %v1355, %v1403
      %v1427 = vmul.f32 %v1360, %v1403
      %v1428 = vmul.f32 %v1363, %v1403
      %v1429 = vmul.f32 %v1368, %v1403
      %v1430 = vmul.f32 %v1371, %v1403
      %v1431 = vmul.f32 %v1376, %v1403
      %v1432 = vmul.f32 %v1379, %v1403
      %v1433 = vmul.f32 %v1384, %v1403
      %v1434 = vmul.f32 %v1387, %v1403
      %v1435 = vmul.f32 %v1392, %v1403
      %v1436 = vmul.f32 %v1395, %v1403
      %v1437 = vld [vmem:[%s6] sm:$0x1]
      %v1439 = vlaneseq
      %v1440 = vshrl.u32 %v1439, 7
      %v1441 = vsub.s32 0, %v1440
      %v1442 = vrot.slane %v1437, %v1441
      %v1444 = vadd.f32 %v1405, %v1442
      %v1445 = vadd.f32 %v1406, %v1442
      %v1446 = vadd.f32 %v1407, %v1442
      %v1447 = vadd.f32 %v1408, %v1442
      %v1448 = vadd.f32 %v1409, %v1442
      %v1449 = vadd.f32 %v1410, %v1442
      %v1450 = vadd.f32 %v1411, %v1442
      %v1451 = vadd.f32 %v1412, %v1442
      %v1452 = vadd.f32 %v1413, %v1442
      %v1453 = vadd.f32 %v1414, %v1442
      %v1454 = vadd.f32 %v1415, %v1442
      %v1455 = vadd.f32 %v1416, %v1442
      %v1456 = vadd.f32 %v1417, %v1442
      %v1457 = vadd.f32 %v1418, %v1442
      %v1458 = vadd.f32 %v1419, %v1442
      %v1459 = vadd.f32 %v1420, %v1442
      %v1460 = vadd.f32 %v1421, %v1442
      %v1461 = vadd.f32 %v1422, %v1442
      %v1462 = vadd.f32 %v1423, %v1442
      %v1463 = vadd.f32 %v1424, %v1442
      %v1464 = vadd.f32 %v1425, %v1442
      %v1465 = vadd.f32 %v1426, %v1442
      %v1466 = vadd.f32 %v1427, %v1442
      %v1467 = vadd.f32 %v1428, %v1442
      %v1468 = vadd.f32 %v1429, %v1442
      %v1469 = vadd.f32 %v1430, %v1442
      %v1470 = vadd.f32 %v1431, %v1442
      %v1471 = vadd.f32 %v1432, %v1442
      %v1472 = vadd.f32 %v1433, %v1442
      %v1473 = vadd.f32 %v1434, %v1442
      %v1474 = vadd.f32 %v1435, %v1442
      %v1475 = vadd.f32 %v1436, %v1442
      %v1476 = vmax.f32 %v1444, 0.0
      %v1477 = vmax.f32 %v1445, 0.0
      %v1478 = vmax.f32 %v1446, 0.0
      %v1479 = vmax.f32 %v1447, 0.0
      %v1480 = vmax.f32 %v1448, 0.0
      %v1481 = vmax.f32 %v1449, 0.0
      %v1482 = vmax.f32 %v1450, 0.0
      %v1483 = vmax.f32 %v1451, 0.0
      %v1484 = vmax.f32 %v1452, 0.0
      %v1485 = vmax.f32 %v1453, 0.0
      %v1486 = vmax.f32 %v1454, 0.0
      %v1487 = vmax.f32 %v1455, 0.0
      %v1488 = vmax.f32 %v1456, 0.0
      %v1489 = vmax.f32 %v1457, 0.0
      %v1490 = vmax.f32 %v1458, 0.0
      %v1491 = vmax.f32 %v1459, 0.0
      %v1492 = vmax.f32 %v1460, 0.0
      %v1493 = vmax.f32 %v1461, 0.0
      %v1494 = vmax.f32 %v1462, 0.0
      %v1495 = vmax.f32 %v1463, 0.0
      %v1496 = vmax.f32 %v1464, 0.0
      %v1497 = vmax.f32 %v1465, 0.0
      %v1498 = vmax.f32 %v1466, 0.0
      %v1499 = vmax.f32 %v1467, 0.0
      %v1500 = vmax.f32 %v1468, 0.0
      %v1501 = vmax.f32 %v1469, 0.0
      %v1502 = vmax.f32 %v1470, 0.0
      %v1503 = vmax.f32 %v1471, 0.0
      %v1504 = vmax.f32 %v1472, 0.0
      %v1505 = vmax.f32 %v1473, 0.0
      %v1506 = vmax.f32 %v1474, 0.0
      %v1507 = vmax.f32 %v1475, 0.0
      %v1508 = vpack.c.bf16 %v1477, %v1476
      %v1509 = vpack.c.bf16 %v1479, %v1478
      %v1510 = vpack.c.bf16 %v1481, %v1480
      %v1511 = vpack.c.bf16 %v1483, %v1482
      %v1512 = vpack.c.bf16 %v1485, %v1484
      %v1513 = vpack.c.bf16 %v1487, %v1486
      %v1514 = vpack.c.bf16 %v1489, %v1488
      %v1515 = vpack.c.bf16 %v1491, %v1490
      %v1516 = vpack.c.bf16 %v1493, %v1492
      %v1517 = vpack.c.bf16 %v1495, %v1494
      %v1518 = vpack.c.bf16 %v1497, %v1496
      %v1519 = vpack.c.bf16 %v1499, %v1498
      %v1520 = vpack.c.bf16 %v1501, %v1500
      %v1521 = vpack.c.bf16 %v1503, %v1502
      %v1522 = vpack.c.bf16 %v1505, %v1504
      %v1523 = vpack.c.bf16 %v1507, %v1506
      %v1524 = vld [vmem:[%s7] sm:$0xff]
      %v1525 = vld [vmem:[%s7 + $0x8] sm:$0xff]
      %v1526 = vld [vmem:[%s7 + $0x10] sm:$0xff]
      %v1527 = vld [vmem:[%s7 + $0x18] sm:$0xff]
      %v1528 = vld [vmem:[%s7 + $0x20] sm:$0xff]
      %v1529 = vld [vmem:[%s7 + $0x28] sm:$0xff]
      %v1530 = vld [vmem:[%s7 + $0x30] sm:$0xff]
      %v1531 = vld [vmem:[%s7 + $0x38] sm:$0xff]
      %v1532 = vld [vmem:[%s7 + $0x40] sm:$0xff]
      %v1533 = vld [vmem:[%s7 + $0x48] sm:$0xff]
      %v1534 = vld [vmem:[%s7 + $0x50] sm:$0xff]
      %v1535 = vld [vmem:[%s7 + $0x58] sm:$0xff]
      %v1536 = vld [vmem:[%s7 + $0x60] sm:$0xff]
      %v1537 = vld [vmem:[%s7 + $0x68] sm:$0xff]
      %v1538 = vld [vmem:[%s7 + $0x70] sm:$0xff]
      %v1539 = vld [vmem:[%s7 + $0x78] sm:$0xff]
      %v1540 = vld [vmem:[%s7 + $0x80] sm:$0xff]
      %v1541 = vld [vmem:[%s7 + $0x88] sm:$0xff]
      %v1542 = vld [vmem:[%s7 + $0x90] sm:$0xff]
      %v1543 = vld [vmem:[%s7 + $0x98] sm:$0xff]
      %v1544 = vld [vmem:[%s7 + $0xa0] sm:$0xff]
      %v1545 = vld [vmem:[%s7 + $0xa8] sm:$0xff]
      %v1546 = vld [vmem:[%s7 + $0xb0] sm:$0xff]
      %v1547 = vld [vmem:[%s7 + $0xb8] sm:$0xff]
      %v1548 = vld [vmem:[%s7 + $0xc0] sm:$0xff]
      %v1549 = vld [vmem:[%s7 + $0xc8] sm:$0xff]
      %v1550 = vld [vmem:[%s7 + $0xd0] sm:$0xff]
      %v1551 = vld [vmem:[%s7 + $0xd8] sm:$0xff]
      %v1552 = vld [vmem:[%s7 + $0xe0] sm:$0xff]
      %v1553 = vld [vmem:[%s7 + $0xe8] sm:$0xff]
      %v1554 = vld [vmem:[%s7 + $0xf0] sm:$0xff]
      %v1555 = vld [vmem:[%s7 + $0xf8] sm:$0xff]
      %v1556 = vld [vmem:[%s7 + $0x100] sm:$0xff]
      %v1557 = vld [vmem:[%s7 + $0x108] sm:$0xff]
      %v1558 = vld [vmem:[%s7 + $0x110] sm:$0xff]
      %v1559 = vld [vmem:[%s7 + $0x118] sm:$0xff]
      %v1560 = vld [vmem:[%s7 + $0x120] sm:$0xff]
      %v1561 = vld [vmem:[%s7 + $0x128] sm:$0xff]
      %v1562 = vld [vmem:[%s7 + $0x130] sm:$0xff]
      %v1563 = vld [vmem:[%s7 + $0x138] sm:$0xff]
      %v1564 = vld [vmem:[%s7 + $0x140] sm:$0xff]
      %v1565 = vld [vmem:[%s7 + $0x148] sm:$0xff]
      %v1566 = vld [vmem:[%s7 + $0x150] sm:$0xff]
      %v1567 = vld [vmem:[%s7 + $0x158] sm:$0xff]
      %v1568 = vld [vmem:[%s7 + $0x160] sm:$0xff]
      %v1569 = vld [vmem:[%s7 + $0x168] sm:$0xff]
      %v1570 = vld [vmem:[%s7 + $0x170] sm:$0xff]
      %v1571 = vld [vmem:[%s7 + $0x178] sm:$0xff]
      %v1572 = vld [vmem:[%s7 + $0x180] sm:$0xff]
      %v1573 = vld [vmem:[%s7 + $0x188] sm:$0xff]
      %v1574 = vld [vmem:[%s7 + $0x190] sm:$0xff]
      %v1575 = vld [vmem:[%s7 + $0x198] sm:$0xff]
      %v1576 = vld [vmem:[%s7 + $0x1a0] sm:$0xff]
      %v1577 = vld [vmem:[%s7 + $0x1a8] sm:$0xff]
      %v1578 = vld [vmem:[%s7 + $0x1b0] sm:$0xff]
      %v1579 = vld [vmem:[%s7 + $0x1b8] sm:$0xff]
      %v1580 = vld [vmem:[%s7 + $0x1c0] sm:$0xff]
      %v1581 = vld [vmem:[%s7 + $0x1c8] sm:$0xff]
      %v1582 = vld [vmem:[%s7 + $0x1d0] sm:$0xff]
      %v1583 = vld [vmem:[%s7 + $0x1d8] sm:$0xff]
      %v1584 = vld [vmem:[%s7 + $0x1e0] sm:$0xff]
      %v1585 = vld [vmem:[%s7 + $0x1e8] sm:$0xff]
      %v1586 = vld [vmem:[%s7 + $0x1f0] sm:$0xff]
      %v1587 = vld [vmem:[%s7 + $0x1f8] sm:$0xff]
      %v1652 = vunpack.c.l.b16 %v1524
      %v1653 = vunpack.c.h.b16 %v1524
      %v1654 = vunpack.c.l.b16 %v1525
      %v1655 = vunpack.c.h.b16 %v1525
      %v1656 = vunpack.c.l.b16 %v1526
      %v1657 = vunpack.c.h.b16 %v1526
      %v1658 = vunpack.c.l.b16 %v1527
      %v1659 = vunpack.c.h.b16 %v1527
      %v1660 = vunpack.c.l.b16 %v1528
      %v1661 = vunpack.c.h.b16 %v1528
      %v1662 = vunpack.c.l.b16 %v1529
      %v1663 = vunpack.c.h.b16 %v1529
      %v1664 = vunpack.c.l.b16 %v1530
      %v1665 = vunpack.c.h.b16 %v1530
      %v1666 = vunpack.c.l.b16 %v1531
      %v1667 = vunpack.c.h.b16 %v1531
      %v1668 = vunpack.c.l.b16 %v1532
      %v1669 = vunpack.c.h.b16 %v1532
      %v1670 = vunpack.c.l.b16 %v1533
      %v1671 = vunpack.c.h.b16 %v1533
      %v1672 = vunpack.c.l.b16 %v1534
      %v1673 = vunpack.c.h.b16 %v1534
      %v1674 = vunpack.c.l.b16 %v1535
      %v1675 = vunpack.c.h.b16 %v1535
      %v1676 = vunpack.c.l.b16 %v1536
      %v1677 = vunpack.c.h.b16 %v1536
      %v1678 = vunpack.c.l.b16 %v1537
      %v1679 = vunpack.c.h.b16 %v1537
      %v1680 = vunpack.c.l.b16 %v1538
      %v1681 = vunpack.c.h.b16 %v1538
      %v1682 = vunpack.c.l.b16 %v1539
      %v1683 = vunpack.c.h.b16 %v1539
      %v1684 = vunpack.c.l.b16 %v1540
      %v1685 = vunpack.c.h.b16 %v1540
      %v1686 = vunpack.c.l.b16 %v1541
      %v1687 = vunpack.c.h.b16 %v1541
      %v1688 = vunpack.c.l.b16 %v1542
      %v1689 = vunpack.c.h.b16 %v1542
      %v1690 = vunpack.c.l.b16 %v1543
      %v1691 = vunpack.c.h.b16 %v1543
      %v1692 = vunpack.c.l.b16 %v1544
      %v1693 = vunpack.c.h.b16 %v1544
      %v1694 = vunpack.c.l.b16 %v1545
      %v1695 = vunpack.c.h.b16 %v1545
      %v1696 = vunpack.c.l.b16 %v1546
      %v1697 = vunpack.c.h.b16 %v1546
      %v1698 = vunpack.c.l.b16 %v1547
      %v1699 = vunpack.c.h.b16 %v1547
      %v1700 = vunpack.c.l.b16 %v1548
      %v1701 = vunpack.c.h.b16 %v1548
      %v1702 = vunpack.c.l.b16 %v1549
      %v1703 = vunpack.c.h.b16 %v1549
      %v1704 = vunpack.c.l.b16 %v1550
      %v1705 = vunpack.c.h.b16 %v1550
      %v1706 = vunpack.c.l.b16 %v1551
      %v1707 = vunpack.c.h.b16 %v1551
      %v1708 = vunpack.c.l.b16 %v1552
      %v1709 = vunpack.c.h.b16 %v1552
      %v1710 = vunpack.c.l.b16 %v1553
      %v1711 = vunpack.c.h.b16 %v1553
      %v1712 = vunpack.c.l.b16 %v1554
      %v1713 = vunpack.c.h.b16 %v1554
      %v1714 = vunpack.c.l.b16 %v1555
      %v1715 = vunpack.c.h.b16 %v1555
      %v1716 = vunpack.c.l.b16 %v1556
      %v1717 = vunpack.c.h.b16 %v1556
      %v1718 = vunpack.c.l.b16 %v1557
      %v1719 = vunpack.c.h.b16 %v1557
      %v1720 = vunpack.c.l.b16 %v1558
      %v1721 = vunpack.c.h.b16 %v1558
      %v1722 = vunpack.c.l.b16 %v1559
      %v1723 = vunpack.c.h.b16 %v1559
      %v1724 = vunpack.c.l.b16 %v1560
      %v1725 = vunpack.c.h.b16 %v1560
      %v1726 = vunpack.c.l.b16 %v1561
      %v1727 = vunpack.c.h.b16 %v1561
      %v1728 = vunpack.c.l.b16 %v1562
      %v1729 = vunpack.c.h.b16 %v1562
      %v1730 = vunpack.c.l.b16 %v1563
      %v1731 = vunpack.c.h.b16 %v1563
      %v1732 = vunpack.c.l.b16 %v1564
      %v1733 = vunpack.c.h.b16 %v1564
      %v1734 = vunpack.c.l.b16 %v1565
      %v1735 = vunpack.c.h.b16 %v1565
      %v1736 = vunpack.c.l.b16 %v1566
      %v1737 = vunpack.c.h.b16 %v1566
      %v1738 = vunpack.c.l.b16 %v1567
      %v1739 = vunpack.c.h.b16 %v1567
      %v1740 = vunpack.c.l.b16 %v1568
      %v1741 = vunpack.c.h.b16 %v1568
      %v1742 = vunpack.c.l.b16 %v1569
      %v1743 = vunpack.c.h.b16 %v1569
      %v1744 = vunpack.c.l.b16 %v1570
      %v1745 = vunpack.c.h.b16 %v1570
      %v1746 = vunpack.c.l.b16 %v1571
      %v1747 = vunpack.c.h.b16 %v1571
      %v1748 = vunpack.c.l.b16 %v1572
      %v1749 = vunpack.c.h.b16 %v1572
      %v1750 = vunpack.c.l.b16 %v1573
      %v1751 = vunpack.c.h.b16 %v1573
      %v1752 = vunpack.c.l.b16 %v1574
      %v1753 = vunpack.c.h.b16 %v1574
      %v1754 = vunpack.c.l.b16 %v1575
      %v1755 = vunpack.c.h.b16 %v1575
      %v1756 = vunpack.c.l.b16 %v1576
      %v1757 = vunpack.c.h.b16 %v1576
      %v1758 = vunpack.c.l.b16 %v1577
      %v1759 = vunpack.c.h.b16 %v1577
      %v1760 = vunpack.c.l.b16 %v1578
      %v1761 = vunpack.c.h.b16 %v1578
      %v1762 = vunpack.c.l.b16 %v1579
      %v1763 = vunpack.c.h.b16 %v1579
      %v1764 = vunpack.c.l.b16 %v1580
      %v1765 = vunpack.c.h.b16 %v1580
      %v1766 = vunpack.c.l.b16 %v1581
      %v1767 = vunpack.c.h.b16 %v1581
      %v1768 = vunpack.c.l.b16 %v1582
      %v1769 = vunpack.c.h.b16 %v1582
      %v1770 = vunpack.c.l.b16 %v1583
      %v1771 = vunpack.c.h.b16 %v1583
      %v1772 = vunpack.c.l.b16 %v1584
      %v1773 = vunpack.c.h.b16 %v1584
      %v1774 = vunpack.c.l.b16 %v1585
      %v1775 = vunpack.c.h.b16 %v1585
      %v1776 = vunpack.c.l.b16 %v1586
      %v1777 = vunpack.c.h.b16 %v1586
      %v1778 = vunpack.c.l.b16 %v1587
      %v1779 = vunpack.c.h.b16 %v1587
      %v1780 = vpack.c.b16 %v1660, %v1652
      %v1781 = vpack.c.b16 %v1661, %v1653
      %v1782 = vpack.c.b16 %v1662, %v1654
      %v1783 = vpack.c.b16 %v1663, %v1655
      %v1784 = vpack.c.b16 %v1664, %v1656
      %v1785 = vpack.c.b16 %v1665, %v1657
      %v1786 = vpack.c.b16 %v1666, %v1658
      %v1787 = vpack.c.b16 %v1667, %v1659
      %v1788 = vpack.c.b16 %v1676, %v1668
      %v1789 = vpack.c.b16 %v1677, %v1669
      %v1790 = vpack.c.b16 %v1678, %v1670
      %v1791 = vpack.c.b16 %v1679, %v1671
      %v1792 = vpack.c.b16 %v1680, %v1672
      %v1793 = vpack.c.b16 %v1681, %v1673
      %v1794 = vpack.c.b16 %v1682, %v1674
      %v1795 = vpack.c.b16 %v1683, %v1675
      %v1796 = vpack.c.b16 %v1692, %v1684
      %v1797 = vpack.c.b16 %v1693, %v1685
      %v1798 = vpack.c.b16 %v1694, %v1686
      %v1799 = vpack.c.b16 %v1695, %v1687
      %v1800 = vpack.c.b16 %v1696, %v1688
      %v1801 = vpack.c.b16 %v1697, %v1689
      %v1802 = vpack.c.b16 %v1698, %v1690
      %v1803 = vpack.c.b16 %v1699, %v1691
      %v1804 = vpack.c.b16 %v1708, %v1700
      %v1805 = vpack.c.b16 %v1709, %v1701
      %v1806 = vpack.c.b16 %v1710, %v1702
      %v1807 = vpack.c.b16 %v1711, %v1703
      %v1808 = vpack.c.b16 %v1712, %v1704
      %v1809 = vpack.c.b16 %v1713, %v1705
      %v1810 = vpack.c.b16 %v1714, %v1706
      %v1811 = vpack.c.b16 %v1715, %v1707
      %v1812 = vpack.c.b16 %v1724, %v1716
      %v1813 = vpack.c.b16 %v1725, %v1717
      %v1814 = vpack.c.b16 %v1726, %v1718
      %v1815 = vpack.c.b16 %v1727, %v1719
      %v1816 = vpack.c.b16 %v1728, %v1720
      %v1817 = vpack.c.b16 %v1729, %v1721
      %v1818 = vpack.c.b16 %v1730, %v1722
      %v1819 = vpack.c.b16 %v1731, %v1723
      %v1820 = vpack.c.b16 %v1740, %v1732
      %v1821 = vpack.c.b16 %v1741, %v1733
      %v1822 = vpack.c.b16 %v1742, %v1734
      %v1823 = vpack.c.b16 %v1743, %v1735
      %v1824 = vpack.c.b16 %v1744, %v1736
      %v1825 = vpack.c.b16 %v1745, %v1737
      %v1826 = vpack.c.b16 %v1746, %v1738
      %v1827 = vpack.c.b16 %v1747, %v1739
      %v1828 = vpack.c.b16 %v1756, %v1748
      %v1829 = vpack.c.b16 %v1757, %v1749
      %v1830 = vpack.c.b16 %v1758, %v1750
      %v1831 = vpack.c.b16 %v1759, %v1751
      %v1832 = vpack.c.b16 %v1760, %v1752
      %v1833 = vpack.c.b16 %v1761, %v1753
      %v1834 = vpack.c.b16 %v1762, %v1754
      %v1835 = vpack.c.b16 %v1763, %v1755
      %v1836 = vpack.c.b16 %v1772, %v1764
      %v1837 = vpack.c.b16 %v1773, %v1765
      %v1838 = vpack.c.b16 %v1774, %v1766
      %v1839 = vpack.c.b16 %v1775, %v1767
      %v1840 = vpack.c.b16 %v1776, %v1768
      %v1841 = vpack.c.b16 %v1777, %v1769
      %v1842 = vpack.c.b16 %v1778, %v1770
      %v1843 = vpack.c.b16 %v1779, %v1771
      %1908 = vmatprep.subr.bf16.mxu0 %v1781
      %1909 = vmatpush1.bf16.msra.mxu0 %v1780
      %1910 = vmatprep.subr.bf16.mxu0 %v1789
      %1911 = vmatpush1.bf16.msra.mxu0 %v1788
      %1912 = vmatprep.subr.bf16.mxu0 %v1797
      %1913 = vmatpush1.bf16.msra.mxu0 %v1796
      %1914 = vmatprep.subr.bf16.mxu0 %v1805
      %1915 = vmatpush1.bf16.msra.mxu0 %v1804
      %1916 = vmatprep.subr.bf16.mxu0 %v1813
      %1917 = vmatpush1.bf16.msra.mxu0 %v1812
      %1918 = vmatprep.subr.bf16.mxu0 %v1821
      %1919 = vmatpush1.bf16.msra.mxu0 %v1820
      %1920 = vmatprep.subr.bf16.mxu0 %v1829
      %1921 = vmatpush1.bf16.msra.mxu0 %v1828
      %1922 = vmatprep.subr.bf16.mxu0 %v1837
      %1923 = vmatpush1.bf16.msra.mxu0 %v1836
      %1924 = vmatprep.subr.bf16.mxu0 0
      %1925 = vmatpush1.bf16.msra.mxu0 0
      %1926 = vmatprep.subr.bf16.mxu0 0
      %1927 = vmatpush1.bf16.msra.mxu0 0
      %1928 = vmatprep.subr.bf16.mxu0 0
      %1929 = vmatpush1.bf16.msra.mxu0 0
      %1930 = vmatprep.subr.bf16.mxu0 0
      %1931 = vmatpush1.bf16.msra.mxu0 0
      %1932 = vmatprep.subr.bf16.mxu0 0
      %1933 = vmatpush1.bf16.msra.mxu0 0
      %1934 = vmatprep.subr.bf16.mxu0 0
      %1935 = vmatpush1.bf16.msra.mxu0 0
      %1936 = vmatprep.subr.bf16.mxu0 0
      %1937 = vmatpush1.bf16.msra.mxu0 0
      %1938 = vmatprep.subr.bf16.mxu0 0
      %1939 = vmatpush1.bf16.msra.mxu0 0
      %1940 = vmatprep.mubr.bf16.mxu0 0
      %1941 = vmatmul.mubr.bf16.gmra.mrb[0].mxu0 %v1508
      %v1942 = vpop.f32.mrb[0].mxu0
      %v1943 = vadd.f32 0.0, %v1942
      %v1944 = vpop.f32.mrb[0].mxu0
      %v1945 = vadd.f32 0.0, %v1944
      %v1946 = vpop.f32.mrb[0].mxu0
      %v1947 = vadd.f32 0.0, %v1946
      %v1948 = vpop.f32.mrb[0].mxu0
      %v1949 = vadd.f32 0.0, %v1948
      %1950 = vmatprep.mubr.bf16.mxu0 0
      %1951 = vmatmul.mubr.bf16.gmra.mrb[0].mxu0 %v1509
      %v1952 = vpop.f32.mrb[0].mxu0
      %v1953 = vadd.f32 0.0, %v1952
      %v1954 = vpop.f32.mrb[0].mxu0
      %v1955 = vadd.f32 0.0, %v1954
      %v1956 = vpop.f32.mrb[0].mxu0
      %v1957 = vadd.f32 0.0, %v1956
      %v1958 = vpop.f32.mrb[0].mxu0
      %v1959 = vadd.f32 0.0, %v1958
      %1960 = vmatprep.mubr.bf16.mxu0 0
      %1961 = vmatmul.mubr.bf16.gmra.mrb[0].mxu0 %v1510
      %v1962 = vpop.f32.mrb[0].mxu0
      %v1963 = vadd.f32 0.0, %v1962
      %v1964 = vpop.f32.mrb[0].mxu0
      %v1965 = vadd.f32 0.0, %v1964
      %v1966 = vpop.f32.mrb[0].mxu0
      %v1967 = vadd.f32 0.0, %v1966
      %v1968 = vpop.f32.mrb[0].mxu0
      %v1969 = vadd.f32 0.0, %v1968
      %1970 = vmatprep.mubr.bf16.mxu0 0
      %1971 = vmatmul.mubr.bf16.gmra.mrb[0].mxu0 %v1511
      %v1972 = vpop.f32.mrb[0].mxu0
      %v1973 = vadd.f32 0.0, %v1972
      %v1974 = vpop.f32.mrb[0].mxu0
      %v1975 = vadd.f32 0.0, %v1974
      %v1976 = vpop.f32.mrb[0].mxu0
      %v1977 = vadd.f32 0.0, %v1976
      %v1978 = vpop.f32.mrb[0].mxu0
      %v1979 = vadd.f32 0.0, %v1978
      %1980 = vmatprep.mubr.bf16.mxu0 0
      %1981 = vmatmul.mubr.bf16.gmra.mrb[0].mxu0 %v1512
      %v1982 = vpop.f32.mrb[0].mxu0
      %v1983 = vadd.f32 0.0, %v1982
      %v1984 = vpop.f32.mrb[0].mxu0
      %v1985 = vadd.f32 0.0, %v1984
      %v1986 = vpop.f32.mrb[0].mxu0
      %v1987 = vadd.f32 0.0, %v1986
      %v1988 = vpop.f32.mrb[0].mxu0
      %v1989 = vadd.f32 0.0, %v1988
      %1990 = vmatprep.mubr.bf16.mxu0 0
      %1991 = vmatmul.mubr.bf16.gmra.mrb[0].mxu0 %v1513
      %v1992 = vpop.f32.mrb[0].mxu0
      %v1993 = vadd.f32 0.0, %v1992
      %v1994 = vpop.f32.mrb[0].mxu0
      %v1995 = vadd.f32 0.0, %v1994
      %v1996 = vpop.f32.mrb[0].mxu0
      %v1997 = vadd.f32 0.0, %v1996
      %v1998 = vpop.f32.mrb[0].mxu0
      %v1999 = vadd.f32 0.0, %v1998
      %2000 = vmatprep.mubr.bf16.mxu0 0
      %2001 = vmatmul.mubr.bf16.gmra.mrb[0].mxu0 %v1514
      %v2002 = vpop.f32.mrb[0].mxu0
      %v2003 = vadd.f32 0.0, %v2002
      %v2004 = vpop.f32.mrb[0].mxu0
      %v2005 = vadd.f32 0.0, %v2004
      %v2006 = vpop.f32.mrb[0].mxu0
      %v2007 = vadd.f32 0.0, %v2006
      %v2008 = vpop.f32.mrb[0].mxu0
      %v2009 = vadd.f32 0.0, %v2008
      %2010 = vmatprep.mubr.bf16.mxu0 0
      %2011 = vmatmul.mubr.bf16.gmra.mrb[0].mxu0 %v1515
      %v2012 = vpop.f32.mrb[0].mxu0
      %v2013 = vadd.f32 0.0, %v2012
      %v2014 = vpop.f32.mrb[0].mxu0
      %v2015 = vadd.f32 0.0, %v2014
      %v2016 = vpop.f32.mrb[0].mxu0
      %v2017 = vadd.f32 0.0, %v2016
      %v2018 = vpop.f32.mrb[0].mxu0
      %v2019 = vadd.f32 0.0, %v2018
      %2020 = vmatprep.mubr.bf16.mxu0 0
      %2021 = vmatmul.mubr.bf16.gmra.mrb[0].mxu0 %v1516
      %v2022 = vpop.f32.mrb[0].mxu0
      %v2023 = vadd.f32 0.0, %v2022
      %v2024 = vpop.f32.mrb[0].mxu0
      %v2025 = vadd.f32 0.0, %v2024
      %v2026 = vpop.f32.mrb[0].mxu0
      %v2027 = vadd.f32 0.0, %v2026
      %v2028 = vpop.f32.mrb[0].mxu0
      %v2029 = vadd.f32 0.0, %v2028
      %2030 = vmatprep.mubr.bf16.mxu0 0
      %2031 = vmatmul.mubr.bf16.gmra.mrb[0].mxu0 %v1517
      %v2032 = vpop.f32.mrb[0].mxu0
      %v2033 = vadd.f32 0.0, %v2032
      %v2034 = vpop.f32.mrb[0].mxu0
      %v2035 = vadd.f32 0.0, %v2034
      %v2036 = vpop.f32.mrb[0].mxu0
      %v2037 = vadd.f32 0.0, %v2036
      %v2038 = vpop.f32.mrb[0].mxu0
      %v2039 = vadd.f32 0.0, %v2038
      %2040 = vmatprep.mubr.bf16.mxu0 0
      %2041 = vmatmul.mubr.bf16.gmra.mrb[0].mxu0 %v1518
      %v2042 = vpop.f32.mrb[0].mxu0
      %v2043 = vadd.f32 0.0, %v2042
      %v2044 = vpop.f32.mrb[0].mxu0
      %v2045 = vadd.f32 0.0, %v2044
      %v2046 = vpop.f32.mrb[0].mxu0
      %v2047 = vadd.f32 0.0, %v2046
      %v2048 = vpop.f32.mrb[0].mxu0
      %v2049 = vadd.f32 0.0, %v2048
      %2050 = vmatprep.mubr.bf16.mxu0 0
      %2051 = vmatmul.mubr.bf16.gmra.mrb[0].mxu0 %v1519
      %v2052 = vpop.f32.mrb[0].mxu0
      %v2053 = vadd.f32 0.0, %v2052
      %v2054 = vpop.f32.mrb[0].mxu0
      %v2055 = vadd.f32 0.0, %v2054
      %v2056 = vpop.f32.mrb[0].mxu0
      %v2057 = vadd.f32 0.0, %v2056
      %v2058 = vpop.f32.mrb[0].mxu0
      %v2059 = vadd.f32 0.0, %v2058
      %2060 = vmatprep.mubr.bf16.mxu0 0
      %2061 = vmatmul.mubr.bf16.gmra.mrb[0].mxu0 %v1520
      %v2062 = vpop.f32.mrb[0].mxu0
      %v2063 = vadd.f32 0.0, %v2062
      %v2064 = vpop.f32.mrb[0].mxu0
      %v2065 = vadd.f32 0.0, %v2064
      %v2066 = vpop.f32.mrb[0].mxu0
      %v2067 = vadd.f32 0.0, %v2066
      %v2068 = vpop.f32.mrb[0].mxu0
      %v2069 = vadd.f32 0.0, %v2068
      %2070 = vmatprep.mubr.bf16.mxu0 0
      %2071 = vmatmul.mubr.bf16.gmra.mrb[0].mxu0 %v1521
      %v2072 = vpop.f32.mrb[0].mxu0
      %v2073 = vadd.f32 0.0, %v2072
      %v2074 = vpop.f32.mrb[0].mxu0
      %v2075 = vadd.f32 0.0, %v2074
      %v2076 = vpop.f32.mrb[0].mxu0
      %v2077 = vadd.f32 0.0, %v2076
      %v2078 = vpop.f32.mrb[0].mxu0
      %v2079 = vadd.f32 0.0, %v2078
      %2080 = vmatprep.mubr.bf16.mxu0 0
      %2081 = vmatmul.mubr.bf16.gmra.mrb[0].mxu0 %v1522
      %v2082 = vpop.f32.mrb[0].mxu0
      %v2083 = vadd.f32 0.0, %v2082
      %v2084 = vpop.f32.mrb[0].mxu0
      %v2085 = vadd.f32 0.0, %v2084
      %v2086 = vpop.f32.mrb[0].mxu0
      %v2087 = vadd.f32 0.0, %v2086
      %v2088 = vpop.f32.mrb[0].mxu0
      %v2089 = vadd.f32 0.0, %v2088
      %2090 = vmatprep.mubr.bf16.mxu0 0
      %2091 = vmatmul.mubr.bf16.gmra.mrb[0].mxu0 %v1523
      %v2092 = vpop.f32.mrb[0].mxu0
      %v2093 = vadd.f32 0.0, %v2092
      %v2094 = vpop.f32.mrb[0].mxu0
      %v2095 = vadd.f32 0.0, %v2094
      %v2096 = vpop.f32.mrb[0].mxu0
      %v2097 = vadd.f32 0.0, %v2096
      %v2098 = vpop.f32.mrb[0].mxu0
      %v2099 = vadd.f32 0.0, %v2098
      %2100 = vdwg.mxu0
      %2101 = vmatprep.subr.bf16.mxu0 %v1783
      %2102 = vmatpush1.bf16.msra.mxu0 %v1782
      %2103 = vmatprep.subr.bf16.mxu0 %v1791
      %2104 = vmatpush1.bf16.msra.mxu0 %v1790
      %2105 = vmatprep.subr.bf16.mxu0 %v1799
      %2106 = vmatpush1.bf16.msra.mxu0 %v1798
      %2107 = vmatprep.subr.bf16.mxu0 %v1807
      %2108 = vmatpush1.bf16.msra.mxu0 %v1806
      %2109 = vmatprep.subr.bf16.mxu0 %v1815
      %2110 = vmatpush1.bf16.msra.mxu0 %v1814
      %2111 = vmatprep.subr.bf16.mxu0 %v1823
      %2112 = vmatpush1.bf16.msra.mxu0 %v1822
      %2113 = vmatprep.subr.bf16.mxu0 %v1831
      %2114 = vmatpush1.bf16.msra.mxu0 %v1830
      %2115 = vmatprep.subr.bf16.mxu0 %v1839
      %2116 = vmatpush1.bf16.msra.mxu0 %v1838
      %2117 = vmatprep.subr.bf16.mxu0 0
      %2118 = vmatpush1.bf16.msra.mxu0 0
      %2119 = vmatprep.subr.bf16.mxu0 0
      %2120 = vmatpush1.bf16.msra.mxu0 0
      %2121 = vmatprep.subr.bf16.mxu0 0
      %2122 = vmatpush1.bf16.msra.mxu0 0
      %2123 = vmatprep.subr.bf16.mxu0 0
      %2124 = vmatpush1.bf16.msra.mxu0 0
      %2125 = vmatprep.subr.bf16.mxu0 0
      %2126 = vmatpush1.bf16.msra.mxu0 0
      %2127 = vmatprep.subr.bf16.mxu0 0
      %2128 = vmatpush1.bf16.msra.mxu0 0
      %2129 = vmatprep.subr.bf16.mxu0 0
      %2130 = vmatpush1.bf16.msra.mxu0 0
      %2131 = vmatprep.subr.bf16.mxu0 0
      %2132 = vmatpush1.bf16.msra.mxu0 0
      %2133 = vmatprep.mubr.bf16.mxu0 0
      %2134 = vmatmul.mubr.bf16.gmra.mrb[0].mxu0 %v1508
      %v2135 = vpop.f32.mrb[0].mxu0
      %v2136 = vadd.f32 0.0, %v2135
      %v2137 = vpop.f32.mrb[0].mxu0
      %v2138 = vadd.f32 0.0, %v2137
      %v2139 = vpop.f32.mrb[0].mxu0
      %v2140 = vadd.f32 0.0, %v2139
      %v2141 = vpop.f32.mrb[0].mxu0
      %v2142 = vadd.f32 0.0, %v2141
      %2143 = vmatprep.mubr.bf16.mxu0 0
      %2144 = vmatmul.mubr.bf16.gmra.mrb[0].mxu0 %v1509
      %v2145 = vpop.f32.mrb[0].mxu0
      %v2146 = vadd.f32 0.0, %v2145
      %v2147 = vpop.f32.mrb[0].mxu0
      %v2148 = vadd.f32 0.0, %v2147
      %v2149 = vpop.f32.mrb[0].mxu0
      %v2150 = vadd.f32 0.0, %v2149
      %v2151 = vpop.f32.mrb[0].mxu0
      %v2152 = vadd.f32 0.0, %v2151
      %2153 = vmatprep.mubr.bf16.mxu0 0
      %2154 = vmatmul.mubr.bf16.gmra.mrb[0].mxu0 %v1510
      %v2155 = vpop.f32.mrb[0].mxu0
      %v2156 = vadd.f32 0.0, %v2155
      %v2157 = vpop.f32.mrb[0].mxu0
      %v2158 = vadd.f32 0.0, %v2157
      %v2159 = vpop.f32.mrb[0].mxu0
      %v2160 = vadd.f32 0.0, %v2159
      %v2161 = vpop.f32.mrb[0].mxu0
      %v2162 = vadd.f32 0.0, %v2161
      %2163 = vmatprep.mubr.bf16.mxu0 0
      %2164 = vmatmul.mubr.bf16.gmra.mrb[0].mxu0 %v1511
      %v2165 = vpop.f32.mrb[0].mxu0
      %v2166 = vadd.f32 0.0, %v2165
      %v2167 = vpop.f32.mrb[0].mxu0
      %v2168 = vadd.f32 0.0, %v2167
      %v2169 = vpop.f32.mrb[0].mxu0
      %v2170 = vadd.f32 0.0, %v2169
      %v2171 = vpop.f32.mrb[0].mxu0
      %v2172 = vadd.f32 0.0, %v2171
      %2173 = vmatprep.mubr.bf16.mxu0 0
      %2174 = vmatmul.mubr.bf16.gmra.mrb[0].mxu0 %v1512
      %v2175 = vpop.f32.mrb[0].mxu0
      %v2176 = vadd.f32 0.0, %v2175
      %v2177 = vpop.f32.mrb[0].mxu0
      %v2178 = vadd.f32 0.0, %v2177
      %v2179 = vpop.f32.mrb[0].mxu0
      %v2180 = vadd.f32 0.0, %v2179
      %v2181 = vpop.f32.mrb[0].mxu0
      %v2182 = vadd.f32 0.0, %v2181
      %2183 = vmatprep.mubr.bf16.mxu0 0
      %2184 = vmatmul.mubr.bf16.gmra.mrb[0].mxu0 %v1513
      %v2185 = vpop.f32.mrb[0].mxu0
      %v2186 = vadd.f32 0.0, %v2185
      %v2187 = vpop.f32.mrb[0].mxu0
      %v2188 = vadd.f32 0.0, %v2187
      %v2189 = vpop.f32.mrb[0].mxu0
      %v2190 = vadd.f32 0.0, %v2189
      %v2191 = vpop.f32.mrb[0].mxu0
      %v2192 = vadd.f32 0.0, %v2191
      %2193 = vmatprep.mubr.bf16.mxu0 0
      %2194 = vmatmul.mubr.bf16.gmra.mrb[0].mxu0 %v1514
      %v2195 = vpop.f32.mrb[0].mxu0
      %v2196 = vadd.f32 0.0, %v2195
      %v2197 = vpop.f32.mrb[0].mxu0
      %v2198 = vadd.f32 0.0, %v2197
      %v2199 = vpop.f32.mrb[0].mxu0
      %v2200 = vadd.f32 0.0, %v2199
      %v2201 = vpop.f32.mrb[0].mxu0
      %v2202 = vadd.f32 0.0, %v2201
      %2203 = vmatprep.mubr.bf16.mxu0 0
      %2204 = vmatmul.mubr.bf16.gmra.mrb[0].mxu0 %v1515
      %v2205 = vpop.f32.mrb[0].mxu0
      %v2206 = vadd.f32 0.0, %v2205
      %v2207 = vpop.f32.mrb[0].mxu0
      %v2208 = vadd.f32 0.0, %v2207
      %v2209 = vpop.f32.mrb[0].mxu0
      %v2210 = vadd.f32 0.0, %v2209
      %v2211 = vpop.f32.mrb[0].mxu0
      %v2212 = vadd.f32 0.0, %v2211
      %2213 = vmatprep.mubr.bf16.mxu0 0
      %2214 = vmatmul.mubr.bf16.gmra.mrb[0].mxu0 %v1516
      %v2215 = vpop.f32.mrb[0].mxu0
      %v2216 = vadd.f32 0.0, %v2215
      %v2217 = vpop.f32.mrb[0].mxu0
      %v2218 = vadd.f32 0.0, %v2217
      %v2219 = vpop.f32.mrb[0].mxu0
      %v2220 = vadd.f32 0.0, %v2219
      %v2221 = vpop.f32.mrb[0].mxu0
      %v2222 = vadd.f32 0.0, %v2221
      %2223 = vmatprep.mubr.bf16.mxu0 0
      %2224 = vmatmul.mubr.bf16.gmra.mrb[0].mxu0 %v1517
      %v2225 = vpop.f32.mrb[0].mxu0
      %v2226 = vadd.f32 0.0, %v2225
      %v2227 = vpop.f32.mrb[0].mxu0
      %v2228 = vadd.f32 0.0, %v2227
      %v2229 = vpop.f32.mrb[0].mxu0
      %v2230 = vadd.f32 0.0, %v2229
      %v2231 = vpop.f32.mrb[0].mxu0
      %v2232 = vadd.f32 0.0, %v2231
      %2233 = vmatprep.mubr.bf16.mxu0 0
      %2234 = vmatmul.mubr.bf16.gmra.mrb[0].mxu0 %v1518
      %v2235 = vpop.f32.mrb[0].mxu0
      %v2236 = vadd.f32 0.0, %v2235
      %v2237 = vpop.f32.mrb[0].mxu0
      %v2238 = vadd.f32 0.0, %v2237
      %v2239 = vpop.f32.mrb[0].mxu0
      %v2240 = vadd.f32 0.0, %v2239
      %v2241 = vpop.f32.mrb[0].mxu0
      %v2242 = vadd.f32 0.0, %v2241
      %2243 = vmatprep.mubr.bf16.mxu0 0
      %2244 = vmatmul.mubr.bf16.gmra.mrb[0].mxu0 %v1519
      %v2245 = vpop.f32.mrb[0].mxu0
      %v2246 = vadd.f32 0.0, %v2245
      %v2247 = vpop.f32.mrb[0].mxu0
      %v2248 = vadd.f32 0.0, %v2247
      %v2249 = vpop.f32.mrb[0].mxu0
      %v2250 = vadd.f32 0.0, %v2249
      %v2251 = vpop.f32.mrb[0].mxu0
      %v2252 = vadd.f32 0.0, %v2251
      %2253 = vmatprep.mubr.bf16.mxu0 0
      %2254 = vmatmul.mubr.bf16.gmra.mrb[0].mxu0 %v1520
      %v2255 = vpop.f32.mrb[0].mxu0
      %v2256 = vadd.f32 0.0, %v2255
      %v2257 = vpop.f32.mrb[0].mxu0
      %v2258 = vadd.f32 0.0, %v2257
      %v2259 = vpop.f32.mrb[0].mxu0
      %v2260 = vadd.f32 0.0, %v2259
      %v2261 = vpop.f32.mrb[0].mxu0
      %v2262 = vadd.f32 0.0, %v2261
      %2263 = vmatprep.mubr.bf16.mxu0 0
      %2264 = vmatmul.mubr.bf16.gmra.mrb[0].mxu0 %v1521
      %v2265 = vpop.f32.mrb[0].mxu0
      %v2266 = vadd.f32 0.0, %v2265
      %v2267 = vpop.f32.mrb[0].mxu0
      %v2268 = vadd.f32 0.0, %v2267
      %v2269 = vpop.f32.mrb[0].mxu0
      %v2270 = vadd.f32 0.0, %v2269
      %v2271 = vpop.f32.mrb[0].mxu0
      %v2272 = vadd.f32 0.0, %v2271
      %2273 = vmatprep.mubr.bf16.mxu0 0
      %2274 = vmatmul.mubr.bf16.gmra.mrb[0].mxu0 %v1522
      %v2275 = vpop.f32.mrb[0].mxu0
      %v2276 = vadd.f32 0.0, %v2275
      %v2277 = vpop.f32.mrb[0].mxu0
      %v2278 = vadd.f32 0.0, %v2277
      %v2279 = vpop.f32.mrb[0].mxu0
      %v2280 = vadd.f32 0.0, %v2279
      %v2281 = vpop.f32.mrb[0].mxu0
      %v2282 = vadd.f32 0.0, %v2281
      %2283 = vmatprep.mubr.bf16.mxu0 0
      %2284 = vmatmul.mubr.bf16.gmra.mrb[0].mxu0 %v1523
      %v2285 = vpop.f32.mrb[0].mxu0
      %v2286 = vadd.f32 0.0, %v2285
      %v2287 = vpop.f32.mrb[0].mxu0
      %v2288 = vadd.f32 0.0, %v2287
      %v2289 = vpop.f32.mrb[0].mxu0
      %v2290 = vadd.f32 0.0, %v2289
      %v2291 = vpop.f32.mrb[0].mxu0
      %v2292 = vadd.f32 0.0, %v2291
      %2293 = vdwg.mxu0
      %2294 = vmatprep.subr.bf16.mxu0 %v1785
      %2295 = vmatpush1.bf16.msra.mxu0 %v1784
      %2296 = vmatprep.subr.bf16.mxu0 %v1793
      %2297 = vmatpush1.bf16.msra.mxu0 %v1792
      %2298 = vmatprep.subr.bf16.mxu0 %v1801
      %2299 = vmatpush1.bf16.msra.mxu0 %v1800
      %2300 = vmatprep.subr.bf16.mxu0 %v1809
      %2301 = vmatpush1.bf16.msra.mxu0 %v1808
      %2302 = vmatprep.subr.bf16.mxu0 %v1817
      %2303 = vmatpush1.bf16.msra.mxu0 %v1816
      %2304 = vmatprep.subr.bf16.mxu0 %v1825
      %2305 = vmatpush1.bf16.msra.mxu0 %v1824
      %2306 = vmatprep.subr.bf16.mxu0 %v1833
      %2307 = vmatpush1.bf16.msra.mxu0 %v1832
      %2308 = vmatprep.subr.bf16.mxu0 %v1841
      %2309 = vmatpush1.bf16.msra.mxu0 %v1840
      %2310 = vmatprep.subr.bf16.mxu0 0
      %2311 = vmatpush1.bf16.msra.mxu0 0
      %2312 = vmatprep.subr.bf16.mxu0 0
      %2313 = vmatpush1.bf16.msra.mxu0 0
      %2314 = vmatprep.subr.bf16.mxu0 0
      %2315 = vmatpush1.bf16.msra.mxu0 0
      %2316 = vmatprep.subr.bf16.mxu0 0
      %2317 = vmatpush1.bf16.msra.mxu0 0
      %2318 = vmatprep.subr.bf16.mxu0 0
      %2319 = vmatpush1.bf16.msra.mxu0 0
      %2320 = vmatprep.subr.bf16.mxu0 0
      %2321 = vmatpush1.bf16.msra.mxu0 0
      %2322 = vmatprep.subr.bf16.mxu0 0
      %2323 = vmatpush1.bf16.msra.mxu0 0
      %2324 = vmatprep.subr.bf16.mxu0 0
      %2325 = vmatpush1.bf16.msra.mxu0 0
      %2326 = vmatprep.mubr.bf16.mxu0 0
      %2327 = vmatmul.mubr.bf16.gmra.mrb[0].mxu0 %v1508
      %v2328 = vpop.f32.mrb[0].mxu0
      %v2329 = vadd.f32 0.0, %v2328
      %v2330 = vpop.f32.mrb[0].mxu0
      %v2331 = vadd.f32 0.0, %v2330
      %v2332 = vpop.f32.mrb[0].mxu0
      %v2333 = vadd.f32 0.0, %v2332
      %v2334 = vpop.f32.mrb[0].mxu0
      %v2335 = vadd.f32 0.0, %v2334
      %2336 = vmatprep.mubr.bf16.mxu0 0
      %2337 = vmatmul.mubr.bf16.gmra.mrb[0].mxu0 %v1509
      %v2338 = vpop.f32.mrb[0].mxu0
      %v2339 = vadd.f32 0.0, %v2338
      %v2340 = vpop.f32.mrb[0].mxu0
      %v2341 = vadd.f32 0.0, %v2340
      %v2342 = vpop.f32.mrb[0].mxu0
      %v2343 = vadd.f32 0.0, %v2342
      %v2344 = vpop.f32.mrb[0].mxu0
      %v2345 = vadd.f32 0.0, %v2344
      %2346 = vmatprep.mubr.bf16.mxu0 0
      %2347 = vmatmul.mubr.bf16.gmra.mrb[0].mxu0 %v1510
      %v2348 = vpop.f32.mrb[0].mxu0
      %v2349 = vadd.f32 0.0, %v2348
      %v2350 = vpop.f32.mrb[0].mxu0
      %v2351 = vadd.f32 0.0, %v2350
      %v2352 = vpop.f32.mrb[0].mxu0
      %v2353 = vadd.f32 0.0, %v2352
      %v2354 = vpop.f32.mrb[0].mxu0
      %v2355 = vadd.f32 0.0, %v2354
      %2356 = vmatprep.mubr.bf16.mxu0 0
      %2357 = vmatmul.mubr.bf16.gmra.mrb[0].mxu0 %v1511
      %v2358 = vpop.f32.mrb[0].mxu0
      %v2359 = vadd.f32 0.0, %v2358
      %v2360 = vpop.f32.mrb[0].mxu0
      %v2361 = vadd.f32 0.0, %v2360
      %v2362 = vpop.f32.mrb[0].mxu0
      %v2363 = vadd.f32 0.0, %v2362
      %v2364 = vpop.f32.mrb[0].mxu0
      %v2365 = vadd.f32 0.0, %v2364
      %2366 = vmatprep.mubr.bf16.mxu0 0
      %2367 = vmatmul.mubr.bf16.gmra.mrb[0].mxu0 %v1512
      %v2368 = vpop.f32.mrb[0].mxu0
      %v2369 = vadd.f32 0.0, %v2368
      %v2370 = vpop.f32.mrb[0].mxu0
      %v2371 = vadd.f32 0.0, %v2370
      %v2372 = vpop.f32.mrb[0].mxu0
      %v2373 = vadd.f32 0.0, %v2372
      %v2374 = vpop.f32.mrb[0].mxu0
      %v2375 = vadd.f32 0.0, %v2374
      %2376 = vmatprep.mubr.bf16.mxu0 0
      %2377 = vmatmul.mubr.bf16.gmra.mrb[0].mxu0 %v1513
      %v2378 = vpop.f32.mrb[0].mxu0
      %v2379 = vadd.f32 0.0, %v2378
      %v2380 = vpop.f32.mrb[0].mxu0
      %v2381 = vadd.f32 0.0, %v2380
      %v2382 = vpop.f32.mrb[0].mxu0
      %v2383 = vadd.f32 0.0, %v2382
      %v2384 = vpop.f32.mrb[0].mxu0
      %v2385 = vadd.f32 0.0, %v2384
      %2386 = vmatprep.mubr.bf16.mxu0 0
      %2387 = vmatmul.mubr.bf16.gmra.mrb[0].mxu0 %v1514
      %v2388 = vpop.f32.mrb[0].mxu0
      %v2389 = vadd.f32 0.0, %v2388
      %v2390 = vpop.f32.mrb[0].mxu0
      %v2391 = vadd.f32 0.0, %v2390
      %v2392 = vpop.f32.mrb[0].mxu0
      %v2393 = vadd.f32 0.0, %v2392
      %v2394 = vpop.f32.mrb[0].mxu0
      %v2395 = vadd.f32 0.0, %v2394
      %2396 = vmatprep.mubr.bf16.mxu0 0
      %2397 = vmatmul.mubr.bf16.gmra.mrb[0].mxu0 %v1515
      %v2398 = vpop.f32.mrb[0].mxu0
      %v2399 = vadd.f32 0.0, %v2398
      %v2400 = vpop.f32.mrb[0].mxu0
      %v2401 = vadd.f32 0.0, %v2400
      %v2402 = vpop.f32.mrb[0].mxu0
      %v2403 = vadd.f32 0.0, %v2402
      %v2404 = vpop.f32.mrb[0].mxu0
      %v2405 = vadd.f32 0.0, %v2404
      %2406 = vmatprep.mubr.bf16.mxu0 0
      %2407 = vmatmul.mubr.bf16.gmra.mrb[0].mxu0 %v1516
      %v2408 = vpop.f32.mrb[0].mxu0
      %v2409 = vadd.f32 0.0, %v2408
      %v2410 = vpop.f32.mrb[0].mxu0
      %v2411 = vadd.f32 0.0, %v2410
      %v2412 = vpop.f32.mrb[0].mxu0
      %v2413 = vadd.f32 0.0, %v2412
      %v2414 = vpop.f32.mrb[0].mxu0
      %v2415 = vadd.f32 0.0, %v2414
      %2416 = vmatprep.mubr.bf16.mxu0 0
      %2417 = vmatmul.mubr.bf16.gmra.mrb[0].mxu0 %v1517
      %v2418 = vpop.f32.mrb[0].mxu0
      %v2419 = vadd.f32 0.0, %v2418
      %v2420 = vpop.f32.mrb[0].mxu0
      %v2421 = vadd.f32 0.0, %v2420
      %v2422 = vpop.f32.mrb[0].mxu0
      %v2423 = vadd.f32 0.0, %v2422
      %v2424 = vpop.f32.mrb[0].mxu0
      %v2425 = vadd.f32 0.0, %v2424
      %2426 = vmatprep.mubr.bf16.mxu0 0
      %2427 = vmatmul.mubr.bf16.gmra.mrb[0].mxu0 %v1518
      %v2428 = vpop.f32.mrb[0].mxu0
      %v2429 = vadd.f32 0.0, %v2428
      %v2430 = vpop.f32.mrb[0].mxu0
      %v2431 = vadd.f32 0.0, %v2430
      %v2432 = vpop.f32.mrb[0].mxu0
      %v2433 = vadd.f32 0.0, %v2432
      %v2434 = vpop.f32.mrb[0].mxu0
      %v2435 = vadd.f32 0.0, %v2434
      %2436 = vmatprep.mubr.bf16.mxu0 0
      %2437 = vmatmul.mubr.bf16.gmra.mrb[0].mxu0 %v1519
      %v2438 = vpop.f32.mrb[0].mxu0
      %v2439 = vadd.f32 0.0, %v2438
      %v2440 = vpop.f32.mrb[0].mxu0
      %v2441 = vadd.f32 0.0, %v2440
      %v2442 = vpop.f32.mrb[0].mxu0
      %v2443 = vadd.f32 0.0, %v2442
      %v2444 = vpop.f32.mrb[0].mxu0
      %v2445 = vadd.f32 0.0, %v2444
      %2446 = vmatprep.mubr.bf16.mxu0 0
      %2447 = vmatmul.mubr.bf16.gmra.mrb[0].mxu0 %v1520
      %v2448 = vpop.f32.mrb[0].mxu0
      %v2449 = vadd.f32 0.0, %v2448
      %v2450 = vpop.f32.mrb[0].mxu0
      %v2451 = vadd.f32 0.0, %v2450
      %v2452 = vpop.f32.mrb[0].mxu0
      %v2453 = vadd.f32 0.0, %v2452
      %v2454 = vpop.f32.mrb[0].mxu0
      %v2455 = vadd.f32 0.0, %v2454
      %2456 = vmatprep.mubr.bf16.mxu0 0
      %2457 = vmatmul.mubr.bf16.gmra.mrb[0].mxu0 %v1521
      %v2458 = vpop.f32.mrb[0].mxu0
      %v2459 = vadd.f32 0.0, %v2458
      %v2460 = vpop.f32.mrb[0].mxu0
      %v2461 = vadd.f32 0.0, %v2460
      %v2462 = vpop.f32.mrb[0].mxu0
      %v2463 = vadd.f32 0.0, %v2462
      %v2464 = vpop.f32.mrb[0].mxu0
      %v2465 = vadd.f32 0.0, %v2464
      %2466 = vmatprep.mubr.bf16.mxu0 0
      %2467 = vmatmul.mubr.bf16.gmra.mrb[0].mxu0 %v1522
      %v2468 = vpop.f32.mrb[0].mxu0
      %v2469 = vadd.f32 0.0, %v2468
      %v2470 = vpop.f32.mrb[0].mxu0
      %v2471 = vadd.f32 0.0, %v2470
      %v2472 = vpop.f32.mrb[0].mxu0
      %v2473 = vadd.f32 0.0, %v2472
      %v2474 = vpop.f32.mrb[0].mxu0
      %v2475 = vadd.f32 0.0, %v2474
      %2476 = vmatprep.mubr.bf16.mxu0 0
      %2477 = vmatmul.mubr.bf16.gmra.mrb[0].mxu0 %v1523
      %v2478 = vpop.f32.mrb[0].mxu0
      %v2479 = vadd.f32 0.0, %v2478
      %v2480 = vpop.f32.mrb[0].mxu0
      %v2481 = vadd.f32 0.0, %v2480
      %v2482 = vpop.f32.mrb[0].mxu0
      %v2483 = vadd.f32 0.0, %v2482
      %v2484 = vpop.f32.mrb[0].mxu0
      %v2485 = vadd.f32 0.0, %v2484
      %2486 = vdwg.mxu0
      %2487 = vmatprep.subr.bf16.mxu0 %v1787
      %2488 = vmatpush1.bf16.msra.mxu0 %v1786
      %2489 = vmatprep.subr.bf16.mxu0 %v1795
      %2490 = vmatpush1.bf16.msra.mxu0 %v1794
      %2491 = vmatprep.subr.bf16.mxu0 %v1803
      %2492 = vmatpush1.bf16.msra.mxu0 %v1802
      %2493 = vmatprep.subr.bf16.mxu0 %v1811
      %2494 = vmatpush1.bf16.msra.mxu0 %v1810
      %2495 = vmatprep.subr.bf16.mxu0 %v1819
      %2496 = vmatpush1.bf16.msra.mxu0 %v1818
      %2497 = vmatprep.subr.bf16.mxu0 %v1827
      %2498 = vmatpush1.bf16.msra.mxu0 %v1826
      %2499 = vmatprep.subr.bf16.mxu0 %v1835
      %2500 = vmatpush1.bf16.msra.mxu0 %v1834
      %2501 = vmatprep.subr.bf16.mxu0 %v1843
      %2502 = vmatpush1.bf16.msra.mxu0 %v1842
      %2503 = vmatprep.subr.bf16.mxu0 0
      %2504 = vmatpush1.bf16.msra.mxu0 0
      %2505 = vmatprep.subr.bf16.mxu0 0
      %2506 = vmatpush1.bf16.msra.mxu0 0
      %2507 = vmatprep.subr.bf16.mxu0 0
      %2508 = vmatpush1.bf16.msra.mxu0 0
      %2509 = vmatprep.subr.bf16.mxu0 0
      %2510 = vmatpush1.bf16.msra.mxu0 0
      %2511 = vmatprep.subr.bf16.mxu0 0
      %2512 = vmatpush1.bf16.msra.mxu0 0
      %2513 = vmatprep.subr.bf16.mxu0 0
      %2514 = vmatpush1.bf16.msra.mxu0 0
      %2515 = vmatprep.subr.bf16.mxu0 0
      %2516 = vmatpush1.bf16.msra.mxu0 0
      %2517 = vmatprep.subr.bf16.mxu0 0
      %2518 = vmatpush1.bf16.msra.mxu0 0
      %2519 = vmatprep.mubr.bf16.mxu0 0
      %2520 = vmatmul.mubr.bf16.gmra.mrb[0].mxu0 %v1508
      %v2521 = vpop.f32.mrb[0].mxu0
      %v2522 = vadd.f32 0.0, %v2521
      %v2523 = vpop.f32.mrb[0].mxu0
      %v2524 = vadd.f32 0.0, %v2523
      %v2525 = vpop.f32.mrb[0].mxu0
      %v2526 = vadd.f32 0.0, %v2525
      %v2527 = vpop.f32.mrb[0].mxu0
      %v2528 = vadd.f32 0.0, %v2527
      %2529 = vmatprep.mubr.bf16.mxu0 0
      %2530 = vmatmul.mubr.bf16.gmra.mrb[0].mxu0 %v1509
      %v2531 = vpop.f32.mrb[0].mxu0
      %v2532 = vadd.f32 0.0, %v2531
      %v2533 = vpop.f32.mrb[0].mxu0
      %v2534 = vadd.f32 0.0, %v2533
      %v2535 = vpop.f32.mrb[0].mxu0
      %v2536 = vadd.f32 0.0, %v2535
      %v2537 = vpop.f32.mrb[0].mxu0
      %v2538 = vadd.f32 0.0, %v2537
      %2539 = vmatprep.mubr.bf16.mxu0 0
      %2540 = vmatmul.mubr.bf16.gmra.mrb[0].mxu0 %v1510
      %v2541 = vpop.f32.mrb[0].mxu0
      %v2542 = vadd.f32 0.0, %v2541
      %v2543 = vpop.f32.mrb[0].mxu0
      %v2544 = vadd.f32 0.0, %v2543
      %v2545 = vpop.f32.mrb[0].mxu0
      %v2546 = vadd.f32 0.0, %v2545
      %v2547 = vpop.f32.mrb[0].mxu0
      %v2548 = vadd.f32 0.0, %v2547
      %2549 = vmatprep.mubr.bf16.mxu0 0
      %2550 = vmatmul.mubr.bf16.gmra.mrb[0].mxu0 %v1511
      %v2551 = vpop.f32.mrb[0].mxu0
      %v2552 = vadd.f32 0.0, %v2551
      %v2553 = vpop.f32.mrb[0].mxu0
      %v2554 = vadd.f32 0.0, %v2553
      %v2555 = vpop.f32.mrb[0].mxu0
      %v2556 = vadd.f32 0.0, %v2555
      %v2557 = vpop.f32.mrb[0].mxu0
      %v2558 = vadd.f32 0.0, %v2557
      %2559 = vmatprep.mubr.bf16.mxu0 0
      %2560 = vmatmul.mubr.bf16.gmra.mrb[0].mxu0 %v1512
      %v2561 = vpop.f32.mrb[0].mxu0
      %v2562 = vadd.f32 0.0, %v2561
      %v2563 = vpop.f32.mrb[0].mxu0
      %v2564 = vadd.f32 0.0, %v2563
      %v2565 = vpop.f32.mrb[0].mxu0
      %v2566 = vadd.f32 0.0, %v2565
      %v2567 = vpop.f32.mrb[0].mxu0
      %v2568 = vadd.f32 0.0, %v2567
      %2569 = vmatprep.mubr.bf16.mxu0 0
      %2570 = vmatmul.mubr.bf16.gmra.mrb[0].mxu0 %v1513
      %v2571 = vpop.f32.mrb[0].mxu0
      %v2572 = vadd.f32 0.0, %v2571
      %v2573 = vpop.f32.mrb[0].mxu0
      %v2574 = vadd.f32 0.0, %v2573
      %v2575 = vpop.f32.mrb[0].mxu0
      %v2576 = vadd.f32 0.0, %v2575
      %v2577 = vpop.f32.mrb[0].mxu0
      %v2578 = vadd.f32 0.0, %v2577
      %2579 = vmatprep.mubr.bf16.mxu0 0
      %2580 = vmatmul.mubr.bf16.gmra.mrb[0].mxu0 %v1514
      %v2581 = vpop.f32.mrb[0].mxu0
      %v2582 = vadd.f32 0.0, %v2581
      %v2583 = vpop.f32.mrb[0].mxu0
      %v2584 = vadd.f32 0.0, %v2583
      %v2585 = vpop.f32.mrb[0].mxu0
      %v2586 = vadd.f32 0.0, %v2585
      %v2587 = vpop.f32.mrb[0].mxu0
      %v2588 = vadd.f32 0.0, %v2587
      %2589 = vmatprep.mubr.bf16.mxu0 0
      %2590 = vmatmul.mubr.bf16.gmra.mrb[0].mxu0 %v1515
      %v2591 = vpop.f32.mrb[0].mxu0
      %v2592 = vadd.f32 0.0, %v2591
      %v2593 = vpop.f32.mrb[0].mxu0
      %v2594 = vadd.f32 0.0, %v2593
      %v2595 = vpop.f32.mrb[0].mxu0
      %v2596 = vadd.f32 0.0, %v2595
      %v2597 = vpop.f32.mrb[0].mxu0
      %v2598 = vadd.f32 0.0, %v2597
      %2599 = vmatprep.mubr.bf16.mxu0 0
      %2600 = vmatmul.mubr.bf16.gmra.mrb[0].mxu0 %v1516
      %v2601 = vpop.f32.mrb[0].mxu0
      %v2602 = vadd.f32 0.0, %v2601
      %v2603 = vpop.f32.mrb[0].mxu0
      %v2604 = vadd.f32 0.0, %v2603
      %v2605 = vpop.f32.mrb[0].mxu0
      %v2606 = vadd.f32 0.0, %v2605
      %v2607 = vpop.f32.mrb[0].mxu0
      %v2608 = vadd.f32 0.0, %v2607
      %2609 = vmatprep.mubr.bf16.mxu0 0
      %2610 = vmatmul.mubr.bf16.gmra.mrb[0].mxu0 %v1517
      %v2611 = vpop.f32.mrb[0].mxu0
      %v2612 = vadd.f32 0.0, %v2611
      %v2613 = vpop.f32.mrb[0].mxu0
      %v2614 = vadd.f32 0.0, %v2613
      %v2615 = vpop.f32.mrb[0].mxu0
      %v2616 = vadd.f32 0.0, %v2615
      %v2617 = vpop.f32.mrb[0].mxu0
      %v2618 = vadd.f32 0.0, %v2617
      %2619 = vmatprep.mubr.bf16.mxu0 0
      %2620 = vmatmul.mubr.bf16.gmra.mrb[0].mxu0 %v1518
      %v2621 = vpop.f32.mrb[0].mxu0
      %v2622 = vadd.f32 0.0, %v2621
      %v2623 = vpop.f32.mrb[0].mxu0
      %v2624 = vadd.f32 0.0, %v2623
      %v2625 = vpop.f32.mrb[0].mxu0
      %v2626 = vadd.f32 0.0, %v2625
      %v2627 = vpop.f32.mrb[0].mxu0
      %v2628 = vadd.f32 0.0, %v2627
      %2629 = vmatprep.mubr.bf16.mxu0 0
      %2630 = vmatmul.mubr.bf16.gmra.mrb[0].mxu0 %v1519
      %v2631 = vpop.f32.mrb[0].mxu0
      %v2632 = vadd.f32 0.0, %v2631
      %v2633 = vpop.f32.mrb[0].mxu0
      %v2634 = vadd.f32 0.0, %v2633
      %v2635 = vpop.f32.mrb[0].mxu0
      %v2636 = vadd.f32 0.0, %v2635
      %v2637 = vpop.f32.mrb[0].mxu0
      %v2638 = vadd.f32 0.0, %v2637
      %2639 = vmatprep.mubr.bf16.mxu0 0
      %2640 = vmatmul.mubr.bf16.gmra.mrb[0].mxu0 %v1520
      %v2641 = vpop.f32.mrb[0].mxu0
      %v2642 = vadd.f32 0.0, %v2641
      %v2643 = vpop.f32.mrb[0].mxu0
      %v2644 = vadd.f32 0.0, %v2643
      %v2645 = vpop.f32.mrb[0].mxu0
      %v2646 = vadd.f32 0.0, %v2645
      %v2647 = vpop.f32.mrb[0].mxu0
      %v2648 = vadd.f32 0.0, %v2647
      %2649 = vmatprep.mubr.bf16.mxu0 0
      %2650 = vmatmul.mubr.bf16.gmra.mrb[0].mxu0 %v1521
      %v2651 = vpop.f32.mrb[0].mxu0
      %v2652 = vadd.f32 0.0, %v2651
      %v2653 = vpop.f32.mrb[0].mxu0
      %v2654 = vadd.f32 0.0, %v2653
      %v2655 = vpop.f32.mrb[0].mxu0
      %v2656 = vadd.f32 0.0, %v2655
      %v2657 = vpop.f32.mrb[0].mxu0
      %v2658 = vadd.f32 0.0, %v2657
      %2659 = vmatprep.mubr.bf16.mxu0 0
      %2660 = vmatmul.mubr.bf16.gmra.mrb[0].mxu0 %v1522
      %v2661 = vpop.f32.mrb[0].mxu0
      %v2662 = vadd.f32 0.0, %v2661
      %v2663 = vpop.f32.mrb[0].mxu0
      %v2664 = vadd.f32 0.0, %v2663
      %v2665 = vpop.f32.mrb[0].mxu0
      %v2666 = vadd.f32 0.0, %v2665
      %v2667 = vpop.f32.mrb[0].mxu0
      %v2668 = vadd.f32 0.0, %v2667
      %2669 = vmatprep.mubr.bf16.mxu0 0
      %2670 = vmatmul.mubr.bf16.gmra.mrb[0].mxu0 %v1523
      %v2671 = vpop.f32.mrb[0].mxu0
      %v2672 = vadd.f32 0.0, %v2671
      %v2673 = vpop.f32.mrb[0].mxu0
      %v2674 = vadd.f32 0.0, %v2673
      %v2675 = vpop.f32.mrb[0].mxu0
      %v2676 = vadd.f32 0.0, %v2675
      %v2677 = vpop.f32.mrb[0].mxu0
      %v2678 = vadd.f32 0.0, %v2677
      %2679 = vdwg.mxu0
      %v2680 = vld [vmem:[%s8] sm:$0xff]
      %v2682 = vlaneseq
      %v2683 = vshrl.u32 %v2682, 7
      %v2684 = vsub.s32 0, %v2683
      %v2685 = vrot.slane %v2680, %v2684
      %v2686 = vlaneseq
      %v2687 = vshrl.u32 %v2686, 7
      %v2688 = vsub.s32 1, %v2687
      %v2689 = vrot.slane %v2680, %v2688
      %v2690 = vlaneseq
      %v2691 = vshrl.u32 %v2690, 7
      %v2692 = vsub.s32 2, %v2691
      %v2693 = vrot.slane %v2680, %v2692
      %v2694 = vlaneseq
      %v2695 = vshrl.u32 %v2694, 7
      %v2696 = vsub.s32 3, %v2695
      %v2697 = vrot.slane %v2680, %v2696
      %v2698 = vlaneseq
      %v2699 = vshrl.u32 %v2698, 7
      %v2700 = vsub.s32 4, %v2699
      %v2701 = vrot.slane %v2680, %v2700
      %v2702 = vlaneseq
      %v2703 = vshrl.u32 %v2702, 7
      %v2704 = vsub.s32 5, %v2703
      %v2705 = vrot.slane %v2680, %v2704
      %v2706 = vlaneseq
      %v2707 = vshrl.u32 %v2706, 7
      %v2708 = vsub.s32 6, %v2707
      %v2709 = vrot.slane %v2680, %v2708
      %v2710 = vlaneseq
      %v2711 = vshrl.u32 %v2710, 7
      %v2712 = vsub.s32 7, %v2711
      %v2713 = vrot.slane %v2680, %v2712
      %v2722 = vmul.f32 %v1943, %v2685
      %v2723 = vmul.f32 %v1945, %v2689
      %v2724 = vmul.f32 %v2136, %v2693
      %v2725 = vmul.f32 %v2138, %v2697
      %v2726 = vmul.f32 %v2329, %v2701
      %v2727 = vmul.f32 %v2331, %v2705
      %v2728 = vmul.f32 %v2522, %v2709
      %v2729 = vmul.f32 %v2524, %v2713
      %v2730 = vmul.f32 %v1947, %v2685
      %v2731 = vmul.f32 %v1949, %v2689
      %v2732 = vmul.f32 %v2140, %v2693
      %v2733 = vmul.f32 %v2142, %v2697
      %v2734 = vmul.f32 %v2333, %v2701
      %v2735 = vmul.f32 %v2335, %v2705
      %v2736 = vmul.f32 %v2526, %v2709
      %v2737 = vmul.f32 %v2528, %v2713
      %v2738 = vmul.f32 %v1953, %v2685
      %v2739 = vmul.f32 %v1955, %v2689
      %v2740 = vmul.f32 %v2146, %v2693
      %v2741 = vmul.f32 %v2148, %v2697
      %v2742 = vmul.f32 %v2339, %v2701
      %v2743 = vmul.f32 %v2341, %v2705
      %v2744 = vmul.f32 %v2532, %v2709
      %v2745 = vmul.f32 %v2534, %v2713
      %v2746 = vmul.f32 %v1957, %v2685
      %v2747 = vmul.f32 %v1959, %v2689
      %v2748 = vmul.f32 %v2150, %v2693
      %v2749 = vmul.f32 %v2152, %v2697
      %v2750 = vmul.f32 %v2343, %v2701
      %v2751 = vmul.f32 %v2345, %v2705
      %v2752 = vmul.f32 %v2536, %v2709
      %v2753 = vmul.f32 %v2538, %v2713
      %v2754 = vmul.f32 %v1963, %v2685
      %v2755 = vmul.f32 %v1965, %v2689
      %v2756 = vmul.f32 %v2156, %v2693
      %v2757 = vmul.f32 %v2158, %v2697
      %v2758 = vmul.f32 %v2349, %v2701
      %v2759 = vmul.f32 %v2351, %v2705
      %v2760 = vmul.f32 %v2542, %v2709
      %v2761 = vmul.f32 %v2544, %v2713
      %v2762 = vmul.f32 %v1967, %v2685
      %v2763 = vmul.f32 %v1969, %v2689
      %v2764 = vmul.f32 %v2160, %v2693
      %v2765 = vmul.f32 %v2162, %v2697
      %v2766 = vmul.f32 %v2353, %v2701
      %v2767 = vmul.f32 %v2355, %v2705
      %v2768 = vmul.f32 %v2546, %v2709
      %v2769 = vmul.f32 %v2548, %v2713
      %v2770 = vmul.f32 %v1973, %v2685
      %v2771 = vmul.f32 %v1975, %v2689
      %v2772 = vmul.f32 %v2166, %v2693
      %v2773 = vmul.f32 %v2168, %v2697
      %v2774 = vmul.f32 %v2359, %v2701
      %v2775 = vmul.f32 %v2361, %v2705
      %v2776 = vmul.f32 %v2552, %v2709
      %v2777 = vmul.f32 %v2554, %v2713
      %v2778 = vmul.f32 %v1977, %v2685
      %v2779 = vmul.f32 %v1979, %v2689
      %v2780 = vmul.f32 %v2170, %v2693
      %v2781 = vmul.f32 %v2172, %v2697
      %v2782 = vmul.f32 %v2363, %v2701
      %v2783 = vmul.f32 %v2365, %v2705
      %v2784 = vmul.f32 %v2556, %v2709
      %v2785 = vmul.f32 %v2558, %v2713
      %v2786 = vmul.f32 %v1983, %v2685
      %v2787 = vmul.f32 %v1985, %v2689
      %v2788 = vmul.f32 %v2176, %v2693
      %v2789 = vmul.f32 %v2178, %v2697
      %v2790 = vmul.f32 %v2369, %v2701
      %v2791 = vmul.f32 %v2371, %v2705
      %v2792 = vmul.f32 %v2562, %v2709
      %v2793 = vmul.f32 %v2564, %v2713
      %v2794 = vmul.f32 %v1987, %v2685
      %v2795 = vmul.f32 %v1989, %v2689
      %v2796 = vmul.f32 %v2180, %v2693
      %v2797 = vmul.f32 %v2182, %v2697
      %v2798 = vmul.f32 %v2373, %v2701
      %v2799 = vmul.f32 %v2375, %v2705
      %v2800 = vmul.f32 %v2566, %v2709
      %v2801 = vmul.f32 %v2568, %v2713
      %v2802 = vmul.f32 %v1993, %v2685
      %v2803 = vmul.f32 %v1995, %v2689
      %v2804 = vmul.f32 %v2186, %v2693
      %v2805 = vmul.f32 %v2188, %v2697
      %v2806 = vmul.f32 %v2379, %v2701
      %v2807 = vmul.f32 %v2381, %v2705
      %v2808 = vmul.f32 %v2572, %v2709
      %v2809 = vmul.f32 %v2574, %v2713
      %v2810 = vmul.f32 %v1997, %v2685
      %v2811 = vmul.f32 %v1999, %v2689
      %v2812 = vmul.f32 %v2190, %v2693
      %v2813 = vmul.f32 %v2192, %v2697
      %v2814 = vmul.f32 %v2383, %v2701
      %v2815 = vmul.f32 %v2385, %v2705
      %v2816 = vmul.f32 %v2576, %v2709
      %v2817 = vmul.f32 %v2578, %v2713
      %v2818 = vmul.f32 %v2003, %v2685
      %v2819 = vmul.f32 %v2005, %v2689
      %v2820 = vmul.f32 %v2196, %v2693
      %v2821 = vmul.f32 %v2198, %v2697
      %v2822 = vmul.f32 %v2389, %v2701
      %v2823 = vmul.f32 %v2391, %v2705
      %v2824 = vmul.f32 %v2582, %v2709
      %v2825 = vmul.f32 %v2584, %v2713
      %v2826 = vmul.f32 %v2007, %v2685
      %v2827 = vmul.f32 %v2009, %v2689
      %v2828 = vmul.f32 %v2200, %v2693
      %v2829 = vmul.f32 %v2202, %v2697
      %v2830 = vmul.f32 %v2393, %v2701
      %v2831 = vmul.f32 %v2395, %v2705
      %v2832 = vmul.f32 %v2586, %v2709
      %v2833 = vmul.f32 %v2588, %v2713
      %v2834 = vmul.f32 %v2013, %v2685
      %v2835 = vmul.f32 %v2015, %v2689
      %v2836 = vmul.f32 %v2206, %v2693
      %v2837 = vmul.f32 %v2208, %v2697
      %v2838 = vmul.f32 %v2399, %v2701
      %v2839 = vmul.f32 %v2401, %v2705
      %v2840 = vmul.f32 %v2592, %v2709
      %v2841 = vmul.f32 %v2594, %v2713
      %v2842 = vmul.f32 %v2017, %v2685
      %v2843 = vmul.f32 %v2019, %v2689
      %v2844 = vmul.f32 %v2210, %v2693
      %v2845 = vmul.f32 %v2212, %v2697
      %v2846 = vmul.f32 %v2403, %v2701
      %v2847 = vmul.f32 %v2405, %v2705
      %v2848 = vmul.f32 %v2596, %v2709
      %v2849 = vmul.f32 %v2598, %v2713
      %v2850 = vmul.f32 %v2023, %v2685
      %v2851 = vmul.f32 %v2025, %v2689
      %v2852 = vmul.f32 %v2216, %v2693
      %v2853 = vmul.f32 %v2218, %v2697
      %v2854 = vmul.f32 %v2409, %v2701
      %v2855 = vmul.f32 %v2411, %v2705
      %v2856 = vmul.f32 %v2602, %v2709
      %v2857 = vmul.f32 %v2604, %v2713
      %v2858 = vmul.f32 %v2027, %v2685
      %v2859 = vmul.f32 %v2029, %v2689
      %v2860 = vmul.f32 %v2220, %v2693
      %v2861 = vmul.f32 %v2222, %v2697
      %v2862 = vmul.f32 %v2413, %v2701
      %v2863 = vmul.f32 %v2415, %v2705
      %v2864 = vmul.f32 %v2606, %v2709
      %v2865 = vmul.f32 %v2608, %v2713
      %v2866 = vmul.f32 %v2033, %v2685
      %v2867 = vmul.f32 %v2035, %v2689
      %v2868 = vmul.f32 %v2226, %v2693
      %v2869 = vmul.f32 %v2228, %v2697
      %v2870 = vmul.f32 %v2419, %v2701
      %v2871 = vmul.f32 %v2421, %v2705
      %v2872 = vmul.f32 %v2612, %v2709
      %v2873 = vmul.f32 %v2614, %v2713
      %v2874 = vmul.f32 %v2037, %v2685
      %v2875 = vmul.f32 %v2039, %v2689
      %v2876 = vmul.f32 %v2230, %v2693
      %v2877 = vmul.f32 %v2232, %v2697
      %v2878 = vmul.f32 %v2423, %v2701
      %v2879 = vmul.f32 %v2425, %v2705
      %v2880 = vmul.f32 %v2616, %v2709
      %v2881 = vmul.f32 %v2618, %v2713
      %v2882 = vmul.f32 %v2043, %v2685
      %v2883 = vmul.f32 %v2045, %v2689
      %v2884 = vmul.f32 %v2236, %v2693
      %v2885 = vmul.f32 %v2238, %v2697
      %v2886 = vmul.f32 %v2429, %v2701
      %v2887 = vmul.f32 %v2431, %v2705
      %v2888 = vmul.f32 %v2622, %v2709
      %v2889 = vmul.f32 %v2624, %v2713
      %v2890 = vmul.f32 %v2047, %v2685
      %v2891 = vmul.f32 %v2049, %v2689
      %v2892 = vmul.f32 %v2240, %v2693
      %v2893 = vmul.f32 %v2242, %v2697
      %v2894 = vmul.f32 %v2433, %v2701
      %v2895 = vmul.f32 %v2435, %v2705
      %v2896 = vmul.f32 %v2626, %v2709
      %v2897 = vmul.f32 %v2628, %v2713
      %v2898 = vmul.f32 %v2053, %v2685
      %v2899 = vmul.f32 %v2055, %v2689
      %v2900 = vmul.f32 %v2246, %v2693
      %v2901 = vmul.f32 %v2248, %v2697
      %v2902 = vmul.f32 %v2439, %v2701
      %v2903 = vmul.f32 %v2441, %v2705
      %v2904 = vmul.f32 %v2632, %v2709
      %v2905 = vmul.f32 %v2634, %v2713
      %v2906 = vmul.f32 %v2057, %v2685
      %v2907 = vmul.f32 %v2059, %v2689
      %v2908 = vmul.f32 %v2250, %v2693
      %v2909 = vmul.f32 %v2252, %v2697
      %v2910 = vmul.f32 %v2443, %v2701
      %v2911 = vmul.f32 %v2445, %v2705
      %v2912 = vmul.f32 %v2636, %v2709
      %v2913 = vmul.f32 %v2638, %v2713
      %v2914 = vmul.f32 %v2063, %v2685
      %v2915 = vmul.f32 %v2065, %v2689
      %v2916 = vmul.f32 %v2256, %v2693
      %v2917 = vmul.f32 %v2258, %v2697
      %v2918 = vmul.f32 %v2449, %v2701
      %v2919 = vmul.f32 %v2451, %v2705
      %v2920 = vmul.f32 %v2642, %v2709
      %v2921 = vmul.f32 %v2644, %v2713
      %v2922 = vmul.f32 %v2067, %v2685
      %v2923 = vmul.f32 %v2069, %v2689
      %v2924 = vmul.f32 %v2260, %v2693
      %v2925 = vmul.f32 %v2262, %v2697
      %v2926 = vmul.f32 %v2453, %v2701
      %v2927 = vmul.f32 %v2455, %v2705
      %v2928 = vmul.f32 %v2646, %v2709
      %v2929 = vmul.f32 %v2648, %v2713
      %v2930 = vmul.f32 %v2073, %v2685
      %v2931 = vmul.f32 %v2075, %v2689
      %v2932 = vmul.f32 %v2266, %v2693
      %v2933 = vmul.f32 %v2268, %v2697
      %v2934 = vmul.f32 %v2459, %v2701
      %v2935 = vmul.f32 %v2461, %v2705
      %v2936 = vmul.f32 %v2652, %v2709
      %v2937 = vmul.f32 %v2654, %v2713
      %v2938 = vmul.f32 %v2077, %v2685
      %v2939 = vmul.f32 %v2079, %v2689
      %v2940 = vmul.f32 %v2270, %v2693
      %v2941 = vmul.f32 %v2272, %v2697
      %v2942 = vmul.f32 %v2463, %v2701
      %v2943 = vmul.f32 %v2465, %v2705
      %v2944 = vmul.f32 %v2656, %v2709
      %v2945 = vmul.f32 %v2658, %v2713
      %v2946 = vmul.f32 %v2083, %v2685
      %v2947 = vmul.f32 %v2085, %v2689
      %v2948 = vmul.f32 %v2276, %v2693
      %v2949 = vmul.f32 %v2278, %v2697
      %v2950 = vmul.f32 %v2469, %v2701
      %v2951 = vmul.f32 %v2471, %v2705
      %v2952 = vmul.f32 %v2662, %v2709
      %v2953 = vmul.f32 %v2664, %v2713
      %v2954 = vmul.f32 %v2087, %v2685
      %v2955 = vmul.f32 %v2089, %v2689
      %v2956 = vmul.f32 %v2280, %v2693
      %v2957 = vmul.f32 %v2282, %v2697
      %v2958 = vmul.f32 %v2473, %v2701
      %v2959 = vmul.f32 %v2475, %v2705
      %v2960 = vmul.f32 %v2666, %v2709
      %v2961 = vmul.f32 %v2668, %v2713
      %v2962 = vmul.f32 %v2093, %v2685
      %v2963 = vmul.f32 %v2095, %v2689
      %v2964 = vmul.f32 %v2286, %v2693
      %v2965 = vmul.f32 %v2288, %v2697
      %v2966 = vmul.f32 %v2479, %v2701
      %v2967 = vmul.f32 %v2481, %v2705
      %v2968 = vmul.f32 %v2672, %v2709
      %v2969 = vmul.f32 %v2674, %v2713
      %v2970 = vmul.f32 %v2097, %v2685
      %v2971 = vmul.f32 %v2099, %v2689
      %v2972 = vmul.f32 %v2290, %v2693
      %v2973 = vmul.f32 %v2292, %v2697
      %v2974 = vmul.f32 %v2483, %v2701
      %v2975 = vmul.f32 %v2485, %v2705
      %v2976 = vmul.f32 %v2676, %v2709
      %v2977 = vmul.f32 %v2678, %v2713
      %v2978 = vld [vmem:[%s9] sm:$0xff]
      %v2980 = vlaneseq
      %v2981 = vshrl.u32 %v2980, 7
      %v2982 = vsub.s32 0, %v2981
      %v2983 = vrot.slane %v2978, %v2982
      %v2984 = vlaneseq
      %v2985 = vshrl.u32 %v2984, 7
      %v2986 = vsub.s32 1, %v2985
      %v2987 = vrot.slane %v2978, %v2986
      %v2988 = vlaneseq
      %v2989 = vshrl.u32 %v2988, 7
      %v2990 = vsub.s32 2, %v2989
      %v2991 = vrot.slane %v2978, %v2990
      %v2992 = vlaneseq
      %v2993 = vshrl.u32 %v2992, 7
      %v2994 = vsub.s32 3, %v2993
      %v2995 = vrot.slane %v2978, %v2994
      %v2996 = vlaneseq
      %v2997 = vshrl.u32 %v2996, 7
      %v2998 = vsub.s32 4, %v2997
      %v2999 = vrot.slane %v2978, %v2998
      %v3000 = vlaneseq
      %v3001 = vshrl.u32 %v3000, 7
      %v3002 = vsub.s32 5, %v3001
      %v3003 = vrot.slane %v2978, %v3002
      %v3004 = vlaneseq
      %v3005 = vshrl.u32 %v3004, 7
      %v3006 = vsub.s32 6, %v3005
      %v3007 = vrot.slane %v2978, %v3006
      %v3008 = vlaneseq
      %v3009 = vshrl.u32 %v3008, 7
      %v3010 = vsub.s32 7, %v3009
      %v3011 = vrot.slane %v2978, %v3010
      %v3020 = vadd.f32 %v2722, %v2983
      %v3021 = vadd.f32 %v2723, %v2987
      %v3022 = vadd.f32 %v2724, %v2991
      %v3023 = vadd.f32 %v2725, %v2995
      %v3024 = vadd.f32 %v2726, %v2999
      %v3025 = vadd.f32 %v2727, %v3003
      %v3026 = vadd.f32 %v2728, %v3007
      %v3027 = vadd.f32 %v2729, %v3011
      %v3028 = vadd.f32 %v2730, %v2983
      %v3029 = vadd.f32 %v2731, %v2987
      %v3030 = vadd.f32 %v2732, %v2991
      %v3031 = vadd.f32 %v2733, %v2995
      %v3032 = vadd.f32 %v2734, %v2999
      %v3033 = vadd.f32 %v2735, %v3003
      %v3034 = vadd.f32 %v2736, %v3007
      %v3035 = vadd.f32 %v2737, %v3011
      %v3036 = vadd.f32 %v2738, %v2983
      %v3037 = vadd.f32 %v2739, %v2987
      %v3038 = vadd.f32 %v2740, %v2991
      %v3039 = vadd.f32 %v2741, %v2995
      %v3040 = vadd.f32 %v2742, %v2999
      %v3041 = vadd.f32 %v2743, %v3003
      %v3042 = vadd.f32 %v2744, %v3007
      %v3043 = vadd.f32 %v2745, %v3011
      %v3044 = vadd.f32 %v2746, %v2983
      %v3045 = vadd.f32 %v2747, %v2987
      %v3046 = vadd.f32 %v2748, %v2991
      %v3047 = vadd.f32 %v2749, %v2995
      %v3048 = vadd.f32 %v2750, %v2999
      %v3049 = vadd.f32 %v2751, %v3003
      %v3050 = vadd.f32 %v2752, %v3007
      %v3051 = vadd.f32 %v2753, %v3011
      %v3052 = vadd.f32 %v2754, %v2983
      %v3053 = vadd.f32 %v2755, %v2987
      %v3054 = vadd.f32 %v2756, %v2991
      %v3055 = vadd.f32 %v2757, %v2995
      %v3056 = vadd.f32 %v2758, %v2999
      %v3057 = vadd.f32 %v2759, %v3003
      %v3058 = vadd.f32 %v2760, %v3007
      %v3059 = vadd.f32 %v2761, %v3011
      %v3060 = vadd.f32 %v2762, %v2983
      %v3061 = vadd.f32 %v2763, %v2987
      %v3062 = vadd.f32 %v2764, %v2991
      %v3063 = vadd.f32 %v2765, %v2995
      %v3064 = vadd.f32 %v2766, %v2999
      %v3065 = vadd.f32 %v2767, %v3003
      %v3066 = vadd.f32 %v2768, %v3007
      %v3067 = vadd.f32 %v2769, %v3011
      %v3068 = vadd.f32 %v2770, %v2983
      %v3069 = vadd.f32 %v2771, %v2987
      %v3070 = vadd.f32 %v2772, %v2991
      %v3071 = vadd.f32 %v2773, %v2995
      %v3072 = vadd.f32 %v2774, %v2999
      %v3073 = vadd.f32 %v2775, %v3003
      %v3074 = vadd.f32 %v2776, %v3007
      %v3075 = vadd.f32 %v2777, %v3011
      %v3076 = vadd.f32 %v2778, %v2983
      %v3077 = vadd.f32 %v2779, %v2987
      %v3078 = vadd.f32 %v2780, %v2991
      %v3079 = vadd.f32 %v2781, %v2995
      %v3080 = vadd.f32 %v2782, %v2999
      %v3081 = vadd.f32 %v2783, %v3003
      %v3082 = vadd.f32 %v2784, %v3007
      %v3083 = vadd.f32 %v2785, %v3011
      %v3084 = vadd.f32 %v2786, %v2983
      %v3085 = vadd.f32 %v2787, %v2987
      %v3086 = vadd.f32 %v2788, %v2991
      %v3087 = vadd.f32 %v2789, %v2995
      %v3088 = vadd.f32 %v2790, %v2999
      %v3089 = vadd.f32 %v2791, %v3003
      %v3090 = vadd.f32 %v2792, %v3007
      %v3091 = vadd.f32 %v2793, %v3011
      %v3092 = vadd.f32 %v2794, %v2983
      %v3093 = vadd.f32 %v2795, %v2987
      %v3094 = vadd.f32 %v2796, %v2991
      %v3095 = vadd.f32 %v2797, %v2995
      %v3096 = vadd.f32 %v2798, %v2999
      %v3097 = vadd.f32 %v2799, %v3003
      %v3098 = vadd.f32 %v2800, %v3007
      %v3099 = vadd.f32 %v2801, %v3011
      %v3100 = vadd.f32 %v2802, %v2983
      %v3101 = vadd.f32 %v2803, %v2987
      %v3102 = vadd.f32 %v2804, %v2991
      %v3103 = vadd.f32 %v2805, %v2995
      %v3104 = vadd.f32 %v2806, %v2999
      %v3105 = vadd.f32 %v2807, %v3003
      %v3106 = vadd.f32 %v2808, %v3007
      %v3107 = vadd.f32 %v2809, %v3011
      %v3108 = vadd.f32 %v2810, %v2983
      %v3109 = vadd.f32 %v2811, %v2987
      %v3110 = vadd.f32 %v2812, %v2991
      %v3111 = vadd.f32 %v2813, %v2995
      %v3112 = vadd.f32 %v2814, %v2999
      %v3113 = vadd.f32 %v2815, %v3003
      %v3114 = vadd.f32 %v2816, %v3007
      %v3115 = vadd.f32 %v2817, %v3011
      %v3116 = vadd.f32 %v2818, %v2983
      %v3117 = vadd.f32 %v2819, %v2987
      %v3118 = vadd.f32 %v2820, %v2991
      %v3119 = vadd.f32 %v2821, %v2995
      %v3120 = vadd.f32 %v2822, %v2999
      %v3121 = vadd.f32 %v2823, %v3003
      %v3122 = vadd.f32 %v2824, %v3007
      %v3123 = vadd.f32 %v2825, %v3011
      %v3124 = vadd.f32 %v2826, %v2983
      %v3125 = vadd.f32 %v2827, %v2987
      %v3126 = vadd.f32 %v2828, %v2991
      %v3127 = vadd.f32 %v2829, %v2995
      %v3128 = vadd.f32 %v2830, %v2999
      %v3129 = vadd.f32 %v2831, %v3003
      %v3130 = vadd.f32 %v2832, %v3007
      %v3131 = vadd.f32 %v2833, %v3011
      %v3132 = vadd.f32 %v2834, %v2983
      %v3133 = vadd.f32 %v2835, %v2987
      %v3134 = vadd.f32 %v2836, %v2991
      %v3135 = vadd.f32 %v2837, %v2995
      %v3136 = vadd.f32 %v2838, %v2999
      %v3137 = vadd.f32 %v2839, %v3003
      %v3138 = vadd.f32 %v2840, %v3007
      %v3139 = vadd.f32 %v2841, %v3011
      %v3140 = vadd.f32 %v2842, %v2983
      %v3141 = vadd.f32 %v2843, %v2987
      %v3142 = vadd.f32 %v2844, %v2991
      %v3143 = vadd.f32 %v2845, %v2995
      %v3144 = vadd.f32 %v2846, %v2999
      %v3145 = vadd.f32 %v2847, %v3003
      %v3146 = vadd.f32 %v2848, %v3007
      %v3147 = vadd.f32 %v2849, %v3011
      %v3148 = vadd.f32 %v2850, %v2983
      %v3149 = vadd.f32 %v2851, %v2987
      %v3150 = vadd.f32 %v2852, %v2991
      %v3151 = vadd.f32 %v2853, %v2995
      %v3152 = vadd.f32 %v2854, %v2999
      %v3153 = vadd.f32 %v2855, %v3003
      %v3154 = vadd.f32 %v2856, %v3007
      %v3155 = vadd.f32 %v2857, %v3011
      %v3156 = vadd.f32 %v2858, %v2983
      %v3157 = vadd.f32 %v2859, %v2987
      %v3158 = vadd.f32 %v2860, %v2991
      %v3159 = vadd.f32 %v2861, %v2995
      %v3160 = vadd.f32 %v2862, %v2999
      %v3161 = vadd.f32 %v2863, %v3003
      %v3162 = vadd.f32 %v2864, %v3007
      %v3163 = vadd.f32 %v2865, %v3011
      %v3164 = vadd.f32 %v2866, %v2983
      %v3165 = vadd.f32 %v2867, %v2987
      %v3166 = vadd.f32 %v2868, %v2991
      %v3167 = vadd.f32 %v2869, %v2995
      %v3168 = vadd.f32 %v2870, %v2999
      %v3169 = vadd.f32 %v2871, %v3003
      %v3170 = vadd.f32 %v2872, %v3007
      %v3171 = vadd.f32 %v2873, %v3011
      %v3172 = vadd.f32 %v2874, %v2983
      %v3173 = vadd.f32 %v2875, %v2987
      %v3174 = vadd.f32 %v2876, %v2991
      %v3175 = vadd.f32 %v2877, %v2995
      %v3176 = vadd.f32 %v2878, %v2999
      %v3177 = vadd.f32 %v2879, %v3003
      %v3178 = vadd.f32 %v2880, %v3007
      %v3179 = vadd.f32 %v2881, %v3011
      %v3180 = vadd.f32 %v2882, %v2983
      %v3181 = vadd.f32 %v2883, %v2987
      %v3182 = vadd.f32 %v2884, %v2991
      %v3183 = vadd.f32 %v2885, %v2995
      %v3184 = vadd.f32 %v2886, %v2999
      %v3185 = vadd.f32 %v2887, %v3003
      %v3186 = vadd.f32 %v2888, %v3007
      %v3187 = vadd.f32 %v2889, %v3011
      %v3188 = vadd.f32 %v2890, %v2983
      %v3189 = vadd.f32 %v2891, %v2987
      %v3190 = vadd.f32 %v2892, %v2991
      %v3191 = vadd.f32 %v2893, %v2995
      %v3192 = vadd.f32 %v2894, %v2999
      %v3193 = vadd.f32 %v2895, %v3003
      %v3194 = vadd.f32 %v2896, %v3007
      %v3195 = vadd.f32 %v2897, %v3011
      %v3196 = vadd.f32 %v2898, %v2983
      %v3197 = vadd.f32 %v2899, %v2987
      %v3198 = vadd.f32 %v2900, %v2991
      %v3199 = vadd.f32 %v2901, %v2995
      %v3200 = vadd.f32 %v2902, %v2999
      %v3201 = vadd.f32 %v2903, %v3003
      %v3202 = vadd.f32 %v2904, %v3007
      %v3203 = vadd.f32 %v2905, %v3011
      %v3204 = vadd.f32 %v2906, %v2983
      %v3205 = vadd.f32 %v2907, %v2987
      %v3206 = vadd.f32 %v2908, %v2991
      %v3207 = vadd.f32 %v2909, %v2995
      %v3208 = vadd.f32 %v2910, %v2999
      %v3209 = vadd.f32 %v2911, %v3003
      %v3210 = vadd.f32 %v2912, %v3007
      %v3211 = vadd.f32 %v2913, %v3011
      %v3212 = vadd.f32 %v2914, %v2983
      %v3213 = vadd.f32 %v2915, %v2987
      %v3214 = vadd.f32 %v2916, %v2991
      %v3215 = vadd.f32 %v2917, %v2995
      %v3216 = vadd.f32 %v2918, %v2999
      %v3217 = vadd.f32 %v2919, %v3003
      %v3218 = vadd.f32 %v2920, %v3007
      %v3219 = vadd.f32 %v2921, %v3011
      %v3220 = vadd.f32 %v2922, %v2983
      %v3221 = vadd.f32 %v2923, %v2987
      %v3222 = vadd.f32 %v2924, %v2991
      %v3223 = vadd.f32 %v2925, %v2995
      %v3224 = vadd.f32 %v2926, %v2999
      %v3225 = vadd.f32 %v2927, %v3003
      %v3226 = vadd.f32 %v2928, %v3007
      %v3227 = vadd.f32 %v2929, %v3011
      %v3228 = vadd.f32 %v2930, %v2983
      %v3229 = vadd.f32 %v2931, %v2987
      %v3230 = vadd.f32 %v2932, %v2991
      %v3231 = vadd.f32 %v2933, %v2995
      %v3232 = vadd.f32 %v2934, %v2999
      %v3233 = vadd.f32 %v2935, %v3003
      %v3234 = vadd.f32 %v2936, %v3007
      %v3235 = vadd.f32 %v2937, %v3011
      %v3236 = vadd.f32 %v2938, %v2983
      %v3237 = vadd.f32 %v2939, %v2987
      %v3238 = vadd.f32 %v2940, %v2991
      %v3239 = vadd.f32 %v2941, %v2995
      %v3240 = vadd.f32 %v2942, %v2999
      %v3241 = vadd.f32 %v2943, %v3003
      %v3242 = vadd.f32 %v2944, %v3007
      %v3243 = vadd.f32 %v2945, %v3011
      %v3244 = vadd.f32 %v2946, %v2983
      %v3245 = vadd.f32 %v2947, %v2987
      %v3246 = vadd.f32 %v2948, %v2991
      %v3247 = vadd.f32 %v2949, %v2995
      %v3248 = vadd.f32 %v2950, %v2999
      %v3249 = vadd.f32 %v2951, %v3003
      %v3250 = vadd.f32 %v2952, %v3007
      %v3251 = vadd.f32 %v2953, %v3011
      %v3252 = vadd.f32 %v2954, %v2983
      %v3253 = vadd.f32 %v2955, %v2987
      %v3254 = vadd.f32 %v2956, %v2991
      %v3255 = vadd.f32 %v2957, %v2995
      %v3256 = vadd.f32 %v2958, %v2999
      %v3257 = vadd.f32 %v2959, %v3003
      %v3258 = vadd.f32 %v2960, %v3007
      %v3259 = vadd.f32 %v2961, %v3011
      %v3260 = vadd.f32 %v2962, %v2983
      %v3261 = vadd.f32 %v2963, %v2987
      %v3262 = vadd.f32 %v2964, %v2991
      %v3263 = vadd.f32 %v2965, %v2995
      %v3264 = vadd.f32 %v2966, %v2999
      %v3265 = vadd.f32 %v2967, %v3003
      %v3266 = vadd.f32 %v2968, %v3007
      %v3267 = vadd.f32 %v2969, %v3011
      %v3268 = vadd.f32 %v2970, %v2983
      %v3269 = vadd.f32 %v2971, %v2987
      %v3270 = vadd.f32 %v2972, %v2991
      %v3271 = vadd.f32 %v2973, %v2995
      %v3272 = vadd.f32 %v2974, %v2999
      %v3273 = vadd.f32 %v2975, %v3003
      %v3274 = vadd.f32 %v2976, %v3007
      %v3275 = vadd.f32 %v2977, %v3011
      %v3276 = vld [vmem:[#allocation2] sm:$0xff]
      %v3277 = vmax.f32 %v3020, %v3028
      %v3278 = vmax.f32 %v3277, %v3036
      %v3279 = vmax.f32 %v3278, %v3044
      %v3280 = vmax.f32 %v3279, %v3052
      %v3281 = vmax.f32 %v3280, %v3060
      %v3282 = vmax.f32 %v3281, %v3068
      %v3283 = vmax.f32 %v3282, %v3076
      %v3284 = vmax.f32 %v3283, %v3084
      %v3285 = vmax.f32 %v3284, %v3092
      %v3286 = vmax.f32 %v3285, %v3100
      %v3287 = vmax.f32 %v3286, %v3108
      %v3288 = vmax.f32 %v3287, %v3116
      %v3289 = vmax.f32 %v3288, %v3124
      %v3290 = vmax.f32 %v3289, %v3132
      %v3291 = vmax.f32 %v3290, %v3140
      %v3292 = vmax.f32 %v3291, %v3148
      %v3293 = vmax.f32 %v3292, %v3156
      %v3294 = vmax.f32 %v3293, %v3164
      %v3295 = vmax.f32 %v3294, %v3172
      %v3296 = vmax.f32 %v3295, %v3180
      %v3297 = vmax.f32 %v3296, %v3188
      %v3298 = vmax.f32 %v3297, %v3196
      %v3299 = vmax.f32 %v3298, %v3204
      %v3300 = vmax.f32 %v3299, %v3212
      %v3301 = vmax.f32 %v3300, %v3220
      %v3302 = vmax.f32 %v3301, %v3228
      %v3303 = vmax.f32 %v3302, %v3236
      %v3304 = vmax.f32 %v3303, %v3244
      %v3305 = vmax.f32 %v3304, %v3252
      %v3306 = vmax.f32 %v3305, %v3260
      %v3307 = vmax.f32 %v3306, %v3268
      %v3308 = vrot.slane %v3307, 4
      %v3309 = vmax.f32 %v3307, %v3308
      %v3310 = vrot.slane %v3309, 2
      %v3311 = vmax.f32 %v3309, %v3310
      %v3312 = vrot.slane %v3311, 1
      %v3313 = vmax.f32 %v3311, %v3312
      %v3314 = vmax.f32 %v3021, %v3029
      %v3315 = vmax.f32 %v3314, %v3037
      %v3316 = vmax.f32 %v3315, %v3045
      %v3317 = vmax.f32 %v3316, %v3053
      %v3318 = vmax.f32 %v3317, %v3061
      %v3319 = vmax.f32 %v3318, %v3069
      %v3320 = vmax.f32 %v3319, %v3077
      %v3321 = vmax.f32 %v3320, %v3085
      %v3322 = vmax.f32 %v3321, %v3093
      %v3323 = vmax.f32 %v3322, %v3101
      %v3324 = vmax.f32 %v3323, %v3109
      %v3325 = vmax.f32 %v3324, %v3117
      %v3326 = vmax.f32 %v3325, %v3125
      %v3327 = vmax.f32 %v3326, %v3133
      %v3328 = vmax.f32 %v3327, %v3141
      %v3329 = vmax.f32 %v3328, %v3149
      %v3330 = vmax.f32 %v3329, %v3157
      %v3331 = vmax.f32 %v3330, %v3165
      %v3332 = vmax.f32 %v3331, %v3173
      %v3333 = vmax.f32 %v3332, %v3181
      %v3334 = vmax.f32 %v3333, %v3189
      %v3335 = vmax.f32 %v3334, %v3197
      %v3336 = vmax.f32 %v3335, %v3205
      %v3337 = vmax.f32 %v3336, %v3213
      %v3338 = vmax.f32 %v3337, %v3221
      %v3339 = vmax.f32 %v3338, %v3229
      %v3340 = vmax.f32 %v3339, %v3237
      %v3341 = vmax.f32 %v3340, %v3245
      %v3342 = vmax.f32 %v3341, %v3253
      %v3343 = vmax.f32 %v3342, %v3261
      %v3344 = vmax.f32 %v3343, %v3269
      %v3345 = vrot.slane %v3344, 4
      %v3346 = vmax.f32 %v3344, %v3345
      %v3347 = vrot.slane %v3346, 2
      %v3348 = vmax.f32 %v3346, %v3347
      %v3349 = vrot.slane %v3348, 1
      %v3350 = vmax.f32 %v3348, %v3349
      %v3351 = vmax.f32 %v3022, %v3030
      %v3352 = vmax.f32 %v3351, %v3038
      %v3353 = vmax.f32 %v3352, %v3046
      %v3354 = vmax.f32 %v3353, %v3054
      %v3355 = vmax.f32 %v3354, %v3062
      %v3356 = vmax.f32 %v3355, %v3070
      %v3357 = vmax.f32 %v3356, %v3078
      %v3358 = vmax.f32 %v3357, %v3086
      %v3359 = vmax.f32 %v3358, %v3094
      %v3360 = vmax.f32 %v3359, %v3102
      %v3361 = vmax.f32 %v3360, %v3110
      %v3362 = vmax.f32 %v3361, %v3118
      %v3363 = vmax.f32 %v3362, %v3126
      %v3364 = vmax.f32 %v3363, %v3134
      %v3365 = vmax.f32 %v3364, %v3142
      %v3366 = vmax.f32 %v3365, %v3150
      %v3367 = vmax.f32 %v3366, %v3158
      %v3368 = vmax.f32 %v3367, %v3166
      %v3369 = vmax.f32 %v3368, %v3174
      %v3370 = vmax.f32 %v3369, %v3182
      %v3371 = vmax.f32 %v3370, %v3190
      %v3372 = vmax.f32 %v3371, %v3198
      %v3373 = vmax.f32 %v3372, %v3206
      %v3374 = vmax.f32 %v3373, %v3214
      %v3375 = vmax.f32 %v3374, %v3222
      %v3376 = vmax.f32 %v3375, %v3230
      %v3377 = vmax.f32 %v3376, %v3238
      %v3378 = vmax.f32 %v3377, %v3246
      %v3379 = vmax.f32 %v3378, %v3254
      %v3380 = vmax.f32 %v3379, %v3262
      %v3381 = vmax.f32 %v3380, %v3270
      %v3382 = vrot.slane %v3381, 4
      %v3383 = vmax.f32 %v3381, %v3382
      %v3384 = vrot.slane %v3383, 2
      %v3385 = vmax.f32 %v3383, %v3384
      %v3386 = vrot.slane %v3385, 1
      %v3387 = vmax.f32 %v3385, %v3386
      %v3388 = vmax.f32 %v3023, %v3031
      %v3389 = vmax.f32 %v3388, %v3039
      %v3390 = vmax.f32 %v3389, %v3047
      %v3391 = vmax.f32 %v3390, %v3055
      %v3392 = vmax.f32 %v3391, %v3063
      %v3393 = vmax.f32 %v3392, %v3071
      %v3394 = vmax.f32 %v3393, %v3079
      %v3395 = vmax.f32 %v3394, %v3087
      %v3396 = vmax.f32 %v3395, %v3095
      %v3397 = vmax.f32 %v3396, %v3103
      %v3398 = vmax.f32 %v3397, %v3111
      %v3399 = vmax.f32 %v3398, %v3119
      %v3400 = vmax.f32 %v3399, %v3127
      %v3401 = vmax.f32 %v3400, %v3135
      %v3402 = vmax.f32 %v3401, %v3143
      %v3403 = vmax.f32 %v3402, %v3151
      %v3404 = vmax.f32 %v3403, %v3159
      %v3405 = vmax.f32 %v3404, %v3167
      %v3406 = vmax.f32 %v3405, %v3175
      %v3407 = vmax.f32 %v3406, %v3183
      %v3408 = vmax.f32 %v3407, %v3191
      %v3409 = vmax.f32 %v3408, %v3199
      %v3410 = vmax.f32 %v3409, %v3207
      %v3411 = vmax.f32 %v3410, %v3215
      %v3412 = vmax.f32 %v3411, %v3223
      %v3413 = vmax.f32 %v3412, %v3231
      %v3414 = vmax.f32 %v3413, %v3239
      %v3415 = vmax.f32 %v3414, %v3247
      %v3416 = vmax.f32 %v3415, %v3255
      %v3417 = vmax.f32 %v3416, %v3263
      %v3418 = vmax.f32 %v3417, %v3271
      %v3419 = vrot.slane %v3418, 4
      %v3420 = vmax.f32 %v3418, %v3419
      %v3421 = vrot.slane %v3420, 2
      %v3422 = vmax.f32 %v3420, %v3421
      %v3423 = vrot.slane %v3422, 1
      %v3424 = vmax.f32 %v3422, %v3423
      %v3425 = vmax.f32 %v3024, %v3032
      %v3426 = vmax.f32 %v3425, %v3040
      %v3427 = vmax.f32 %v3426, %v3048
      %v3428 = vmax.f32 %v3427, %v3056
      %v3429 = vmax.f32 %v3428, %v3064
      %v3430 = vmax.f32 %v3429, %v3072
      %v3431 = vmax.f32 %v3430, %v3080
      %v3432 = vmax.f32 %v3431, %v3088
      %v3433 = vmax.f32 %v3432, %v3096
      %v3434 = vmax.f32 %v3433, %v3104
      %v3435 = vmax.f32 %v3434, %v3112
      %v3436 = vmax.f32 %v3435, %v3120
      %v3437 = vmax.f32 %v3436, %v3128
      %v3438 = vmax.f32 %v3437, %v3136
      %v3439 = vmax.f32 %v3438, %v3144
      %v3440 = vmax.f32 %v3439, %v3152
      %v3441 = vmax.f32 %v3440, %v3160
      %v3442 = vmax.f32 %v3441, %v3168
      %v3443 = vmax.f32 %v3442, %v3176
      %v3444 = vmax.f32 %v3443, %v3184
      %v3445 = vmax.f32 %v3444, %v3192
      %v3446 = vmax.f32 %v3445, %v3200
      %v3447 = vmax.f32 %v3446, %v3208
      %v3448 = vmax.f32 %v3447, %v3216
      %v3449 = vmax.f32 %v3448, %v3224
      %v3450 = vmax.f32 %v3449, %v3232
      %v3451 = vmax.f32 %v3450, %v3240
      %v3452 = vmax.f32 %v3451, %v3248
      %v3453 = vmax.f32 %v3452, %v3256
      %v3454 = vmax.f32 %v3453, %v3264
      %v3455 = vmax.f32 %v3454, %v3272
      %v3456 = vrot.slane %v3455, 4
      %v3457 = vmax.f32 %v3455, %v3456
      %v3458 = vrot.slane %v3457, 2
      %v3459 = vmax.f32 %v3457, %v3458
      %v3460 = vrot.slane %v3459, 1
      %v3461 = vmax.f32 %v3459, %v3460
      %v3462 = vmax.f32 %v3025, %v3033
      %v3463 = vmax.f32 %v3462, %v3041
      %v3464 = vmax.f32 %v3463, %v3049
      %v3465 = vmax.f32 %v3464, %v3057
      %v3466 = vmax.f32 %v3465, %v3065
      %v3467 = vmax.f32 %v3466, %v3073
      %v3468 = vmax.f32 %v3467, %v3081
      %v3469 = vmax.f32 %v3468, %v3089
      %v3470 = vmax.f32 %v3469, %v3097
      %v3471 = vmax.f32 %v3470, %v3105
      %v3472 = vmax.f32 %v3471, %v3113
      %v3473 = vmax.f32 %v3472, %v3121
      %v3474 = vmax.f32 %v3473, %v3129
      %v3475 = vmax.f32 %v3474, %v3137
      %v3476 = vmax.f32 %v3475, %v3145
      %v3477 = vmax.f32 %v3476, %v3153
      %v3478 = vmax.f32 %v3477, %v3161
      %v3479 = vmax.f32 %v3478, %v3169
      %v3480 = vmax.f32 %v3479, %v3177
      %v3481 = vmax.f32 %v3480, %v3185
      %v3482 = vmax.f32 %v3481, %v3193
      %v3483 = vmax.f32 %v3482, %v3201
      %v3484 = vmax.f32 %v3483, %v3209
      %v3485 = vmax.f32 %v3484, %v3217
      %v3486 = vmax.f32 %v3485, %v3225
      %v3487 = vmax.f32 %v3486, %v3233
      %v3488 = vmax.f32 %v3487, %v3241
      %v3489 = vmax.f32 %v3488, %v3249
      %v3490 = vmax.f32 %v3489, %v3257
      %v3491 = vmax.f32 %v3490, %v3265
      %v3492 = vmax.f32 %v3491, %v3273
      %v3493 = vrot.slane %v3492, 4
      %v3494 = vmax.f32 %v3492, %v3493
      %v3495 = vrot.slane %v3494, 2
      %v3496 = vmax.f32 %v3494, %v3495
      %v3497 = vrot.slane %v3496, 1
      %v3498 = vmax.f32 %v3496, %v3497
      %v3499 = vmax.f32 %v3026, %v3034
      %v3500 = vmax.f32 %v3499, %v3042
      %v3501 = vmax.f32 %v3500, %v3050
      %v3502 = vmax.f32 %v3501, %v3058
      %v3503 = vmax.f32 %v3502, %v3066
      %v3504 = vmax.f32 %v3503, %v3074
      %v3505 = vmax.f32 %v3504, %v3082
      %v3506 = vmax.f32 %v3505, %v3090
      %v3507 = vmax.f32 %v3506, %v3098
      %v3508 = vmax.f32 %v3507, %v3106
      %v3509 = vmax.f32 %v3508, %v3114
      %v3510 = vmax.f32 %v3509, %v3122
      %v3511 = vmax.f32 %v3510, %v3130
      %v3512 = vmax.f32 %v3511, %v3138
      %v3513 = vmax.f32 %v3512, %v3146
      %v3514 = vmax.f32 %v3513, %v3154
      %v3515 = vmax.f32 %v3514, %v3162
      %v3516 = vmax.f32 %v3515, %v3170
      %v3517 = vmax.f32 %v3516, %v3178
      %v3518 = vmax.f32 %v3517, %v3186
      %v3519 = vmax.f32 %v3518, %v3194
      %v3520 = vmax.f32 %v3519, %v3202
      %v3521 = vmax.f32 %v3520, %v3210
      %v3522 = vmax.f32 %v3521, %v3218
      %v3523 = vmax.f32 %v3522, %v3226
      %v3524 = vmax.f32 %v3523, %v3234
      %v3525 = vmax.f32 %v3524, %v3242
      %v3526 = vmax.f32 %v3525, %v3250
      %v3527 = vmax.f32 %v3526, %v3258
      %v3528 = vmax.f32 %v3527, %v3266
      %v3529 = vmax.f32 %v3528, %v3274
      %v3530 = vrot.slane %v3529, 4
      %v3531 = vmax.f32 %v3529, %v3530
      %v3532 = vrot.slane %v3531, 2
      %v3533 = vmax.f32 %v3531, %v3532
      %v3534 = vrot.slane %v3533, 1
      %v3535 = vmax.f32 %v3533, %v3534
      %v3536 = vmax.f32 %v3027, %v3035
      %v3537 = vmax.f32 %v3536, %v3043
      %v3538 = vmax.f32 %v3537, %v3051
      %v3539 = vmax.f32 %v3538, %v3059
      %v3540 = vmax.f32 %v3539, %v3067
      %v3541 = vmax.f32 %v3540, %v3075
      %v3542 = vmax.f32 %v3541, %v3083
      %v3543 = vmax.f32 %v3542, %v3091
      %v3544 = vmax.f32 %v3543, %v3099
      %v3545 = vmax.f32 %v3544, %v3107
      %v3546 = vmax.f32 %v3545, %v3115
      %v3547 = vmax.f32 %v3546, %v3123
      %v3548 = vmax.f32 %v3547, %v3131
      %v3549 = vmax.f32 %v3548, %v3139
      %v3550 = vmax.f32 %v3549, %v3147
      %v3551 = vmax.f32 %v3550, %v3155
      %v3552 = vmax.f32 %v3551, %v3163
      %v3553 = vmax.f32 %v3552, %v3171
      %v3554 = vmax.f32 %v3553, %v3179
      %v3555 = vmax.f32 %v3554, %v3187
      %v3556 = vmax.f32 %v3555, %v3195
      %v3557 = vmax.f32 %v3556, %v3203
      %v3558 = vmax.f32 %v3557, %v3211
      %v3559 = vmax.f32 %v3558, %v3219
      %v3560 = vmax.f32 %v3559, %v3227
      %v3561 = vmax.f32 %v3560, %v3235
      %v3562 = vmax.f32 %v3561, %v3243
      %v3563 = vmax.f32 %v3562, %v3251
      %v3564 = vmax.f32 %v3563, %v3259
      %v3565 = vmax.f32 %v3564, %v3267
      %v3566 = vmax.f32 %v3565, %v3275
      %v3567 = vrot.slane %v3566, 4
      %v3568 = vmax.f32 %v3566, %v3567
      %v3569 = vrot.slane %v3568, 2
      %v3570 = vmax.f32 %v3568, %v3569
      %v3571 = vrot.slane %v3570, 1
      %v3572 = vmax.f32 %v3570, %v3571
      %v3581 = vcombine.low %v3313, %v3350
      %v3582 = vcombine.low %v3387, %v3424
      %v3583 = vcombine.low %v3461, %v3498
      %v3584 = vcombine.low %v3535, %v3572
      %v3586 = vunpack.c.l.s4 1966171168
      %v3587 = vunpack.c.0.s8 %v3586
      %v3588 = vlaneseq
      %v3589 = vshrl.u32 %v3588, 7
      %v3590 = vsub.s32 %v3587, %v3589
      %v3591 = vrot.slane %v3581, %v3590
      %v3593 = vunpack.c.l.s4 1966171168
      %v3594 = vunpack.c.0.s8 %v3593
      %v3595 = vlaneseq
      %v3596 = vshrl.u32 %v3595, 7
      %v3597 = vsub.s32 %v3594, %v3596
      %v3598 = vrot.slane %v3582, %v3597
      %v3600 = vunpack.c.l.s4 1966171168
      %v3601 = vunpack.c.0.s8 %v3600
      %v3602 = vlaneseq
      %v3603 = vshrl.u32 %v3602, 7
      %v3604 = vsub.s32 %v3601, %v3603
      %v3605 = vrot.slane %v3583, %v3604
      %v3607 = vunpack.c.l.s4 1966171168
      %v3608 = vunpack.c.0.s8 %v3607
      %v3609 = vlaneseq
      %v3610 = vshrl.u32 %v3609, 7
      %v3611 = vsub.s32 %v3608, %v3610
      %v3612 = vrot.slane %v3584, %v3611
      %v3613 = vcombine.low %v3591, %v3598
      %v3614 = vcombine.low %v3605, %v3612
      %v3616 = vunpack.c.l.s4 1966171168
      %v3617 = vunpack.c.0.s8 %v3616
      %v3618 = vlaneseq
      %v3619 = vshrl.u32 %v3618, 7
      %v3620 = vsub.s32 %v3617, %v3619
      %v3621 = vrot.slane %v3613, %v3620
      %v3623 = vunpack.c.l.s4 1966171168
      %v3624 = vunpack.c.0.s8 %v3623
      %v3625 = vlaneseq
      %v3626 = vshrl.u32 %v3625, 7
      %v3627 = vsub.s32 %v3624, %v3626
      %v3628 = vrot.slane %v3614, %v3627
      %v3629 = vcombine.low %v3621, %v3628
      %v3631 = vmax.f32 %v3276, %v3629
      %3632 = vst [vmem:[#allocation2] sm:$0xff] %v3631
      // Predicated region
      $region65: #{pointnet_cls_forward.6} parent=59 // pred_check
        %p3633 = pneg %p404
      $region66: #{pointnet_cls_forward.6} parent=59 // pred_check_branch
        %3635 = sbr.rel (%p3633) target = $region68
      $region67: #{pointnet_cls_forward.6} parent=59 // pred_region
        %v3636 = vld [vmem:[#allocation2] sm:$0xff]
        %3637 = vst [vmem:[%s402] sm:$0xff] %v3636
      $region68: #{pointnet_cls_forward.6} parent=59 // pred_fallthru
        _
      %p3638 = scmp.lt.s32.totalorder %s25, 1
      %s3639 = scalar_select %p3638, %s25, 1
      %s3640 = smul.addr %s3639, 8
      %s3641 = scalar_lea.vmem %s10, %s3640
      // Predicated region
      $region69: #{pointnet_cls_forward.6} parent=59 // pred_check
        %p3642 = pneg %p273
      $region70: #{pointnet_cls_forward.6} parent=59 // pred_check_branch
        %3644 = sbr.rel (%p3642) target = $region72
      $region71: #{pointnet_cls_forward.6} parent=59 // pred_region
        _
      $region72: #{pointnet_cls_forward.6} parent=59 // pred_fallthru
        _
    $region60: #{pointnet_cls_forward.6} parent=5 // pred_fallthru
      _
    %p3645 = scmp.le.s32.totalorder 2, %s16
    // Predicated region
    $region73: #{pointnet_cls_forward.6} parent=5 // pred_check
      %p3646 = pneg %p3645
    $region74: #{pointnet_cls_forward.6} parent=5 // pred_check_branch
      %3648 = sbr.rel (%p3646) target = $region76
    $region75: #{pointnet_cls_forward.6} parent=5 // pred_region
      %s3649 = ssub.s32 %s16, 2
      // Predicated region
      $region77: #{pointnet_cls_forward.6} parent=75 // pred_check
        %p3650 = pneg %p279
      $region78: #{pointnet_cls_forward.6} parent=75 // pred_check_branch
        %3652 = sbr.rel (%p3650) target = $region80
      $region79: #{pointnet_cls_forward.6} parent=75 // pred_region
        %p3653 = scmp.lt.s32.totalorder %s27, 1
        %s3654 = scalar_select %p3653, %s27, 1
        %s3655 = smul.addr %s3654, 8
        %s3656 = scalar_lea.vmem %s10, %s3655
      $region80: #{pointnet_cls_forward.6} parent=75 // pred_fallthru
        _
    $region76: #{pointnet_cls_forward.6} parent=5 // pred_fallthru
      _
  $region6: #{pointnet_cls_forward.6} parent=0 // loop_footer
    %s20 = sadd.s32 1, %s16
  $region7: #{pointnet_cls_forward.6} parent=0 // loop_footer_branch
    %15 = sbr.rel target = $region3
  $region8: #{pointnet_cls_forward.6} parent=0 // loop_exit
    _

// kernel: pointnet_cls_forward.7
$region0: #{pointnet_cls_forward.7}
  #allocation0 [shape = 'u32[]', space=smem, size = 0x4, offset = 0x4, fixed_abs, tag = 'smem constant byte address 0x4 - core index']
  #allocation1 [shape = 'u32[144,128]{1,0:T(1,128)}', space=vmem, size = 0x12000, scoped, tag = 'internal scratch']
  %s0 = inlined_call_operand.vmem [shape: f32[2,1024], index: 0, kind: input, shape index: {}]
  %s1 = inlined_call_operand.vmem [shape: bf16[1024,512], index: 1, kind: input, shape index: {}]
  %s2 = inlined_call_operand.vmem [shape: f32[1,512], index: 2, kind: input, shape index: {}]
  %s3 = inlined_call_operand.vmem [shape: f32[1,512], index: 3, kind: input, shape index: {}]
  %s4 = inlined_call_operand.vmem [shape: bf16[512,256], index: 4, kind: input, shape index: {}]
  %s5 = inlined_call_operand.vmem [shape: f32[1,256], index: 5, kind: input, shape index: {}]
  %s6 = inlined_call_operand.vmem [shape: f32[1,256], index: 6, kind: input, shape index: {}]
  %s7 = inlined_call_operand.vmem [shape: f32[256,2], index: 7, kind: input, shape index: {}]
  %s8 = inlined_call_operand.vmem [shape: f32[1,2], index: 8, kind: input, shape index: {}]
  %s9 = inlined_call_operand.hbm [shape: f32[2,2], index: 9, kind: output, shape index: {}]
  %s10 = sld [smem:[#allocation0]]
  $region46: #{pointnet_cls_forward.7} parent=0
    _
  %s12 = ssub.s32 1, %s10
  %s13 = scalar_select 0, %s12, %s10
  $region1: #{pointnet_cls_forward.7} parent=0
    #allocation2 [shape = 'u8[1024]{0}', space=vmem, size = 0x400, scoped, tag = 'output window, operand 0, single buffered']
    #allocation3 [shape = 's32[1]{0}', space=sflag, size = 0x4, scoped, tag = 'scoped memory for pointnet_cls_forward.7']
    %14 = vsyncpa [#allocation3], 0
    // Predicated region
    $region2: #{pointnet_cls_forward.7} parent=1 // pred_check
      _
    $region3: #{pointnet_cls_forward.7} parent=1 // pred_check_branch
      %16 = sbr.rel (0) target = $region5
    $region4: #{pointnet_cls_forward.7} parent=1 // pred_region
      _
    $region5: #{pointnet_cls_forward.7} parent=1 // pred_fallthru
      _
    // Predicated region
    $region6: #{pointnet_cls_forward.7} parent=1 // pred_check
      _
    $region7: #{pointnet_cls_forward.7} parent=1 // pred_check_branch
      %18 = sbr.rel (0) target = $region9
    $region8: #{pointnet_cls_forward.7} parent=1 // pred_region
      _
    $region9: #{pointnet_cls_forward.7} parent=1 // pred_fallthru
      _
    // Predicated region
    $region10: #{pointnet_cls_forward.7} parent=1 // pred_check
      _
    $region11: #{pointnet_cls_forward.7} parent=1 // pred_check_branch
      %20 = sbr.rel (0) target = $region13
    $region12: #{pointnet_cls_forward.7} parent=1 // pred_region
      _
    $region13: #{pointnet_cls_forward.7} parent=1 // pred_fallthru
      _
    // Predicated region
    $region14: #{pointnet_cls_forward.7} parent=1 // pred_check
      _
    $region15: #{pointnet_cls_forward.7} parent=1 // pred_check_branch
      %22 = sbr.rel (0) target = $region17
    $region16: #{pointnet_cls_forward.7} parent=1 // pred_region
      _
    $region17: #{pointnet_cls_forward.7} parent=1 // pred_fallthru
      _
    // Predicated region
    $region18: #{pointnet_cls_forward.7} parent=1 // pred_check
      _
    $region19: #{pointnet_cls_forward.7} parent=1 // pred_check_branch
      %24 = sbr.rel (0) target = $region21
    $region20: #{pointnet_cls_forward.7} parent=1 // pred_region
      _
    $region21: #{pointnet_cls_forward.7} parent=1 // pred_fallthru
      _
    // Predicated region
    $region22: #{pointnet_cls_forward.7} parent=1 // pred_check
      _
    $region23: #{pointnet_cls_forward.7} parent=1 // pred_check_branch
      %26 = sbr.rel (0) target = $region25
    $region24: #{pointnet_cls_forward.7} parent=1 // pred_region
      _
    $region25: #{pointnet_cls_forward.7} parent=1 // pred_fallthru
      _
    // Predicated region
    $region26: #{pointnet_cls_forward.7} parent=1 // pred_check
      _
    $region27: #{pointnet_cls_forward.7} parent=1 // pred_check_branch
      %28 = sbr.rel (0) target = $region29
    $region28: #{pointnet_cls_forward.7} parent=1 // pred_region
      _
    $region29: #{pointnet_cls_forward.7} parent=1 // pred_fallthru
      _
    // Predicated region
    $region30: #{pointnet_cls_forward.7} parent=1 // pred_check
      _
    $region31: #{pointnet_cls_forward.7} parent=1 // pred_check_branch
      %30 = sbr.rel (0) target = $region33
    $region32: #{pointnet_cls_forward.7} parent=1 // pred_region
      _
    $region33: #{pointnet_cls_forward.7} parent=1 // pred_fallthru
      _
    // Predicated region
    $region34: #{pointnet_cls_forward.7} parent=1 // pred_check
      _
    $region35: #{pointnet_cls_forward.7} parent=1 // pred_check_branch
      %32 = sbr.rel (0) target = $region37
    $region36: #{pointnet_cls_forward.7} parent=1 // pred_region
      _
    $region37: #{pointnet_cls_forward.7} parent=1 // pred_fallthru
      _
    %v33 = vld [vmem:[%s0] sm:$0xff]
    %v34 = vld [vmem:[%s0 + $0x8] sm:$0xff]
    %v37 = vcombine.high %v33, %v33
    %v39 = vunpack.c.l.s4 1983009808
    %v40 = vunpack.c.0.s8 %v39
    %v41 = vlaneseq
    %v42 = vshrl.u32 %v41, 7
    %v43 = vsub.s32 %v40, %v42
    %v44 = vrot.slane %v33, %v43
    %v46 = vunpack.c.l.s4 1983009808
    %v47 = vunpack.c.0.s8 %v46
    %v48 = vlaneseq
    %v49 = vshrl.u32 %v48, 7
    %v50 = vsub.s32 %v47, %v49
    %v51 = vrot.slane %v37, %v50
    %v52 = vcombine.high %v44, %v44
    %v53 = vcombine.high %v51, %v51
    %v54 = vcombine.high %v34, %v34
    %v56 = vunpack.c.l.s4 1983009808
    %v57 = vunpack.c.0.s8 %v56
    %v58 = vlaneseq
    %v59 = vshrl.u32 %v58, 7
    %v60 = vsub.s32 %v57, %v59
    %v61 = vrot.slane %v34, %v60
    %v63 = vunpack.c.l.s4 1983009808
    %v64 = vunpack.c.0.s8 %v63
    %v65 = vlaneseq
    %v66 = vshrl.u32 %v65, 7
    %v67 = vsub.s32 %v64, %v66
    %v68 = vrot.slane %v54, %v67
    %v69 = vcombine.high %v61, %v61
    %v70 = vcombine.high %v68, %v68
    %v79 = vpack.c.bf16 %v44, %v44
    %v80 = vpack.c.bf16 %v52, %v52
    %v81 = vpack.c.bf16 %v51, %v51
    %v82 = vpack.c.bf16 %v53, %v53
    %v83 = vpack.c.bf16 %v61, %v61
    %v84 = vpack.c.bf16 %v69, %v69
    %v85 = vpack.c.bf16 %v68, %v68
    %v86 = vpack.c.bf16 %v70, %v70
    %v87 = vld [vmem:[%s1] sm:$0xff]
    %v88 = vld [vmem:[%s1 + $0x8] sm:$0xff]
    %v89 = vld [vmem:[%s1 + $0x10] sm:$0xff]
    %v90 = vld [vmem:[%s1 + $0x18] sm:$0xff]
    %v91 = vld [vmem:[%s1 + $0x20] sm:$0xff]
    %v92 = vld [vmem:[%s1 + $0x28] sm:$0xff]
    %v93 = vld [vmem:[%s1 + $0x30] sm:$0xff]
    %v94 = vld [vmem:[%s1 + $0x38] sm:$0xff]
    %v95 = vld [vmem:[%s1 + $0x40] sm:$0xff]
    %v96 = vld [vmem:[%s1 + $0x48] sm:$0xff]
    %v97 = vld [vmem:[%s1 + $0x50] sm:$0xff]
    %v98 = vld [vmem:[%s1 + $0x58] sm:$0xff]
    %v99 = vld [vmem:[%s1 + $0x60] sm:$0xff]
    %v100 = vld [vmem:[%s1 + $0x68] sm:$0xff]
    %v101 = vld [vmem:[%s1 + $0x70] sm:$0xff]
    %v102 = vld [vmem:[%s1 + $0x78] sm:$0xff]
    %v103 = vld [vmem:[%s1 + $0x80] sm:$0xff]
    %v104 = vld [vmem:[%s1 + $0x88] sm:$0xff]
    %v105 = vld [vmem:[%s1 + $0x90] sm:$0xff]
    %v106 = vld [vmem:[%s1 + $0x98] sm:$0xff]
    %v107 = vld [vmem:[%s1 + $0xa0] sm:$0xff]
    %v108 = vld [vmem:[%s1 + $0xa8] sm:$0xff]
    %v109 = vld [vmem:[%s1 + $0xb0] sm:$0xff]
    %v110 = vld [vmem:[%s1 + $0xb8] sm:$0xff]
    %v111 = vld [vmem:[%s1 + $0xc0] sm:$0xff]
    %v112 = vld [vmem:[%s1 + $0xc8] sm:$0xff]
    %v113 = vld [vmem:[%s1 + $0xd0] sm:$0xff]
    %v114 = vld [vmem:[%s1 + $0xd8] sm:$0xff]
    %v115 = vld [vmem:[%s1 + $0xe0] sm:$0xff]
    %v116 = vld [vmem:[%s1 + $0xe8] sm:$0xff]
    %v117 = vld [vmem:[%s1 + $0xf0] sm:$0xff]
    %v118 = vld [vmem:[%s1 + $0xf8] sm:$0xff]
    %v119 = vld [vmem:[%s1 + $0x100] sm:$0xff]
    %v120 = vld [vmem:[%s1 + $0x108] sm:$0xff]
    %v121 = vld [vmem:[%s1 + $0x110] sm:$0xff]
    %v122 = vld [vmem:[%s1 + $0x118] sm:$0xff]
    %v123 = vld [vmem:[%s1 + $0x120] sm:$0xff]
    %v124 = vld [vmem:[%s1 + $0x128] sm:$0xff]
    %v125 = vld [vmem:[%s1 + $0x130] sm:$0xff]
    %v126 = vld [vmem:[%s1 + $0x138] sm:$0xff]
    %v127 = vld [vmem:[%s1 + $0x140] sm:$0xff]
    %v128 = vld [vmem:[%s1 + $0x148] sm:$0xff]
    %v129 = vld [vmem:[%s1 + $0x150] sm:$0xff]
    %v130 = vld [vmem:[%s1 + $0x158] sm:$0xff]
    %v131 = vld [vmem:[%s1 + $0x160] sm:$0xff]
    %v132 = vld [vmem:[%s1 + $0x168] sm:$0xff]
    %v133 = vld [vmem:[%s1 + $0x170] sm:$0xff]
    %v134 = vld [vmem:[%s1 + $0x178] sm:$0xff]
    %v135 = vld [vmem:[%s1 + $0x180] sm:$0xff]
    %v136 = vld [vmem:[%s1 + $0x188] sm:$0xff]
    %v137 = vld [vmem:[%s1 + $0x190] sm:$0xff]
    %v138 = vld [vmem:[%s1 + $0x198] sm:$0xff]
    %v139 = vld [vmem:[%s1 + $0x1a0] sm:$0xff]
    %v140 = vld [vmem:[%s1 + $0x1a8] sm:$0xff]
    %v141 = vld [vmem:[%s1 + $0x1b0] sm:$0xff]
    %v142 = vld [vmem:[%s1 + $0x1b8] sm:$0xff]
    %v143 = vld [vmem:[%s1 + $0x1c0] sm:$0xff]
    %v144 = vld [vmem:[%s1 + $0x1c8] sm:$0xff]
    %v145 = vld [vmem:[%s1 + $0x1d0] sm:$0xff]
    %v146 = vld [vmem:[%s1 + $0x1d8] sm:$0xff]
    %v147 = vld [vmem:[%s1 + $0x1e0] sm:$0xff]
    %v148 = vld [vmem:[%s1 + $0x1e8] sm:$0xff]
    %v149 = vld [vmem:[%s1 + $0x1f0] sm:$0xff]
    %v150 = vld [vmem:[%s1 + $0x1f8] sm:$0xff]
    %v151 = vld [vmem:[%s1 + $0x200] sm:$0xff]
    %v152 = vld [vmem:[%s1 + $0x208] sm:$0xff]
    %v153 = vld [vmem:[%s1 + $0x210] sm:$0xff]
    %v154 = vld [vmem:[%s1 + $0x218] sm:$0xff]
    %v155 = vld [vmem:[%s1 + $0x220] sm:$0xff]
    %v156 = vld [vmem:[%s1 + $0x228] sm:$0xff]
    %v157 = vld [vmem:[%s1 + $0x230] sm:$0xff]
    %v158 = vld [vmem:[%s1 + $0x238] sm:$0xff]
    %v159 = vld [vmem:[%s1 + $0x240] sm:$0xff]
    %v160 = vld [vmem:[%s1 + $0x248] sm:$0xff]
    %v161 = vld [vmem:[%s1 + $0x250] sm:$0xff]
    %v162 = vld [vmem:[%s1 + $0x258] sm:$0xff]
    %v163 = vld [vmem:[%s1 + $0x260] sm:$0xff]
    %v164 = vld [vmem:[%s1 + $0x268] sm:$0xff]
    %v165 = vld [vmem:[%s1 + $0x270] sm:$0xff]
    %v166 = vld [vmem:[%s1 + $0x278] sm:$0xff]
    %v167 = vld [vmem:[%s1 + $0x280] sm:$0xff]
    %v168 = vld [vmem:[%s1 + $0x288] sm:$0xff]
    %v169 = vld [vmem:[%s1 + $0x290] sm:$0xff]
    %v170 = vld [vmem:[%s1 + $0x298] sm:$0xff]
    %v171 = vld [vmem:[%s1 + $0x2a0] sm:$0xff]
    %v172 = vld [vmem:[%s1 + $0x2a8] sm:$0xff]
    %v173 = vld [vmem:[%s1 + $0x2b0] sm:$0xff]
    %v174 = vld [vmem:[%s1 + $0x2b8] sm:$0xff]
    %v175 = vld [vmem:[%s1 + $0x2c0] sm:$0xff]
    %v176 = vld [vmem:[%s1 + $0x2c8] sm:$0xff]
    %v177 = vld [vmem:[%s1 + $0x2d0] sm:$0xff]
    %v178 = vld [vmem:[%s1 + $0x2d8] sm:$0xff]
    %v179 = vld [vmem:[%s1 + $0x2e0] sm:$0xff]
    %v180 = vld [vmem:[%s1 + $0x2e8] sm:$0xff]
    %v181 = vld [vmem:[%s1 + $0x2f0] sm:$0xff]
    %v182 = vld [vmem:[%s1 + $0x2f8] sm:$0xff]
    %v183 = vld [vmem:[%s1 + $0x300] sm:$0xff]
    %v184 = vld [vmem:[%s1 + $0x308] sm:$0xff]
    %v185 = vld [vmem:[%s1 + $0x310] sm:$0xff]
    %v186 = vld [vmem:[%s1 + $0x318] sm:$0xff]
    %v187 = vld [vmem:[%s1 + $0x320] sm:$0xff]
    %v188 = vld [vmem:[%s1 + $0x328] sm:$0xff]
    %v189 = vld [vmem:[%s1 + $0x330] sm:$0xff]
    %v190 = vld [vmem:[%s1 + $0x338] sm:$0xff]
    %v191 = vld [vmem:[%s1 + $0x340] sm:$0xff]
    %v192 = vld [vmem:[%s1 + $0x348] sm:$0xff]
    %v193 = vld [vmem:[%s1 + $0x350] sm:$0xff]
    %v194 = vld [vmem:[%s1 + $0x358] sm:$0xff]
    %v195 = vld [vmem:[%s1 + $0x360] sm:$0xff]
    %v196 = vld [vmem:[%s1 + $0x368] sm:$0xff]
    %v197 = vld [vmem:[%s1 + $0x370] sm:$0xff]
    %v198 = vld [vmem:[%s1 + $0x378] sm:$0xff]
    %v199 = vld [vmem:[%s1 + $0x380] sm:$0xff]
    %v200 = vld [vmem:[%s1 + $0x388] sm:$0xff]
    %v201 = vld [vmem:[%s1 + $0x390] sm:$0xff]
    %v202 = vld [vmem:[%s1 + $0x398] sm:$0xff]
    %v203 = vld [vmem:[%s1 + $0x3a0] sm:$0xff]
    %v204 = vld [vmem:[%s1 + $0x3a8] sm:$0xff]
    %v205 = vld [vmem:[%s1 + $0x3b0] sm:$0xff]
    %v206 = vld [vmem:[%s1 + $0x3b8] sm:$0xff]
    %v207 = vld [vmem:[%s1 + $0x3c0] sm:$0xff]
    %v208 = vld [vmem:[%s1 + $0x3c8] sm:$0xff]
    %v209 = vld [vmem:[%s1 + $0x3d0] sm:$0xff]
    %v210 = vld [vmem:[%s1 + $0x3d8] sm:$0xff]
    %v211 = vld [vmem:[%s1 + $0x3e0] sm:$0xff]
    %v212 = vld [vmem:[%s1 + $0x3e8] sm:$0xff]
    %v213 = vld [vmem:[%s1 + $0x3f0] sm:$0xff]
    %v214 = vld [vmem:[%s1 + $0x3f8] sm:$0xff]
    %v215 = vld [vmem:[%s1 + $0x400] sm:$0xff]
    %v216 = vld [vmem:[%s1 + $0x408] sm:$0xff]
    %v217 = vld [vmem:[%s1 + $0x410] sm:$0xff]
    %v218 = vld [vmem:[%s1 + $0x418] sm:$0xff]
    %v219 = vld [vmem:[%s1 + $0x420] sm:$0xff]
    %v220 = vld [vmem:[%s1 + $0x428] sm:$0xff]
    %v221 = vld [vmem:[%s1 + $0x430] sm:$0xff]
    %v222 = vld [vmem:[%s1 + $0x438] sm:$0xff]
    %v223 = vld [vmem:[%s1 + $0x440] sm:$0xff]
    %v224 = vld [vmem:[%s1 + $0x448] sm:$0xff]
    %v225 = vld [vmem:[%s1 + $0x450] sm:$0xff]
    %v226 = vld [vmem:[%s1 + $0x458] sm:$0xff]
    %v227 = vld [vmem:[%s1 + $0x460] sm:$0xff]
    %v228 = vld [vmem:[%s1 + $0x468] sm:$0xff]
    %v229 = vld [vmem:[%s1 + $0x470] sm:$0xff]
    %v230 = vld [vmem:[%s1 + $0x478] sm:$0xff]
    %v231 = vld [vmem:[%s1 + $0x480] sm:$0xff]
    %v232 = vld [vmem:[%s1 + $0x488] sm:$0xff]
    %v233 = vld [vmem:[%s1 + $0x490] sm:$0xff]
    %v234 = vld [vmem:[%s1 + $0x498] sm:$0xff]
    %v235 = vld [vmem:[%s1 + $0x4a0] sm:$0xff]
    %v236 = vld [vmem:[%s1 + $0x4a8] sm:$0xff]
    %v237 = vld [vmem:[%s1 + $0x4b0] sm:$0xff]
    %v238 = vld [vmem:[%s1 + $0x4b8] sm:$0xff]
    %v239 = vld [vmem:[%s1 + $0x4c0] sm:$0xff]
    %v240 = vld [vmem:[%s1 + $0x4c8] sm:$0xff]
    %v241 = vld [vmem:[%s1 + $0x4d0] sm:$0xff]
    %v242 = vld [vmem:[%s1 + $0x4d8] sm:$0xff]
    %v243 = vld [vmem:[%s1 + $0x4e0] sm:$0xff]
    %v244 = vld [vmem:[%s1 + $0x4e8] sm:$0xff]
    %v245 = vld [vmem:[%s1 + $0x4f0] sm:$0xff]
    %v246 = vld [vmem:[%s1 + $0x4f8] sm:$0xff]
    %v247 = vld [vmem:[%s1 + $0x500] sm:$0xff]
    %v248 = vld [vmem:[%s1 + $0x508] sm:$0xff]
    %v249 = vld [vmem:[%s1 + $0x510] sm:$0xff]
    %v250 = vld [vmem:[%s1 + $0x518] sm:$0xff]
    %v251 = vld [vmem:[%s1 + $0x520] sm:$0xff]
    %v252 = vld [vmem:[%s1 + $0x528] sm:$0xff]
    %v253 = vld [vmem:[%s1 + $0x530] sm:$0xff]
    %v254 = vld [vmem:[%s1 + $0x538] sm:$0xff]
    %v255 = vld [vmem:[%s1 + $0x540] sm:$0xff]
    %v256 = vld [vmem:[%s1 + $0x548] sm:$0xff]
    %v257 = vld [vmem:[%s1 + $0x550] sm:$0xff]
    %v258 = vld [vmem:[%s1 + $0x558] sm:$0xff]
    %v259 = vld [vmem:[%s1 + $0x560] sm:$0xff]
    %v260 = vld [vmem:[%s1 + $0x568] sm:$0xff]
    %v261 = vld [vmem:[%s1 + $0x570] sm:$0xff]
    %v262 = vld [vmem:[%s1 + $0x578] sm:$0xff]
    %v263 = vld [vmem:[%s1 + $0x580] sm:$0xff]
    %v264 = vld [vmem:[%s1 + $0x588] sm:$0xff]
    %v265 = vld [vmem:[%s1 + $0x590] sm:$0xff]
    %v266 = vld [vmem:[%s1 + $0x598] sm:$0xff]
    %v267 = vld [vmem:[%s1 + $0x5a0] sm:$0xff]
    %v268 = vld [vmem:[%s1 + $0x5a8] sm:$0xff]
    %v269 = vld [vmem:[%s1 + $0x5b0] sm:$0xff]
    %v270 = vld [vmem:[%s1 + $0x5b8] sm:$0xff]
    %v271 = vld [vmem:[%s1 + $0x5c0] sm:$0xff]
    %v272 = vld [vmem:[%s1 + $0x5c8] sm:$0xff]
    %v273 = vld [vmem:[%s1 + $0x5d0] sm:$0xff]
    %v274 = vld [vmem:[%s1 + $0x5d8] sm:$0xff]
    %v275 = vld [vmem:[%s1 + $0x5e0] sm:$0xff]
    %v276 = vld [vmem:[%s1 + $0x5e8] sm:$0xff]
    %v277 = vld [vmem:[%s1 + $0x5f0] sm:$0xff]
    %v278 = vld [vmem:[%s1 + $0x5f8] sm:$0xff]
    %v279 = vld [vmem:[%s1 + $0x600] sm:$0xff]
    %v280 = vld [vmem:[%s1 + $0x608] sm:$0xff]
    %v281 = vld [vmem:[%s1 + $0x610] sm:$0xff]
    %v282 = vld [vmem:[%s1 + $0x618] sm:$0xff]
    %v283 = vld [vmem:[%s1 + $0x620] sm:$0xff]
    %v284 = vld [vmem:[%s1 + $0x628] sm:$0xff]
    %v285 = vld [vmem:[%s1 + $0x630] sm:$0xff]
    %v286 = vld [vmem:[%s1 + $0x638] sm:$0xff]
    %v287 = vld [vmem:[%s1 + $0x640] sm:$0xff]
    %v288 = vld [vmem:[%s1 + $0x648] sm:$0xff]
    %v289 = vld [vmem:[%s1 + $0x650] sm:$0xff]
    %v290 = vld [vmem:[%s1 + $0x658] sm:$0xff]
    %v291 = vld [vmem:[%s1 + $0x660] sm:$0xff]
    %v292 = vld [vmem:[%s1 + $0x668] sm:$0xff]
    %v293 = vld [vmem:[%s1 + $0x670] sm:$0xff]
    %v294 = vld [vmem:[%s1 + $0x678] sm:$0xff]
    %v295 = vld [vmem:[%s1 + $0x680] sm:$0xff]
    %v296 = vld [vmem:[%s1 + $0x688] sm:$0xff]
    %v297 = vld [vmem:[%s1 + $0x690] sm:$0xff]
    %v298 = vld [vmem:[%s1 + $0x698] sm:$0xff]
    %v299 = vld [vmem:[%s1 + $0x6a0] sm:$0xff]
    %v300 = vld [vmem:[%s1 + $0x6a8] sm:$0xff]
    %v301 = vld [vmem:[%s1 + $0x6b0] sm:$0xff]
    %v302 = vld [vmem:[%s1 + $0x6b8] sm:$0xff]
    %v303 = vld [vmem:[%s1 + $0x6c0] sm:$0xff]
    %v304 = vld [vmem:[%s1 + $0x6c8] sm:$0xff]
    %v305 = vld [vmem:[%s1 + $0x6d0] sm:$0xff]
    %v306 = vld [vmem:[%s1 + $0x6d8] sm:$0xff]
    %v307 = vld [vmem:[%s1 + $0x6e0] sm:$0xff]
    %v308 = vld [vmem:[%s1 + $0x6e8] sm:$0xff]
    %v309 = vld [vmem:[%s1 + $0x6f0] sm:$0xff]
    %v310 = vld [vmem:[%s1 + $0x6f8] sm:$0xff]
    %v311 = vld [vmem:[%s1 + $0x700] sm:$0xff]
    %v312 = vld [vmem:[%s1 + $0x708] sm:$0xff]
    %v313 = vld [vmem:[%s1 + $0x710] sm:$0xff]
    %v314 = vld [vmem:[%s1 + $0x718] sm:$0xff]
    %v315 = vld [vmem:[%s1 + $0x720] sm:$0xff]
    %v316 = vld [vmem:[%s1 + $0x728] sm:$0xff]
    %v317 = vld [vmem:[%s1 + $0x730] sm:$0xff]
    %v318 = vld [vmem:[%s1 + $0x738] sm:$0xff]
    %v319 = vld [vmem:[%s1 + $0x740] sm:$0xff]
    %v320 = vld [vmem:[%s1 + $0x748] sm:$0xff]
    %v321 = vld [vmem:[%s1 + $0x750] sm:$0xff]
    %v322 = vld [vmem:[%s1 + $0x758] sm:$0xff]
    %v323 = vld [vmem:[%s1 + $0x760] sm:$0xff]
    %v324 = vld [vmem:[%s1 + $0x768] sm:$0xff]
    %v325 = vld [vmem:[%s1 + $0x770] sm:$0xff]
    %v326 = vld [vmem:[%s1 + $0x778] sm:$0xff]
    %v327 = vld [vmem:[%s1 + $0x780] sm:$0xff]
    %v328 = vld [vmem:[%s1 + $0x788] sm:$0xff]
    %v329 = vld [vmem:[%s1 + $0x790] sm:$0xff]
    %v330 = vld [vmem:[%s1 + $0x798] sm:$0xff]
    %v331 = vld [vmem:[%s1 + $0x7a0] sm:$0xff]
    %v332 = vld [vmem:[%s1 + $0x7a8] sm:$0xff]
    %v333 = vld [vmem:[%s1 + $0x7b0] sm:$0xff]
    %v334 = vld [vmem:[%s1 + $0x7b8] sm:$0xff]
    %v335 = vld [vmem:[%s1 + $0x7c0] sm:$0xff]
    %v336 = vld [vmem:[%s1 + $0x7c8] sm:$0xff]
    %v337 = vld [vmem:[%s1 + $0x7d0] sm:$0xff]
    %v338 = vld [vmem:[%s1 + $0x7d8] sm:$0xff]
    %v339 = vld [vmem:[%s1 + $0x7e0] sm:$0xff]
    %v340 = vld [vmem:[%s1 + $0x7e8] sm:$0xff]
    %v341 = vld [vmem:[%s1 + $0x7f0] sm:$0xff]
    %v342 = vld [vmem:[%s1 + $0x7f8] sm:$0xff]
    %v599 = vunpack.c.l.b16 %v87
    %v600 = vunpack.c.h.b16 %v87
    %v601 = vunpack.c.l.b16 %v88
    %v602 = vunpack.c.h.b16 %v88
    %v603 = vunpack.c.l.b16 %v89
    %v604 = vunpack.c.h.b16 %v89
    %v605 = vunpack.c.l.b16 %v90
    %v606 = vunpack.c.h.b16 %v90
    %v607 = vunpack.c.l.b16 %v91
    %v608 = vunpack.c.h.b16 %v91
    %v609 = vunpack.c.l.b16 %v92
    %v610 = vunpack.c.h.b16 %v92
    %v611 = vunpack.c.l.b16 %v93
    %v612 = vunpack.c.h.b16 %v93
    %v613 = vunpack.c.l.b16 %v94
    %v614 = vunpack.c.h.b16 %v94
    %v615 = vunpack.c.l.b16 %v95
    %v616 = vunpack.c.h.b16 %v95
    %v617 = vunpack.c.l.b16 %v96
    %v618 = vunpack.c.h.b16 %v96
    %v619 = vunpack.c.l.b16 %v97
    %v620 = vunpack.c.h.b16 %v97
    %v621 = vunpack.c.l.b16 %v98
    %v622 = vunpack.c.h.b16 %v98
    %v623 = vunpack.c.l.b16 %v99
    %v624 = vunpack.c.h.b16 %v99
    %v625 = vunpack.c.l.b16 %v100
    %v626 = vunpack.c.h.b16 %v100
    %v627 = vunpack.c.l.b16 %v101
    %v628 = vunpack.c.h.b16 %v101
    %v629 = vunpack.c.l.b16 %v102
    %v630 = vunpack.c.h.b16 %v102
    %v631 = vunpack.c.l.b16 %v103
    %v632 = vunpack.c.h.b16 %v103
    %v633 = vunpack.c.l.b16 %v104
    %v634 = vunpack.c.h.b16 %v104
    %v635 = vunpack.c.l.b16 %v105
    %v636 = vunpack.c.h.b16 %v105
    %v637 = vunpack.c.l.b16 %v106
    %v638 = vunpack.c.h.b16 %v106
    %v639 = vunpack.c.l.b16 %v107
    %v640 = vunpack.c.h.b16 %v107
    %v641 = vunpack.c.l.b16 %v108
    %v642 = vunpack.c.h.b16 %v108
    %v643 = vunpack.c.l.b16 %v109
    %v644 = vunpack.c.h.b16 %v109
    %v645 = vunpack.c.l.b16 %v110
    %v646 = vunpack.c.h.b16 %v110
    %v647 = vunpack.c.l.b16 %v111
    %v648 = vunpack.c.h.b16 %v111
    %v649 = vunpack.c.l.b16 %v112
    %v650 = vunpack.c.h.b16 %v112
    %v651 = vunpack.c.l.b16 %v113
    %v652 = vunpack.c.h.b16 %v113
    %v653 = vunpack.c.l.b16 %v114
    %v654 = vunpack.c.h.b16 %v114
    %v655 = vunpack.c.l.b16 %v115
    %v656 = vunpack.c.h.b16 %v115
    %v657 = vunpack.c.l.b16 %v116
    %v658 = vunpack.c.h.b16 %v116
    %v659 = vunpack.c.l.b16 %v117
    %v660 = vunpack.c.h.b16 %v117
    %v661 = vunpack.c.l.b16 %v118
    %v662 = vunpack.c.h.b16 %v118
    %v663 = vunpack.c.l.b16 %v119
    %v664 = vunpack.c.h.b16 %v119
    %v665 = vunpack.c.l.b16 %v120
    %v666 = vunpack.c.h.b16 %v120
    %v667 = vunpack.c.l.b16 %v121
    %v668 = vunpack.c.h.b16 %v121
    %v669 = vunpack.c.l.b16 %v122
    %v670 = vunpack.c.h.b16 %v122
    %v671 = vunpack.c.l.b16 %v123
    %v672 = vunpack.c.h.b16 %v123
    %v673 = vunpack.c.l.b16 %v124
    %v674 = vunpack.c.h.b16 %v124
    %v675 = vunpack.c.l.b16 %v125
    %v676 = vunpack.c.h.b16 %v125
    %v677 = vunpack.c.l.b16 %v126
    %v678 = vunpack.c.h.b16 %v126
    %v679 = vunpack.c.l.b16 %v127
    %v680 = vunpack.c.h.b16 %v127
    %v681 = vunpack.c.l.b16 %v128
    %v682 = vunpack.c.h.b16 %v128
    %v683 = vunpack.c.l.b16 %v129
    %v684 = vunpack.c.h.b16 %v129
    %v685 = vunpack.c.l.b16 %v130
    %v686 = vunpack.c.h.b16 %v130
    %v687 = vunpack.c.l.b16 %v131
    %v688 = vunpack.c.h.b16 %v131
    %v689 = vunpack.c.l.b16 %v132
    %v690 = vunpack.c.h.b16 %v132
    %v691 = vunpack.c.l.b16 %v133
    %v692 = vunpack.c.h.b16 %v133
    %v693 = vunpack.c.l.b16 %v134
    %v694 = vunpack.c.h.b16 %v134
    %v695 = vunpack.c.l.b16 %v135
    %v696 = vunpack.c.h.b16 %v135
    %v697 = vunpack.c.l.b16 %v136
    %v698 = vunpack.c.h.b16 %v136
    %v699 = vunpack.c.l.b16 %v137
    %v700 = vunpack.c.h.b16 %v137
    %v701 = vunpack.c.l.b16 %v138
    %v702 = vunpack.c.h.b16 %v138
    %v703 = vunpack.c.l.b16 %v139
    %v704 = vunpack.c.h.b16 %v139
    %v705 = vunpack.c.l.b16 %v140
    %v706 = vunpack.c.h.b16 %v140
    %v707 = vunpack.c.l.b16 %v141
    %v708 = vunpack.c.h.b16 %v141
    %v709 = vunpack.c.l.b16 %v142
    %v710 = vunpack.c.h.b16 %v142
    %v711 = vunpack.c.l.b16 %v143
    %v712 = vunpack.c.h.b16 %v143
    %v713 = vunpack.c.l.b16 %v144
    %v714 = vunpack.c.h.b16 %v144
    %v715 = vunpack.c.l.b16 %v145
    %v716 = vunpack.c.h.b16 %v145
    %v717 = vunpack.c.l.b16 %v146
    %v718 = vunpack.c.h.b16 %v146
    %v719 = vunpack.c.l.b16 %v147
    %v720 = vunpack.c.h.b16 %v147
    %v721 = vunpack.c.l.b16 %v148
    %v722 = vunpack.c.h.b16 %v148
    %v723 = vunpack.c.l.b16 %v149
    %v724 = vunpack.c.h.b16 %v149
    %v725 = vunpack.c.l.b16 %v150
    %v726 = vunpack.c.h.b16 %v150
    %v727 = vunpack.c.l.b16 %v151
    %v728 = vunpack.c.h.b16 %v151
    %v729 = vunpack.c.l.b16 %v152
    %v730 = vunpack.c.h.b16 %v152
    %v731 = vunpack.c.l.b16 %v153
    %v732 = vunpack.c.h.b16 %v153
    %v733 = vunpack.c.l.b16 %v154
    %v734 = vunpack.c.h.b16 %v154
    %v735 = vunpack.c.l.b16 %v155
    %v736 = vunpack.c.h.b16 %v155
    %v737 = vunpack.c.l.b16 %v156
    %v738 = vunpack.c.h.b16 %v156
    %v739 = vunpack.c.l.b16 %v157
    %v740 = vunpack.c.h.b16 %v157
    %v741 = vunpack.c.l.b16 %v158
    %v742 = vunpack.c.h.b16 %v158
    %v743 = vunpack.c.l.b16 %v159
    %v744 = vunpack.c.h.b16 %v159
    %v745 = vunpack.c.l.b16 %v160
    %v746 = vunpack.c.h.b16 %v160
    %v747 = vunpack.c.l.b16 %v161
    %v748 = vunpack.c.h.b16 %v161
    %v749 = vunpack.c.l.b16 %v162
    %v750 = vunpack.c.h.b16 %v162
    %v751 = vunpack.c.l.b16 %v163
    %v752 = vunpack.c.h.b16 %v163
    %v753 = vunpack.c.l.b16 %v164
    %v754 = vunpack.c.h.b16 %v164
    %v755 = vunpack.c.l.b16 %v165
    %v756 = vunpack.c.h.b16 %v165
    %v757 = vunpack.c.l.b16 %v166
    %v758 = vunpack.c.h.b16 %v166
    %v759 = vunpack.c.l.b16 %v167
    %v760 = vunpack.c.h.b16 %v167
    %v761 = vunpack.c.l.b16 %v168
    %v762 = vunpack.c.h.b16 %v168
    %v763 = vunpack.c.l.b16 %v169
    %v764 = vunpack.c.h.b16 %v169
    %v765 = vunpack.c.l.b16 %v170
    %v766 = vunpack.c.h.b16 %v170
    %v767 = vunpack.c.l.b16 %v171
    %v768 = vunpack.c.h.b16 %v171
    %v769 = vunpack.c.l.b16 %v172
    %v770 = vunpack.c.h.b16 %v172
    %v771 = vunpack.c.l.b16 %v173
    %v772 = vunpack.c.h.b16 %v173
    %v773 = vunpack.c.l.b16 %v174
    %v774 = vunpack.c.h.b16 %v174
    %v775 = vunpack.c.l.b16 %v175
    %v776 = vunpack.c.h.b16 %v175
    %v777 = vunpack.c.l.b16 %v176
    %v778 = vunpack.c.h.b16 %v176
    %v779 = vunpack.c.l.b16 %v177
    %v780 = vunpack.c.h.b16 %v177
    %v781 = vunpack.c.l.b16 %v178
    %v782 = vunpack.c.h.b16 %v178
    %v783 = vunpack.c.l.b16 %v179
    %v784 = vunpack.c.h.b16 %v179
    %v785 = vunpack.c.l.b16 %v180
    %v786 = vunpack.c.h.b16 %v180
    %v787 = vunpack.c.l.b16 %v181
    %v788 = vunpack.c.h.b16 %v181
    %v789 = vunpack.c.l.b16 %v182
    %v790 = vunpack.c.h.b16 %v182
    %v791 = vunpack.c.l.b16 %v183
    %v792 = vunpack.c.h.b16 %v183
    %v793 = vunpack.c.l.b16 %v184
    %v794 = vunpack.c.h.b16 %v184
    %v795 = vunpack.c.l.b16 %v185
    %v796 = vunpack.c.h.b16 %v185
    %v797 = vunpack.c.l.b16 %v186
    %v798 = vunpack.c.h.b16 %v186
    %v799 = vunpack.c.l.b16 %v187
    %v800 = vunpack.c.h.b16 %v187
    %v801 = vunpack.c.l.b16 %v188
    %v802 = vunpack.c.h.b16 %v188
    %v803 = vunpack.c.l.b16 %v189
    %v804 = vunpack.c.h.b16 %v189
    %v805 = vunpack.c.l.b16 %v190
    %v806 = vunpack.c.h.b16 %v190
    %v807 = vunpack.c.l.b16 %v191
    %v808 = vunpack.c.h.b16 %v191
    %v809 = vunpack.c.l.b16 %v192
    %v810 = vunpack.c.h.b16 %v192
    %v811 = vunpack.c.l.b16 %v193
    %v812 = vunpack.c.h.b16 %v193
    %v813 = vunpack.c.l.b16 %v194
    %v814 = vunpack.c.h.b16 %v194
    %v815 = vunpack.c.l.b16 %v195
    %v816 = vunpack.c.h.b16 %v195
    %v817 = vunpack.c.l.b16 %v196
    %v818 = vunpack.c.h.b16 %v196
    %v819 = vunpack.c.l.b16 %v197
    %v820 = vunpack.c.h.b16 %v197
    %v821 = vunpack.c.l.b16 %v198
    %v822 = vunpack.c.h.b16 %v198
    %v823 = vunpack.c.l.b16 %v199
    %v824 = vunpack.c.h.b16 %v199
    %v825 = vunpack.c.l.b16 %v200
    %v826 = vunpack.c.h.b16 %v200
    %v827 = vunpack.c.l.b16 %v201
    %v828 = vunpack.c.h.b16 %v201
    %v829 = vunpack.c.l.b16 %v202
    %v830 = vunpack.c.h.b16 %v202
    %v831 = vunpack.c.l.b16 %v203
    %v832 = vunpack.c.h.b16 %v203
    %v833 = vunpack.c.l.b16 %v204
    %v834 = vunpack.c.h.b16 %v204
    %v835 = vunpack.c.l.b16 %v205
    %v836 = vunpack.c.h.b16 %v205
    %v837 = vunpack.c.l.b16 %v206
    %v838 = vunpack.c.h.b16 %v206
    %v839 = vunpack.c.l.b16 %v207
    %v840 = vunpack.c.h.b16 %v207
    %v841 = vunpack.c.l.b16 %v208
    %v842 = vunpack.c.h.b16 %v208
    %v843 = vunpack.c.l.b16 %v209
    %v844 = vunpack.c.h.b16 %v209
    %v845 = vunpack.c.l.b16 %v210
    %v846 = vunpack.c.h.b16 %v210
    %v847 = vunpack.c.l.b16 %v211
    %v848 = vunpack.c.h.b16 %v211
    %v849 = vunpack.c.l.b16 %v212
    %v850 = vunpack.c.h.b16 %v212
    %v851 = vunpack.c.l.b16 %v213
    %v852 = vunpack.c.h.b16 %v213
    %v853 = vunpack.c.l.b16 %v214
    %v854 = vunpack.c.h.b16 %v214
    %v855 = vunpack.c.l.b16 %v215
    %v856 = vunpack.c.h.b16 %v215
    %v857 = vunpack.c.l.b16 %v216
    %v858 = vunpack.c.h.b16 %v216
    %v859 = vunpack.c.l.b16 %v217
    %v860 = vunpack.c.h.b16 %v217
    %v861 = vunpack.c.l.b16 %v218
    %v862 = vunpack.c.h.b16 %v218
    %v863 = vunpack.c.l.b16 %v219
    %v864 = vunpack.c.h.b16 %v219
    %v865 = vunpack.c.l.b16 %v220
    %v866 = vunpack.c.h.b16 %v220
    %v867 = vunpack.c.l.b16 %v221
    %v868 = vunpack.c.h.b16 %v221
    %v869 = vunpack.c.l.b16 %v222
    %v870 = vunpack.c.h.b16 %v222
    %v871 = vunpack.c.l.b16 %v223
    %v872 = vunpack.c.h.b16 %v223
    %v873 = vunpack.c.l.b16 %v224
    %v874 = vunpack.c.h.b16 %v224
    %v875 = vunpack.c.l.b16 %v225
    %v876 = vunpack.c.h.b16 %v225
    %v877 = vunpack.c.l.b16 %v226
    %v878 = vunpack.c.h.b16 %v226
    %v879 = vunpack.c.l.b16 %v227
    %v880 = vunpack.c.h.b16 %v227
    %v881 = vunpack.c.l.b16 %v228
    %v882 = vunpack.c.h.b16 %v228
    %v883 = vunpack.c.l.b16 %v229
    %v884 = vunpack.c.h.b16 %v229
    %v885 = vunpack.c.l.b16 %v230
    %v886 = vunpack.c.h.b16 %v230
    %v887 = vunpack.c.l.b16 %v231
    %v888 = vunpack.c.h.b16 %v231
    %v889 = vunpack.c.l.b16 %v232
    %v890 = vunpack.c.h.b16 %v232
    %v891 = vunpack.c.l.b16 %v233
    %v892 = vunpack.c.h.b16 %v233
    %v893 = vunpack.c.l.b16 %v234
    %v894 = vunpack.c.h.b16 %v234
    %v895 = vunpack.c.l.b16 %v235
    %v896 = vunpack.c.h.b16 %v235
    %v897 = vunpack.c.l.b16 %v236
    %v898 = vunpack.c.h.b16 %v236
    %v899 = vunpack.c.l.b16 %v237
    %v900 = vunpack.c.h.b16 %v237
    %v901 = vunpack.c.l.b16 %v238
    %v902 = vunpack.c.h.b16 %v238
    %v903 = vunpack.c.l.b16 %v239
    %v904 = vunpack.c.h.b16 %v239
    %v905 = vunpack.c.l.b16 %v240
    %v906 = vunpack.c.h.b16 %v240
    %v907 = vunpack.c.l.b16 %v241
    %v908 = vunpack.c.h.b16 %v241
    %v909 = vunpack.c.l.b16 %v242
    %v910 = vunpack.c.h.b16 %v242
    %v911 = vunpack.c.l.b16 %v243
    %v912 = vunpack.c.h.b16 %v243
    %v913 = vunpack.c.l.b16 %v244
    %v914 = vunpack.c.h.b16 %v244
    %v915 = vunpack.c.l.b16 %v245
    %v916 = vunpack.c.h.b16 %v245
    %v917 = vunpack.c.l.b16 %v246
    %v918 = vunpack.c.h.b16 %v246
    %v919 = vunpack.c.l.b16 %v247
    %v920 = vunpack.c.h.b16 %v247
    %v921 = vunpack.c.l.b16 %v248
    %v922 = vunpack.c.h.b16 %v248
    %v923 = vunpack.c.l.b16 %v249
    %v924 = vunpack.c.h.b16 %v249
    %v925 = vunpack.c.l.b16 %v250
    %v926 = vunpack.c.h.b16 %v250
    %v927 = vunpack.c.l.b16 %v251
    %v928 = vunpack.c.h.b16 %v251
    %v929 = vunpack.c.l.b16 %v252
    %v930 = vunpack.c.h.b16 %v252
    %v931 = vunpack.c.l.b16 %v253
    %v932 = vunpack.c.h.b16 %v253
    %v933 = vunpack.c.l.b16 %v254
    %v934 = vunpack.c.h.b16 %v254
    %v935 = vunpack.c.l.b16 %v255
    %v936 = vunpack.c.h.b16 %v255
    %v937 = vunpack.c.l.b16 %v256
    %v938 = vunpack.c.h.b16 %v256
    %v939 = vunpack.c.l.b16 %v257
    %v940 = vunpack.c.h.b16 %v257
    %v941 = vunpack.c.l.b16 %v258
    %v942 = vunpack.c.h.b16 %v258
    %v943 = vunpack.c.l.b16 %v259
    %v944 = vunpack.c.h.b16 %v259
    %v945 = vunpack.c.l.b16 %v260
    %v946 = vunpack.c.h.b16 %v260
    %v947 = vunpack.c.l.b16 %v261
    %v948 = vunpack.c.h.b16 %v261
    %v949 = vunpack.c.l.b16 %v262
    %v950 = vunpack.c.h.b16 %v262
    %v951 = vunpack.c.l.b16 %v263
    %v952 = vunpack.c.h.b16 %v263
    %v953 = vunpack.c.l.b16 %v264
    %v954 = vunpack.c.h.b16 %v264
    %v955 = vunpack.c.l.b16 %v265
    %v956 = vunpack.c.h.b16 %v265
    %v957 = vunpack.c.l.b16 %v266
    %v958 = vunpack.c.h.b16 %v266
    %v959 = vunpack.c.l.b16 %v267
    %v960 = vunpack.c.h.b16 %v267
    %v961 = vunpack.c.l.b16 %v268
    %v962 = vunpack.c.h.b16 %v268
    %v963 = vunpack.c.l.b16 %v269
    %v964 = vunpack.c.h.b16 %v269
    %v965 = vunpack.c.l.b16 %v270
    %v966 = vunpack.c.h.b16 %v270
    %v967 = vunpack.c.l.b16 %v271
    %v968 = vunpack.c.h.b16 %v271
    %v969 = vunpack.c.l.b16 %v272
    %v970 = vunpack.c.h.b16 %v272
    %v971 = vunpack.c.l.b16 %v273
    %v972 = vunpack.c.h.b16 %v273
    %v973 = vunpack.c.l.b16 %v274
    %v974 = vunpack.c.h.b16 %v274
    %v975 = vunpack.c.l.b16 %v275
    %v976 = vunpack.c.h.b16 %v275
    %v977 = vunpack.c.l.b16 %v276
    %v978 = vunpack.c.h.b16 %v276
    %v979 = vunpack.c.l.b16 %v277
    %v980 = vunpack.c.h.b16 %v277
    %v981 = vunpack.c.l.b16 %v278
    %v982 = vunpack.c.h.b16 %v278
    %v983 = vunpack.c.l.b16 %v279
    %v984 = vunpack.c.h.b16 %v279
    %v985 = vunpack.c.l.b16 %v280
    %v986 = vunpack.c.h.b16 %v280
    %v987 = vunpack.c.l.b16 %v281
    %v988 = vunpack.c.h.b16 %v281
    %v989 = vunpack.c.l.b16 %v282
    %v990 = vunpack.c.h.b16 %v282
    %v991 = vunpack.c.l.b16 %v283
    %v992 = vunpack.c.h.b16 %v283
    %v993 = vunpack.c.l.b16 %v284
    %v994 = vunpack.c.h.b16 %v284
    %v995 = vunpack.c.l.b16 %v285
    %v996 = vunpack.c.h.b16 %v285
    %v997 = vunpack.c.l.b16 %v286
    %v998 = vunpack.c.h.b16 %v286
    %v999 = vunpack.c.l.b16 %v287
    %v1000 = vunpack.c.h.b16 %v287
    %v1001 = vunpack.c.l.b16 %v288
    %v1002 = vunpack.c.h.b16 %v288
    %v1003 = vunpack.c.l.b16 %v289
    %v1004 = vunpack.c.h.b16 %v289
    %v1005 = vunpack.c.l.b16 %v290
    %v1006 = vunpack.c.h.b16 %v290
    %v1007 = vunpack.c.l.b16 %v291
    %v1008 = vunpack.c.h.b16 %v291
    %v1009 = vunpack.c.l.b16 %v292
    %v1010 = vunpack.c.h.b16 %v292
    %v1011 = vunpack.c.l.b16 %v293
    %v1012 = vunpack.c.h.b16 %v293
    %v1013 = vunpack.c.l.b16 %v294
    %v1014 = vunpack.c.h.b16 %v294
    %v1015 = vunpack.c.l.b16 %v295
    %v1016 = vunpack.c.h.b16 %v295
    %v1017 = vunpack.c.l.b16 %v296
    %v1018 = vunpack.c.h.b16 %v296
    %v1019 = vunpack.c.l.b16 %v297
    %v1020 = vunpack.c.h.b16 %v297
    %v1021 = vunpack.c.l.b16 %v298
    %v1022 = vunpack.c.h.b16 %v298
    %v1023 = vunpack.c.l.b16 %v299
    %v1024 = vunpack.c.h.b16 %v299
    %v1025 = vunpack.c.l.b16 %v300
    %v1026 = vunpack.c.h.b16 %v300
    %v1027 = vunpack.c.l.b16 %v301
    %v1028 = vunpack.c.h.b16 %v301
    %v1029 = vunpack.c.l.b16 %v302
    %v1030 = vunpack.c.h.b16 %v302
    %v1031 = vunpack.c.l.b16 %v303
    %v1032 = vunpack.c.h.b16 %v303
    %v1033 = vunpack.c.l.b16 %v304
    %v1034 = vunpack.c.h.b16 %v304
    %v1035 = vunpack.c.l.b16 %v305
    %v1036 = vunpack.c.h.b16 %v305
    %v1037 = vunpack.c.l.b16 %v306
    %v1038 = vunpack.c.h.b16 %v306
    %v1039 = vunpack.c.l.b16 %v307
    %v1040 = vunpack.c.h.b16 %v307
    %v1041 = vunpack.c.l.b16 %v308
    %v1042 = vunpack.c.h.b16 %v308
    %v1043 = vunpack.c.l.b16 %v309
    %v1044 = vunpack.c.h.b16 %v309
    %v1045 = vunpack.c.l.b16 %v310
    %v1046 = vunpack.c.h.b16 %v310
    %v1047 = vunpack.c.l.b16 %v311
    %v1048 = vunpack.c.h.b16 %v311
    %v1049 = vunpack.c.l.b16 %v312
    %v1050 = vunpack.c.h.b16 %v312
    %v1051 = vunpack.c.l.b16 %v313
    %v1052 = vunpack.c.h.b16 %v313
    %v1053 = vunpack.c.l.b16 %v314
    %v1054 = vunpack.c.h.b16 %v314
    %v1055 = vunpack.c.l.b16 %v315
    %v1056 = vunpack.c.h.b16 %v315
    %v1057 = vunpack.c.l.b16 %v316
    %v1058 = vunpack.c.h.b16 %v316
    %v1059 = vunpack.c.l.b16 %v317
    %v1060 = vunpack.c.h.b16 %v317
    %v1061 = vunpack.c.l.b16 %v318
    %v1062 = vunpack.c.h.b16 %v318
    %v1063 = vunpack.c.l.b16 %v319
    %v1064 = vunpack.c.h.b16 %v319
    %v1065 = vunpack.c.l.b16 %v320
    %v1066 = vunpack.c.h.b16 %v320
    %v1067 = vunpack.c.l.b16 %v321
    %v1068 = vunpack.c.h.b16 %v321
    %v1069 = vunpack.c.l.b16 %v322
    %v1070 = vunpack.c.h.b16 %v322
    %v1071 = vunpack.c.l.b16 %v323
    %v1072 = vunpack.c.h.b16 %v323
    %v1073 = vunpack.c.l.b16 %v324
    %v1074 = vunpack.c.h.b16 %v324
    %v1075 = vunpack.c.l.b16 %v325
    %v1076 = vunpack.c.h.b16 %v325
    %v1077 = vunpack.c.l.b16 %v326
    %v1078 = vunpack.c.h.b16 %v326
    %v1079 = vunpack.c.l.b16 %v327
    %v1080 = vunpack.c.h.b16 %v327
    %v1081 = vunpack.c.l.b16 %v328
    %v1082 = vunpack.c.h.b16 %v328
    %v1083 = vunpack.c.l.b16 %v329
    %v1084 = vunpack.c.h.b16 %v329
    %v1085 = vunpack.c.l.b16 %v330
    %v1086 = vunpack.c.h.b16 %v330
    %v1087 = vunpack.c.l.b16 %v331
    %v1088 = vunpack.c.h.b16 %v331
    %v1089 = vunpack.c.l.b16 %v332
    %v1090 = vunpack.c.h.b16 %v332
    %v1091 = vunpack.c.l.b16 %v333
    %v1092 = vunpack.c.h.b16 %v333
    %v1093 = vunpack.c.l.b16 %v334
    %v1094 = vunpack.c.h.b16 %v334
    %v1095 = vunpack.c.l.b16 %v335
    %v1096 = vunpack.c.h.b16 %v335
    %v1097 = vunpack.c.l.b16 %v336
    %v1098 = vunpack.c.h.b16 %v336
    %v1099 = vunpack.c.l.b16 %v337
    %v1100 = vunpack.c.h.b16 %v337
    %v1101 = vunpack.c.l.b16 %v338
    %v1102 = vunpack.c.h.b16 %v338
    %v1103 = vunpack.c.l.b16 %v339
    %v1104 = vunpack.c.h.b16 %v339
    %v1105 = vunpack.c.l.b16 %v340
    %v1106 = vunpack.c.h.b16 %v340
    %v1107 = vunpack.c.l.b16 %v341
    %v1108 = vunpack.c.h.b16 %v341
    %v1109 = vunpack.c.l.b16 %v342
    %v1110 = vunpack.c.h.b16 %v342
    %v1111 = vpack.c.b16 %v603, %v599
    %v1112 = vpack.c.b16 %v604, %v600
    %v1113 = vpack.c.b16 %v605, %v601
    %v1114 = vpack.c.b16 %v606, %v602
    %v1115 = vpack.c.b16 %v611, %v607
    %v1116 = vpack.c.b16 %v612, %v608
    %v1117 = vpack.c.b16 %v613, %v609
    %v1118 = vpack.c.b16 %v614, %v610
    %v1119 = vpack.c.b16 %v619, %v615
    %v1120 = vpack.c.b16 %v620, %v616
    %v1121 = vpack.c.b16 %v621, %v617
    %v1122 = vpack.c.b16 %v622, %v618
    %v1123 = vpack.c.b16 %v627, %v623
    %v1124 = vpack.c.b16 %v628, %v624
    %v1125 = vpack.c.b16 %v629, %v625
    %v1126 = vpack.c.b16 %v630, %v626
    %v1127 = vpack.c.b16 %v635, %v631
    %v1128 = vpack.c.b16 %v636, %v632
    %v1129 = vpack.c.b16 %v637, %v633
    %v1130 = vpack.c.b16 %v638, %v634
    %v1131 = vpack.c.b16 %v643, %v639
    %v1132 = vpack.c.b16 %v644, %v640
    %v1133 = vpack.c.b16 %v645, %v641
    %v1134 = vpack.c.b16 %v646, %v642
    %v1135 = vpack.c.b16 %v651, %v647
    %v1136 = vpack.c.b16 %v652, %v648
    %v1137 = vpack.c.b16 %v653, %v649
    %v1138 = vpack.c.b16 %v654, %v650
    %v1139 = vpack.c.b16 %v659, %v655
    %v1140 = vpack.c.b16 %v660, %v656
    %v1141 = vpack.c.b16 %v661, %v657
    %v1142 = vpack.c.b16 %v662, %v658
    %v1143 = vpack.c.b16 %v667, %v663
    %v1144 = vpack.c.b16 %v668, %v664
    %v1145 = vpack.c.b16 %v669, %v665
    %v1146 = vpack.c.b16 %v670, %v666
    %v1147 = vpack.c.b16 %v675, %v671
    %v1148 = vpack.c.b16 %v676, %v672
    %v1149 = vpack.c.b16 %v677, %v673
    %v1150 = vpack.c.b16 %v678, %v674
    %v1151 = vpack.c.b16 %v683, %v679
    %v1152 = vpack.c.b16 %v684, %v680
    %v1153 = vpack.c.b16 %v685, %v681
    %v1154 = vpack.c.b16 %v686, %v682
    %v1155 = vpack.c.b16 %v691, %v687
    %v1156 = vpack.c.b16 %v692, %v688
    %v1157 = vpack.c.b16 %v693, %v689
    %v1158 = vpack.c.b16 %v694, %v690
    %v1159 = vpack.c.b16 %v699, %v695
    %v1160 = vpack.c.b16 %v700, %v696
    %v1161 = vpack.c.b16 %v701, %v697
    %v1162 = vpack.c.b16 %v702, %v698
    %v1163 = vpack.c.b16 %v707, %v703
    %v1164 = vpack.c.b16 %v708, %v704
    %v1165 = vpack.c.b16 %v709, %v705
    %v1166 = vpack.c.b16 %v710, %v706
    %v1167 = vpack.c.b16 %v715, %v711
    %v1168 = vpack.c.b16 %v716, %v712
    %v1169 = vpack.c.b16 %v717, %v713
    %v1170 = vpack.c.b16 %v718, %v714
    %v1171 = vpack.c.b16 %v723, %v719
    %v1172 = vpack.c.b16 %v724, %v720
    %v1173 = vpack.c.b16 %v725, %v721
    %v1174 = vpack.c.b16 %v726, %v722
    %v1175 = vpack.c.b16 %v731, %v727
    %v1176 = vpack.c.b16 %v732, %v728
    %v1177 = vpack.c.b16 %v733, %v729
    %v1178 = vpack.c.b16 %v734, %v730
    %v1179 = vpack.c.b16 %v739, %v735
    %v1180 = vpack.c.b16 %v740, %v736
    %v1181 = vpack.c.b16 %v741, %v737
    %v1182 = vpack.c.b16 %v742, %v738
    %v1183 = vpack.c.b16 %v747, %v743
    %v1184 = vpack.c.b16 %v748, %v744
    %v1185 = vpack.c.b16 %v749, %v745
    %v1186 = vpack.c.b16 %v750, %v746
    %v1187 = vpack.c.b16 %v755, %v751
    %v1188 = vpack.c.b16 %v756, %v752
    %v1189 = vpack.c.b16 %v757, %v753
    %v1190 = vpack.c.b16 %v758, %v754
    %v1191 = vpack.c.b16 %v763, %v759
    %v1192 = vpack.c.b16 %v764, %v760
    %v1193 = vpack.c.b16 %v765, %v761
    %v1194 = vpack.c.b16 %v766, %v762
    %v1195 = vpack.c.b16 %v771, %v767
    %v1196 = vpack.c.b16 %v772, %v768
    %v1197 = vpack.c.b16 %v773, %v769
    %v1198 = vpack.c.b16 %v774, %v770
    %v1199 = vpack.c.b16 %v779, %v775
    %v1200 = vpack.c.b16 %v780, %v776
    %v1201 = vpack.c.b16 %v781, %v777
    %v1202 = vpack.c.b16 %v782, %v778
    %v1203 = vpack.c.b16 %v787, %v783
    %v1204 = vpack.c.b16 %v788, %v784
    %v1205 = vpack.c.b16 %v789, %v785
    %v1206 = vpack.c.b16 %v790, %v786
    %v1207 = vpack.c.b16 %v795, %v791
    %v1208 = vpack.c.b16 %v796, %v792
    %v1209 = vpack.c.b16 %v797, %v793
    %v1210 = vpack.c.b16 %v798, %v794
    %v1211 = vpack.c.b16 %v803, %v799
    %v1212 = vpack.c.b16 %v804, %v800
    %v1213 = vpack.c.b16 %v805, %v801
    %v1214 = vpack.c.b16 %v806, %v802
    %v1215 = vpack.c.b16 %v811, %v807
    %v1216 = vpack.c.b16 %v812, %v808
    %v1217 = vpack.c.b16 %v813, %v809
    %v1218 = vpack.c.b16 %v814, %v810
    %v1219 = vpack.c.b16 %v819, %v815
    %v1220 = vpack.c.b16 %v820, %v816
    %v1221 = vpack.c.b16 %v821, %v817
    %v1222 = vpack.c.b16 %v822, %v818
    %v1223 = vpack.c.b16 %v827, %v823
    %v1224 = vpack.c.b16 %v828, %v824
    %v1225 = vpack.c.b16 %v829, %v825
    %v1226 = vpack.c.b16 %v830, %v826
    %v1227 = vpack.c.b16 %v835, %v831
    %v1228 = vpack.c.b16 %v836, %v832
    %v1229 = vpack.c.b16 %v837, %v833
    %v1230 = vpack.c.b16 %v838, %v834
    %v1231 = vpack.c.b16 %v843, %v839
    %v1232 = vpack.c.b16 %v844, %v840
    %v1233 = vpack.c.b16 %v845, %v841
    %v1234 = vpack.c.b16 %v846, %v842
    %v1235 = vpack.c.b16 %v851, %v847
    %v1236 = vpack.c.b16 %v852, %v848
    %v1237 = vpack.c.b16 %v853, %v849
    %v1238 = vpack.c.b16 %v854, %v850
    %v1239 = vpack.c.b16 %v859, %v855
    %v1240 = vpack.c.b16 %v860, %v856
    %v1241 = vpack.c.b16 %v861, %v857
    %v1242 = vpack.c.b16 %v862, %v858
    %v1243 = vpack.c.b16 %v867, %v863
    %v1244 = vpack.c.b16 %v868, %v864
    %v1245 = vpack.c.b16 %v869, %v865
    %v1246 = vpack.c.b16 %v870, %v866
    %v1247 = vpack.c.b16 %v875, %v871
    %v1248 = vpack.c.b16 %v876, %v872
    %v1249 = vpack.c.b16 %v877, %v873
    %v1250 = vpack.c.b16 %v878, %v874
    %v1251 = vpack.c.b16 %v883, %v879
    %v1252 = vpack.c.b16 %v884, %v880
    %v1253 = vpack.c.b16 %v885, %v881
    %v1254 = vpack.c.b16 %v886, %v882
    %v1255 = vpack.c.b16 %v891, %v887
    %v1256 = vpack.c.b16 %v892, %v888
    %v1257 = vpack.c.b16 %v893, %v889
    %v1258 = vpack.c.b16 %v894, %v890
    %v1259 = vpack.c.b16 %v899, %v895
    %v1260 = vpack.c.b16 %v900, %v896
    %v1261 = vpack.c.b16 %v901, %v897
    %v1262 = vpack.c.b16 %v902, %v898
    %v1263 = vpack.c.b16 %v907, %v903
    %v1264 = vpack.c.b16 %v908, %v904
    %v1265 = vpack.c.b16 %v909, %v905
    %v1266 = vpack.c.b16 %v910, %v906
    %v1267 = vpack.c.b16 %v915, %v911
    %v1268 = vpack.c.b16 %v916, %v912
    %v1269 = vpack.c.b16 %v917, %v913
    %v1270 = vpack.c.b16 %v918, %v914
    %v1271 = vpack.c.b16 %v923, %v919
    %v1272 = vpack.c.b16 %v924, %v920
    %v1273 = vpack.c.b16 %v925, %v921
    %v1274 = vpack.c.b16 %v926, %v922
    %v1275 = vpack.c.b16 %v931, %v927
    %v1276 = vpack.c.b16 %v932, %v928
    %v1277 = vpack.c.b16 %v933, %v929
    %v1278 = vpack.c.b16 %v934, %v930
    %v1279 = vpack.c.b16 %v939, %v935
    %v1280 = vpack.c.b16 %v940, %v936
    %v1281 = vpack.c.b16 %v941, %v937
    %v1282 = vpack.c.b16 %v942, %v938
    %v1283 = vpack.c.b16 %v947, %v943
    %v1284 = vpack.c.b16 %v948, %v944
    %v1285 = vpack.c.b16 %v949, %v945
    %v1286 = vpack.c.b16 %v950, %v946
    %v1287 = vpack.c.b16 %v955, %v951
    %v1288 = vpack.c.b16 %v956, %v952
    %v1289 = vpack.c.b16 %v957, %v953
    %v1290 = vpack.c.b16 %v958, %v954
    %v1291 = vpack.c.b16 %v963, %v959
    %v1292 = vpack.c.b16 %v964, %v960
    %v1293 = vpack.c.b16 %v965, %v961
    %v1294 = vpack.c.b16 %v966, %v962
    %v1295 = vpack.c.b16 %v971, %v967
    %v1296 = vpack.c.b16 %v972, %v968
    %v1297 = vpack.c.b16 %v973, %v969
    %v1298 = vpack.c.b16 %v974, %v970
    %v1299 = vpack.c.b16 %v979, %v975
    %v1300 = vpack.c.b16 %v980, %v976
    %v1301 = vpack.c.b16 %v981, %v977
    %v1302 = vpack.c.b16 %v982, %v978
    %v1303 = vpack.c.b16 %v987, %v983
    %v1304 = vpack.c.b16 %v988, %v984
    %v1305 = vpack.c.b16 %v989, %v985
    %v1306 = vpack.c.b16 %v990, %v986
    %v1307 = vpack.c.b16 %v995, %v991
    %v1308 = vpack.c.b16 %v996, %v992
    %v1309 = vpack.c.b16 %v997, %v993
    %v1310 = vpack.c.b16 %v998, %v994
    %v1311 = vpack.c.b16 %v1003, %v999
    %v1312 = vpack.c.b16 %v1004, %v1000
    %v1313 = vpack.c.b16 %v1005, %v1001
    %v1314 = vpack.c.b16 %v1006, %v1002
    %v1315 = vpack.c.b16 %v1011, %v1007
    %v1316 = vpack.c.b16 %v1012, %v1008
    %v1317 = vpack.c.b16 %v1013, %v1009
    %v1318 = vpack.c.b16 %v1014, %v1010
    %v1319 = vpack.c.b16 %v1019, %v1015
    %v1320 = vpack.c.b16 %v1020, %v1016
    %v1321 = vpack.c.b16 %v1021, %v1017
    %v1322 = vpack.c.b16 %v1022, %v1018
    %v1323 = vpack.c.b16 %v1027, %v1023
    %v1324 = vpack.c.b16 %v1028, %v1024
    %v1325 = vpack.c.b16 %v1029, %v1025
    %v1326 = vpack.c.b16 %v1030, %v1026
    %v1327 = vpack.c.b16 %v1035, %v1031
    %v1328 = vpack.c.b16 %v1036, %v1032
    %v1329 = vpack.c.b16 %v1037, %v1033
    %v1330 = vpack.c.b16 %v1038, %v1034
    %v1331 = vpack.c.b16 %v1043, %v1039
    %v1332 = vpack.c.b16 %v1044, %v1040
    %v1333 = vpack.c.b16 %v1045, %v1041
    %v1334 = vpack.c.b16 %v1046, %v1042
    %v1335 = vpack.c.b16 %v1051, %v1047
    %v1336 = vpack.c.b16 %v1052, %v1048
    %v1337 = vpack.c.b16 %v1053, %v1049
    %v1338 = vpack.c.b16 %v1054, %v1050
    %v1339 = vpack.c.b16 %v1059, %v1055
    %v1340 = vpack.c.b16 %v1060, %v1056
    %v1341 = vpack.c.b16 %v1061, %v1057
    %v1342 = vpack.c.b16 %v1062, %v1058
    %v1343 = vpack.c.b16 %v1067, %v1063
    %v1344 = vpack.c.b16 %v1068, %v1064
    %v1345 = vpack.c.b16 %v1069, %v1065
    %v1346 = vpack.c.b16 %v1070, %v1066
    %v1347 = vpack.c.b16 %v1075, %v1071
    %v1348 = vpack.c.b16 %v1076, %v1072
    %v1349 = vpack.c.b16 %v1077, %v1073
    %v1350 = vpack.c.b16 %v1078, %v1074
    %v1351 = vpack.c.b16 %v1083, %v1079
    %v1352 = vpack.c.b16 %v1084, %v1080
    %v1353 = vpack.c.b16 %v1085, %v1081
    %v1354 = vpack.c.b16 %v1086, %v1082
    %v1355 = vpack.c.b16 %v1091, %v1087
    %v1356 = vpack.c.b16 %v1092, %v1088
    %v1357 = vpack.c.b16 %v1093, %v1089
    %v1358 = vpack.c.b16 %v1094, %v1090
    %v1359 = vpack.c.b16 %v1099, %v1095
    %v1360 = vpack.c.b16 %v1100, %v1096
    %v1361 = vpack.c.b16 %v1101, %v1097
    %v1362 = vpack.c.b16 %v1102, %v1098
    %v1363 = vpack.c.b16 %v1107, %v1103
    %v1364 = vpack.c.b16 %v1108, %v1104
    %v1365 = vpack.c.b16 %v1109, %v1105
    %v1366 = vpack.c.b16 %v1110, %v1106
    %1623 = vmatprep.subr.bf16.mxu0 %v1112
    %1624 = vmatpush1.bf16.msra.mxu0 %v1111
    %1625 = vmatprep.subr.bf16.mxu0 %v1116
    %1626 = vmatpush1.bf16.msra.mxu0 %v1115
    %1627 = vmatprep.subr.bf16.mxu0 %v1120
    %1628 = vmatpush1.bf16.msra.mxu0 %v1119
    %1629 = vmatprep.subr.bf16.mxu0 %v1124
    %1630 = vmatpush1.bf16.msra.mxu0 %v1123
    %1631 = vmatprep.subr.bf16.mxu0 %v1128
    %1632 = vmatpush1.bf16.msra.mxu0 %v1127
    %1633 = vmatprep.subr.bf16.mxu0 %v1132
    %1634 = vmatpush1.bf16.msra.mxu0 %v1131
    %1635 = vmatprep.subr.bf16.mxu0 %v1136
    %1636 = vmatpush1.bf16.msra.mxu0 %v1135
    %1637 = vmatprep.subr.bf16.mxu0 %v1140
    %1638 = vmatpush1.bf16.msra.mxu0 %v1139
    %1639 = vmatprep.subr.bf16.mxu0 %v1144
    %1640 = vmatpush1.bf16.msra.mxu0 %v1143
    %1641 = vmatprep.subr.bf16.mxu0 %v1148
    %1642 = vmatpush1.bf16.msra.mxu0 %v1147
    %1643 = vmatprep.subr.bf16.mxu0 %v1152
    %1644 = vmatpush1.bf16.msra.mxu0 %v1151
    %1645 = vmatprep.subr.bf16.mxu0 %v1156
    %1646 = vmatpush1.bf16.msra.mxu0 %v1155
    %1647 = vmatprep.subr.bf16.mxu0 %v1160
    %1648 = vmatpush1.bf16.msra.mxu0 %v1159
    %1649 = vmatprep.subr.bf16.mxu0 %v1164
    %1650 = vmatpush1.bf16.msra.mxu0 %v1163
    %1651 = vmatprep.subr.bf16.mxu0 %v1168
    %1652 = vmatpush1.bf16.msra.mxu0 %v1167
    %1653 = vmatprep.subr.bf16.mxu0 %v1172
    %1654 = vmatpush1.bf16.msra.mxu0 %v1171
    %1655 = vmatprep.mubr.bf16.mxu0 %v80
    %1656 = vmatmul.mubr.bf16.gmra.mrb[0].mxu0 %v79
    %v1657 = vpop.f32.mrb[0].mxu0
    %v1658 = vadd.f32 0.0, %v1657
    %v1659 = vpop.f32.mrb[0].mxu0
    %v1660 = vadd.f32 0.0, %v1659
    %v1661 = vpop.f32.mrb[0].mxu0
    %v1662 = vpop.f32.mrb[0].mxu0
    %1663 = vdwg.mxu0
    %1664 = vmatprep.subr.bf16.mxu0 %v1176
    %1665 = vmatpush1.bf16.msra.mxu0 %v1175
    %1666 = vmatprep.subr.bf16.mxu0 %v1180
    %1667 = vmatpush1.bf16.msra.mxu0 %v1179
    %1668 = vmatprep.subr.bf16.mxu0 %v1184
    %1669 = vmatpush1.bf16.msra.mxu0 %v1183
    %1670 = vmatprep.subr.bf16.mxu0 %v1188
    %1671 = vmatpush1.bf16.msra.mxu0 %v1187
    %1672 = vmatprep.subr.bf16.mxu0 %v1192
    %1673 = vmatpush1.bf16.msra.mxu0 %v1191
    %1674 = vmatprep.subr.bf16.mxu0 %v1196
    %1675 = vmatpush1.bf16.msra.mxu0 %v1195
    %1676 = vmatprep.subr.bf16.mxu0 %v1200
    %1677 = vmatpush1.bf16.msra.mxu0 %v1199
    %1678 = vmatprep.subr.bf16.mxu0 %v1204
    %1679 = vmatpush1.bf16.msra.mxu0 %v1203
    %1680 = vmatprep.subr.bf16.mxu0 %v1208
    %1681 = vmatpush1.bf16.msra.mxu0 %v1207
    %1682 = vmatprep.subr.bf16.mxu0 %v1212
    %1683 = vmatpush1.bf16.msra.mxu0 %v1211
    %1684 = vmatprep.subr.bf16.mxu0 %v1216
    %1685 = vmatpush1.bf16.msra.mxu0 %v1215
    %1686 = vmatprep.subr.bf16.mxu0 %v1220
    %1687 = vmatpush1.bf16.msra.mxu0 %v1219
    %1688 = vmatprep.subr.bf16.mxu0 %v1224
    %1689 = vmatpush1.bf16.msra.mxu0 %v1223
    %1690 = vmatprep.subr.bf16.mxu0 %v1228
    %1691 = vmatpush1.bf16.msra.mxu0 %v1227
    %1692 = vmatprep.subr.bf16.mxu0 %v1232
    %1693 = vmatpush1.bf16.msra.mxu0 %v1231
    %1694 = vmatprep.subr.bf16.mxu0 %v1236
    %1695 = vmatpush1.bf16.msra.mxu0 %v1235
    %1696 = vmatprep.mubr.bf16.mxu0 %v82
    %1697 = vmatmul.mubr.bf16.gmra.mrb[0].mxu0 %v81
    %v1698 = vpop.f32.mrb[0].mxu0
    %v1699 = vadd.f32 %v1658, %v1698
    %v1700 = vpop.f32.mrb[0].mxu0
    %v1701 = vadd.f32 %v1660, %v1700
    %v1702 = vpop.f32.mrb[0].mxu0
    %v1703 = vpop.f32.mrb[0].mxu0
    %1704 = vdwg.mxu0
    %1705 = vmatprep.subr.bf16.mxu0 %v1240
    %1706 = vmatpush1.bf16.msra.mxu0 %v1239
    %1707 = vmatprep.subr.bf16.mxu0 %v1244
    %1708 = vmatpush1.bf16.msra.mxu0 %v1243
    %1709 = vmatprep.subr.bf16.mxu0 %v1248
    %1710 = vmatpush1.bf16.msra.mxu0 %v1247
    %1711 = vmatprep.subr.bf16.mxu0 %v1252
    %1712 = vmatpush1.bf16.msra.mxu0 %v1251
    %1713 = vmatprep.subr.bf16.mxu0 %v1256
    %1714 = vmatpush1.bf16.msra.mxu0 %v1255
    %1715 = vmatprep.subr.bf16.mxu0 %v1260
    %1716 = vmatpush1.bf16.msra.mxu0 %v1259
    %1717 = vmatprep.subr.bf16.mxu0 %v1264
    %1718 = vmatpush1.bf16.msra.mxu0 %v1263
    %1719 = vmatprep.subr.bf16.mxu0 %v1268
    %1720 = vmatpush1.bf16.msra.mxu0 %v1267
    %1721 = vmatprep.subr.bf16.mxu0 %v1272
    %1722 = vmatpush1.bf16.msra.mxu0 %v1271
    %1723 = vmatprep.subr.bf16.mxu0 %v1276
    %1724 = vmatpush1.bf16.msra.mxu0 %v1275
    %1725 = vmatprep.subr.bf16.mxu0 %v1280
    %1726 = vmatpush1.bf16.msra.mxu0 %v1279
    %1727 = vmatprep.subr.bf16.mxu0 %v1284
    %1728 = vmatpush1.bf16.msra.mxu0 %v1283
    %1729 = vmatprep.subr.bf16.mxu0 %v1288
    %1730 = vmatpush1.bf16.msra.mxu0 %v1287
    %1731 = vmatprep.subr.bf16.mxu0 %v1292
    %1732 = vmatpush1.bf16.msra.mxu0 %v1291
    %1733 = vmatprep.subr.bf16.mxu0 %v1296
    %1734 = vmatpush1.bf16.msra.mxu0 %v1295
    %1735 = vmatprep.subr.bf16.mxu0 %v1300
    %1736 = vmatpush1.bf16.msra.mxu0 %v1299
    %1737 = vmatprep.mubr.bf16.mxu0 %v84
    %1738 = vmatmul.mubr.bf16.gmra.mrb[0].mxu0 %v83
    %v1739 = vpop.f32.mrb[0].mxu0
    %v1740 = vadd.f32 %v1699, %v1739
    %v1741 = vpop.f32.mrb[0].mxu0
    %v1742 = vadd.f32 %v1701, %v1741
    %v1743 = vpop.f32.mrb[0].mxu0
    %v1744 = vpop.f32.mrb[0].mxu0
    %1745 = vdwg.mxu0
    %1746 = vmatprep.subr.bf16.mxu0 %v1304
    %1747 = vmatpush1.bf16.msra.mxu0 %v1303
    %1748 = vmatprep.subr.bf16.mxu0 %v1308
    %1749 = vmatpush1.bf16.msra.mxu0 %v1307
    %1750 = vmatprep.subr.bf16.mxu0 %v1312
    %1751 = vmatpush1.bf16.msra.mxu0 %v1311
    %1752 = vmatprep.subr.bf16.mxu0 %v1316
    %1753 = vmatpush1.bf16.msra.mxu0 %v1315
    %1754 = vmatprep.subr.bf16.mxu0 %v1320
    %1755 = vmatpush1.bf16.msra.mxu0 %v1319
    %1756 = vmatprep.subr.bf16.mxu0 %v1324
    %1757 = vmatpush1.bf16.msra.mxu0 %v1323
    %1758 = vmatprep.subr.bf16.mxu0 %v1328
    %1759 = vmatpush1.bf16.msra.mxu0 %v1327
    %1760 = vmatprep.subr.bf16.mxu0 %v1332
    %1761 = vmatpush1.bf16.msra.mxu0 %v1331
    %1762 = vmatprep.subr.bf16.mxu0 %v1336
    %1763 = vmatpush1.bf16.msra.mxu0 %v1335
    %1764 = vmatprep.subr.bf16.mxu0 %v1340
    %1765 = vmatpush1.bf16.msra.mxu0 %v1339
    %1766 = vmatprep.subr.bf16.mxu0 %v1344
    %1767 = vmatpush1.bf16.msra.mxu0 %v1343
    %1768 = vmatprep.subr.bf16.mxu0 %v1348
    %1769 = vmatpush1.bf16.msra.mxu0 %v1347
    %1770 = vmatprep.subr.bf16.mxu0 %v1352
    %1771 = vmatpush1.bf16.msra.mxu0 %v1351
    %1772 = vmatprep.subr.bf16.mxu0 %v1356
    %1773 = vmatpush1.bf16.msra.mxu0 %v1355
    %1774 = vmatprep.subr.bf16.mxu0 %v1360
    %1775 = vmatpush1.bf16.msra.mxu0 %v1359
    %1776 = vmatprep.subr.bf16.mxu0 %v1364
    %1777 = vmatpush1.bf16.msra.mxu0 %v1363
    %1778 = vmatprep.mubr.bf16.mxu0 %v86
    %1779 = vmatmul.mubr.bf16.gmra.mrb[0].mxu0 %v85
    %v1780 = vpop.f32.mrb[0].mxu0
    %v1781 = vadd.f32 %v1740, %v1780
    %v1782 = vpop.f32.mrb[0].mxu0
    %v1783 = vadd.f32 %v1742, %v1782
    %v1784 = vpop.f32.mrb[0].mxu0
    %v1785 = vpop.f32.mrb[0].mxu0
    %1786 = vdwg.mxu0
    %1787 = vmatprep.subr.bf16.mxu0 %v1114
    %1788 = vmatpush1.bf16.msra.mxu0 %v1113
    %1789 = vmatprep.subr.bf16.mxu0 %v1118
    %1790 = vmatpush1.bf16.msra.mxu0 %v1117
    %1791 = vmatprep.subr.bf16.mxu0 %v1122
    %1792 = vmatpush1.bf16.msra.mxu0 %v1121
    %1793 = vmatprep.subr.bf16.mxu0 %v1126
    %1794 = vmatpush1.bf16.msra.mxu0 %v1125
    %1795 = vmatprep.subr.bf16.mxu0 %v1130
    %1796 = vmatpush1.bf16.msra.mxu0 %v1129
    %1797 = vmatprep.subr.bf16.mxu0 %v1134
    %1798 = vmatpush1.bf16.msra.mxu0 %v1133
    %1799 = vmatprep.subr.bf16.mxu0 %v1138
    %1800 = vmatpush1.bf16.msra.mxu0 %v1137
    %1801 = vmatprep.subr.bf16.mxu0 %v1142
    %1802 = vmatpush1.bf16.msra.mxu0 %v1141
    %1803 = vmatprep.subr.bf16.mxu0 %v1146
    %1804 = vmatpush1.bf16.msra.mxu0 %v1145
    %1805 = vmatprep.subr.bf16.mxu0 %v1150
    %1806 = vmatpush1.bf16.msra.mxu0 %v1149
    %1807 = vmatprep.subr.bf16.mxu0 %v1154
    %1808 = vmatpush1.bf16.msra.mxu0 %v1153
    %1809 = vmatprep.subr.bf16.mxu0 %v1158
    %1810 = vmatpush1.bf16.msra.mxu0 %v1157
    %1811 = vmatprep.subr.bf16.mxu0 %v1162
    %1812 = vmatpush1.bf16.msra.mxu0 %v1161
    %1813 = vmatprep.subr.bf16.mxu0 %v1166
    %1814 = vmatpush1.bf16.msra.mxu0 %v1165
    %1815 = vmatprep.subr.bf16.mxu0 %v1170
    %1816 = vmatpush1.bf16.msra.mxu0 %v1169
    %1817 = vmatprep.subr.bf16.mxu0 %v1174
    %1818 = vmatpush1.bf16.msra.mxu0 %v1173
    %1819 = vmatprep.mubr.bf16.mxu0 %v80
    %1820 = vmatmul.mubr.bf16.gmra.mrb[0].mxu0 %v79
    %v1821 = vpop.f32.mrb[0].mxu0
    %v1822 = vadd.f32 0.0, %v1821
    %v1823 = vpop.f32.mrb[0].mxu0
    %v1824 = vadd.f32 0.0, %v1823
    %v1825 = vpop.f32.mrb[0].mxu0
    %v1826 = vpop.f32.mrb[0].mxu0
    %1827 = vdwg.mxu0
    %1828 = vmatprep.subr.bf16.mxu0 %v1178
    %1829 = vmatpush1.bf16.msra.mxu0 %v1177
    %1830 = vmatprep.subr.bf16.mxu0 %v1182
    %1831 = vmatpush1.bf16.msra.mxu0 %v1181
    %1832 = vmatprep.subr.bf16.mxu0 %v1186
    %1833 = vmatpush1.bf16.msra.mxu0 %v1185
    %1834 = vmatprep.subr.bf16.mxu0 %v1190
    %1835 = vmatpush1.bf16.msra.mxu0 %v1189
    %1836 = vmatprep.subr.bf16.mxu0 %v1194
    %1837 = vmatpush1.bf16.msra.mxu0 %v1193
    %1838 = vmatprep.subr.bf16.mxu0 %v1198
    %1839 = vmatpush1.bf16.msra.mxu0 %v1197
    %1840 = vmatprep.subr.bf16.mxu0 %v1202
    %1841 = vmatpush1.bf16.msra.mxu0 %v1201
    %1842 = vmatprep.subr.bf16.mxu0 %v1206
    %1843 = vmatpush1.bf16.msra.mxu0 %v1205
    %1844 = vmatprep.subr.bf16.mxu0 %v1210
    %1845 = vmatpush1.bf16.msra.mxu0 %v1209
    %1846 = vmatprep.subr.bf16.mxu0 %v1214
    %1847 = vmatpush1.bf16.msra.mxu0 %v1213
    %1848 = vmatprep.subr.bf16.mxu0 %v1218
    %1849 = vmatpush1.bf16.msra.mxu0 %v1217
    %1850 = vmatprep.subr.bf16.mxu0 %v1222
    %1851 = vmatpush1.bf16.msra.mxu0 %v1221
    %1852 = vmatprep.subr.bf16.mxu0 %v1226
    %1853 = vmatpush1.bf16.msra.mxu0 %v1225
    %1854 = vmatprep.subr.bf16.mxu0 %v1230
    %1855 = vmatpush1.bf16.msra.mxu0 %v1229
    %1856 = vmatprep.subr.bf16.mxu0 %v1234
    %1857 = vmatpush1.bf16.msra.mxu0 %v1233
    %1858 = vmatprep.subr.bf16.mxu0 %v1238
    %1859 = vmatpush1.bf16.msra.mxu0 %v1237
    %1860 = vmatprep.mubr.bf16.mxu0 %v82
    %1861 = vmatmul.mubr.bf16.gmra.mrb[0].mxu0 %v81
    %v1862 = vpop.f32.mrb[0].mxu0
    %v1863 = vadd.f32 %v1822, %v1862
    %v1864 = vpop.f32.mrb[0].mxu0
    %v1865 = vadd.f32 %v1824, %v1864
    %v1866 = vpop.f32.mrb[0].mxu0
    %v1867 = vpop.f32.mrb[0].mxu0
    %1868 = vdwg.mxu0
    %1869 = vmatprep.subr.bf16.mxu0 %v1242
    %1870 = vmatpush1.bf16.msra.mxu0 %v1241
    %1871 = vmatprep.subr.bf16.mxu0 %v1246
    %1872 = vmatpush1.bf16.msra.mxu0 %v1245
    %1873 = vmatprep.subr.bf16.mxu0 %v1250
    %1874 = vmatpush1.bf16.msra.mxu0 %v1249
    %1875 = vmatprep.subr.bf16.mxu0 %v1254
    %1876 = vmatpush1.bf16.msra.mxu0 %v1253
    %1877 = vmatprep.subr.bf16.mxu0 %v1258
    %1878 = vmatpush1.bf16.msra.mxu0 %v1257
    %1879 = vmatprep.subr.bf16.mxu0 %v1262
    %1880 = vmatpush1.bf16.msra.mxu0 %v1261
    %1881 = vmatprep.subr.bf16.mxu0 %v1266
    %1882 = vmatpush1.bf16.msra.mxu0 %v1265
    %1883 = vmatprep.subr.bf16.mxu0 %v1270
    %1884 = vmatpush1.bf16.msra.mxu0 %v1269
    %1885 = vmatprep.subr.bf16.mxu0 %v1274
    %1886 = vmatpush1.bf16.msra.mxu0 %v1273
    %1887 = vmatprep.subr.bf16.mxu0 %v1278
    %1888 = vmatpush1.bf16.msra.mxu0 %v1277
    %1889 = vmatprep.subr.bf16.mxu0 %v1282
    %1890 = vmatpush1.bf16.msra.mxu0 %v1281
    %1891 = vmatprep.subr.bf16.mxu0 %v1286
    %1892 = vmatpush1.bf16.msra.mxu0 %v1285
    %1893 = vmatprep.subr.bf16.mxu0 %v1290
    %1894 = vmatpush1.bf16.msra.mxu0 %v1289
    %1895 = vmatprep.subr.bf16.mxu0 %v1294
    %1896 = vmatpush1.bf16.msra.mxu0 %v1293
    %1897 = vmatprep.subr.bf16.mxu0 %v1298
    %1898 = vmatpush1.bf16.msra.mxu0 %v1297
    %1899 = vmatprep.subr.bf16.mxu0 %v1302
    %1900 = vmatpush1.bf16.msra.mxu0 %v1301
    %1901 = vmatprep.mubr.bf16.mxu0 %v84
    %1902 = vmatmul.mubr.bf16.gmra.mrb[0].mxu0 %v83
    %v1903 = vpop.f32.mrb[0].mxu0
    %v1904 = vadd.f32 %v1863, %v1903
    %v1905 = vpop.f32.mrb[0].mxu0
    %v1906 = vadd.f32 %v1865, %v1905
    %v1907 = vpop.f32.mrb[0].mxu0
    %v1908 = vpop.f32.mrb[0].mxu0
    %1909 = vdwg.mxu0
    %1910 = vmatprep.subr.bf16.mxu0 %v1306
    %1911 = vmatpush1.bf16.msra.mxu0 %v1305
    %1912 = vmatprep.subr.bf16.mxu0 %v1310
    %1913 = vmatpush1.bf16.msra.mxu0 %v1309
    %1914 = vmatprep.subr.bf16.mxu0 %v1314
    %1915 = vmatpush1.bf16.msra.mxu0 %v1313
    %1916 = vmatprep.subr.bf16.mxu0 %v1318
    %1917 = vmatpush1.bf16.msra.mxu0 %v1317
    %1918 = vmatprep.subr.bf16.mxu0 %v1322
    %1919 = vmatpush1.bf16.msra.mxu0 %v1321
    %1920 = vmatprep.subr.bf16.mxu0 %v1326
    %1921 = vmatpush1.bf16.msra.mxu0 %v1325
    %1922 = vmatprep.subr.bf16.mxu0 %v1330
    %1923 = vmatpush1.bf16.msra.mxu0 %v1329
    %1924 = vmatprep.subr.bf16.mxu0 %v1334
    %1925 = vmatpush1.bf16.msra.mxu0 %v1333
    %1926 = vmatprep.subr.bf16.mxu0 %v1338
    %1927 = vmatpush1.bf16.msra.mxu0 %v1337
    %1928 = vmatprep.subr.bf16.mxu0 %v1342
    %1929 = vmatpush1.bf16.msra.mxu0 %v1341
    %1930 = vmatprep.subr.bf16.mxu0 %v1346
    %1931 = vmatpush1.bf16.msra.mxu0 %v1345
    %1932 = vmatprep.subr.bf16.mxu0 %v1350
    %1933 = vmatpush1.bf16.msra.mxu0 %v1349
    %1934 = vmatprep.subr.bf16.mxu0 %v1354
    %1935 = vmatpush1.bf16.msra.mxu0 %v1353
    %1936 = vmatprep.subr.bf16.mxu0 %v1358
    %1937 = vmatpush1.bf16.msra.mxu0 %v1357
    %1938 = vmatprep.subr.bf16.mxu0 %v1362
    %1939 = vmatpush1.bf16.msra.mxu0 %v1361
    %1940 = vmatprep.subr.bf16.mxu0 %v1366
    %1941 = vmatpush1.bf16.msra.mxu0 %v1365
    %1942 = vmatprep.mubr.bf16.mxu0 %v86
    %1943 = vmatmul.mubr.bf16.gmra.mrb[0].mxu0 %v85
    %v1944 = vpop.f32.mrb[0].mxu0
    %v1945 = vadd.f32 %v1904, %v1944
    %v1946 = vpop.f32.mrb[0].mxu0
    %v1947 = vadd.f32 %v1906, %v1946
    %v1948 = vpop.f32.mrb[0].mxu0
    %v1949 = vpop.f32.mrb[0].mxu0
    %1950 = vdwg.mxu0
    %v1951 = vld [vmem:[%s2] sm:$0xf]
    %v1953 = vlaneseq
    %v1954 = vshrl.u32 %v1953, 7
    %v1955 = vsub.s32 0, %v1954
    %v1956 = vrot.slane %v1951, %v1955
    %v1957 = vlaneseq
    %v1958 = vshrl.u32 %v1957, 7
    %v1959 = vsub.s32 1, %v1958
    %v1960 = vrot.slane %v1951, %v1959
    %v1961 = vlaneseq
    %v1962 = vshrl.u32 %v1961, 7
    %v1963 = vsub.s32 2, %v1962
    %v1964 = vrot.slane %v1951, %v1963
    %v1965 = vlaneseq
    %v1966 = vshrl.u32 %v1965, 7
    %v1967 = vsub.s32 3, %v1966
    %v1968 = vrot.slane %v1951, %v1967
    %v1973 = vmul.f32 %v1781, %v1956
    %v1974 = vmul.f32 %v1783, %v1960
    %v1975 = vmul.f32 %v1945, %v1964
    %v1976 = vmul.f32 %v1947, %v1968
    %v1977 = vld [vmem:[%s3] sm:$0xf]
    %v1979 = vlaneseq
    %v1980 = vshrl.u32 %v1979, 7
    %v1981 = vsub.s32 0, %v1980
    %v1982 = vrot.slane %v1977, %v1981
    %v1983 = vlaneseq
    %v1984 = vshrl.u32 %v1983, 7
    %v1985 = vsub.s32 1, %v1984
    %v1986 = vrot.slane %v1977, %v1985
    %v1987 = vlaneseq
    %v1988 = vshrl.u32 %v1987, 7
    %v1989 = vsub.s32 2, %v1988
    %v1990 = vrot.slane %v1977, %v1989
    %v1991 = vlaneseq
    %v1992 = vshrl.u32 %v1991, 7
    %v1993 = vsub.s32 3, %v1992
    %v1994 = vrot.slane %v1977, %v1993
    %v1999 = vadd.f32 %v1973, %v1982
    %v2000 = vadd.f32 %v1974, %v1986
    %v2001 = vadd.f32 %v1975, %v1990
    %v2002 = vadd.f32 %v1976, %v1994
    %v2003 = vmax.f32 %v1999, 0.0
    %v2004 = vmax.f32 %v2000, 0.0
    %v2005 = vmax.f32 %v2001, 0.0
    %v2006 = vmax.f32 %v2002, 0.0
    %v2007 = vpack.c.bf16 %v2003, %v2003
    %v2008 = vpack.c.bf16 %v2004, %v2004
    %v2009 = vpack.c.bf16 %v2005, %v2005
    %v2010 = vpack.c.bf16 %v2006, %v2006
    %v2011 = vld [vmem:[%s4] sm:$0xff]
    %v2012 = vld [vmem:[%s4 + $0x8] sm:$0xff]
    %v2013 = vld [vmem:[%s4 + $0x10] sm:$0xff]
    %v2014 = vld [vmem:[%s4 + $0x18] sm:$0xff]
    %v2015 = vld [vmem:[%s4 + $0x20] sm:$0xff]
    %v2016 = vld [vmem:[%s4 + $0x28] sm:$0xff]
    %v2017 = vld [vmem:[%s4 + $0x30] sm:$0xff]
    %v2018 = vld [vmem:[%s4 + $0x38] sm:$0xff]
    %v2019 = vld [vmem:[%s4 + $0x40] sm:$0xff]
    %v2020 = vld [vmem:[%s4 + $0x48] sm:$0xff]
    %v2021 = vld [vmem:[%s4 + $0x50] sm:$0xff]
    %v2022 = vld [vmem:[%s4 + $0x58] sm:$0xff]
    %v2023 = vld [vmem:[%s4 + $0x60] sm:$0xff]
    %v2024 = vld [vmem:[%s4 + $0x68] sm:$0xff]
    %v2025 = vld [vmem:[%s4 + $0x70] sm:$0xff]
    %v2026 = vld [vmem:[%s4 + $0x78] sm:$0xff]
    %v2027 = vld [vmem:[%s4 + $0x80] sm:$0xff]
    %v2028 = vld [vmem:[%s4 + $0x88] sm:$0xff]
    %v2029 = vld [vmem:[%s4 + $0x90] sm:$0xff]
    %v2030 = vld [vmem:[%s4 + $0x98] sm:$0xff]
    %v2031 = vld [vmem:[%s4 + $0xa0] sm:$0xff]
    %v2032 = vld [vmem:[%s4 + $0xa8] sm:$0xff]
    %v2033 = vld [vmem:[%s4 + $0xb0] sm:$0xff]
    %v2034 = vld [vmem:[%s4 + $0xb8] sm:$0xff]
    %v2035 = vld [vmem:[%s4 + $0xc0] sm:$0xff]
    %v2036 = vld [vmem:[%s4 + $0xc8] sm:$0xff]
    %v2037 = vld [vmem:[%s4 + $0xd0] sm:$0xff]
    %v2038 = vld [vmem:[%s4 + $0xd8] sm:$0xff]
    %v2039 = vld [vmem:[%s4 + $0xe0] sm:$0xff]
    %v2040 = vld [vmem:[%s4 + $0xe8] sm:$0xff]
    %v2041 = vld [vmem:[%s4 + $0xf0] sm:$0xff]
    %v2042 = vld [vmem:[%s4 + $0xf8] sm:$0xff]
    %v2043 = vld [vmem:[%s4 + $0x100] sm:$0xff]
    %v2044 = vld [vmem:[%s4 + $0x108] sm:$0xff]
    %v2045 = vld [vmem:[%s4 + $0x110] sm:$0xff]
    %v2046 = vld [vmem:[%s4 + $0x118] sm:$0xff]
    %v2047 = vld [vmem:[%s4 + $0x120] sm:$0xff]
    %v2048 = vld [vmem:[%s4 + $0x128] sm:$0xff]
    %v2049 = vld [vmem:[%s4 + $0x130] sm:$0xff]
    %v2050 = vld [vmem:[%s4 + $0x138] sm:$0xff]
    %v2051 = vld [vmem:[%s4 + $0x140] sm:$0xff]
    %v2052 = vld [vmem:[%s4 + $0x148] sm:$0xff]
    %v2053 = vld [vmem:[%s4 + $0x150] sm:$0xff]
    %v2054 = vld [vmem:[%s4 + $0x158] sm:$0xff]
    %v2055 = vld [vmem:[%s4 + $0x160] sm:$0xff]
    %v2056 = vld [vmem:[%s4 + $0x168] sm:$0xff]
    %v2057 = vld [vmem:[%s4 + $0x170] sm:$0xff]
    %v2058 = vld [vmem:[%s4 + $0x178] sm:$0xff]
    %v2059 = vld [vmem:[%s4 + $0x180] sm:$0xff]
    %v2060 = vld [vmem:[%s4 + $0x188] sm:$0xff]
    %v2061 = vld [vmem:[%s4 + $0x190] sm:$0xff]
    %v2062 = vld [vmem:[%s4 + $0x198] sm:$0xff]
    %v2063 = vld [vmem:[%s4 + $0x1a0] sm:$0xff]
    %v2064 = vld [vmem:[%s4 + $0x1a8] sm:$0xff]
    %v2065 = vld [vmem:[%s4 + $0x1b0] sm:$0xff]
    %v2066 = vld [vmem:[%s4 + $0x1b8] sm:$0xff]
    %v2067 = vld [vmem:[%s4 + $0x1c0] sm:$0xff]
    %v2068 = vld [vmem:[%s4 + $0x1c8] sm:$0xff]
    %v2069 = vld [vmem:[%s4 + $0x1d0] sm:$0xff]
    %v2070 = vld [vmem:[%s4 + $0x1d8] sm:$0xff]
    %v2071 = vld [vmem:[%s4 + $0x1e0] sm:$0xff]
    %v2072 = vld [vmem:[%s4 + $0x1e8] sm:$0xff]
    %v2073 = vld [vmem:[%s4 + $0x1f0] sm:$0xff]
    %v2074 = vld [vmem:[%s4 + $0x1f8] sm:$0xff]
    %v2139 = vunpack.c.l.b16 %v2011
    %v2140 = vunpack.c.h.b16 %v2011
    %v2141 = vunpack.c.l.b16 %v2012
    %v2142 = vunpack.c.h.b16 %v2012
    %v2143 = vunpack.c.l.b16 %v2013
    %v2144 = vunpack.c.h.b16 %v2013
    %v2145 = vunpack.c.l.b16 %v2014
    %v2146 = vunpack.c.h.b16 %v2014
    %v2147 = vunpack.c.l.b16 %v2015
    %v2148 = vunpack.c.h.b16 %v2015
    %v2149 = vunpack.c.l.b16 %v2016
    %v2150 = vunpack.c.h.b16 %v2016
    %v2151 = vunpack.c.l.b16 %v2017
    %v2152 = vunpack.c.h.b16 %v2017
    %v2153 = vunpack.c.l.b16 %v2018
    %v2154 = vunpack.c.h.b16 %v2018
    %v2155 = vunpack.c.l.b16 %v2019
    %v2156 = vunpack.c.h.b16 %v2019
    %v2157 = vunpack.c.l.b16 %v2020
    %v2158 = vunpack.c.h.b16 %v2020
    %v2159 = vunpack.c.l.b16 %v2021
    %v2160 = vunpack.c.h.b16 %v2021
    %v2161 = vunpack.c.l.b16 %v2022
    %v2162 = vunpack.c.h.b16 %v2022
    %v2163 = vunpack.c.l.b16 %v2023
    %v2164 = vunpack.c.h.b16 %v2023
    %v2165 = vunpack.c.l.b16 %v2024
    %v2166 = vunpack.c.h.b16 %v2024
    %v2167 = vunpack.c.l.b16 %v2025
    %v2168 = vunpack.c.h.b16 %v2025
    %v2169 = vunpack.c.l.b16 %v2026
    %v2170 = vunpack.c.h.b16 %v2026
    %v2171 = vunpack.c.l.b16 %v2027
    %v2172 = vunpack.c.h.b16 %v2027
    %v2173 = vunpack.c.l.b16 %v2028
    %v2174 = vunpack.c.h.b16 %v2028
    %v2175 = vunpack.c.l.b16 %v2029
    %v2176 = vunpack.c.h.b16 %v2029
    %v2177 = vunpack.c.l.b16 %v2030
    %v2178 = vunpack.c.h.b16 %v2030
    %v2179 = vunpack.c.l.b16 %v2031
    %v2180 = vunpack.c.h.b16 %v2031
    %v2181 = vunpack.c.l.b16 %v2032
    %v2182 = vunpack.c.h.b16 %v2032
    %v2183 = vunpack.c.l.b16 %v2033
    %v2184 = vunpack.c.h.b16 %v2033
    %v2185 = vunpack.c.l.b16 %v2034
    %v2186 = vunpack.c.h.b16 %v2034
    %v2187 = vunpack.c.l.b16 %v2035
    %v2188 = vunpack.c.h.b16 %v2035
    %v2189 = vunpack.c.l.b16 %v2036
    %v2190 = vunpack.c.h.b16 %v2036
    %v2191 = vunpack.c.l.b16 %v2037
    %v2192 = vunpack.c.h.b16 %v2037
    %v2193 = vunpack.c.l.b16 %v2038
    %v2194 = vunpack.c.h.b16 %v2038
    %v2195 = vunpack.c.l.b16 %v2039
    %v2196 = vunpack.c.h.b16 %v2039
    %v2197 = vunpack.c.l.b16 %v2040
    %v2198 = vunpack.c.h.b16 %v2040
    %v2199 = vunpack.c.l.b16 %v2041
    %v2200 = vunpack.c.h.b16 %v2041
    %v2201 = vunpack.c.l.b16 %v2042
    %v2202 = vunpack.c.h.b16 %v2042
    %v2203 = vunpack.c.l.b16 %v2043
    %v2204 = vunpack.c.h.b16 %v2043
    %v2205 = vunpack.c.l.b16 %v2044
    %v2206 = vunpack.c.h.b16 %v2044
    %v2207 = vunpack.c.l.b16 %v2045
    %v2208 = vunpack.c.h.b16 %v2045
    %v2209 = vunpack.c.l.b16 %v2046
    %v2210 = vunpack.c.h.b16 %v2046
    %v2211 = vunpack.c.l.b16 %v2047
    %v2212 = vunpack.c.h.b16 %v2047
    %v2213 = vunpack.c.l.b16 %v2048
    %v2214 = vunpack.c.h.b16 %v2048
    %v2215 = vunpack.c.l.b16 %v2049
    %v2216 = vunpack.c.h.b16 %v2049
    %v2217 = vunpack.c.l.b16 %v2050
    %v2218 = vunpack.c.h.b16 %v2050
    %v2219 = vunpack.c.l.b16 %v2051
    %v2220 = vunpack.c.h.b16 %v2051
    %v2221 = vunpack.c.l.b16 %v2052
    %v2222 = vunpack.c.h.b16 %v2052
    %v2223 = vunpack.c.l.b16 %v2053
    %v2224 = vunpack.c.h.b16 %v2053
    %v2225 = vunpack.c.l.b16 %v2054
    %v2226 = vunpack.c.h.b16 %v2054
    %v2227 = vunpack.c.l.b16 %v2055
    %v2228 = vunpack.c.h.b16 %v2055
    %v2229 = vunpack.c.l.b16 %v2056
    %v2230 = vunpack.c.h.b16 %v2056
    %v2231 = vunpack.c.l.b16 %v2057
    %v2232 = vunpack.c.h.b16 %v2057
    %v2233 = vunpack.c.l.b16 %v2058
    %v2234 = vunpack.c.h.b16 %v2058
    %v2235 = vunpack.c.l.b16 %v2059
    %v2236 = vunpack.c.h.b16 %v2059
    %v2237 = vunpack.c.l.b16 %v2060
    %v2238 = vunpack.c.h.b16 %v2060
    %v2239 = vunpack.c.l.b16 %v2061
    %v2240 = vunpack.c.h.b16 %v2061
    %v2241 = vunpack.c.l.b16 %v2062
    %v2242 = vunpack.c.h.b16 %v2062
    %v2243 = vunpack.c.l.b16 %v2063
    %v2244 = vunpack.c.h.b16 %v2063
    %v2245 = vunpack.c.l.b16 %v2064
    %v2246 = vunpack.c.h.b16 %v2064
    %v2247 = vunpack.c.l.b16 %v2065
    %v2248 = vunpack.c.h.b16 %v2065
    %v2249 = vunpack.c.l.b16 %v2066
    %v2250 = vunpack.c.h.b16 %v2066
    %v2251 = vunpack.c.l.b16 %v2067
    %v2252 = vunpack.c.h.b16 %v2067
    %v2253 = vunpack.c.l.b16 %v2068
    %v2254 = vunpack.c.h.b16 %v2068
    %v2255 = vunpack.c.l.b16 %v2069
    %v2256 = vunpack.c.h.b16 %v2069
    %v2257 = vunpack.c.l.b16 %v2070
    %v2258 = vunpack.c.h.b16 %v2070
    %v2259 = vunpack.c.l.b16 %v2071
    %v2260 = vunpack.c.h.b16 %v2071
    %v2261 = vunpack.c.l.b16 %v2072
    %v2262 = vunpack.c.h.b16 %v2072
    %v2263 = vunpack.c.l.b16 %v2073
    %v2264 = vunpack.c.h.b16 %v2073
    %v2265 = vunpack.c.l.b16 %v2074
    %v2266 = vunpack.c.h.b16 %v2074
    %v2267 = vpack.c.b16 %v2141, %v2139
    %v2268 = vpack.c.b16 %v2142, %v2140
    %v2269 = vpack.c.b16 %v2145, %v2143
    %v2270 = vpack.c.b16 %v2146, %v2144
    %v2271 = vpack.c.b16 %v2149, %v2147
    %v2272 = vpack.c.b16 %v2150, %v2148
    %v2273 = vpack.c.b16 %v2153, %v2151
    %v2274 = vpack.c.b16 %v2154, %v2152
    %v2275 = vpack.c.b16 %v2157, %v2155
    %v2276 = vpack.c.b16 %v2158, %v2156
    %v2277 = vpack.c.b16 %v2161, %v2159
    %v2278 = vpack.c.b16 %v2162, %v2160
    %v2279 = vpack.c.b16 %v2165, %v2163
    %v2280 = vpack.c.b16 %v2166, %v2164
    %v2281 = vpack.c.b16 %v2169, %v2167
    %v2282 = vpack.c.b16 %v2170, %v2168
    %v2283 = vpack.c.b16 %v2173, %v2171
    %v2284 = vpack.c.b16 %v2174, %v2172
    %v2285 = vpack.c.b16 %v2177, %v2175
    %v2286 = vpack.c.b16 %v2178, %v2176
    %v2287 = vpack.c.b16 %v2181, %v2179
    %v2288 = vpack.c.b16 %v2182, %v2180
    %v2289 = vpack.c.b16 %v2185, %v2183
    %v2290 = vpack.c.b16 %v2186, %v2184
    %v2291 = vpack.c.b16 %v2189, %v2187
    %v2292 = vpack.c.b16 %v2190, %v2188
    %v2293 = vpack.c.b16 %v2193, %v2191
    %v2294 = vpack.c.b16 %v2194, %v2192
    %v2295 = vpack.c.b16 %v2197, %v2195
    %v2296 = vpack.c.b16 %v2198, %v2196
    %v2297 = vpack.c.b16 %v2201, %v2199
    %v2298 = vpack.c.b16 %v2202, %v2200
    %v2299 = vpack.c.b16 %v2205, %v2203
    %v2300 = vpack.c.b16 %v2206, %v2204
    %v2301 = vpack.c.b16 %v2209, %v2207
    %v2302 = vpack.c.b16 %v2210, %v2208
    %v2303 = vpack.c.b16 %v2213, %v2211
    %v2304 = vpack.c.b16 %v2214, %v2212
    %v2305 = vpack.c.b16 %v2217, %v2215
    %v2306 = vpack.c.b16 %v2218, %v2216
    %v2307 = vpack.c.b16 %v2221, %v2219
    %v2308 = vpack.c.b16 %v2222, %v2220
    %v2309 = vpack.c.b16 %v2225, %v2223
    %v2310 = vpack.c.b16 %v2226, %v2224
    %v2311 = vpack.c.b16 %v2229, %v2227
    %v2312 = vpack.c.b16 %v2230, %v2228
    %v2313 = vpack.c.b16 %v2233, %v2231
    %v2314 = vpack.c.b16 %v2234, %v2232
    %v2315 = vpack.c.b16 %v2237, %v2235
    %v2316 = vpack.c.b16 %v2238, %v2236
    %v2317 = vpack.c.b16 %v2241, %v2239
    %v2318 = vpack.c.b16 %v2242, %v2240
    %v2319 = vpack.c.b16 %v2245, %v2243
    %v2320 = vpack.c.b16 %v2246, %v2244
    %v2321 = vpack.c.b16 %v2249, %v2247
    %v2322 = vpack.c.b16 %v2250, %v2248
    %v2323 = vpack.c.b16 %v2253, %v2251
    %v2324 = vpack.c.b16 %v2254, %v2252
    %v2325 = vpack.c.b16 %v2257, %v2255
    %v2326 = vpack.c.b16 %v2258, %v2256
    %v2327 = vpack.c.b16 %v2261, %v2259
    %v2328 = vpack.c.b16 %v2262, %v2260
    %v2329 = vpack.c.b16 %v2265, %v2263
    %v2330 = vpack.c.b16 %v2266, %v2264
    %2395 = vmatprep.subr.bf16.mxu0 %v2268
    %2396 = vmatpush1.bf16.msra.mxu0 %v2267
    %2397 = vmatprep.subr.bf16.mxu0 %v2270
    %2398 = vmatpush1.bf16.msra.mxu0 %v2269
    %2399 = vmatprep.subr.bf16.mxu0 %v2272
    %2400 = vmatpush1.bf16.msra.mxu0 %v2271
    %2401 = vmatprep.subr.bf16.mxu0 %v2274
    %2402 = vmatpush1.bf16.msra.mxu0 %v2273
    %2403 = vmatprep.subr.bf16.mxu0 %v2276
    %2404 = vmatpush1.bf16.msra.mxu0 %v2275
    %2405 = vmatprep.subr.bf16.mxu0 %v2278
    %2406 = vmatpush1.bf16.msra.mxu0 %v2277
    %2407 = vmatprep.subr.bf16.mxu0 %v2280
    %2408 = vmatpush1.bf16.msra.mxu0 %v2279
    %2409 = vmatprep.subr.bf16.mxu0 %v2282
    %2410 = vmatpush1.bf16.msra.mxu0 %v2281
    %2411 = vmatprep.subr.bf16.mxu0 %v2284
    %2412 = vmatpush1.bf16.msra.mxu0 %v2283
    %2413 = vmatprep.subr.bf16.mxu0 %v2286
    %2414 = vmatpush1.bf16.msra.mxu0 %v2285
    %2415 = vmatprep.subr.bf16.mxu0 %v2288
    %2416 = vmatpush1.bf16.msra.mxu0 %v2287
    %2417 = vmatprep.subr.bf16.mxu0 %v2290
    %2418 = vmatpush1.bf16.msra.mxu0 %v2289
    %2419 = vmatprep.subr.bf16.mxu0 %v2292
    %2420 = vmatpush1.bf16.msra.mxu0 %v2291
    %2421 = vmatprep.subr.bf16.mxu0 %v2294
    %2422 = vmatpush1.bf16.msra.mxu0 %v2293
    %2423 = vmatprep.subr.bf16.mxu0 %v2296
    %2424 = vmatpush1.bf16.msra.mxu0 %v2295
    %2425 = vmatprep.subr.bf16.mxu0 %v2298
    %2426 = vmatpush1.bf16.msra.mxu0 %v2297
    %2427 = vmatprep.mubr.bf16.mxu0 %v2008
    %2428 = vmatmul.mubr.bf16.gmra.mrb[0].mxu0 %v2007
    %v2429 = vpop.f32.mrb[0].mxu0
    %v2430 = vadd.f32 0.0, %v2429
    %v2431 = vpop.f32.mrb[0].mxu0
    %v2432 = vadd.f32 0.0, %v2431
    %v2433 = vpop.f32.mrb[0].mxu0
    %v2434 = vpop.f32.mrb[0].mxu0
    %2435 = vdwg.mxu0
    %2436 = vmatprep.subr.bf16.mxu0 %v2300
    %2437 = vmatpush1.bf16.msra.mxu0 %v2299
    %2438 = vmatprep.subr.bf16.mxu0 %v2302
    %2439 = vmatpush1.bf16.msra.mxu0 %v2301
    %2440 = vmatprep.subr.bf16.mxu0 %v2304
    %2441 = vmatpush1.bf16.msra.mxu0 %v2303
    %2442 = vmatprep.subr.bf16.mxu0 %v2306
    %2443 = vmatpush1.bf16.msra.mxu0 %v2305
    %2444 = vmatprep.subr.bf16.mxu0 %v2308
    %2445 = vmatpush1.bf16.msra.mxu0 %v2307
    %2446 = vmatprep.subr.bf16.mxu0 %v2310
    %2447 = vmatpush1.bf16.msra.mxu0 %v2309
    %2448 = vmatprep.subr.bf16.mxu0 %v2312
    %2449 = vmatpush1.bf16.msra.mxu0 %v2311
    %2450 = vmatprep.subr.bf16.mxu0 %v2314
    %2451 = vmatpush1.bf16.msra.mxu0 %v2313
    %2452 = vmatprep.subr.bf16.mxu0 %v2316
    %2453 = vmatpush1.bf16.msra.mxu0 %v2315
    %2454 = vmatprep.subr.bf16.mxu0 %v2318
    %2455 = vmatpush1.bf16.msra.mxu0 %v2317
    %2456 = vmatprep.subr.bf16.mxu0 %v2320
    %2457 = vmatpush1.bf16.msra.mxu0 %v2319
    %2458 = vmatprep.subr.bf16.mxu0 %v2322
    %2459 = vmatpush1.bf16.msra.mxu0 %v2321
    %2460 = vmatprep.subr.bf16.mxu0 %v2324
    %2461 = vmatpush1.bf16.msra.mxu0 %v2323
    %2462 = vmatprep.subr.bf16.mxu0 %v2326
    %2463 = vmatpush1.bf16.msra.mxu0 %v2325
    %2464 = vmatprep.subr.bf16.mxu0 %v2328
    %2465 = vmatpush1.bf16.msra.mxu0 %v2327
    %2466 = vmatprep.subr.bf16.mxu0 %v2330
    %2467 = vmatpush1.bf16.msra.mxu0 %v2329
    %2468 = vmatprep.mubr.bf16.mxu0 %v2010
    %2469 = vmatmul.mubr.bf16.gmra.mrb[0].mxu0 %v2009
    %v2470 = vpop.f32.mrb[0].mxu0
    %v2471 = vadd.f32 %v2430, %v2470
    %v2472 = vpop.f32.mrb[0].mxu0
    %v2473 = vadd.f32 %v2432, %v2472
    %v2474 = vpop.f32.mrb[0].mxu0
    %v2475 = vpop.f32.mrb[0].mxu0
    %2476 = vdwg.mxu0
    %v2477 = vld [vmem:[%s5] sm:$0x3]
    %v2479 = vlaneseq
    %v2480 = vshrl.u32 %v2479, 7
    %v2481 = vsub.s32 0, %v2480
    %v2482 = vrot.slane %v2477, %v2481
    %v2483 = vlaneseq
    %v2484 = vshrl.u32 %v2483, 7
    %v2485 = vsub.s32 1, %v2484
    %v2486 = vrot.slane %v2477, %v2485
    %v2489 = vmul.f32 %v2471, %v2482
    %v2490 = vmul.f32 %v2473, %v2486
    %v2491 = vld [vmem:[%s6] sm:$0x3]
    %v2493 = vlaneseq
    %v2494 = vshrl.u32 %v2493, 7
    %v2495 = vsub.s32 0, %v2494
    %v2496 = vrot.slane %v2491, %v2495
    %v2497 = vlaneseq
    %v2498 = vshrl.u32 %v2497, 7
    %v2499 = vsub.s32 1, %v2498
    %v2500 = vrot.slane %v2491, %v2499
    %v2503 = vadd.f32 %v2489, %v2496
    %v2504 = vadd.f32 %v2490, %v2500
    %v2505 = vmax.f32 %v2503, 0.0
    %v2506 = vmax.f32 %v2504, 0.0
    %v2507 = vld [vmem:[%s7] sm:$0xff]
    %v2508 = vld [vmem:[%s7 + $0x8] sm:$0xff]
    %v2509 = vld [vmem:[%s7 + $0x10] sm:$0xff]
    %v2510 = vld [vmem:[%s7 + $0x18] sm:$0xff]
    %v2511 = vld [vmem:[%s7 + $0x20] sm:$0xff]
    %v2512 = vld [vmem:[%s7 + $0x28] sm:$0xff]
    %v2513 = vld [vmem:[%s7 + $0x30] sm:$0xff]
    %v2514 = vld [vmem:[%s7 + $0x38] sm:$0xff]
    %v2515 = vld [vmem:[%s7 + $0x40] sm:$0xff]
    %v2516 = vld [vmem:[%s7 + $0x48] sm:$0xff]
    %v2517 = vld [vmem:[%s7 + $0x50] sm:$0xff]
    %v2518 = vld [vmem:[%s7 + $0x58] sm:$0xff]
    %v2519 = vld [vmem:[%s7 + $0x60] sm:$0xff]
    %v2520 = vld [vmem:[%s7 + $0x68] sm:$0xff]
    %v2521 = vld [vmem:[%s7 + $0x70] sm:$0xff]
    %v2522 = vld [vmem:[%s7 + $0x78] sm:$0xff]
    %v2523 = vld [vmem:[%s7 + $0x80] sm:$0xff]
    %v2524 = vld [vmem:[%s7 + $0x88] sm:$0xff]
    %v2525 = vld [vmem:[%s7 + $0x90] sm:$0xff]
    %v2526 = vld [vmem:[%s7 + $0x98] sm:$0xff]
    %v2527 = vld [vmem:[%s7 + $0xa0] sm:$0xff]
    %v2528 = vld [vmem:[%s7 + $0xa8] sm:$0xff]
    %v2529 = vld [vmem:[%s7 + $0xb0] sm:$0xff]
    %v2530 = vld [vmem:[%s7 + $0xb8] sm:$0xff]
    %v2531 = vld [vmem:[%s7 + $0xc0] sm:$0xff]
    %v2532 = vld [vmem:[%s7 + $0xc8] sm:$0xff]
    %v2533 = vld [vmem:[%s7 + $0xd0] sm:$0xff]
    %v2534 = vld [vmem:[%s7 + $0xd8] sm:$0xff]
    %v2535 = vld [vmem:[%s7 + $0xe0] sm:$0xff]
    %v2536 = vld [vmem:[%s7 + $0xe8] sm:$0xff]
    %v2537 = vld [vmem:[%s7 + $0xf0] sm:$0xff]
    %v2538 = vld [vmem:[%s7 + $0xf8] sm:$0xff]
    %v2539 = vld [vmem:[%s8] sm:$0x1]
    %v2541 = vlaneseq
    %v2542 = vshrl.u32 %v2541, 7
    %v2543 = vsub.s32 0, %v2542
    %v2544 = vrot.slane %v2539, %v2543
    %2546 = vmatprep.subr.mxu0 0.0
    %2547 = vmatpush1.msra.mxu0 %v2507
    %2548 = vmatprep.subr.mxu0 0.0
    %2549 = vmatpush1.msra.mxu0 %v2508
    %2550 = vmatprep.subr.mxu0 0.0
    %2551 = vmatpush1.msra.mxu0 %v2509
    %2552 = vmatprep.subr.mxu0 0.0
    %2553 = vmatpush1.msra.mxu0 %v2510
    %2554 = vmatprep.subr.mxu0 0.0
    %2555 = vmatpush1.msra.mxu0 %v2511
    %2556 = vmatprep.subr.mxu0 0.0
    %2557 = vmatpush1.msra.mxu0 %v2512
    %2558 = vmatprep.subr.mxu0 0.0
    %2559 = vmatpush1.msra.mxu0 %v2513
    %2560 = vmatprep.subr.mxu0 0.0
    %2561 = vmatpush1.msra.mxu0 %v2514
    %2562 = vmatprep.subr.mxu0 0.0
    %2563 = vmatpush1.msra.mxu0 %v2515
    %2564 = vmatprep.subr.mxu0 0.0
    %2565 = vmatpush1.msra.mxu0 %v2516
    %2566 = vmatprep.subr.mxu0 0.0
    %2567 = vmatpush1.msra.mxu0 %v2517
    %2568 = vmatprep.subr.mxu0 0.0
    %2569 = vmatpush1.msra.mxu0 %v2518
    %2570 = vmatprep.subr.mxu0 0.0
    %2571 = vmatpush1.msra.mxu0 %v2519
    %2572 = vmatprep.subr.mxu0 0.0
    %2573 = vmatpush1.msra.mxu0 %v2520
    %2574 = vmatprep.subr.mxu0 0.0
    %2575 = vmatpush1.msra.mxu0 %v2521
    %2576 = vmatprep.subr.mxu0 0.0
    %2577 = vmatpush1.msra.mxu0 %v2522
    %2578 = vmatprep.subr.mxu0 0.0
    %2579 = vmatpush1.msra.mxu0 %v2523
    %2580 = vmatprep.subr.mxu0 0.0
    %2581 = vmatpush1.msra.mxu0 %v2524
    %2582 = vmatprep.subr.mxu0 0.0
    %2583 = vmatpush1.msra.mxu0 %v2525
    %2584 = vmatprep.subr.mxu0 0.0
    %2585 = vmatpush1.msra.mxu0 %v2526
    %2586 = vmatprep.subr.mxu0 0.0
    %2587 = vmatpush1.msra.mxu0 %v2527
    %2588 = vmatprep.subr.mxu0 0.0
    %2589 = vmatpush1.msra.mxu0 %v2528
    %2590 = vmatprep.subr.mxu0 0.0
    %2591 = vmatpush1.msra.mxu0 %v2529
    %2592 = vmatprep.subr.mxu0 0.0
    %2593 = vmatpush1.msra.mxu0 %v2530
    %2594 = vmatprep.subr.mxu0 0.0
    %2595 = vmatpush1.msra.mxu0 %v2531
    %2596 = vmatprep.subr.mxu0 0.0
    %2597 = vmatpush1.msra.mxu0 %v2532
    %2598 = vmatprep.subr.mxu0 0.0
    %2599 = vmatpush1.msra.mxu0 %v2533
    %2600 = vmatprep.subr.mxu0 0.0
    %2601 = vmatpush1.msra.mxu0 %v2534
    %2602 = vmatprep.subr.mxu0 0.0
    %2603 = vmatpush1.msra.mxu0 %v2535
    %2604 = vmatprep.subr.mxu0 0.0
    %2605 = vmatpush1.msra.mxu0 %v2536
    %2606 = vmatprep.subr.mxu0 0.0
    %2607 = vmatpush1.msra.mxu0 %v2537
    %2608 = vmatprep.subr.mxu0 0.0
    %2609 = vmatpush1.msra.mxu0 %v2538
    %2610 = vmatprep.mubr.f32.mxu0 %v2506
    %2611 = vmatmul.mubr.f32.gmra.mrb[0].mxu0 %v2505
    %v2612 = vpop.f32.mrb[0].mxu0
    %v2613 = vadd.f32 %v2544, %v2612
    %v2614 = vpop.f32.mrb[0].mxu0
    %2615 = vdwg.mxu0
    %vm2616 = vcmask 9216
    %v2617 = vsel %vm2616, %v2613, -inf
    %2618 = vmax.xlane.f32.xlu0 %v2617
    %v2619 = vpop.xlane.xlu0 %2618
    %v2620 = vsub.f32 %v2613, %v2619
    %v2621 = vmul.f32 %v2620, 1.442695
    %v2622 = vpow.pop %v2621
    %v2623 = vsel %vm2616, %v2622, 0.0
    %2624 = vadd.xlane.f32.xlu0 %v2623
    %v2625 = vpop.xlane.xlu0 %2624
    %v2626 = vlog2.pop %v2625
    %v2627 = vmul.f32 %v2626, 0.6931472
    %v2628 = vsub.f32 %v2620, %v2627
    %2629 = vst.msk [vmem:[#allocation2] sm:$0x3] %vm2616, %v2628
    // Predicated region
    $region38: #{pointnet_cls_forward.7} parent=1 // pred_check
      _
    $region39: #{pointnet_cls_forward.7} parent=1 // pred_check_branch
      %2631 = sbr.rel (0) target = $region41
    $region40: #{pointnet_cls_forward.7} parent=1 // pred_region
      %s2633 = ssub.s32 32, 32
      %2634 = vsyncadd [#allocation3], %s2633
      %s2636 = sshll.u32 [#allocation2], 4
      %s2637 = int_to_ptr.vmem [resolvable:$true] %s2636
      %2639 = dma.vmem_to_hbm [thread:$0]  %s2637, 32, %s9, [#allocation3]
    $region41: #{pointnet_cls_forward.7} parent=1 // pred_fallthru
      _
    // Predicated region
    $region42: #{pointnet_cls_forward.7} parent=1 // pred_check
      _
    $region43: #{pointnet_cls_forward.7} parent=1 // pred_check_branch
      %2641 = sbr.rel (0) target = $region45
    $region44: #{pointnet_cls_forward.7} parent=1 // pred_region
      %2642 = dma.done [#allocation3], 32
    $region45: #{pointnet_cls_forward.7} parent=1 // pred_fallthru
      _
    %2643 = vsyncpa [#allocation3], 1

</llo_original>
